<compile_context>
chip_gen: v6e
topology: v6e:2x2x1
jax: 0.10.0
libtpu: 0.0.40
codegen_flags: <defaults>
</compile_context>

<pallas_src>
import functools

import jax
import jax.numpy as jnp
from jax.experimental import pallas as pl
from jax.experimental.pallas import tpu as pltpu

LANE = 128  # pad weight output dims to multiples of the TPU lane width


def _round_up(x, m):
    return (x + m - 1) // m * m


def _pad2d(a, rows, cols):
    return jnp.pad(a, ((0, rows - a.shape[0]), (0, cols - a.shape[1])))


# ------------------------------ Pallas kernel ------------------------------ #
def _fused_mlp_kernel(
    ue_ref,    # (TB, E)    bf16  gathered user embeddings
    ie_ref,    # (TB, E)    bf16  gathered item embeddings
    uf_ref,    # (TB, F)    bf16  raw user features
    wf_ref,    # (F, Ep)    bf16  user_feature_mlp Linear weight^T (col padded)
    bf_ref,    # (1, Ep)    f32
    w1u_ref,   # (E, H1p)   bf16  mlp[0] weight^T rows for user_emb
    w1i_ref,   # (E, H1p)   bf16  mlp[0] weight^T rows for item_emb
    w1f_ref,   # (Ep, H1p)  bf16  mlp[0] weight^T rows for user_feat_emb (padded)
    b1_ref,    # (1, H1p)   f32
    w2_ref,    # (H1p, H2p) bf16  mlp.linear_1 weight^T (padded)
    b2_ref,    # (1, H2p)   f32
    w3_ref,    # (1, H2p)   f32   output_layer weight (row vector, padded)
    b3_ref,    # (1,)       f32   output_layer bias (SMEM scalar)
    out_ref,   # (1, TB)    f32   lane-dense output block (batch along lanes)
):
    f32 = jnp.float32
    bf16 = jnp.bfloat16

    # user_feature_mlp: Linear + ReLU (Dropout == identity in eval mode).
    feat = jnp.dot(uf_ref[...], wf_ref[...], preferred_element_type=f32)
    feat = jnp.maximum(feat + bf_ref[...], 0.0)            # (TB, Ep) f32

    # mlp[0] on torch.cat([user_emb, item_emb, user_feat_emb], dim=1) done as
    # three partial matmuls (exact decomposition of the concat) so the wrapper
    # never materializes concatenated / padded activations in HBM.
    h1 = jnp.dot(ue_ref[...], w1u_ref[...], preferred_element_type=f32)
    h1 = h1 + jnp.dot(ie_ref[...], w1i_ref[...], preferred_element_type=f32)
    h1 = h1 + jnp.dot(feat.astype(bf16), w1f_ref[...], preferred_element_type=f32)
    h1 = jnp.maximum(h1 + b1_ref[...], 0.0)                # (TB, H1p) f32

    # mlp.linear_1 + ReLU.
    h2 = jnp.dot(h1.astype(bf16), w2_ref[...], preferred_element_type=f32)
    h2 = jnp.maximum(h2 + b2_ref[...], 0.0)                # (TB, H2p) f32

    # output_layer (H2 -> 1): VPU multiply + XLU cross-lane reduce (no N=1 MXU
    # push); result written lane-dense.  With TB >= 512 this epilogue (one
    # reduce + one relayout) amortizes over the tile.
    row = jnp.sum(h2 * w3_ref[...], axis=-1) + b3_ref[0]   # (TB,)
    out_ref[...] = row.reshape(1, -1).astype(out_ref.dtype)


# ---------------------------- parameter packing ---------------------------- #
def init_params(key, num_users, num_items, user_feature_dim, embedding_dim,
                hidden_dims):
    """Parameters in torch layout (nn.Linear weight is (out, in))."""
    E, F = embedding_dim, user_feature_dim
    H1, H2 = hidden_dims
    ks = jax.random.split(key, 10)
    s = 0.1
    return {
        "user_table": s * jax.random.normal(ks[0], (num_users, E), jnp.float32),
        "item_table": s * jax.random.normal(ks[1], (num_items, E), jnp.float32),
        "feat_w": s * jax.random.normal(ks[2], (E, F), jnp.float32),
        "feat_b": s * jax.random.normal(ks[3], (E,), jnp.float32),
        "mlp0_w": s * jax.random.normal(ks[4], (H1, 3 * E), jnp.float32),
        "mlp0_b": s * jax.random.normal(ks[5], (H1,), jnp.float32),
        "mlp1_w": s * jax.random.normal(ks[6], (H2, H1), jnp.float32),
        "mlp1_b": s * jax.random.normal(ks[7], (H2,), jnp.float32),
        "out_w": s * jax.random.normal(ks[8], (1, H2), jnp.float32),
        "out_b": s * jax.random.normal(ks[9], (1,), jnp.float32),
    }


def pack_params(p):
    """One-time prep: transpose to (in,out), pad output dims to lane multiples,
    bf16 matmul operands, split mlp[0] weight along the concat boundary."""
    E = p["user_table"].shape[1]
    F = p["feat_w"].shape[1]
    H1 = p["mlp0_w"].shape[0]
    H2 = p["mlp1_w"].shape[0]
    Ep, H1p, H2p = _round_up(E, LANE), _round_up(H1, LANE), _round_up(H2, LANE)
    bf16 = jnp.bfloat16

    w1t = p["mlp0_w"].T                                           # (3E, H1)
    return {
        # bf16 tables: the gather then yields bf16 MXU operands directly.
        "user_table": p["user_table"].astype(bf16),               # (U, E)
        "item_table": p["item_table"].astype(bf16),               # (I, E)
        "wf": _pad2d(p["feat_w"].T, F, Ep).astype(bf16),          # (F, Ep)
        "bf": _pad2d(p["feat_b"][None, :], 1, Ep),                # (1, Ep) f32
        "w1u": _pad2d(w1t[:E], E, H1p).astype(bf16),              # (E, H1p)
        "w1i": _pad2d(w1t[E:2 * E], E, H1p).astype(bf16),         # (E, H1p)
        "w1f": _pad2d(w1t[2 * E:], Ep, H1p).astype(bf16),         # (Ep, H1p)
        "b1": _pad2d(p["mlp0_b"][None, :], 1, H1p),               # (1, H1p) f32
        "w2": _pad2d(p["mlp1_w"].T, H1p, H2p).astype(bf16),       # (H1p, H2p)
        "b2": _pad2d(p["mlp1_b"][None, :], 1, H2p),               # (1, H2p) f32
        "w3": _pad2d(p["out_w"], 1, H2p),                         # (1, H2p) f32
        "b3": p["out_b"].astype(jnp.float32),                     # (1,)
    }


def _vmem_limit_bytes(tb, E, Ep, F, H1p, H2p):
    """Scoped-VMEM budget derived from the actual tile sizes (not a blind 32MB)."""
    act_in = 2 * tb * (2 * E + F) * 2                 # double-buffered bf16 tiles
    weights = 2 * ((F * Ep + 2 * E * H1p + Ep * H1p + H1p * H2p) * 2
                   + (Ep + H1p + 2 * H2p) * 4)        # resident (double-buffered)
    interm = tb * (Ep + H1p + H2p) * (4 + 2)          # f32 intermediates + bf16 casts
    out = 2 * tb * 4
    est = act_in + weights + interm + out
    return int(min(max(4 * est, 16 << 20), 96 << 20))


# --------------------------------- forward --------------------------------- #
def hybrid_ncf_forward(pk, user_ids, item_ids, user_features, *, tb=512,
                       semantics=("parallel",)):
    E = pk["user_table"].shape[1]
    F, Ep = pk["wf"].shape
    H1p = pk["w1u"].shape[1]
    H2p = pk["w2"].shape[1]

    B = user_ids.shape[0]
    tb = min(tb, _round_up(B, LANE))      # don't manufacture extra padded rows
    Bp = _round_up(B, tb)
    nt = Bp // tb
    pad = Bp - B

    # Pad the id vectors (index 0 is always valid), so the XLA gathers directly
    # produce batch-padded blocks -- no separate pad copy of the gathered rows.
    uid = jnp.pad(user_ids, (0, pad))
    iid = jnp.pad(item_ids, (0, pad))
    ue = pk["user_table"][uid]                                  # (Bp, E) bf16
    ie = pk["item_table"][iid]                                  # (Bp, E) bf16
    uf = jnp.pad(user_features.astype(jnp.bfloat16), ((0, pad), (0, 0)))  # (Bp,F)

    const = lambda i: (0, 0)   # weights stay resident in VMEM across the grid
    batch = lambda i: (i, 0)

    out = pl.pallas_call(
        _fused_mlp_kernel,
        out_shape=jax.ShapeDtypeStruct((1, Bp), jnp.float32),
        grid=(nt,),
        in_specs=[
            pl.BlockSpec((tb, E), batch),
            pl.BlockSpec((tb, E), batch),
            pl.BlockSpec((tb, F), batch),
            pl.BlockSpec((F, Ep), const),
            pl.BlockSpec((1, Ep), const),
            pl.BlockSpec((E, H1p), const),
            pl.BlockSpec((E, H1p), const),
            pl.BlockSpec((Ep, H1p), const),
            pl.BlockSpec((1, H1p), const),
            pl.BlockSpec((H1p, H2p), const),
            pl.BlockSpec((1, H2p), const),
            pl.BlockSpec((1, H2p), const),
            pl.BlockSpec(memory_space=pltpu.MemorySpace.SMEM),   # b3 scalar
        ],
        out_specs=pl.BlockSpec((1, tb), lambda i: (0, i)),       # lane-dense
        compiler_params=pltpu.CompilerParams(
            dimension_semantics=semantics,
            vmem_limit_bytes=_vmem_limit_bytes(tb, E, Ep, F, H1p, H2p),
        ),
    )(ue, ie, uf, pk["wf"], pk["bf"], pk["w1u"], pk["w1i"], pk["w1f"],
      pk["b1"], pk["w2"], pk["b2"], pk["w3"], pk["b3"])

    # torch: output.squeeze() -> shape (B,)
    return out[0, :B]


# -------------------------------- reference -------------------------------- #
def reference_forward(params, user_ids, item_ids, user_features):
    """Pure-XLA reference applying the same bf16 operand quantization."""
    bf16, f32 = jnp.bfloat16, jnp.float32
    E = params["user_table"].shape[1]
    ue = params["user_table"][user_ids].astype(bf16)
    ie = params["item_table"][item_ids].astype(bf16)

    feat = jnp.dot(user_features.astype(bf16), params["feat_w"].T.astype(bf16),
                   preferred_element_type=f32) + params["feat_b"]
    feat = jnp.maximum(feat, 0.0)

    w1 = params["mlp0_w"].T.astype(bf16)                         # (3E, H1)
    h1 = (jnp.dot(ue, w1[:E], preferred_element_type=f32)
          + jnp.dot(ie, w1[E:2 * E], preferred_element_type=f32)
          + jnp.dot(feat.astype(bf16), w1[2 * E:], preferred_element_type=f32)
          + params["mlp0_b"])
    h1 = jnp.maximum(h1, 0.0)

    h2 = jnp.dot(h1.astype(bf16), params["mlp1_w"].T.astype(bf16),
                 preferred_element_type=f32) + params["mlp1_b"]
    h2 = jnp.maximum(h2, 0.0)
    return jnp.sum(h2 * params["out_w"][0], axis=-1) + params["out_b"][0]


# ----------------------------------- main ----------------------------------- #
if __name__ == "__main__":
    num_users, num_items = 100, 200
    user_feature_dim = 24
    embedding_dim = 50            # torch default
    hidden_dims = [128, 64]       # torch default
    batch = 1000                  # padded to 1024 -> 2 batch tiles of TB=512

    key = jax.random.PRNGKey(0)
    kp, ku, ki, kf = jax.random.split(key, 4)

    params = init_params(kp, num_users, num_items, user_feature_dim,
                         embedding_dim, hidden_dims)
    packed = pack_params(params)

    user_ids = jax.random.randint(ku, (batch,), 0, num_users, dtype=jnp.int32)
    item_ids = jax.random.randint(ki, (batch,), 0, num_items, dtype=jnp.int32)
    user_features = jax.random.normal(kf, (batch, user_feature_dim), jnp.float32)

    ref = reference_forward(params, user_ids, item_ids, user_features)

    def run(semantics):
        f = jax.jit(functools.partial(hybrid_ncf_forward, tb=512,
                                      semantics=semantics))
        return jax.block_until_ready(f(packed, user_ids, item_ids, user_features))

    ok = lambda y: (y.shape == (batch,)
                    and bool(jnp.allclose(y, ref, atol=1e-3, rtol=1e-3)))

    out = None
    # v7x: split batch tiles across both TensorCores. Fall back gracefully on
    # chips / runtimes where CORE_PARALLEL is unsupported (v5e/v6e: single TC).
    if hasattr(pltpu, "CORE_PARALLEL"):
        try:
            cand = run((pltpu.CORE_PARALLEL,))
            if ok(cand):
                out = cand
        except Exception:
            out = None
    if out is None:
        out = run(("parallel",))

    assert out.shape == (batch,)
    assert jnp.allclose(out, ref, atol=1e-3, rtol=1e-3), (
        float(jnp.max(jnp.abs(out - ref))))
    print("KERNEL_OK")
</pallas_src>

<mosaic_0001>
module attributes {stable_mosaic.version = 11 : i64} {
  func.func @_fused_mlp_kernel(%arg0: i32, %arg1: memref<512x50xbf16, #tpu.memory_space<vmem>>, %arg2: memref<512x50xbf16, #tpu.memory_space<vmem>>, %arg3: memref<512x24xbf16, #tpu.memory_space<vmem>>, %arg4: memref<24x128xbf16, #tpu.memory_space<vmem>>, %arg5: memref<1x128xf32, #tpu.memory_space<vmem>>, %arg6: memref<50x128xbf16, #tpu.memory_space<vmem>>, %arg7: memref<50x128xbf16, #tpu.memory_space<vmem>>, %arg8: memref<128x128xbf16, #tpu.memory_space<vmem>>, %arg9: memref<1x128xf32, #tpu.memory_space<vmem>>, %arg10: memref<128x128xbf16, #tpu.memory_space<vmem>>, %arg11: memref<1x128xf32, #tpu.memory_space<vmem>>, %arg12: memref<1x128xf32, #tpu.memory_space<vmem>>, %arg13: memref<1xf32, #tpu.memory_space<smem>>, %arg14: memref<1x512xf32, #tpu.memory_space<vmem>>) attributes {dimension_semantics = [#tpu.dimension_semantics<core_parallel>], iteration_bounds = array<i64: 2>, scalar_prefetch = 0 : i64, scratch_operands = 0 : i64, tpu.core_type = #tpu.core_type<tc>, window_params = [{transform_indices = @transform_0, window_bounds = array<i64: 512, 50>}, {transform_indices = @transform_1, window_bounds = array<i64: 512, 50>}, {transform_indices = @transform_2, window_bounds = array<i64: 512, 24>}, {pipeline_mode = #tpu.pipeline_mode<synchronous>, transform_indices = @transform_3, window_bounds = array<i64: 24, 128>}, {pipeline_mode = #tpu.pipeline_mode<synchronous>, transform_indices = @transform_4, window_bounds = array<i64: 1, 128>}, {pipeline_mode = #tpu.pipeline_mode<synchronous>, transform_indices = @transform_5, window_bounds = array<i64: 50, 128>}, {pipeline_mode = #tpu.pipeline_mode<synchronous>, transform_indices = @transform_6, window_bounds = array<i64: 50, 128>}, {pipeline_mode = #tpu.pipeline_mode<synchronous>, transform_indices = @transform_7, window_bounds = array<i64: 128, 128>}, {pipeline_mode = #tpu.pipeline_mode<synchronous>, transform_indices = @transform_8, window_bounds = array<i64: 1, 128>}, {pipeline_mode = #tpu.pipeline_mode<synchronous>, transform_indices = @transform_9, window_bounds = array<i64: 128, 128>}, {pipeline_mode = #tpu.pipeline_mode<synchronous>, transform_indices = @transform_10, window_bounds = array<i64: 1, 128>}, {pipeline_mode = #tpu.pipeline_mode<synchronous>, transform_indices = @transform_11, window_bounds = array<i64: 1, 128>}, {transform_indices = @transform_12, window_bounds = array<i64: 1>}, {transform_indices = @transform_13, window_bounds = array<i64: 1, 512>}]} {
    %c0 = arith.constant 0 : index
    %c0_0 = arith.constant 0 : index
    %0 = vector.load %arg3[%c0, %c0_0] : memref<512x24xbf16, #tpu.memory_space<vmem>>, vector<512x24xbf16>
    %c0_1 = arith.constant 0 : index
    %c0_2 = arith.constant 0 : index
    %1 = vector.load %arg4[%c0_1, %c0_2] : memref<24x128xbf16, #tpu.memory_space<vmem>>, vector<24x128xbf16>
    %cst = arith.constant dense<0.000000e+00> : vector<512x128xf32>
    %2 = tpu.matmul %0, %1, %cst {dimension_numbers = #tpu.dot_dimension_numbers<[1], [0], [0], [1], [0, 0, 1, 1], [], []>} : vector<512x24xbf16>, vector<24x128xbf16>, vector<512x128xf32> -> vector<512x128xf32>
    %c0_3 = arith.constant 0 : index
    %c0_4 = arith.constant 0 : index
    %3 = vector.load %arg5[%c0_3, %c0_4] : memref<1x128xf32, #tpu.memory_space<vmem>>, vector<1x128xf32>
    %4 = vector.broadcast %3 : vector<1x128xf32> to vector<512x128xf32>
    %5 = arith.addf %2, %4 : vector<512x128xf32>
    %cst_5 = arith.constant 0.000000e+00 : f32
    %6 = vector.broadcast %cst_5 : f32 to vector<512x128xf32>
    %7 = arith.maximumf %5, %6 : vector<512x128xf32>
    %c0_6 = arith.constant 0 : index
    %c0_7 = arith.constant 0 : index
    %8 = vector.load %arg1[%c0_6, %c0_7] : memref<512x50xbf16, #tpu.memory_space<vmem>>, vector<512x50xbf16>
    %c0_8 = arith.constant 0 : index
    %c0_9 = arith.constant 0 : index
    %9 = vector.load %arg6[%c0_8, %c0_9] : memref<50x128xbf16, #tpu.memory_space<vmem>>, vector<50x128xbf16>
    %cst_10 = arith.constant dense<0.000000e+00> : vector<512x128xf32>
    %10 = tpu.matmul %8, %9, %cst_10 {dimension_numbers = #tpu.dot_dimension_numbers<[1], [0], [0], [1], [0, 0, 1, 1], [], []>} : vector<512x50xbf16>, vector<50x128xbf16>, vector<512x128xf32> -> vector<512x128xf32>
    %c0_11 = arith.constant 0 : index
    %c0_12 = arith.constant 0 : index
    %11 = vector.load %arg2[%c0_11, %c0_12] : memref<512x50xbf16, #tpu.memory_space<vmem>>, vector<512x50xbf16>
    %c0_13 = arith.constant 0 : index
    %c0_14 = arith.constant 0 : index
    %12 = vector.load %arg7[%c0_13, %c0_14] : memref<50x128xbf16, #tpu.memory_space<vmem>>, vector<50x128xbf16>
    %cst_15 = arith.constant dense<0.000000e+00> : vector<512x128xf32>
    %13 = tpu.matmul %11, %12, %cst_15 {dimension_numbers = #tpu.dot_dimension_numbers<[1], [0], [0], [1], [0, 0, 1, 1], [], []>} : vector<512x50xbf16>, vector<50x128xbf16>, vector<512x128xf32> -> vector<512x128xf32>
    %14 = arith.addf %10, %13 : vector<512x128xf32>
    %15 = arith.truncf %7 : vector<512x128xf32> to vector<512x128xbf16>
    %c0_16 = arith.constant 0 : index
    %c0_17 = arith.constant 0 : index
    %16 = vector.load %arg8[%c0_16, %c0_17] : memref<128x128xbf16, #tpu.memory_space<vmem>>, vector<128x128xbf16>
    %cst_18 = arith.constant dense<0.000000e+00> : vector<512x128xf32>
    %17 = tpu.matmul %15, %16, %cst_18 {dimension_numbers = #tpu.dot_dimension_numbers<[1], [0], [0], [1], [0, 0, 1, 1], [], []>} : vector<512x128xbf16>, vector<128x128xbf16>, vector<512x128xf32> -> vector<512x128xf32>
    %18 = arith.addf %14, %17 : vector<512x128xf32>
    %c0_19 = arith.constant 0 : index
    %c0_20 = arith.constant 0 : index
    %19 = vector.load %arg9[%c0_19, %c0_20] : memref<1x128xf32, #tpu.memory_space<vmem>>, vector<1x128xf32>
    %20 = vector.broadcast %19 : vector<1x128xf32> to vector<512x128xf32>
    %21 = arith.addf %18, %20 : vector<512x128xf32>
    %cst_21 = arith.constant 0.000000e+00 : f32
    %22 = vector.broadcast %cst_21 : f32 to vector<512x128xf32>
    %23 = arith.maximumf %21, %22 : vector<512x128xf32>
    %24 = arith.truncf %23 : vector<512x128xf32> to vector<512x128xbf16>
    %c0_22 = arith.constant 0 : index
    %c0_23 = arith.constant 0 : index
    %25 = vector.load %arg10[%c0_22, %c0_23] : memref<128x128xbf16, #tpu.memory_space<vmem>>, vector<128x128xbf16>
    %cst_24 = arith.constant dense<0.000000e+00> : vector<512x128xf32>
    %26 = tpu.matmul %24, %25, %cst_24 {dimension_numbers = #tpu.dot_dimension_numbers<[1], [0], [0], [1], [0, 0, 1, 1], [], []>} : vector<512x128xbf16>, vector<128x128xbf16>, vector<512x128xf32> -> vector<512x128xf32>
    %c0_25 = arith.constant 0 : index
    %c0_26 = arith.constant 0 : index
    %27 = vector.load %arg11[%c0_25, %c0_26] : memref<1x128xf32, #tpu.memory_space<vmem>>, vector<1x128xf32>
    %28 = vector.broadcast %27 : vector<1x128xf32> to vector<512x128xf32>
    %29 = arith.addf %26, %28 : vector<512x128xf32>
    %cst_27 = arith.constant 0.000000e+00 : f32
    %30 = vector.broadcast %cst_27 : f32 to vector<512x128xf32>
    %31 = arith.maximumf %29, %30 : vector<512x128xf32>
    %c0_28 = arith.constant 0 : index
    %c0_29 = arith.constant 0 : index
    %32 = vector.load %arg12[%c0_28, %c0_29] : memref<1x128xf32, #tpu.memory_space<vmem>>, vector<1x128xf32>
    %33 = vector.broadcast %32 : vector<1x128xf32> to vector<512x128xf32>
    %34 = arith.mulf %31, %33 : vector<512x128xf32>
    %cst_30 = arith.constant dense<0.000000e+00> : vector<512xf32>
    %35 = vector.multi_reduction <add>, %34, %cst_30 [1] : vector<512x128xf32> to vector<512xf32>
    %c0_31 = arith.constant 0 : index
    %36 = memref.load %arg13[%c0_31] : memref<1xf32, #tpu.memory_space<smem>>
    %37 = vector.broadcast %36 : f32 to vector<512xf32>
    %38 = arith.addf %35, %37 : vector<512xf32>
    %39 = vector.shape_cast %38 : vector<512xf32> to vector<1x512xf32>
    %c0_32 = arith.constant 0 : index
    %c0_33 = arith.constant 0 : index
    %40 = vector.load %arg14[%c0_32, %c0_33] : memref<1x512xf32, #tpu.memory_space<vmem>>, vector<1x512xf32>
    tpu.vector_store %arg14[%c0_32, %c0_33], %39 {strides = array<i32>} : memref<1x512xf32, #tpu.memory_space<vmem>>, vector<1x512xf32>,
    return
  }
  func.func @transform_0(%arg0: i32) -> (i32, i32) {
    %c0_i32 = arith.constant 0 : i32
    %c0_i32_0 = arith.constant 0 : i32
    return %arg0, %c0_i32 : i32, i32
  }
  func.func @transform_1(%arg0: i32) -> (i32, i32) {
    %c0_i32 = arith.constant 0 : i32
    %c0_i32_0 = arith.constant 0 : i32
    return %arg0, %c0_i32 : i32, i32
  }
  func.func @transform_2(%arg0: i32) -> (i32, i32) {
    %c0_i32 = arith.constant 0 : i32
    %c0_i32_0 = arith.constant 0 : i32
    return %arg0, %c0_i32 : i32, i32
  }
  func.func @transform_3(%arg0: i32) -> (i32, i32) {
    %c0_i32 = arith.constant 0 : i32
    %c0_i32_0 = arith.constant 0 : i32
    %c0_i32_1 = arith.constant 0 : i32
    return %c0_i32, %c0_i32_0 : i32, i32
  }
  func.func @transform_4(%arg0: i32) -> (i32, i32) {
    %c0_i32 = arith.constant 0 : i32
    %c0_i32_0 = arith.constant 0 : i32
    %c0_i32_1 = arith.constant 0 : i32
    return %c0_i32, %c0_i32_0 : i32, i32
  }
  func.func @transform_5(%arg0: i32) -> (i32, i32) {
    %c0_i32 = arith.constant 0 : i32
    %c0_i32_0 = arith.constant 0 : i32
    %c0_i32_1 = arith.constant 0 : i32
    return %c0_i32, %c0_i32_0 : i32, i32
  }
  func.func @transform_6(%arg0: i32) -> (i32, i32) {
    %c0_i32 = arith.constant 0 : i32
    %c0_i32_0 = arith.constant 0 : i32
    %c0_i32_1 = arith.constant 0 : i32
    return %c0_i32, %c0_i32_0 : i32, i32
  }
  func.func @transform_7(%arg0: i32) -> (i32, i32) {
    %c0_i32 = arith.constant 0 : i32
    %c0_i32_0 = arith.constant 0 : i32
    %c0_i32_1 = arith.constant 0 : i32
    return %c0_i32, %c0_i32_0 : i32, i32
  }
  func.func @transform_8(%arg0: i32) -> (i32, i32) {
    %c0_i32 = arith.constant 0 : i32
    %c0_i32_0 = arith.constant 0 : i32
    %c0_i32_1 = arith.constant 0 : i32
    return %c0_i32, %c0_i32_0 : i32, i32
  }
  func.func @transform_9(%arg0: i32) -> (i32, i32) {
    %c0_i32 = arith.constant 0 : i32
    %c0_i32_0 = arith.constant 0 : i32
    %c0_i32_1 = arith.constant 0 : i32
    return %c0_i32, %c0_i32_0 : i32, i32
  }
  func.func @transform_10(%arg0: i32) -> (i32, i32) {
    %c0_i32 = arith.constant 0 : i32
    %c0_i32_0 = arith.constant 0 : i32
    %c0_i32_1 = arith.constant 0 : i32
    return %c0_i32, %c0_i32_0 : i32, i32
  }
  func.func @transform_11(%arg0: i32) -> (i32, i32) {
    %c0_i32 = arith.constant 0 : i32
    %c0_i32_0 = arith.constant 0 : i32
    %c0_i32_1 = arith.constant 0 : i32
    return %c0_i32, %c0_i32_0 : i32, i32
  }
  func.func @transform_12(%arg0: i32) -> i32 {
    %c0_i32 = arith.constant 0 : i32
    %c0_i32_0 = arith.constant 0 : i32
    return %c0_i32 : i32
  }
  func.func @transform_13(%arg0: i32) -> (i32, i32) {
    %c0_i32 = arith.constant 0 : i32
    %c0_i32_0 = arith.constant 0 : i32
    return %c0_i32, %arg0 : i32, i32
  }
}

module attributes {stable_mosaic.version = 11 : i64} {
  func.func @_fused_mlp_kernel(%arg0: i32, %arg1: memref<512x50xbf16, #tpu.memory_space<vmem>>, %arg2: memref<512x50xbf16, #tpu.memory_space<vmem>>, %arg3: memref<512x24xbf16, #tpu.memory_space<vmem>>, %arg4: memref<24x128xbf16, #tpu.memory_space<vmem>>, %arg5: memref<1x128xf32, #tpu.memory_space<vmem>>, %arg6: memref<50x128xbf16, #tpu.memory_space<vmem>>, %arg7: memref<50x128xbf16, #tpu.memory_space<vmem>>, %arg8: memref<128x128xbf16, #tpu.memory_space<vmem>>, %arg9: memref<1x128xf32, #tpu.memory_space<vmem>>, %arg10: memref<128x128xbf16, #tpu.memory_space<vmem>>, %arg11: memref<1x128xf32, #tpu.memory_space<vmem>>, %arg12: memref<1x128xf32, #tpu.memory_space<vmem>>, %arg13: memref<1xf32, #tpu.memory_space<smem>>, %arg14: memref<1x512xf32, #tpu.memory_space<vmem>>) attributes {dimension_semantics = [#tpu.dimension_semantics<parallel>], iteration_bounds = array<i64: 2>, scalar_prefetch = 0 : i64, scratch_operands = 0 : i64, tpu.core_type = #tpu.core_type<tc>, window_params = [{transform_indices = @transform_0, window_bounds = array<i64: 512, 50>}, {transform_indices = @transform_1, window_bounds = array<i64: 512, 50>}, {transform_indices = @transform_2, window_bounds = array<i64: 512, 24>}, {pipeline_mode = #tpu.pipeline_mode<synchronous>, transform_indices = @transform_3, window_bounds = array<i64: 24, 128>}, {pipeline_mode = #tpu.pipeline_mode<synchronous>, transform_indices = @transform_4, window_bounds = array<i64: 1, 128>}, {pipeline_mode = #tpu.pipeline_mode<synchronous>, transform_indices = @transform_5, window_bounds = array<i64: 50, 128>}, {pipeline_mode = #tpu.pipeline_mode<synchronous>, transform_indices = @transform_6, window_bounds = array<i64: 50, 128>}, {pipeline_mode = #tpu.pipeline_mode<synchronous>, transform_indices = @transform_7, window_bounds = array<i64: 128, 128>}, {pipeline_mode = #tpu.pipeline_mode<synchronous>, transform_indices = @transform_8, window_bounds = array<i64: 1, 128>}, {pipeline_mode = #tpu.pipeline_mode<synchronous>, transform_indices = @transform_9, window_bounds = array<i64: 128, 128>}, {pipeline_mode = #tpu.pipeline_mode<synchronous>, transform_indices = @transform_10, window_bounds = array<i64: 1, 128>}, {pipeline_mode = #tpu.pipeline_mode<synchronous>, transform_indices = @transform_11, window_bounds = array<i64: 1, 128>}, {transform_indices = @transform_12, window_bounds = array<i64: 1>}, {transform_indices = @transform_13, window_bounds = array<i64: 1, 512>}]} {
    %c0 = arith.constant 0 : index
    %c0_0 = arith.constant 0 : index
    %0 = vector.load %arg3[%c0, %c0_0] : memref<512x24xbf16, #tpu.memory_space<vmem>>, vector<512x24xbf16>
    %c0_1 = arith.constant 0 : index
    %c0_2 = arith.constant 0 : index
    %1 = vector.load %arg4[%c0_1, %c0_2] : memref<24x128xbf16, #tpu.memory_space<vmem>>, vector<24x128xbf16>
    %cst = arith.constant dense<0.000000e+00> : vector<512x128xf32>
    %2 = tpu.matmul %0, %1, %cst {dimension_numbers = #tpu.dot_dimension_numbers<[1], [0], [0], [1], [0, 0, 1, 1], [], []>} : vector<512x24xbf16>, vector<24x128xbf16>, vector<512x128xf32> -> vector<512x128xf32>
    %c0_3 = arith.constant 0 : index
    %c0_4 = arith.constant 0 : index
    %3 = vector.load %arg5[%c0_3, %c0_4] : memref<1x128xf32, #tpu.memory_space<vmem>>, vector<1x128xf32>
    %4 = vector.broadcast %3 : vector<1x128xf32> to vector<512x128xf32>
    %5 = arith.addf %2, %4 : vector<512x128xf32>
    %cst_5 = arith.constant 0.000000e+00 : f32
    %6 = vector.broadcast %cst_5 : f32 to vector<512x128xf32>
    %7 = arith.maximumf %5, %6 : vector<512x128xf32>
    %c0_6 = arith.constant 0 : index
    %c0_7 = arith.constant 0 : index
    %8 = vector.load %arg1[%c0_6, %c0_7] : memref<512x50xbf16, #tpu.memory_space<vmem>>, vector<512x50xbf16>
    %c0_8 = arith.constant 0 : index
    %c0_9 = arith.constant 0 : index
    %9 = vector.load %arg6[%c0_8, %c0_9] : memref<50x128xbf16, #tpu.memory_space<vmem>>, vector<50x128xbf16>
    %cst_10 = arith.constant dense<0.000000e+00> : vector<512x128xf32>
    %10 = tpu.matmul %8, %9, %cst_10 {dimension_numbers = #tpu.dot_dimension_numbers<[1], [0], [0], [1], [0, 0, 1, 1], [], []>} : vector<512x50xbf16>, vector<50x128xbf16>, vector<512x128xf32> -> vector<512x128xf32>
    %c0_11 = arith.constant 0 : index
    %c0_12 = arith.constant 0 : index
    %11 = vector.load %arg2[%c0_11, %c0_12] : memref<512x50xbf16, #tpu.memory_space<vmem>>, vector<512x50xbf16>
    %c0_13 = arith.constant 0 : index
    %c0_14 = arith.constant 0 : index
    %12 = vector.load %arg7[%c0_13, %c0_14] : memref<50x128xbf16, #tpu.memory_space<vmem>>, vector<50x128xbf16>
    %cst_15 = arith.constant dense<0.000000e+00> : vector<512x128xf32>
    %13 = tpu.matmul %11, %12, %cst_15 {dimension_numbers = #tpu.dot_dimension_numbers<[1], [0], [0], [1], [0, 0, 1, 1], [], []>} : vector<512x50xbf16>, vector<50x128xbf16>, vector<512x128xf32> -> vector<512x128xf32>
    %14 = arith.addf %10, %13 : vector<512x128xf32>
    %15 = arith.truncf %7 : vector<512x128xf32> to vector<512x128xbf16>
    %c0_16 = arith.constant 0 : index
    %c0_17 = arith.constant 0 : index
    %16 = vector.load %arg8[%c0_16, %c0_17] : memref<128x128xbf16, #tpu.memory_space<vmem>>, vector<128x128xbf16>
    %cst_18 = arith.constant dense<0.000000e+00> : vector<512x128xf32>
    %17 = tpu.matmul %15, %16, %cst_18 {dimension_numbers = #tpu.dot_dimension_numbers<[1], [0], [0], [1], [0, 0, 1, 1], [], []>} : vector<512x128xbf16>, vector<128x128xbf16>, vector<512x128xf32> -> vector<512x128xf32>
    %18 = arith.addf %14, %17 : vector<512x128xf32>
    %c0_19 = arith.constant 0 : index
    %c0_20 = arith.constant 0 : index
    %19 = vector.load %arg9[%c0_19, %c0_20] : memref<1x128xf32, #tpu.memory_space<vmem>>, vector<1x128xf32>
    %20 = vector.broadcast %19 : vector<1x128xf32> to vector<512x128xf32>
    %21 = arith.addf %18, %20 : vector<512x128xf32>
    %cst_21 = arith.constant 0.000000e+00 : f32
    %22 = vector.broadcast %cst_21 : f32 to vector<512x128xf32>
    %23 = arith.maximumf %21, %22 : vector<512x128xf32>
    %24 = arith.truncf %23 : vector<512x128xf32> to vector<512x128xbf16>
    %c0_22 = arith.constant 0 : index
    %c0_23 = arith.constant 0 : index
    %25 = vector.load %arg10[%c0_22, %c0_23] : memref<128x128xbf16, #tpu.memory_space<vmem>>, vector<128x128xbf16>
    %cst_24 = arith.constant dense<0.000000e+00> : vector<512x128xf32>
    %26 = tpu.matmul %24, %25, %cst_24 {dimension_numbers = #tpu.dot_dimension_numbers<[1], [0], [0], [1], [0, 0, 1, 1], [], []>} : vector<512x128xbf16>, vector<128x128xbf16>, vector<512x128xf32> -> vector<512x128xf32>
    %c0_25 = arith.constant 0 : index
    %c0_26 = arith.constant 0 : index
    %27 = vector.load %arg11[%c0_25, %c0_26] : memref<1x128xf32, #tpu.memory_space<vmem>>, vector<1x128xf32>
    %28 = vector.broadcast %27 : vector<1x128xf32> to vector<512x128xf32>
    %29 = arith.addf %26, %28 : vector<512x128xf32>
    %cst_27 = arith.constant 0.000000e+00 : f32
    %30 = vector.broadcast %cst_27 : f32 to vector<512x128xf32>
    %31 = arith.maximumf %29, %30 : vector<512x128xf32>
    %c0_28 = arith.constant 0 : index
    %c0_29 = arith.constant 0 : index
    %32 = vector.load %arg12[%c0_28, %c0_29] : memref<1x128xf32, #tpu.memory_space<vmem>>, vector<1x128xf32>
    %33 = vector.broadcast %32 : vector<1x128xf32> to vector<512x128xf32>
    %34 = arith.mulf %31, %33 : vector<512x128xf32>
    %cst_30 = arith.constant dense<0.000000e+00> : vector<512xf32>
    %35 = vector.multi_reduction <add>, %34, %cst_30 [1] : vector<512x128xf32> to vector<512xf32>
    %c0_31 = arith.constant 0 : index
    %36 = memref.load %arg13[%c0_31] : memref<1xf32, #tpu.memory_space<smem>>
    %37 = vector.broadcast %36 : f32 to vector<512xf32>
    %38 = arith.addf %35, %37 : vector<512xf32>
    %39 = vector.shape_cast %38 : vector<512xf32> to vector<1x512xf32>
    %c0_32 = arith.constant 0 : index
    %c0_33 = arith.constant 0 : index
    %40 = vector.load %arg14[%c0_32, %c0_33] : memref<1x512xf32, #tpu.memory_space<vmem>>, vector<1x512xf32>
    tpu.vector_store %arg14[%c0_32, %c0_33], %39 {strides = array<i32>} : memref<1x512xf32, #tpu.memory_space<vmem>>, vector<1x512xf32>,
    return
  }
  func.func @transform_0(%arg0: i32) -> (i32, i32) {
    %c0_i32 = arith.constant 0 : i32
    %c0_i32_0 = arith.constant 0 : i32
    return %arg0, %c0_i32 : i32, i32
  }
  func.func @transform_1(%arg0: i32) -> (i32, i32) {
    %c0_i32 = arith.constant 0 : i32
    %c0_i32_0 = arith.constant 0 : i32
    return %arg0, %c0_i32 : i32, i32
  }
  func.func @transform_2(%arg0: i32) -> (i32, i32) {
    %c0_i32 = arith.constant 0 : i32
    %c0_i32_0 = arith.constant 0 : i32
    return %arg0, %c0_i32 : i32, i32
  }
  func.func @transform_3(%arg0: i32) -> (i32, i32) {
    %c0_i32 = arith.constant 0 : i32
    %c0_i32_0 = arith.constant 0 : i32
    %c0_i32_1 = arith.constant 0 : i32
    return %c0_i32, %c0_i32_0 : i32, i32
  }
  func.func @transform_4(%arg0: i32) -> (i32, i32) {
    %c0_i32 = arith.constant 0 : i32
    %c0_i32_0 = arith.constant 0 : i32
    %c0_i32_1 = arith.constant 0 : i32
    return %c0_i32, %c0_i32_0 : i32, i32
  }
  func.func @transform_5(%arg0: i32) -> (i32, i32) {
    %c0_i32 = arith.constant 0 : i32
    %c0_i32_0 = arith.constant 0 : i32
    %c0_i32_1 = arith.constant 0 : i32
    return %c0_i32, %c0_i32_0 : i32, i32
  }
  func.func @transform_6(%arg0: i32) -> (i32, i32) {
    %c0_i32 = arith.constant 0 : i32
    %c0_i32_0 = arith.constant 0 : i32
    %c0_i32_1 = arith.constant 0 : i32
    return %c0_i32, %c0_i32_0 : i32, i32
  }
  func.func @transform_7(%arg0: i32) -> (i32, i32) {
    %c0_i32 = arith.constant 0 : i32
    %c0_i32_0 = arith.constant 0 : i32
    %c0_i32_1 = arith.constant 0 : i32
    return %c0_i32, %c0_i32_0 : i32, i32
  }
  func.func @transform_8(%arg0: i32) -> (i32, i32) {
    %c0_i32 = arith.constant 0 : i32
    %c0_i32_0 = arith.constant 0 : i32
    %c0_i32_1 = arith.constant 0 : i32
    return %c0_i32, %c0_i32_0 : i32, i32
  }
  func.func @transform_9(%arg0: i32) -> (i32, i32) {
    %c0_i32 = arith.constant 0 : i32
    %c0_i32_0 = arith.constant 0 : i32
    %c0_i32_1 = arith.constant 0 : i32
    return %c0_i32, %c0_i32_0 : i32, i32
  }
  func.func @transform_10(%arg0: i32) -> (i32, i32) {
    %c0_i32 = arith.constant 0 : i32
    %c0_i32_0 = arith.constant 0 : i32
    %c0_i32_1 = arith.constant 0 : i32
    return %c0_i32, %c0_i32_0 : i32, i32
  }
  func.func @transform_11(%arg0: i32) -> (i32, i32) {
    %c0_i32 = arith.constant 0 : i32
    %c0_i32_0 = arith.constant 0 : i32
    %c0_i32_1 = arith.constant 0 : i32
    return %c0_i32, %c0_i32_0 : i32, i32
  }
  func.func @transform_12(%arg0: i32) -> i32 {
    %c0_i32 = arith.constant 0 : i32
    %c0_i32_0 = arith.constant 0 : i32
    return %c0_i32 : i32
  }
  func.func @transform_13(%arg0: i32) -> (i32, i32) {
    %c0_i32 = arith.constant 0 : i32
    %c0_i32_0 = arith.constant 0 : i32
    return %c0_i32, %arg0 : i32, i32
  }
}

</mosaic_0001>

<llo_original>
// kernel: hybrid_ncf_forward.1
$region0: #{hybrid_ncf_forward.1}
  #allocation0 [shape = 'u32[]', space=smem, size = 0x4, offset = 0x4, fixed_abs, tag = 'smem constant byte address 0x4 - core index']
  #allocation1 [shape = 'u32[144,128]{1,0:T(1,128)}', space=vmem, size = 0x12000, scoped, tag = 'internal scratch']
  #allocation2 [shape = 'f32[1]{0:T(128)S(6)}', space=smem, size = 0x200, scoped, tag = 'scoped memory for hybrid_ncf_forward.1']
  %s0 = inlined_call_operand.vmem [shape: bf16[1024,50], index: 0, kind: input, shape index: {}]
  %s1 = inlined_call_operand.vmem [shape: bf16[1024,50], index: 1, kind: input, shape index: {}]
  %s2 = inlined_call_operand.vmem [shape: bf16[1024,24], index: 2, kind: input, shape index: {}]
  %s3 = inlined_call_operand.vmem [shape: bf16[24,128], index: 3, kind: input, shape index: {}]
  %s4 = inlined_call_operand.vmem [shape: f32[1,128], index: 4, kind: input, shape index: {}]
  %s5 = inlined_call_operand.vmem [shape: bf16[50,128], index: 5, kind: input, shape index: {}]
  %s6 = inlined_call_operand.vmem [shape: bf16[50,128], index: 6, kind: input, shape index: {}]
  %s7 = inlined_call_operand.vmem [shape: bf16[128,128], index: 7, kind: input, shape index: {}]
  %s8 = inlined_call_operand.vmem [shape: f32[1,128], index: 8, kind: input, shape index: {}]
  %s9 = inlined_call_operand.vmem [shape: bf16[128,128], index: 9, kind: input, shape index: {}]
  %s10 = inlined_call_operand.vmem [shape: f32[1,128], index: 10, kind: input, shape index: {}]
  %s11 = inlined_call_operand.vmem [shape: f32[1,128], index: 11, kind: input, shape index: {}]
  %s12 = inlined_call_operand.<no memory space> [shape: f32[1], index: 12, kind: input, shape index: {}]
  %s13 = inlined_call_operand.hbm [shape: f32[1,1024], index: 13, kind: output, shape index: {}]
  %s14 = sld [smem:[#allocation0]]
  $region85: #{hybrid_ncf_forward.1} parent=0
    _
  %s16 = ssub.s32 1, %s14
  %s17 = scalar_select 0, %s16, %s14
  %18 = sst [smem:[#allocation2]] %s12
  $region1: #{hybrid_ncf_forward.1} parent=0
    #allocation3 [shape = 'u8[4096]{0}', space=vmem, size = 0x1000, scoped, tag = 'output window, operand 0']
    #allocation4 [shape = 's32[2]{0}', space=sflag, size = 0x8, scoped, tag = 'scoped memory for hybrid_ncf_forward.1']
    %19 = vsyncpa [#allocation4], 0
    %s20 = scalar_lea.sflag [#allocation4], 1
    %21 = vsyncpa %s20, 0
    loop: start=0, step=1, limit=4
    $region2: #{hybrid_ncf_forward.1} parent=1 // loop_pre_header
      _
    $region3: #{hybrid_ncf_forward.1} parent=1 // loop_header
      %s23 = sphi 0, %s27
      %p24 = scmp.ge.s32.totalorder %s23, 4
      %s33 = sphi 0, %s35
      %s36 = sphi 0, %s33
      %s37 = sphi 0, %s36
      %s53 = sphi 0, %s37
      %s59 = sphi 0, %s61
      %s62 = sphi 0, %s59
      %s63 = sphi 0, %s62
      %s79 = sphi 0, %s63
      %s85 = sphi 0, %s87
      %s88 = sphi 0, %s85
      %s89 = sphi 0, %s88
      %s105 = sphi 0, %s89
      %s109 = sphi 0, %s109
      %s111 = sphi 0, %s109
      %s112 = sphi 0, %s111
      %s126 = sphi 0, %s112
      %s130 = sphi 0, %s130
      %s132 = sphi 0, %s130
      %s133 = sphi 0, %s132
      %s147 = sphi 0, %s133
      %s151 = sphi 0, %s151
      %s153 = sphi 0, %s151
      %s154 = sphi 0, %s153
      %s168 = sphi 0, %s154
      %s172 = sphi 0, %s172
      %s174 = sphi 0, %s172
      %s175 = sphi 0, %s174
      %s189 = sphi 0, %s175
      %s193 = sphi 0, %s193
      %s195 = sphi 0, %s193
      %s196 = sphi 0, %s195
      %s210 = sphi 0, %s196
      %s214 = sphi 0, %s214
      %s216 = sphi 0, %s214
      %s217 = sphi 0, %s216
      %s231 = sphi 0, %s217
      %s235 = sphi 0, %s235
      %s237 = sphi 0, %s235
      %s238 = sphi 0, %s237
      %s252 = sphi 0, %s238
      %s256 = sphi 0, %s256
      %s258 = sphi 0, %s256
      %s259 = sphi 0, %s258
      %s273 = sphi 0, %s259
      %s277 = sphi 0, %s277
      %s279 = sphi 0, %s277
      %s280 = sphi 0, %s279
      %s294 = sphi 0, %s280
      %s298 = sphi 0, %s298
      %s300 = sphi 0, %s298
      %s301 = sphi 0, %s300
      %s315 = sphi 0, %s301
      %s321 = sphi 0, %s323
      %s324 = sphi 0, %s321
      %s325 = sphi 0, %s324
      %s341 = sphi 0, %s325
    $region4: #{hybrid_ncf_forward.1} parent=1 // loop_header_branch
      %26 = sbr.rel (%p24) target = $region8
    $region5: #{hybrid_ncf_forward.1} parent=1 // loop_body
      %s28 = ssub.s32 %s23, 1
      %s29 = ssub.s32 %s23, 2
      %s30 = sadd.s32 %s23, 1
      %s31 = ssub.s32 %s23, %s30
      %p32 = scmp.eq.s32.totalorder %s31, 0
      %s34 = sadd.s32 %s33, 1
      %s35 = scalar_select %p32, %s33, %s34
      %p38 = pneg %p32
      %p39 = scmp.eq.s32.totalorder %s23, 1
      %p40 = por %p38, %p39
      %p41 = scmp.ne.s32.totalorder %s33, %s36
      %p42 = scmp.eq.s32.totalorder %s23, 0
      %p43 = por %p41, %p42
      %p44 = scmp.ne.s32.totalorder %s33, %s36
      %p45 = scmp.eq.s32.totalorder %s28, 1
      %p46 = por %p44, %p45
      %p47 = scmp.ne.s32.totalorder %s36, %s37
      %p48 = scmp.eq.s32.totalorder %s28, 0
      %p49 = por %p47, %p48
      %p50 = scmp.ne.s32.totalorder %s36, %s37
      %p51 = scmp.eq.s32.totalorder %s29, 1
      %p52 = por %p50, %p51
      %p54 = scmp.ne.s32.totalorder %s37, %s53
      %p55 = scmp.eq.s32.totalorder %s29, 0
      %p56 = por %p54, %p55
      %s57 = ssub.s32 %s23, %s30
      %p58 = scmp.eq.s32.totalorder %s57, 0
      %s60 = sadd.s32 %s59, 1
      %s61 = scalar_select %p58, %s59, %s60
      %p64 = pneg %p58
      %p65 = scmp.eq.s32.totalorder %s23, 1
      %p66 = por %p64, %p65
      %p67 = scmp.ne.s32.totalorder %s59, %s62
      %p68 = scmp.eq.s32.totalorder %s23, 0
      %p69 = por %p67, %p68
      %p70 = scmp.ne.s32.totalorder %s59, %s62
      %p71 = scmp.eq.s32.totalorder %s28, 1
      %p72 = por %p70, %p71
      %p73 = scmp.ne.s32.totalorder %s62, %s63
      %p74 = scmp.eq.s32.totalorder %s28, 0
      %p75 = por %p73, %p74
      %p76 = scmp.ne.s32.totalorder %s62, %s63
      %p77 = scmp.eq.s32.totalorder %s29, 1
      %p78 = por %p76, %p77
      %p80 = scmp.ne.s32.totalorder %s63, %s79
      %p81 = scmp.eq.s32.totalorder %s29, 0
      %p82 = por %p80, %p81
      %s83 = ssub.s32 %s23, %s30
      %p84 = scmp.eq.s32.totalorder %s83, 0
      %s86 = sadd.s32 %s85, 1
      %s87 = scalar_select %p84, %s85, %s86
      %p90 = pneg %p84
      %p91 = scmp.eq.s32.totalorder %s23, 1
      %p92 = por %p90, %p91
      %p93 = scmp.ne.s32.totalorder %s85, %s88
      %p94 = scmp.eq.s32.totalorder %s23, 0
      %p95 = por %p93, %p94
      %p96 = scmp.ne.s32.totalorder %s85, %s88
      %p97 = scmp.eq.s32.totalorder %s28, 1
      %p98 = por %p96, %p97
      %p99 = scmp.ne.s32.totalorder %s88, %s89
      %p100 = scmp.eq.s32.totalorder %s28, 0
      %p101 = por %p99, %p100
      %p102 = scmp.ne.s32.totalorder %s88, %s89
      %p103 = scmp.eq.s32.totalorder %s29, 1
      %p104 = por %p102, %p103
      %p106 = scmp.ne.s32.totalorder %s89, %s105
      %p107 = scmp.eq.s32.totalorder %s29, 0
      %p108 = por %p106, %p107
      %s110 = sadd.s32 %s109, 1
      %p113 = scmp.eq.s32.totalorder %s23, 1
      %p114 = scmp.ne.s32.totalorder %s109, %s111
      %p115 = scmp.eq.s32.totalorder %s23, 0
      %p116 = por %p114, %p115
      %p117 = scmp.ne.s32.totalorder %s109, %s111
      %p118 = scmp.eq.s32.totalorder %s28, 1
      %p119 = por %p117, %p118
      %p120 = scmp.ne.s32.totalorder %s111, %s112
      %p121 = scmp.eq.s32.totalorder %s28, 0
      %p122 = por %p120, %p121
      %p123 = scmp.ne.s32.totalorder %s111, %s112
      %p124 = scmp.eq.s32.totalorder %s29, 1
      %p125 = por %p123, %p124
      %p127 = scmp.ne.s32.totalorder %s112, %s126
      %p128 = scmp.eq.s32.totalorder %s29, 0
      %p129 = por %p127, %p128
      %s131 = sadd.s32 %s130, 1
      %p134 = scmp.eq.s32.totalorder %s23, 1
      %p135 = scmp.ne.s32.totalorder %s130, %s132
      %p136 = scmp.eq.s32.totalorder %s23, 0
      %p137 = por %p135, %p136
      %p138 = scmp.ne.s32.totalorder %s130, %s132
      %p139 = scmp.eq.s32.totalorder %s28, 1
      %p140 = por %p138, %p139
      %p141 = scmp.ne.s32.totalorder %s132, %s133
      %p142 = scmp.eq.s32.totalorder %s28, 0
      %p143 = por %p141, %p142
      %p144 = scmp.ne.s32.totalorder %s132, %s133
      %p145 = scmp.eq.s32.totalorder %s29, 1
      %p146 = por %p144, %p145
      %p148 = scmp.ne.s32.totalorder %s133, %s147
      %p149 = scmp.eq.s32.totalorder %s29, 0
      %p150 = por %p148, %p149
      %s152 = sadd.s32 %s151, 1
      %p155 = scmp.eq.s32.totalorder %s23, 1
      %p156 = scmp.ne.s32.totalorder %s151, %s153
      %p157 = scmp.eq.s32.totalorder %s23, 0
      %p158 = por %p156, %p157
      %p159 = scmp.ne.s32.totalorder %s151, %s153
      %p160 = scmp.eq.s32.totalorder %s28, 1
      %p161 = por %p159, %p160
      %p162 = scmp.ne.s32.totalorder %s153, %s154
      %p163 = scmp.eq.s32.totalorder %s28, 0
      %p164 = por %p162, %p163
      %p165 = scmp.ne.s32.totalorder %s153, %s154
      %p166 = scmp.eq.s32.totalorder %s29, 1
      %p167 = por %p165, %p166
      %p169 = scmp.ne.s32.totalorder %s154, %s168
      %p170 = scmp.eq.s32.totalorder %s29, 0
      %p171 = por %p169, %p170
      %s173 = sadd.s32 %s172, 1
      %p176 = scmp.eq.s32.totalorder %s23, 1
      %p177 = scmp.ne.s32.totalorder %s172, %s174
      %p178 = scmp.eq.s32.totalorder %s23, 0
      %p179 = por %p177, %p178
      %p180 = scmp.ne.s32.totalorder %s172, %s174
      %p181 = scmp.eq.s32.totalorder %s28, 1
      %p182 = por %p180, %p181
      %p183 = scmp.ne.s32.totalorder %s174, %s175
      %p184 = scmp.eq.s32.totalorder %s28, 0
      %p185 = por %p183, %p184
      %p186 = scmp.ne.s32.totalorder %s174, %s175
      %p187 = scmp.eq.s32.totalorder %s29, 1
      %p188 = por %p186, %p187
      %p190 = scmp.ne.s32.totalorder %s175, %s189
      %p191 = scmp.eq.s32.totalorder %s29, 0
      %p192 = por %p190, %p191
      %s194 = sadd.s32 %s193, 1
      %p197 = scmp.eq.s32.totalorder %s23, 1
      %p198 = scmp.ne.s32.totalorder %s193, %s195
      %p199 = scmp.eq.s32.totalorder %s23, 0
      %p200 = por %p198, %p199
      %p201 = scmp.ne.s32.totalorder %s193, %s195
      %p202 = scmp.eq.s32.totalorder %s28, 1
      %p203 = por %p201, %p202
      %p204 = scmp.ne.s32.totalorder %s195, %s196
      %p205 = scmp.eq.s32.totalorder %s28, 0
      %p206 = por %p204, %p205
      %p207 = scmp.ne.s32.totalorder %s195, %s196
      %p208 = scmp.eq.s32.totalorder %s29, 1
      %p209 = por %p207, %p208
      %p211 = scmp.ne.s32.totalorder %s196, %s210
      %p212 = scmp.eq.s32.totalorder %s29, 0
      %p213 = por %p211, %p212
      %s215 = sadd.s32 %s214, 1
      %p218 = scmp.eq.s32.totalorder %s23, 1
      %p219 = scmp.ne.s32.totalorder %s214, %s216
      %p220 = scmp.eq.s32.totalorder %s23, 0
      %p221 = por %p219, %p220
      %p222 = scmp.ne.s32.totalorder %s214, %s216
      %p223 = scmp.eq.s32.totalorder %s28, 1
      %p224 = por %p222, %p223
      %p225 = scmp.ne.s32.totalorder %s216, %s217
      %p226 = scmp.eq.s32.totalorder %s28, 0
      %p227 = por %p225, %p226
      %p228 = scmp.ne.s32.totalorder %s216, %s217
      %p229 = scmp.eq.s32.totalorder %s29, 1
      %p230 = por %p228, %p229
      %p232 = scmp.ne.s32.totalorder %s217, %s231
      %p233 = scmp.eq.s32.totalorder %s29, 0
      %p234 = por %p232, %p233
      %s236 = sadd.s32 %s235, 1
      %p239 = scmp.eq.s32.totalorder %s23, 1
      %p240 = scmp.ne.s32.totalorder %s235, %s237
      %p241 = scmp.eq.s32.totalorder %s23, 0
      %p242 = por %p240, %p241
      %p243 = scmp.ne.s32.totalorder %s235, %s237
      %p244 = scmp.eq.s32.totalorder %s28, 1
      %p245 = por %p243, %p244
      %p246 = scmp.ne.s32.totalorder %s237, %s238
      %p247 = scmp.eq.s32.totalorder %s28, 0
      %p248 = por %p246, %p247
      %p249 = scmp.ne.s32.totalorder %s237, %s238
      %p250 = scmp.eq.s32.totalorder %s29, 1
      %p251 = por %p249, %p250
      %p253 = scmp.ne.s32.totalorder %s238, %s252
      %p254 = scmp.eq.s32.totalorder %s29, 0
      %p255 = por %p253, %p254
      %s257 = sadd.s32 %s256, 1
      %p260 = scmp.eq.s32.totalorder %s23, 1
      %p261 = scmp.ne.s32.totalorder %s256, %s258
      %p262 = scmp.eq.s32.totalorder %s23, 0
      %p263 = por %p261, %p262
      %p264 = scmp.ne.s32.totalorder %s256, %s258
      %p265 = scmp.eq.s32.totalorder %s28, 1
      %p266 = por %p264, %p265
      %p267 = scmp.ne.s32.totalorder %s258, %s259
      %p268 = scmp.eq.s32.totalorder %s28, 0
      %p269 = por %p267, %p268
      %p270 = scmp.ne.s32.totalorder %s258, %s259
      %p271 = scmp.eq.s32.totalorder %s29, 1
      %p272 = por %p270, %p271
      %p274 = scmp.ne.s32.totalorder %s259, %s273
      %p275 = scmp.eq.s32.totalorder %s29, 0
      %p276 = por %p274, %p275
      %s278 = sadd.s32 %s277, 1
      %p281 = scmp.eq.s32.totalorder %s23, 1
      %p282 = scmp.ne.s32.totalorder %s277, %s279
      %p283 = scmp.eq.s32.totalorder %s23, 0
      %p284 = por %p282, %p283
      %p285 = scmp.ne.s32.totalorder %s277, %s279
      %p286 = scmp.eq.s32.totalorder %s28, 1
      %p287 = por %p285, %p286
      %p288 = scmp.ne.s32.totalorder %s279, %s280
      %p289 = scmp.eq.s32.totalorder %s28, 0
      %p290 = por %p288, %p289
      %p291 = scmp.ne.s32.totalorder %s279, %s280
      %p292 = scmp.eq.s32.totalorder %s29, 1
      %p293 = por %p291, %p292
      %p295 = scmp.ne.s32.totalorder %s280, %s294
      %p296 = scmp.eq.s32.totalorder %s29, 0
      %p297 = por %p295, %p296
      %s299 = sadd.s32 %s298, 1
      %p302 = scmp.eq.s32.totalorder %s23, 1
      %p303 = scmp.ne.s32.totalorder %s298, %s300
      %p304 = scmp.eq.s32.totalorder %s23, 0
      %p305 = por %p303, %p304
      %p306 = scmp.ne.s32.totalorder %s298, %s300
      %p307 = scmp.eq.s32.totalorder %s28, 1
      %p308 = por %p306, %p307
      %p309 = scmp.ne.s32.totalorder %s300, %s301
      %p310 = scmp.eq.s32.totalorder %s28, 0
      %p311 = por %p309, %p310
      %p312 = scmp.ne.s32.totalorder %s300, %s301
      %p313 = scmp.eq.s32.totalorder %s29, 1
      %p314 = por %p312, %p313
      %p316 = scmp.ne.s32.totalorder %s301, %s315
      %p317 = scmp.eq.s32.totalorder %s29, 0
      %p318 = por %p316, %p317
      %s319 = ssub.s32 %s23, %s30
      %p320 = scmp.eq.s32.totalorder %s319, 0
      %s322 = sadd.s32 %s321, 1
      %s323 = scalar_select %p320, %s321, %s322
      %p326 = pneg %p320
      %p327 = scmp.eq.s32.totalorder %s23, 1
      %p328 = por %p326, %p327
      %p329 = scmp.ne.s32.totalorder %s321, %s324
      %p330 = scmp.eq.s32.totalorder %s23, 0
      %p331 = por %p329, %p330
      %p332 = scmp.ne.s32.totalorder %s321, %s324
      %p333 = scmp.eq.s32.totalorder %s28, 1
      %p334 = por %p332, %p333
      %p335 = scmp.ne.s32.totalorder %s324, %s325
      %p336 = scmp.eq.s32.totalorder %s28, 0
      %p337 = por %p335, %p336
      %p338 = scmp.ne.s32.totalorder %s324, %s325
      %p339 = scmp.eq.s32.totalorder %s29, 1
      %p340 = por %p338, %p339
      %p342 = scmp.ne.s32.totalorder %s325, %s341
      %p343 = scmp.eq.s32.totalorder %s29, 0
      %p344 = por %p342, %p343
      %p345 = scmp.le.s32.totalorder 1, %s23
      %p346 = scmp.lt.s32.totalorder %s23, 3
      %p347 = pnand %p345, %p346
      %p348 = pneg %p347
      // Predicated region
      $region9: #{hybrid_ncf_forward.1} parent=5 // pred_check
        _
      $region10: #{hybrid_ncf_forward.1} parent=5 // pred_check_branch
        %350 = sbr.rel (%p347) target = $region12
      $region11: #{hybrid_ncf_forward.1} parent=5 // pred_region
        %s351 = ssub.s32 %s23, 1
        // Predicated region
        $region13: #{hybrid_ncf_forward.1} parent=11 // pred_check
          %p352 = pneg %p122
        $region14: #{hybrid_ncf_forward.1} parent=11 // pred_check_branch
          %354 = sbr.rel (%p352) target = $region16
        $region15: #{hybrid_ncf_forward.1} parent=11 // pred_region
          _
        $region16: #{hybrid_ncf_forward.1} parent=11 // pred_fallthru
          _
        // Predicated region
        $region17: #{hybrid_ncf_forward.1} parent=11 // pred_check
          %p355 = pneg %p143
        $region18: #{hybrid_ncf_forward.1} parent=11 // pred_check_branch
          %357 = sbr.rel (%p355) target = $region20
        $region19: #{hybrid_ncf_forward.1} parent=11 // pred_region
          _
        $region20: #{hybrid_ncf_forward.1} parent=11 // pred_fallthru
          _
        // Predicated region
        $region21: #{hybrid_ncf_forward.1} parent=11 // pred_check
          %p358 = pneg %p164
        $region22: #{hybrid_ncf_forward.1} parent=11 // pred_check_branch
          %360 = sbr.rel (%p358) target = $region24
        $region23: #{hybrid_ncf_forward.1} parent=11 // pred_region
          _
        $region24: #{hybrid_ncf_forward.1} parent=11 // pred_fallthru
          _
        // Predicated region
        $region25: #{hybrid_ncf_forward.1} parent=11 // pred_check
          %p361 = pneg %p185
        $region26: #{hybrid_ncf_forward.1} parent=11 // pred_check_branch
          %363 = sbr.rel (%p361) target = $region28
        $region27: #{hybrid_ncf_forward.1} parent=11 // pred_region
          _
        $region28: #{hybrid_ncf_forward.1} parent=11 // pred_fallthru
          _
        // Predicated region
        $region29: #{hybrid_ncf_forward.1} parent=11 // pred_check
          %p364 = pneg %p206
        $region30: #{hybrid_ncf_forward.1} parent=11 // pred_check_branch
          %366 = sbr.rel (%p364) target = $region32
        $region31: #{hybrid_ncf_forward.1} parent=11 // pred_region
          _
        $region32: #{hybrid_ncf_forward.1} parent=11 // pred_fallthru
          _
        // Predicated region
        $region33: #{hybrid_ncf_forward.1} parent=11 // pred_check
          %p367 = pneg %p227
        $region34: #{hybrid_ncf_forward.1} parent=11 // pred_check_branch
          %369 = sbr.rel (%p367) target = $region36
        $region35: #{hybrid_ncf_forward.1} parent=11 // pred_region
          _
        $region36: #{hybrid_ncf_forward.1} parent=11 // pred_fallthru
          _
        // Predicated region
        $region37: #{hybrid_ncf_forward.1} parent=11 // pred_check
          %p370 = pneg %p248
        $region38: #{hybrid_ncf_forward.1} parent=11 // pred_check_branch
          %372 = sbr.rel (%p370) target = $region40
        $region39: #{hybrid_ncf_forward.1} parent=11 // pred_region
          _
        $region40: #{hybrid_ncf_forward.1} parent=11 // pred_fallthru
          _
        // Predicated region
        $region41: #{hybrid_ncf_forward.1} parent=11 // pred_check
          %p373 = pneg %p269
        $region42: #{hybrid_ncf_forward.1} parent=11 // pred_check_branch
          %375 = sbr.rel (%p373) target = $region44
        $region43: #{hybrid_ncf_forward.1} parent=11 // pred_region
          _
        $region44: #{hybrid_ncf_forward.1} parent=11 // pred_fallthru
          _
        // Predicated region
        $region45: #{hybrid_ncf_forward.1} parent=11 // pred_check
          %p376 = pneg %p290
        $region46: #{hybrid_ncf_forward.1} parent=11 // pred_check_branch
          %378 = sbr.rel (%p376) target = $region48
        $region47: #{hybrid_ncf_forward.1} parent=11 // pred_region
          _
        $region48: #{hybrid_ncf_forward.1} parent=11 // pred_fallthru
          _
        // Predicated region
        $region49: #{hybrid_ncf_forward.1} parent=11 // pred_check
          %p379 = pneg %p311
        $region50: #{hybrid_ncf_forward.1} parent=11 // pred_check_branch
          %381 = sbr.rel (%p379) target = $region52
        $region51: #{hybrid_ncf_forward.1} parent=11 // pred_region
          _
        $region52: #{hybrid_ncf_forward.1} parent=11 // pred_fallthru
          _
      $region12: #{hybrid_ncf_forward.1} parent=5 // pred_fallthru
        _
      %p382 = scmp.lt.s32.totalorder %s23, 2
      // Predicated region
      $region53: #{hybrid_ncf_forward.1} parent=5 // pred_check
        %p383 = pneg %p382
      $region54: #{hybrid_ncf_forward.1} parent=5 // pred_check_branch
        %385 = sbr.rel (%p383) target = $region56
      $region55: #{hybrid_ncf_forward.1} parent=5 // pred_region
        // Predicated region
        $region57: #{hybrid_ncf_forward.1} parent=55 // pred_check
          %p386 = pneg %p43
        $region58: #{hybrid_ncf_forward.1} parent=55 // pred_check_branch
          %388 = sbr.rel (%p386) target = $region60
        $region59: #{hybrid_ncf_forward.1} parent=55 // pred_region
          %s389 = smul.u32 64, %s23
          %p390 = scmp.lt.s32.totalorder %s389, 127
          %s391 = scalar_select %p390, %s389, 127
          %s392 = smul.addr %s391, 4
          %s393 = scalar_lea.vmem %s0, %s392
          %s394 = smul.u32 64, %s23
        $region60: #{hybrid_ncf_forward.1} parent=55 // pred_fallthru
          _
        // Predicated region
        $region61: #{hybrid_ncf_forward.1} parent=55 // pred_check
          %p395 = pneg %p69
        $region62: #{hybrid_ncf_forward.1} parent=55 // pred_check_branch
          %397 = sbr.rel (%p395) target = $region64
        $region63: #{hybrid_ncf_forward.1} parent=55 // pred_region
          %s398 = smul.u32 64, %s23
          %p399 = scmp.lt.s32.totalorder %s398, 127
          %s400 = scalar_select %p399, %s398, 127
          %s401 = smul.addr %s400, 4
          %s402 = scalar_lea.vmem %s1, %s401
          %s403 = smul.u32 64, %s23
        $region64: #{hybrid_ncf_forward.1} parent=55 // pred_fallthru
          _
        // Predicated region
        $region65: #{hybrid_ncf_forward.1} parent=55 // pred_check
          %p404 = pneg %p95
        $region66: #{hybrid_ncf_forward.1} parent=55 // pred_check_branch
          %406 = sbr.rel (%p404) target = $region68
        $region67: #{hybrid_ncf_forward.1} parent=55 // pred_region
          %s407 = smul.u32 64, %s23
          %p408 = scmp.lt.s32.totalorder %s407, 127
          %s409 = scalar_select %p408, %s407, 127
          %s410 = smul.addr %s409, 4
          %s411 = scalar_lea.vmem %s2, %s410
          %s412 = smul.u32 64, %s23
        $region68: #{hybrid_ncf_forward.1} parent=55 // pred_fallthru
          _
      $region56: #{hybrid_ncf_forward.1} parent=5 // pred_fallthru
        _
      %p413 = scmp.le.s32.totalorder 1, %s23
      %p414 = scmp.lt.s32.totalorder %s23, 3
      %p415 = pnand %p413, %p414
      %p416 = pneg %p415
      // Predicated region
      $region69: #{hybrid_ncf_forward.1} parent=5 // pred_check
        _
      $region70: #{hybrid_ncf_forward.1} parent=5 // pred_check_branch
        %418 = sbr.rel (%p415) target = $region72
      $region71: #{hybrid_ncf_forward.1} parent=5 // pred_region
        %s419 = ssub.s32 %s23, 1
        %s420 = smul.u32 64, %s28
        %p421 = scmp.lt.s32.totalorder %s420, 127
        %s422 = scalar_select %p421, %s420, 127
        %s423 = smul.addr %s422, 4
        %s424 = scalar_lea.vmem %s0, %s423
        %p425 = pneg %p49
        %p426 = pneg %p46
        %s427 = smul.u32 64, %s28
        %p428 = scmp.lt.s32.totalorder %s427, 127
        %s429 = scalar_select %p428, %s427, 127
        %s430 = smul.addr %s429, 4
        %s431 = scalar_lea.vmem %s1, %s430
        %p432 = pneg %p75
        %p433 = pneg %p72
        %s434 = smul.u32 64, %s28
        %p435 = scmp.lt.s32.totalorder %s434, 127
        %s436 = scalar_select %p435, %s434, 127
        %s437 = smul.addr %s436, 4
        %s438 = scalar_lea.vmem %s2, %s437
        %p439 = pneg %p101
        %p440 = pneg %p98
        %p441 = pneg %p122
        %p442 = pneg %p119
        %p443 = pneg %p143
        %p444 = pneg %p140
        %p445 = pneg %p164
        %p446 = pneg %p161
        %p447 = pneg %p185
        %p448 = pneg %p182
        %p449 = pneg %p206
        %p450 = pneg %p203
        %p451 = pneg %p227
        %p452 = pneg %p224
        %p453 = pneg %p248
        %p454 = pneg %p245
        %p455 = pneg %p269
        %p456 = pneg %p266
        %p457 = pneg %p290
        %p458 = pneg %p287
        %p459 = pneg %p311
        %p460 = pneg %p308
        %p461 = pneg %p337
        %p462 = pneg %p334
        %s463 = sand.u32 %s324, 1
        %s464 = scalar_lea.sflag [#allocation4], %s463
        %s465 = sand.u32 %s324, 1
        %s466 = smul.addr %s465, 4
        %s467 = scalar_lea.vmem [#allocation3], %s466
        %s468 = smul.u32 64, %s28
        %p469 = scmp.lt.s32.totalorder %s468, 127
        %s470 = scalar_select %p469, %s468, 127
        %s471 = smul.addr %s470, 4
        %s472 = scalar_lea.vmem %s0, %s471
        %s473 = smul.u32 64, %s28
        %s474 = smul.u32 64, %s28
        %p475 = scmp.lt.s32.totalorder %s474, 127
        %s476 = scalar_select %p475, %s474, 127
        %s477 = smul.addr %s476, 4
        %s478 = scalar_lea.vmem %s1, %s477
        %s479 = smul.u32 64, %s28
        %s480 = smul.u32 64, %s28
        %p481 = scmp.lt.s32.totalorder %s480, 127
        %s482 = scalar_select %p481, %s480, 127
        %s483 = smul.addr %s482, 4
        %s484 = scalar_lea.vmem %s2, %s483
        %s485 = smul.u32 64, %s28
        %s486 = smul.u32 4, %s28
        %v488 = vld [vmem:[%s484] sm:$0xf]
        %v489 = vld [vmem:[%s484 + $0x4] sm:$0xf]
        %v490 = vld [vmem:[%s484 + $0x8] sm:$0xf]
        %v491 = vld [vmem:[%s484 + $0xc] sm:$0xf]
        %v492 = vld [vmem:[%s484 + $0x10] sm:$0xf]
        %v493 = vld [vmem:[%s484 + $0x14] sm:$0xf]
        %v494 = vld [vmem:[%s484 + $0x18] sm:$0xf]
        %v495 = vld [vmem:[%s484 + $0x1c] sm:$0xf]
        %v496 = vld [vmem:[%s484 + $0x20] sm:$0xf]
        %v497 = vld [vmem:[%s484 + $0x24] sm:$0xf]
        %v498 = vld [vmem:[%s484 + $0x28] sm:$0xf]
        %v499 = vld [vmem:[%s484 + $0x2c] sm:$0xf]
        %v500 = vld [vmem:[%s484 + $0x30] sm:$0xf]
        %v501 = vld [vmem:[%s484 + $0x34] sm:$0xf]
        %v502 = vld [vmem:[%s484 + $0x38] sm:$0xf]
        %v503 = vld [vmem:[%s484 + $0x3c] sm:$0xf]
        %v504 = vld [vmem:[%s484 + $0x40] sm:$0xf]
        %v505 = vld [vmem:[%s484 + $0x44] sm:$0xf]
        %v506 = vld [vmem:[%s484 + $0x48] sm:$0xf]
        %v507 = vld [vmem:[%s484 + $0x4c] sm:$0xf]
        %v508 = vld [vmem:[%s484 + $0x50] sm:$0xf]
        %v509 = vld [vmem:[%s484 + $0x54] sm:$0xf]
        %v510 = vld [vmem:[%s484 + $0x58] sm:$0xf]
        %v511 = vld [vmem:[%s484 + $0x5c] sm:$0xf]
        %v512 = vld [vmem:[%s484 + $0x60] sm:$0xf]
        %v513 = vld [vmem:[%s484 + $0x64] sm:$0xf]
        %v514 = vld [vmem:[%s484 + $0x68] sm:$0xf]
        %v515 = vld [vmem:[%s484 + $0x6c] sm:$0xf]
        %v516 = vld [vmem:[%s484 + $0x70] sm:$0xf]
        %v517 = vld [vmem:[%s484 + $0x74] sm:$0xf]
        %v518 = vld [vmem:[%s484 + $0x78] sm:$0xf]
        %v519 = vld [vmem:[%s484 + $0x7c] sm:$0xf]
        %v520 = vld [vmem:[%s484 + $0x80] sm:$0xf]
        %v521 = vld [vmem:[%s484 + $0x84] sm:$0xf]
        %v522 = vld [vmem:[%s484 + $0x88] sm:$0xf]
        %v523 = vld [vmem:[%s484 + $0x8c] sm:$0xf]
        %v524 = vld [vmem:[%s484 + $0x90] sm:$0xf]
        %v525 = vld [vmem:[%s484 + $0x94] sm:$0xf]
        %v526 = vld [vmem:[%s484 + $0x98] sm:$0xf]
        %v527 = vld [vmem:[%s484 + $0x9c] sm:$0xf]
        %v528 = vld [vmem:[%s484 + $0xa0] sm:$0xf]
        %v529 = vld [vmem:[%s484 + $0xa4] sm:$0xf]
        %v530 = vld [vmem:[%s484 + $0xa8] sm:$0xf]
        %v531 = vld [vmem:[%s484 + $0xac] sm:$0xf]
        %v532 = vld [vmem:[%s484 + $0xb0] sm:$0xf]
        %v533 = vld [vmem:[%s484 + $0xb4] sm:$0xf]
        %v534 = vld [vmem:[%s484 + $0xb8] sm:$0xf]
        %v535 = vld [vmem:[%s484 + $0xbc] sm:$0xf]
        %v536 = vld [vmem:[%s484 + $0xc0] sm:$0xf]
        %v537 = vld [vmem:[%s484 + $0xc4] sm:$0xf]
        %v538 = vld [vmem:[%s484 + $0xc8] sm:$0xf]
        %v539 = vld [vmem:[%s484 + $0xcc] sm:$0xf]
        %v540 = vld [vmem:[%s484 + $0xd0] sm:$0xf]
        %v541 = vld [vmem:[%s484 + $0xd4] sm:$0xf]
        %v542 = vld [vmem:[%s484 + $0xd8] sm:$0xf]
        %v543 = vld [vmem:[%s484 + $0xdc] sm:$0xf]
        %v544 = vld [vmem:[%s484 + $0xe0] sm:$0xf]
        %v545 = vld [vmem:[%s484 + $0xe4] sm:$0xf]
        %v546 = vld [vmem:[%s484 + $0xe8] sm:$0xf]
        %v547 = vld [vmem:[%s484 + $0xec] sm:$0xf]
        %v548 = vld [vmem:[%s484 + $0xf0] sm:$0xf]
        %v549 = vld [vmem:[%s484 + $0xf4] sm:$0xf]
        %v550 = vld [vmem:[%s484 + $0xf8] sm:$0xf]
        %v551 = vld [vmem:[%s484 + $0xfc] sm:$0xf]
        %v552 = vld [vmem:[%s3] sm:$0xf]
        %v553 = vld [vmem:[%s3 + $0x4] sm:$0xf]
        %v554 = vld [vmem:[%s3 + $0x8] sm:$0xf]
        %v555 = vld [vmem:[%s4] sm:$0x1]
        %v557 = vlaneseq
        %v558 = vshrl.u32 %v557, 7
        %v559 = vsub.s32 0, %v558
        %v560 = vrot.slane %v555, %v559
        %v626 = vunpack.c.l.b16 %v488
        %v627 = vunpack.c.l.b16 %v489
        %v628 = vunpack.c.l.b16 %v490
        %v629 = vunpack.c.l.b16 %v491
        %v630 = vunpack.c.l.b16 %v492
        %v631 = vunpack.c.l.b16 %v493
        %v632 = vunpack.c.l.b16 %v494
        %v633 = vunpack.c.l.b16 %v495
        %v634 = vunpack.c.l.b16 %v496
        %v635 = vunpack.c.l.b16 %v497
        %v636 = vunpack.c.l.b16 %v498
        %v637 = vunpack.c.l.b16 %v499
        %v638 = vunpack.c.l.b16 %v500
        %v639 = vunpack.c.l.b16 %v501
        %v640 = vunpack.c.l.b16 %v502
        %v641 = vunpack.c.l.b16 %v503
        %v642 = vunpack.c.l.b16 %v504
        %v643 = vunpack.c.l.b16 %v505
        %v644 = vunpack.c.l.b16 %v506
        %v645 = vunpack.c.l.b16 %v507
        %v646 = vunpack.c.l.b16 %v508
        %v647 = vunpack.c.l.b16 %v509
        %v648 = vunpack.c.l.b16 %v510
        %v649 = vunpack.c.l.b16 %v511
        %v650 = vunpack.c.l.b16 %v512
        %v651 = vunpack.c.l.b16 %v513
        %v652 = vunpack.c.l.b16 %v514
        %v653 = vunpack.c.l.b16 %v515
        %v654 = vunpack.c.l.b16 %v516
        %v655 = vunpack.c.l.b16 %v517
        %v656 = vunpack.c.l.b16 %v518
        %v657 = vunpack.c.l.b16 %v519
        %v658 = vunpack.c.l.b16 %v520
        %v659 = vunpack.c.l.b16 %v521
        %v660 = vunpack.c.l.b16 %v522
        %v661 = vunpack.c.l.b16 %v523
        %v662 = vunpack.c.l.b16 %v524
        %v663 = vunpack.c.l.b16 %v525
        %v664 = vunpack.c.l.b16 %v526
        %v665 = vunpack.c.l.b16 %v527
        %v666 = vunpack.c.l.b16 %v528
        %v667 = vunpack.c.l.b16 %v529
        %v668 = vunpack.c.l.b16 %v530
        %v669 = vunpack.c.l.b16 %v531
        %v670 = vunpack.c.l.b16 %v532
        %v671 = vunpack.c.l.b16 %v533
        %v672 = vunpack.c.l.b16 %v534
        %v673 = vunpack.c.l.b16 %v535
        %v674 = vunpack.c.l.b16 %v536
        %v675 = vunpack.c.l.b16 %v537
        %v676 = vunpack.c.l.b16 %v538
        %v677 = vunpack.c.l.b16 %v539
        %v678 = vunpack.c.l.b16 %v540
        %v679 = vunpack.c.l.b16 %v541
        %v680 = vunpack.c.l.b16 %v542
        %v681 = vunpack.c.l.b16 %v543
        %v682 = vunpack.c.l.b16 %v544
        %v683 = vunpack.c.l.b16 %v545
        %v684 = vunpack.c.l.b16 %v546
        %v685 = vunpack.c.l.b16 %v547
        %v686 = vunpack.c.l.b16 %v548
        %v687 = vunpack.c.l.b16 %v549
        %v688 = vunpack.c.l.b16 %v550
        %v689 = vunpack.c.l.b16 %v551
        %v690 = vpack.c.b16 %v627, %v626
        %v691 = vpack.c.b16 %v629, %v628
        %v692 = vpack.c.b16 %v631, %v630
        %v693 = vpack.c.b16 %v633, %v632
        %v694 = vpack.c.b16 %v635, %v634
        %v695 = vpack.c.b16 %v637, %v636
        %v696 = vpack.c.b16 %v639, %v638
        %v697 = vpack.c.b16 %v641, %v640
        %v698 = vpack.c.b16 %v643, %v642
        %v699 = vpack.c.b16 %v645, %v644
        %v700 = vpack.c.b16 %v647, %v646
        %v701 = vpack.c.b16 %v649, %v648
        %v702 = vpack.c.b16 %v651, %v650
        %v703 = vpack.c.b16 %v653, %v652
        %v704 = vpack.c.b16 %v655, %v654
        %v705 = vpack.c.b16 %v657, %v656
        %v706 = vpack.c.b16 %v659, %v658
        %v707 = vpack.c.b16 %v661, %v660
        %v708 = vpack.c.b16 %v663, %v662
        %v709 = vpack.c.b16 %v665, %v664
        %v710 = vpack.c.b16 %v667, %v666
        %v711 = vpack.c.b16 %v669, %v668
        %v712 = vpack.c.b16 %v671, %v670
        %v713 = vpack.c.b16 %v673, %v672
        %v714 = vpack.c.b16 %v675, %v674
        %v715 = vpack.c.b16 %v677, %v676
        %v716 = vpack.c.b16 %v679, %v678
        %v717 = vpack.c.b16 %v681, %v680
        %v718 = vpack.c.b16 %v683, %v682
        %v719 = vpack.c.b16 %v685, %v684
        %v720 = vpack.c.b16 %v687, %v686
        %v721 = vpack.c.b16 %v689, %v688
        %v725 = vunpack.c.l.b16 %v552
        %v726 = vunpack.c.l.b16 %v553
        %v727 = vunpack.c.l.b16 %v554
        %v728 = vpack.c.b16 %v726, %v725
        %v729 = vpack.c.b16 %v727, %v727
        %vm731 = vcmask 195584
        %v733 = vsel %vm731, %v690, 0
        %v736 = vsel %vm731, %v691, 0
        %v739 = vsel %vm731, %v692, 0
        %v742 = vsel %vm731, %v693, 0
        %v745 = vsel %vm731, %v694, 0
        %v748 = vsel %vm731, %v695, 0
        %v751 = vsel %vm731, %v696, 0
        %v754 = vsel %vm731, %v697, 0
        %v757 = vsel %vm731, %v698, 0
        %v760 = vsel %vm731, %v699, 0
        %v763 = vsel %vm731, %v700, 0
        %v766 = vsel %vm731, %v701, 0
        %v769 = vsel %vm731, %v702, 0
        %v772 = vsel %vm731, %v703, 0
        %v775 = vsel %vm731, %v704, 0
        %v778 = vsel %vm731, %v705, 0
        %v781 = vsel %vm731, %v706, 0
        %v784 = vsel %vm731, %v707, 0
        %v787 = vsel %vm731, %v708, 0
        %v790 = vsel %vm731, %v709, 0
        %v793 = vsel %vm731, %v710, 0
        %v796 = vsel %vm731, %v711, 0
        %v799 = vsel %vm731, %v712, 0
        %v802 = vsel %vm731, %v713, 0
        %v805 = vsel %vm731, %v714, 0
        %v808 = vsel %vm731, %v715, 0
        %v811 = vsel %vm731, %v716, 0
        %v814 = vsel %vm731, %v717, 0
        %v817 = vsel %vm731, %v718, 0
        %v820 = vsel %vm731, %v719, 0
        %v823 = vsel %vm731, %v720, 0
        %v826 = vsel %vm731, %v721, 0
        %vm828 = vcmask 1043456
        %v830 = vsel %vm828, %v729, 0
        %832 = vmatprep.subr.bf16.mxu0 0
        %833 = vmatpush1.bf16.msra.mxu0 0
        %834 = vmatprep.subr.bf16.mxu0 0
        %835 = vmatpush1.bf16.msra.mxu0 0
        %836 = vmatprep.subr.bf16.mxu0 0
        %837 = vmatpush1.bf16.msra.mxu0 0
        %838 = vmatprep.subr.bf16.mxu0 0
        %839 = vmatpush1.bf16.msra.mxu0 0
        %840 = vmatprep.subr.bf16.mxu0 0
        %841 = vmatpush1.bf16.msra.mxu0 0
        %842 = vmatprep.subr.bf16.mxu0 0
        %843 = vmatpush1.bf16.msra.mxu0 0
        %844 = vmatprep.subr.bf16.mxu0 0
        %845 = vmatpush1.bf16.msra.mxu0 %v830
        %846 = vmatprep.subr.bf16.mxu0 0
        %847 = vmatpush1.bf16.msra.mxu0 %v728
        %848 = vmatprep.subr.bf16.mxu0 0
        %849 = vmatpush2.bf16.msra.mxu0 0
        %850 = vmatprep.subr.bf16.mxu0 0
        %851 = vmatpush2.bf16.msra.mxu0 0
        %852 = vmatprep.subr.bf16.mxu0 0
        %853 = vmatpush2.bf16.msra.mxu0 0
        %854 = vmatprep.subr.bf16.mxu0 0
        %855 = vmatpush2.bf16.msra.mxu0 0
        %856 = vmatprep.subr.bf16.mxu0 0
        %857 = vmatpush2.bf16.msra.mxu0 0
        %858 = vmatprep.subr.bf16.mxu0 0
        %859 = vmatpush2.bf16.msra.mxu0 0
        %860 = vmatprep.subr.bf16.mxu0 0
        %861 = vmatpush2.bf16.msra.mxu0 0
        %862 = vmatprep.subr.bf16.mxu0 0
        %863 = vmatpush2.bf16.msra.mxu0 0
        %864 = vmatprep.mubr.bf16.mxu0 0
        %865 = vmatmul.mubr.bf16.gmra.mxu0 %v733
        %v866 = vpop.f32.mrf.mxu0
        %v867 = vadd.f32 %v560, %v866
        %v868 = vpop.f32.mrf.mxu0
        %v869 = vpop.f32.mrf.mxu0
        %v870 = vadd.f32 %v560, %v869
        %v871 = vpop.f32.mrf.mxu0
        %872 = vmatprep.mubr.bf16.mxu0 0
        %873 = vmatmul.mubr.bf16.gmra.mxu0 %v736
        %v874 = vpop.f32.mrf.mxu0
        %v875 = vadd.f32 %v560, %v874
        %v876 = vpop.f32.mrf.mxu0
        %v877 = vpop.f32.mrf.mxu0
        %v878 = vadd.f32 %v560, %v877
        %v879 = vpop.f32.mrf.mxu0
        %880 = vmatprep.mubr.bf16.mxu0 0
        %881 = vmatmul.mubr.bf16.gmra.mxu0 %v739
        %v882 = vpop.f32.mrf.mxu0
        %v883 = vadd.f32 %v560, %v882
        %v884 = vpop.f32.mrf.mxu0
        %v885 = vpop.f32.mrf.mxu0
        %v886 = vadd.f32 %v560, %v885
        %v887 = vpop.f32.mrf.mxu0
        %888 = vmatprep.mubr.bf16.mxu0 0
        %889 = vmatmul.mubr.bf16.gmra.mxu0 %v742
        %v890 = vpop.f32.mrf.mxu0
        %v891 = vadd.f32 %v560, %v890
        %v892 = vpop.f32.mrf.mxu0
        %v893 = vpop.f32.mrf.mxu0
        %v894 = vadd.f32 %v560, %v893
        %v895 = vpop.f32.mrf.mxu0
        %896 = vmatprep.mubr.bf16.mxu0 0
        %897 = vmatmul.mubr.bf16.gmra.mxu0 %v745
        %v898 = vpop.f32.mrf.mxu0
        %v899 = vadd.f32 %v560, %v898
        %v900 = vpop.f32.mrf.mxu0
        %v901 = vpop.f32.mrf.mxu0
        %v902 = vadd.f32 %v560, %v901
        %v903 = vpop.f32.mrf.mxu0
        %904 = vmatprep.mubr.bf16.mxu0 0
        %905 = vmatmul.mubr.bf16.gmra.mxu0 %v748
        %v906 = vpop.f32.mrf.mxu0
        %v907 = vadd.f32 %v560, %v906
        %v908 = vpop.f32.mrf.mxu0
        %v909 = vpop.f32.mrf.mxu0
        %v910 = vadd.f32 %v560, %v909
        %v911 = vpop.f32.mrf.mxu0
        %912 = vmatprep.mubr.bf16.mxu0 0
        %913 = vmatmul.mubr.bf16.gmra.mxu0 %v751
        %v914 = vpop.f32.mrf.mxu0
        %v915 = vadd.f32 %v560, %v914
        %v916 = vpop.f32.mrf.mxu0
        %v917 = vpop.f32.mrf.mxu0
        %v918 = vadd.f32 %v560, %v917
        %v919 = vpop.f32.mrf.mxu0
        %920 = vmatprep.mubr.bf16.mxu0 0
        %921 = vmatmul.mubr.bf16.gmra.mxu0 %v754
        %v922 = vpop.f32.mrf.mxu0
        %v923 = vadd.f32 %v560, %v922
        %v924 = vpop.f32.mrf.mxu0
        %v925 = vpop.f32.mrf.mxu0
        %v926 = vadd.f32 %v560, %v925
        %v927 = vpop.f32.mrf.mxu0
        %928 = vmatprep.mubr.bf16.mxu0 0
        %929 = vmatmul.mubr.bf16.gmra.mxu0 %v757
        %v930 = vpop.f32.mrf.mxu0
        %v931 = vadd.f32 %v560, %v930
        %v932 = vpop.f32.mrf.mxu0
        %v933 = vpop.f32.mrf.mxu0
        %v934 = vadd.f32 %v560, %v933
        %v935 = vpop.f32.mrf.mxu0
        %936 = vmatprep.mubr.bf16.mxu0 0
        %937 = vmatmul.mubr.bf16.gmra.mxu0 %v760
        %v938 = vpop.f32.mrf.mxu0
        %v939 = vadd.f32 %v560, %v938
        %v940 = vpop.f32.mrf.mxu0
        %v941 = vpop.f32.mrf.mxu0
        %v942 = vadd.f32 %v560, %v941
        %v943 = vpop.f32.mrf.mxu0
        %944 = vmatprep.mubr.bf16.mxu0 0
        %945 = vmatmul.mubr.bf16.gmra.mxu0 %v763
        %v946 = vpop.f32.mrf.mxu0
        %v947 = vadd.f32 %v560, %v946
        %v948 = vpop.f32.mrf.mxu0
        %v949 = vpop.f32.mrf.mxu0
        %v950 = vadd.f32 %v560, %v949
        %v951 = vpop.f32.mrf.mxu0
        %952 = vmatprep.mubr.bf16.mxu0 0
        %953 = vmatmul.mubr.bf16.gmra.mxu0 %v766
        %v954 = vpop.f32.mrf.mxu0
        %v955 = vadd.f32 %v560, %v954
        %v956 = vpop.f32.mrf.mxu0
        %v957 = vpop.f32.mrf.mxu0
        %v958 = vadd.f32 %v560, %v957
        %v959 = vpop.f32.mrf.mxu0
        %960 = vmatprep.mubr.bf16.mxu0 0
        %961 = vmatmul.mubr.bf16.gmra.mxu0 %v769
        %v962 = vpop.f32.mrf.mxu0
        %v963 = vadd.f32 %v560, %v962
        %v964 = vpop.f32.mrf.mxu0
        %v965 = vpop.f32.mrf.mxu0
        %v966 = vadd.f32 %v560, %v965
        %v967 = vpop.f32.mrf.mxu0
        %968 = vmatprep.mubr.bf16.mxu0 0
        %969 = vmatmul.mubr.bf16.gmra.mxu0 %v772
        %v970 = vpop.f32.mrf.mxu0
        %v971 = vadd.f32 %v560, %v970
        %v972 = vpop.f32.mrf.mxu0
        %v973 = vpop.f32.mrf.mxu0
        %v974 = vadd.f32 %v560, %v973
        %v975 = vpop.f32.mrf.mxu0
        %976 = vmatprep.mubr.bf16.mxu0 0
        %977 = vmatmul.mubr.bf16.gmra.mxu0 %v775
        %v978 = vpop.f32.mrf.mxu0
        %v979 = vadd.f32 %v560, %v978
        %v980 = vpop.f32.mrf.mxu0
        %v981 = vpop.f32.mrf.mxu0
        %v982 = vadd.f32 %v560, %v981
        %v983 = vpop.f32.mrf.mxu0
        %984 = vmatprep.mubr.bf16.mxu0 0
        %985 = vmatmul.mubr.bf16.gmra.mxu0 %v778
        %v986 = vpop.f32.mrf.mxu0
        %v987 = vadd.f32 %v560, %v986
        %v988 = vpop.f32.mrf.mxu0
        %v989 = vpop.f32.mrf.mxu0
        %v990 = vadd.f32 %v560, %v989
        %v991 = vpop.f32.mrf.mxu0
        %992 = vmatprep.mubr.bf16.mxu0 0
        %993 = vmatmul.mubr.bf16.gmra.mxu0 %v781
        %v994 = vpop.f32.mrf.mxu0
        %v995 = vadd.f32 %v560, %v994
        %v996 = vpop.f32.mrf.mxu0
        %v997 = vpop.f32.mrf.mxu0
        %v998 = vadd.f32 %v560, %v997
        %v999 = vpop.f32.mrf.mxu0
        %1000 = vmatprep.mubr.bf16.mxu0 0
        %1001 = vmatmul.mubr.bf16.gmra.mxu0 %v784
        %v1002 = vpop.f32.mrf.mxu0
        %v1003 = vadd.f32 %v560, %v1002
        %v1004 = vpop.f32.mrf.mxu0
        %v1005 = vpop.f32.mrf.mxu0
        %v1006 = vadd.f32 %v560, %v1005
        %v1007 = vpop.f32.mrf.mxu0
        %1008 = vmatprep.mubr.bf16.mxu0 0
        %1009 = vmatmul.mubr.bf16.gmra.mxu0 %v787
        %v1010 = vpop.f32.mrf.mxu0
        %v1011 = vadd.f32 %v560, %v1010
        %v1012 = vpop.f32.mrf.mxu0
        %v1013 = vpop.f32.mrf.mxu0
        %v1014 = vadd.f32 %v560, %v1013
        %v1015 = vpop.f32.mrf.mxu0
        %1016 = vmatprep.mubr.bf16.mxu0 0
        %1017 = vmatmul.mubr.bf16.gmra.mxu0 %v790
        %v1018 = vpop.f32.mrf.mxu0
        %v1019 = vadd.f32 %v560, %v1018
        %v1020 = vpop.f32.mrf.mxu0
        %v1021 = vpop.f32.mrf.mxu0
        %v1022 = vadd.f32 %v560, %v1021
        %v1023 = vpop.f32.mrf.mxu0
        %1024 = vmatprep.mubr.bf16.mxu0 0
        %1025 = vmatmul.mubr.bf16.gmra.mxu0 %v793
        %v1026 = vpop.f32.mrf.mxu0
        %v1027 = vadd.f32 %v560, %v1026
        %v1028 = vpop.f32.mrf.mxu0
        %v1029 = vpop.f32.mrf.mxu0
        %v1030 = vadd.f32 %v560, %v1029
        %v1031 = vpop.f32.mrf.mxu0
        %1032 = vmatprep.mubr.bf16.mxu0 0
        %1033 = vmatmul.mubr.bf16.gmra.mxu0 %v796
        %v1034 = vpop.f32.mrf.mxu0
        %v1035 = vadd.f32 %v560, %v1034
        %v1036 = vpop.f32.mrf.mxu0
        %v1037 = vpop.f32.mrf.mxu0
        %v1038 = vadd.f32 %v560, %v1037
        %v1039 = vpop.f32.mrf.mxu0
        %1040 = vmatprep.mubr.bf16.mxu0 0
        %1041 = vmatmul.mubr.bf16.gmra.mxu0 %v799
        %v1042 = vpop.f32.mrf.mxu0
        %v1043 = vadd.f32 %v560, %v1042
        %v1044 = vpop.f32.mrf.mxu0
        %v1045 = vpop.f32.mrf.mxu0
        %v1046 = vadd.f32 %v560, %v1045
        %v1047 = vpop.f32.mrf.mxu0
        %1048 = vmatprep.mubr.bf16.mxu0 0
        %1049 = vmatmul.mubr.bf16.gmra.mxu0 %v802
        %v1050 = vpop.f32.mrf.mxu0
        %v1051 = vadd.f32 %v560, %v1050
        %v1052 = vpop.f32.mrf.mxu0
        %v1053 = vpop.f32.mrf.mxu0
        %v1054 = vadd.f32 %v560, %v1053
        %v1055 = vpop.f32.mrf.mxu0
        %1056 = vmatprep.mubr.bf16.mxu0 0
        %1057 = vmatmul.mubr.bf16.gmra.mxu0 %v805
        %v1058 = vpop.f32.mrf.mxu0
        %v1059 = vadd.f32 %v560, %v1058
        %v1060 = vpop.f32.mrf.mxu0
        %v1061 = vpop.f32.mrf.mxu0
        %v1062 = vadd.f32 %v560, %v1061
        %v1063 = vpop.f32.mrf.mxu0
        %1064 = vmatprep.mubr.bf16.mxu0 0
        %1065 = vmatmul.mubr.bf16.gmra.mxu0 %v808
        %v1066 = vpop.f32.mrf.mxu0
        %v1067 = vadd.f32 %v560, %v1066
        %v1068 = vpop.f32.mrf.mxu0
        %v1069 = vpop.f32.mrf.mxu0
        %v1070 = vadd.f32 %v560, %v1069
        %v1071 = vpop.f32.mrf.mxu0
        %1072 = vmatprep.mubr.bf16.mxu0 0
        %1073 = vmatmul.mubr.bf16.gmra.mxu0 %v811
        %v1074 = vpop.f32.mrf.mxu0
        %v1075 = vadd.f32 %v560, %v1074
        %v1076 = vpop.f32.mrf.mxu0
        %v1077 = vpop.f32.mrf.mxu0
        %v1078 = vadd.f32 %v560, %v1077
        %v1079 = vpop.f32.mrf.mxu0
        %1080 = vmatprep.mubr.bf16.mxu0 0
        %1081 = vmatmul.mubr.bf16.gmra.mxu0 %v814
        %v1082 = vpop.f32.mrf.mxu0
        %v1083 = vadd.f32 %v560, %v1082
        %v1084 = vpop.f32.mrf.mxu0
        %v1085 = vpop.f32.mrf.mxu0
        %v1086 = vadd.f32 %v560, %v1085
        %v1087 = vpop.f32.mrf.mxu0
        %1088 = vmatprep.mubr.bf16.mxu0 0
        %1089 = vmatmul.mubr.bf16.gmra.mxu0 %v817
        %v1090 = vpop.f32.mrf.mxu0
        %v1091 = vadd.f32 %v560, %v1090
        %v1092 = vpop.f32.mrf.mxu0
        %v1093 = vpop.f32.mrf.mxu0
        %v1094 = vadd.f32 %v560, %v1093
        %v1095 = vpop.f32.mrf.mxu0
        %1096 = vmatprep.mubr.bf16.mxu0 0
        %1097 = vmatmul.mubr.bf16.gmra.mxu0 %v820
        %v1098 = vpop.f32.mrf.mxu0
        %v1099 = vadd.f32 %v560, %v1098
        %v1100 = vpop.f32.mrf.mxu0
        %v1101 = vpop.f32.mrf.mxu0
        %v1102 = vadd.f32 %v560, %v1101
        %v1103 = vpop.f32.mrf.mxu0
        %1104 = vmatprep.mubr.bf16.mxu0 0
        %1105 = vmatmul.mubr.bf16.gmra.mxu0 %v823
        %v1106 = vpop.f32.mrf.mxu0
        %v1107 = vadd.f32 %v560, %v1106
        %v1108 = vpop.f32.mrf.mxu0
        %v1109 = vpop.f32.mrf.mxu0
        %v1110 = vadd.f32 %v560, %v1109
        %v1111 = vpop.f32.mrf.mxu0
        %1112 = vmatprep.mubr.bf16.mxu0 0
        %1113 = vmatmul.mubr.bf16.gmra.mxu0 %v826
        %v1114 = vpop.f32.mrf.mxu0
        %v1115 = vadd.f32 %v560, %v1114
        %v1116 = vpop.f32.mrf.mxu0
        %v1117 = vpop.f32.mrf.mxu0
        %v1118 = vadd.f32 %v560, %v1117
        %v1119 = vpop.f32.mrf.mxu0
        %1120 = vdwg.mxu0
        %v1121 = vmax.f32 %v867, 0.0
        %v1122 = vmax.f32 %v870, 0.0
        %v1123 = vmax.f32 %v875, 0.0
        %v1124 = vmax.f32 %v878, 0.0
        %v1125 = vmax.f32 %v883, 0.0
        %v1126 = vmax.f32 %v886, 0.0
        %v1127 = vmax.f32 %v891, 0.0
        %v1128 = vmax.f32 %v894, 0.0
        %v1129 = vmax.f32 %v899, 0.0
        %v1130 = vmax.f32 %v902, 0.0
        %v1131 = vmax.f32 %v907, 0.0
        %v1132 = vmax.f32 %v910, 0.0
        %v1133 = vmax.f32 %v915, 0.0
        %v1134 = vmax.f32 %v918, 0.0
        %v1135 = vmax.f32 %v923, 0.0
        %v1136 = vmax.f32 %v926, 0.0
        %v1137 = vmax.f32 %v931, 0.0
        %v1138 = vmax.f32 %v934, 0.0
        %v1139 = vmax.f32 %v939, 0.0
        %v1140 = vmax.f32 %v942, 0.0
        %v1141 = vmax.f32 %v947, 0.0
        %v1142 = vmax.f32 %v950, 0.0
        %v1143 = vmax.f32 %v955, 0.0
        %v1144 = vmax.f32 %v958, 0.0
        %v1145 = vmax.f32 %v963, 0.0
        %v1146 = vmax.f32 %v966, 0.0
        %v1147 = vmax.f32 %v971, 0.0
        %v1148 = vmax.f32 %v974, 0.0
        %v1149 = vmax.f32 %v979, 0.0
        %v1150 = vmax.f32 %v982, 0.0
        %v1151 = vmax.f32 %v987, 0.0
        %v1152 = vmax.f32 %v990, 0.0
        %v1153 = vmax.f32 %v995, 0.0
        %v1154 = vmax.f32 %v998, 0.0
        %v1155 = vmax.f32 %v1003, 0.0
        %v1156 = vmax.f32 %v1006, 0.0
        %v1157 = vmax.f32 %v1011, 0.0
        %v1158 = vmax.f32 %v1014, 0.0
        %v1159 = vmax.f32 %v1019, 0.0
        %v1160 = vmax.f32 %v1022, 0.0
        %v1161 = vmax.f32 %v1027, 0.0
        %v1162 = vmax.f32 %v1030, 0.0
        %v1163 = vmax.f32 %v1035, 0.0
        %v1164 = vmax.f32 %v1038, 0.0
        %v1165 = vmax.f32 %v1043, 0.0
        %v1166 = vmax.f32 %v1046, 0.0
        %v1167 = vmax.f32 %v1051, 0.0
        %v1168 = vmax.f32 %v1054, 0.0
        %v1169 = vmax.f32 %v1059, 0.0
        %v1170 = vmax.f32 %v1062, 0.0
        %v1171 = vmax.f32 %v1067, 0.0
        %v1172 = vmax.f32 %v1070, 0.0
        %v1173 = vmax.f32 %v1075, 0.0
        %v1174 = vmax.f32 %v1078, 0.0
        %v1175 = vmax.f32 %v1083, 0.0
        %v1176 = vmax.f32 %v1086, 0.0
        %v1177 = vmax.f32 %v1091, 0.0
        %v1178 = vmax.f32 %v1094, 0.0
        %v1179 = vmax.f32 %v1099, 0.0
        %v1180 = vmax.f32 %v1102, 0.0
        %v1181 = vmax.f32 %v1107, 0.0
        %v1182 = vmax.f32 %v1110, 0.0
        %v1183 = vmax.f32 %v1115, 0.0
        %v1184 = vmax.f32 %v1118, 0.0
        %v1185 = vld [vmem:[%s472] sm:$0xf]
        %v1186 = vld [vmem:[%s472 + $0x4] sm:$0xf]
        %v1187 = vld [vmem:[%s472 + $0x8] sm:$0xf]
        %v1188 = vld [vmem:[%s472 + $0xc] sm:$0xf]
        %v1189 = vld [vmem:[%s472 + $0x10] sm:$0xf]
        %v1190 = vld [vmem:[%s472 + $0x14] sm:$0xf]
        %v1191 = vld [vmem:[%s472 + $0x18] sm:$0xf]
        %v1192 = vld [vmem:[%s472 + $0x1c] sm:$0xf]
        %v1193 = vld [vmem:[%s472 + $0x20] sm:$0xf]
        %v1194 = vld [vmem:[%s472 + $0x24] sm:$0xf]
        %v1195 = vld [vmem:[%s472 + $0x28] sm:$0xf]
        %v1196 = vld [vmem:[%s472 + $0x2c] sm:$0xf]
        %v1197 = vld [vmem:[%s472 + $0x30] sm:$0xf]
        %v1198 = vld [vmem:[%s472 + $0x34] sm:$0xf]
        %v1199 = vld [vmem:[%s472 + $0x38] sm:$0xf]
        %v1200 = vld [vmem:[%s472 + $0x3c] sm:$0xf]
        %v1201 = vld [vmem:[%s472 + $0x40] sm:$0xf]
        %v1202 = vld [vmem:[%s472 + $0x44] sm:$0xf]
        %v1203 = vld [vmem:[%s472 + $0x48] sm:$0xf]
        %v1204 = vld [vmem:[%s472 + $0x4c] sm:$0xf]
        %v1205 = vld [vmem:[%s472 + $0x50] sm:$0xf]
        %v1206 = vld [vmem:[%s472 + $0x54] sm:$0xf]
        %v1207 = vld [vmem:[%s472 + $0x58] sm:$0xf]
        %v1208 = vld [vmem:[%s472 + $0x5c] sm:$0xf]
        %v1209 = vld [vmem:[%s472 + $0x60] sm:$0xf]
        %v1210 = vld [vmem:[%s472 + $0x64] sm:$0xf]
        %v1211 = vld [vmem:[%s472 + $0x68] sm:$0xf]
        %v1212 = vld [vmem:[%s472 + $0x6c] sm:$0xf]
        %v1213 = vld [vmem:[%s472 + $0x70] sm:$0xf]
        %v1214 = vld [vmem:[%s472 + $0x74] sm:$0xf]
        %v1215 = vld [vmem:[%s472 + $0x78] sm:$0xf]
        %v1216 = vld [vmem:[%s472 + $0x7c] sm:$0xf]
        %v1217 = vld [vmem:[%s472 + $0x80] sm:$0xf]
        %v1218 = vld [vmem:[%s472 + $0x84] sm:$0xf]
        %v1219 = vld [vmem:[%s472 + $0x88] sm:$0xf]
        %v1220 = vld [vmem:[%s472 + $0x8c] sm:$0xf]
        %v1221 = vld [vmem:[%s472 + $0x90] sm:$0xf]
        %v1222 = vld [vmem:[%s472 + $0x94] sm:$0xf]
        %v1223 = vld [vmem:[%s472 + $0x98] sm:$0xf]
        %v1224 = vld [vmem:[%s472 + $0x9c] sm:$0xf]
        %v1225 = vld [vmem:[%s472 + $0xa0] sm:$0xf]
        %v1226 = vld [vmem:[%s472 + $0xa4] sm:$0xf]
        %v1227 = vld [vmem:[%s472 + $0xa8] sm:$0xf]
        %v1228 = vld [vmem:[%s472 + $0xac] sm:$0xf]
        %v1229 = vld [vmem:[%s472 + $0xb0] sm:$0xf]
        %v1230 = vld [vmem:[%s472 + $0xb4] sm:$0xf]
        %v1231 = vld [vmem:[%s472 + $0xb8] sm:$0xf]
        %v1232 = vld [vmem:[%s472 + $0xbc] sm:$0xf]
        %v1233 = vld [vmem:[%s472 + $0xc0] sm:$0xf]
        %v1234 = vld [vmem:[%s472 + $0xc4] sm:$0xf]
        %v1235 = vld [vmem:[%s472 + $0xc8] sm:$0xf]
        %v1236 = vld [vmem:[%s472 + $0xcc] sm:$0xf]
        %v1237 = vld [vmem:[%s472 + $0xd0] sm:$0xf]
        %v1238 = vld [vmem:[%s472 + $0xd4] sm:$0xf]
        %v1239 = vld [vmem:[%s472 + $0xd8] sm:$0xf]
        %v1240 = vld [vmem:[%s472 + $0xdc] sm:$0xf]
        %v1241 = vld [vmem:[%s472 + $0xe0] sm:$0xf]
        %v1242 = vld [vmem:[%s472 + $0xe4] sm:$0xf]
        %v1243 = vld [vmem:[%s472 + $0xe8] sm:$0xf]
        %v1244 = vld [vmem:[%s472 + $0xec] sm:$0xf]
        %v1245 = vld [vmem:[%s472 + $0xf0] sm:$0xf]
        %v1246 = vld [vmem:[%s472 + $0xf4] sm:$0xf]
        %v1247 = vld [vmem:[%s472 + $0xf8] sm:$0xf]
        %v1248 = vld [vmem:[%s472 + $0xfc] sm:$0xf]
        %v1249 = vld [vmem:[%s5] sm:$0xf]
        %v1250 = vld [vmem:[%s5 + $0x4] sm:$0xf]
        %v1251 = vld [vmem:[%s5 + $0x8] sm:$0xf]
        %v1252 = vld [vmem:[%s5 + $0xc] sm:$0xf]
        %v1253 = vld [vmem:[%s5 + $0x10] sm:$0xf]
        %v1254 = vld [vmem:[%s5 + $0x14] sm:$0xf]
        %v1255 = vld [vmem:[%s5 + $0x18] sm:$0x1]
        %v1256 = vld [vmem:[%s478] sm:$0xf]
        %v1257 = vld [vmem:[%s478 + $0x4] sm:$0xf]
        %v1258 = vld [vmem:[%s478 + $0x8] sm:$0xf]
        %v1259 = vld [vmem:[%s478 + $0xc] sm:$0xf]
        %v1260 = vld [vmem:[%s478 + $0x10] sm:$0xf]
        %v1261 = vld [vmem:[%s478 + $0x14] sm:$0xf]
        %v1262 = vld [vmem:[%s478 + $0x18] sm:$0xf]
        %v1263 = vld [vmem:[%s478 + $0x1c] sm:$0xf]
        %v1264 = vld [vmem:[%s478 + $0x20] sm:$0xf]
        %v1265 = vld [vmem:[%s478 + $0x24] sm:$0xf]
        %v1266 = vld [vmem:[%s478 + $0x28] sm:$0xf]
        %v1267 = vld [vmem:[%s478 + $0x2c] sm:$0xf]
        %v1268 = vld [vmem:[%s478 + $0x30] sm:$0xf]
        %v1269 = vld [vmem:[%s478 + $0x34] sm:$0xf]
        %v1270 = vld [vmem:[%s478 + $0x38] sm:$0xf]
        %v1271 = vld [vmem:[%s478 + $0x3c] sm:$0xf]
        %v1272 = vld [vmem:[%s478 + $0x40] sm:$0xf]
        %v1273 = vld [vmem:[%s478 + $0x44] sm:$0xf]
        %v1274 = vld [vmem:[%s478 + $0x48] sm:$0xf]
        %v1275 = vld [vmem:[%s478 + $0x4c] sm:$0xf]
        %v1276 = vld [vmem:[%s478 + $0x50] sm:$0xf]
        %v1277 = vld [vmem:[%s478 + $0x54] sm:$0xf]
        %v1278 = vld [vmem:[%s478 + $0x58] sm:$0xf]
        %v1279 = vld [vmem:[%s478 + $0x5c] sm:$0xf]
        %v1280 = vld [vmem:[%s478 + $0x60] sm:$0xf]
        %v1281 = vld [vmem:[%s478 + $0x64] sm:$0xf]
        %v1282 = vld [vmem:[%s478 + $0x68] sm:$0xf]
        %v1283 = vld [vmem:[%s478 + $0x6c] sm:$0xf]
        %v1284 = vld [vmem:[%s478 + $0x70] sm:$0xf]
        %v1285 = vld [vmem:[%s478 + $0x74] sm:$0xf]
        %v1286 = vld [vmem:[%s478 + $0x78] sm:$0xf]
        %v1287 = vld [vmem:[%s478 + $0x7c] sm:$0xf]
        %v1288 = vld [vmem:[%s478 + $0x80] sm:$0xf]
        %v1289 = vld [vmem:[%s478 + $0x84] sm:$0xf]
        %v1290 = vld [vmem:[%s478 + $0x88] sm:$0xf]
        %v1291 = vld [vmem:[%s478 + $0x8c] sm:$0xf]
        %v1292 = vld [vmem:[%s478 + $0x90] sm:$0xf]
        %v1293 = vld [vmem:[%s478 + $0x94] sm:$0xf]
        %v1294 = vld [vmem:[%s478 + $0x98] sm:$0xf]
        %v1295 = vld [vmem:[%s478 + $0x9c] sm:$0xf]
        %v1296 = vld [vmem:[%s478 + $0xa0] sm:$0xf]
        %v1297 = vld [vmem:[%s478 + $0xa4] sm:$0xf]
        %v1298 = vld [vmem:[%s478 + $0xa8] sm:$0xf]
        %v1299 = vld [vmem:[%s478 + $0xac] sm:$0xf]
        %v1300 = vld [vmem:[%s478 + $0xb0] sm:$0xf]
        %v1301 = vld [vmem:[%s478 + $0xb4] sm:$0xf]
        %v1302 = vld [vmem:[%s478 + $0xb8] sm:$0xf]
        %v1303 = vld [vmem:[%s478 + $0xbc] sm:$0xf]
        %v1304 = vld [vmem:[%s478 + $0xc0] sm:$0xf]
        %v1305 = vld [vmem:[%s478 + $0xc4] sm:$0xf]
        %v1306 = vld [vmem:[%s478 + $0xc8] sm:$0xf]
        %v1307 = vld [vmem:[%s478 + $0xcc] sm:$0xf]
        %v1308 = vld [vmem:[%s478 + $0xd0] sm:$0xf]
        %v1309 = vld [vmem:[%s478 + $0xd4] sm:$0xf]
        %v1310 = vld [vmem:[%s478 + $0xd8] sm:$0xf]
        %v1311 = vld [vmem:[%s478 + $0xdc] sm:$0xf]
        %v1312 = vld [vmem:[%s478 + $0xe0] sm:$0xf]
        %v1313 = vld [vmem:[%s478 + $0xe4] sm:$0xf]
        %v1314 = vld [vmem:[%s478 + $0xe8] sm:$0xf]
        %v1315 = vld [vmem:[%s478 + $0xec] sm:$0xf]
        %v1316 = vld [vmem:[%s478 + $0xf0] sm:$0xf]
        %v1317 = vld [vmem:[%s478 + $0xf4] sm:$0xf]
        %v1318 = vld [vmem:[%s478 + $0xf8] sm:$0xf]
        %v1319 = vld [vmem:[%s478 + $0xfc] sm:$0xf]
        %v1320 = vld [vmem:[%s6] sm:$0xf]
        %v1321 = vld [vmem:[%s6 + $0x4] sm:$0xf]
        %v1322 = vld [vmem:[%s6 + $0x8] sm:$0xf]
        %v1323 = vld [vmem:[%s6 + $0xc] sm:$0xf]
        %v1324 = vld [vmem:[%s6 + $0x10] sm:$0xf]
        %v1325 = vld [vmem:[%s6 + $0x14] sm:$0xf]
        %v1326 = vld [vmem:[%s6 + $0x18] sm:$0x1]
        %v1391 = vunpack.c.l.b16 %v1256
        %v1392 = vunpack.c.l.b16 %v1257
        %v1393 = vunpack.c.l.b16 %v1258
        %v1394 = vunpack.c.l.b16 %v1259
        %v1395 = vunpack.c.l.b16 %v1260
        %v1396 = vunpack.c.l.b16 %v1261
        %v1397 = vunpack.c.l.b16 %v1262
        %v1398 = vunpack.c.l.b16 %v1263
        %v1399 = vunpack.c.l.b16 %v1264
        %v1400 = vunpack.c.l.b16 %v1265
        %v1401 = vunpack.c.l.b16 %v1266
        %v1402 = vunpack.c.l.b16 %v1267
        %v1403 = vunpack.c.l.b16 %v1268
        %v1404 = vunpack.c.l.b16 %v1269
        %v1405 = vunpack.c.l.b16 %v1270
        %v1406 = vunpack.c.l.b16 %v1271
        %v1407 = vunpack.c.l.b16 %v1272
        %v1408 = vunpack.c.l.b16 %v1273
        %v1409 = vunpack.c.l.b16 %v1274
        %v1410 = vunpack.c.l.b16 %v1275
        %v1411 = vunpack.c.l.b16 %v1276
        %v1412 = vunpack.c.l.b16 %v1277
        %v1413 = vunpack.c.l.b16 %v1278
        %v1414 = vunpack.c.l.b16 %v1279
        %v1415 = vunpack.c.l.b16 %v1280
        %v1416 = vunpack.c.l.b16 %v1281
        %v1417 = vunpack.c.l.b16 %v1282
        %v1418 = vunpack.c.l.b16 %v1283
        %v1419 = vunpack.c.l.b16 %v1284
        %v1420 = vunpack.c.l.b16 %v1285
        %v1421 = vunpack.c.l.b16 %v1286
        %v1422 = vunpack.c.l.b16 %v1287
        %v1423 = vunpack.c.l.b16 %v1288
        %v1424 = vunpack.c.l.b16 %v1289
        %v1425 = vunpack.c.l.b16 %v1290
        %v1426 = vunpack.c.l.b16 %v1291
        %v1427 = vunpack.c.l.b16 %v1292
        %v1428 = vunpack.c.l.b16 %v1293
        %v1429 = vunpack.c.l.b16 %v1294
        %v1430 = vunpack.c.l.b16 %v1295
        %v1431 = vunpack.c.l.b16 %v1296
        %v1432 = vunpack.c.l.b16 %v1297
        %v1433 = vunpack.c.l.b16 %v1298
        %v1434 = vunpack.c.l.b16 %v1299
        %v1435 = vunpack.c.l.b16 %v1300
        %v1436 = vunpack.c.l.b16 %v1301
        %v1437 = vunpack.c.l.b16 %v1302
        %v1438 = vunpack.c.l.b16 %v1303
        %v1439 = vunpack.c.l.b16 %v1304
        %v1440 = vunpack.c.l.b16 %v1305
        %v1441 = vunpack.c.l.b16 %v1306
        %v1442 = vunpack.c.l.b16 %v1307
        %v1443 = vunpack.c.l.b16 %v1308
        %v1444 = vunpack.c.l.b16 %v1309
        %v1445 = vunpack.c.l.b16 %v1310
        %v1446 = vunpack.c.l.b16 %v1311
        %v1447 = vunpack.c.l.b16 %v1312
        %v1448 = vunpack.c.l.b16 %v1313
        %v1449 = vunpack.c.l.b16 %v1314
        %v1450 = vunpack.c.l.b16 %v1315
        %v1451 = vunpack.c.l.b16 %v1316
        %v1452 = vunpack.c.l.b16 %v1317
        %v1453 = vunpack.c.l.b16 %v1318
        %v1454 = vunpack.c.l.b16 %v1319
        %v1455 = vpack.c.b16 %v1392, %v1391
        %v1456 = vpack.c.b16 %v1394, %v1393
        %v1457 = vpack.c.b16 %v1396, %v1395
        %v1458 = vpack.c.b16 %v1398, %v1397
        %v1459 = vpack.c.b16 %v1400, %v1399
        %v1460 = vpack.c.b16 %v1402, %v1401
        %v1461 = vpack.c.b16 %v1404, %v1403
        %v1462 = vpack.c.b16 %v1406, %v1405
        %v1463 = vpack.c.b16 %v1408, %v1407
        %v1464 = vpack.c.b16 %v1410, %v1409
        %v1465 = vpack.c.b16 %v1412, %v1411
        %v1466 = vpack.c.b16 %v1414, %v1413
        %v1467 = vpack.c.b16 %v1416, %v1415
        %v1468 = vpack.c.b16 %v1418, %v1417
        %v1469 = vpack.c.b16 %v1420, %v1419
        %v1470 = vpack.c.b16 %v1422, %v1421
        %v1471 = vpack.c.b16 %v1424, %v1423
        %v1472 = vpack.c.b16 %v1426, %v1425
        %v1473 = vpack.c.b16 %v1428, %v1427
        %v1474 = vpack.c.b16 %v1430, %v1429
        %v1475 = vpack.c.b16 %v1432, %v1431
        %v1476 = vpack.c.b16 %v1434, %v1433
        %v1477 = vpack.c.b16 %v1436, %v1435
        %v1478 = vpack.c.b16 %v1438, %v1437
        %v1479 = vpack.c.b16 %v1440, %v1439
        %v1480 = vpack.c.b16 %v1442, %v1441
        %v1481 = vpack.c.b16 %v1444, %v1443
        %v1482 = vpack.c.b16 %v1446, %v1445
        %v1483 = vpack.c.b16 %v1448, %v1447
        %v1484 = vpack.c.b16 %v1450, %v1449
        %v1485 = vpack.c.b16 %v1452, %v1451
        %v1486 = vpack.c.b16 %v1454, %v1453
        %v1494 = vunpack.c.l.b16 %v1320
        %v1495 = vunpack.c.l.b16 %v1321
        %v1496 = vunpack.c.l.b16 %v1322
        %v1497 = vunpack.c.l.b16 %v1323
        %v1498 = vunpack.c.l.b16 %v1324
        %v1499 = vunpack.c.l.b16 %v1325
        %v1500 = vunpack.c.l.b16 %v1326
        %v1501 = vpack.c.b16 %v1495, %v1494
        %v1502 = vpack.c.b16 %v1497, %v1496
        %v1503 = vpack.c.b16 %v1499, %v1498
        %v1504 = vpack.c.b16 %v1500, %v1500
        %vm1508 = vcmask 408576
        %v1510 = vsel %vm1508, %v1455, 0
        %v1513 = vsel %vm1508, %v1456, 0
        %v1516 = vsel %vm1508, %v1457, 0
        %v1519 = vsel %vm1508, %v1458, 0
        %v1522 = vsel %vm1508, %v1459, 0
        %v1525 = vsel %vm1508, %v1460, 0
        %v1528 = vsel %vm1508, %v1461, 0
        %v1531 = vsel %vm1508, %v1462, 0
        %v1534 = vsel %vm1508, %v1463, 0
        %v1537 = vsel %vm1508, %v1464, 0
        %v1540 = vsel %vm1508, %v1465, 0
        %v1543 = vsel %vm1508, %v1466, 0
        %v1546 = vsel %vm1508, %v1467, 0
        %v1549 = vsel %vm1508, %v1468, 0
        %v1552 = vsel %vm1508, %v1469, 0
        %v1555 = vsel %vm1508, %v1470, 0
        %v1558 = vsel %vm1508, %v1471, 0
        %v1561 = vsel %vm1508, %v1472, 0
        %v1564 = vsel %vm1508, %v1473, 0
        %v1567 = vsel %vm1508, %v1474, 0
        %v1570 = vsel %vm1508, %v1475, 0
        %v1573 = vsel %vm1508, %v1476, 0
        %v1576 = vsel %vm1508, %v1477, 0
        %v1579 = vsel %vm1508, %v1478, 0
        %v1582 = vsel %vm1508, %v1479, 0
        %v1585 = vsel %vm1508, %v1480, 0
        %v1588 = vsel %vm1508, %v1481, 0
        %v1591 = vsel %vm1508, %v1482, 0
        %v1594 = vsel %vm1508, %v1483, 0
        %v1597 = vsel %vm1508, %v1484, 0
        %v1600 = vsel %vm1508, %v1485, 0
        %v1603 = vsel %vm1508, %v1486, 0
        %vm1605 = vcmask 1040384
        %v1607 = vsel %vm1605, %v1504, 0
        %1609 = vmatprep.subr.bf16.mxu0 0
        %1610 = vmatpush1.bf16.msra.mxu0 0
        %1611 = vmatprep.subr.bf16.mxu0 0
        %1612 = vmatpush1.bf16.msra.mxu0 0
        %1613 = vmatprep.subr.bf16.mxu0 0
        %1614 = vmatpush1.bf16.msra.mxu0 0
        %1615 = vmatprep.subr.bf16.mxu0 0
        %1616 = vmatpush1.bf16.msra.mxu0 0
        %1617 = vmatprep.subr.bf16.mxu0 0
        %1618 = vmatpush1.bf16.msra.mxu0 %v1607
        %1619 = vmatprep.subr.bf16.mxu0 0
        %1620 = vmatpush1.bf16.msra.mxu0 %v1503
        %1621 = vmatprep.subr.bf16.mxu0 0
        %1622 = vmatpush1.bf16.msra.mxu0 %v1502
        %1623 = vmatprep.subr.bf16.mxu0 0
        %1624 = vmatpush1.bf16.msra.mxu0 %v1501
        %1625 = vmatprep.subr.bf16.mxu0 0
        %1626 = vmatpush2.bf16.msra.mxu0 0
        %1627 = vmatprep.subr.bf16.mxu0 0
        %1628 = vmatpush2.bf16.msra.mxu0 0
        %1629 = vmatprep.subr.bf16.mxu0 0
        %1630 = vmatpush2.bf16.msra.mxu0 0
        %1631 = vmatprep.subr.bf16.mxu0 0
        %1632 = vmatpush2.bf16.msra.mxu0 0
        %1633 = vmatprep.subr.bf16.mxu0 0
        %1634 = vmatpush2.bf16.msra.mxu0 0
        %1635 = vmatprep.subr.bf16.mxu0 0
        %1636 = vmatpush2.bf16.msra.mxu0 0
        %1637 = vmatprep.subr.bf16.mxu0 0
        %1638 = vmatpush2.bf16.msra.mxu0 0
        %1639 = vmatprep.subr.bf16.mxu0 0
        %1640 = vmatpush2.bf16.msra.mxu0 0
        %1641 = vmatprep.mubr.bf16.mxu0 0
        %1642 = vmatmul.mubr.bf16.gmra.mxu0 %v1510
        %v1643 = vpop.f32.mrf.mxu0
        %v1644 = vadd.f32 0.0, %v1643
        %v1645 = vpop.f32.mrf.mxu0
        %v1646 = vpop.f32.mrf.mxu0
        %v1647 = vadd.f32 0.0, %v1646
        %v1648 = vpop.f32.mrf.mxu0
        %1649 = vmatprep.mubr.bf16.mxu0 0
        %1650 = vmatmul.mubr.bf16.gmra.mxu0 %v1513
        %v1651 = vpop.f32.mrf.mxu0
        %v1652 = vadd.f32 0.0, %v1651
        %v1653 = vpop.f32.mrf.mxu0
        %v1654 = vpop.f32.mrf.mxu0
        %v1655 = vadd.f32 0.0, %v1654
        %v1656 = vpop.f32.mrf.mxu0
        %1657 = vmatprep.mubr.bf16.mxu0 0
        %1658 = vmatmul.mubr.bf16.gmra.mxu0 %v1516
        %v1659 = vpop.f32.mrf.mxu0
        %v1660 = vadd.f32 0.0, %v1659
        %v1661 = vpop.f32.mrf.mxu0
        %v1662 = vpop.f32.mrf.mxu0
        %v1663 = vadd.f32 0.0, %v1662
        %v1664 = vpop.f32.mrf.mxu0
        %1665 = vmatprep.mubr.bf16.mxu0 0
        %1666 = vmatmul.mubr.bf16.gmra.mxu0 %v1519
        %v1667 = vpop.f32.mrf.mxu0
        %v1668 = vadd.f32 0.0, %v1667
        %v1669 = vpop.f32.mrf.mxu0
        %v1670 = vpop.f32.mrf.mxu0
        %v1671 = vadd.f32 0.0, %v1670
        %v1672 = vpop.f32.mrf.mxu0
        %1673 = vmatprep.mubr.bf16.mxu0 0
        %1674 = vmatmul.mubr.bf16.gmra.mxu0 %v1522
        %v1675 = vpop.f32.mrf.mxu0
        %v1676 = vadd.f32 0.0, %v1675
        %v1677 = vpop.f32.mrf.mxu0
        %v1678 = vpop.f32.mrf.mxu0
        %v1679 = vadd.f32 0.0, %v1678
        %v1680 = vpop.f32.mrf.mxu0
        %1681 = vmatprep.mubr.bf16.mxu0 0
        %1682 = vmatmul.mubr.bf16.gmra.mxu0 %v1525
        %v1683 = vpop.f32.mrf.mxu0
        %v1684 = vadd.f32 0.0, %v1683
        %v1685 = vpop.f32.mrf.mxu0
        %v1686 = vpop.f32.mrf.mxu0
        %v1687 = vadd.f32 0.0, %v1686
        %v1688 = vpop.f32.mrf.mxu0
        %1689 = vmatprep.mubr.bf16.mxu0 0
        %1690 = vmatmul.mubr.bf16.gmra.mxu0 %v1528
        %v1691 = vpop.f32.mrf.mxu0
        %v1692 = vadd.f32 0.0, %v1691
        %v1693 = vpop.f32.mrf.mxu0
        %v1694 = vpop.f32.mrf.mxu0
        %v1695 = vadd.f32 0.0, %v1694
        %v1696 = vpop.f32.mrf.mxu0
        %1697 = vmatprep.mubr.bf16.mxu0 0
        %1698 = vmatmul.mubr.bf16.gmra.mxu0 %v1531
        %v1699 = vpop.f32.mrf.mxu0
        %v1700 = vadd.f32 0.0, %v1699
        %v1701 = vpop.f32.mrf.mxu0
        %v1702 = vpop.f32.mrf.mxu0
        %v1703 = vadd.f32 0.0, %v1702
        %v1704 = vpop.f32.mrf.mxu0
        %1705 = vmatprep.mubr.bf16.mxu0 0
        %1706 = vmatmul.mubr.bf16.gmra.mxu0 %v1534
        %v1707 = vpop.f32.mrf.mxu0
        %v1708 = vadd.f32 0.0, %v1707
        %v1709 = vpop.f32.mrf.mxu0
        %v1710 = vpop.f32.mrf.mxu0
        %v1711 = vadd.f32 0.0, %v1710
        %v1712 = vpop.f32.mrf.mxu0
        %1713 = vmatprep.mubr.bf16.mxu0 0
        %1714 = vmatmul.mubr.bf16.gmra.mxu0 %v1537
        %v1715 = vpop.f32.mrf.mxu0
        %v1716 = vadd.f32 0.0, %v1715
        %v1717 = vpop.f32.mrf.mxu0
        %v1718 = vpop.f32.mrf.mxu0
        %v1719 = vadd.f32 0.0, %v1718
        %v1720 = vpop.f32.mrf.mxu0
        %1721 = vmatprep.mubr.bf16.mxu0 0
        %1722 = vmatmul.mubr.bf16.gmra.mxu0 %v1540
        %v1723 = vpop.f32.mrf.mxu0
        %v1724 = vadd.f32 0.0, %v1723
        %v1725 = vpop.f32.mrf.mxu0
        %v1726 = vpop.f32.mrf.mxu0
        %v1727 = vadd.f32 0.0, %v1726
        %v1728 = vpop.f32.mrf.mxu0
        %1729 = vmatprep.mubr.bf16.mxu0 0
        %1730 = vmatmul.mubr.bf16.gmra.mxu0 %v1543
        %v1731 = vpop.f32.mrf.mxu0
        %v1732 = vadd.f32 0.0, %v1731
        %v1733 = vpop.f32.mrf.mxu0
        %v1734 = vpop.f32.mrf.mxu0
        %v1735 = vadd.f32 0.0, %v1734
        %v1736 = vpop.f32.mrf.mxu0
        %1737 = vmatprep.mubr.bf16.mxu0 0
        %1738 = vmatmul.mubr.bf16.gmra.mxu0 %v1546
        %v1739 = vpop.f32.mrf.mxu0
        %v1740 = vadd.f32 0.0, %v1739
        %v1741 = vpop.f32.mrf.mxu0
        %v1742 = vpop.f32.mrf.mxu0
        %v1743 = vadd.f32 0.0, %v1742
        %v1744 = vpop.f32.mrf.mxu0
        %1745 = vmatprep.mubr.bf16.mxu0 0
        %1746 = vmatmul.mubr.bf16.gmra.mxu0 %v1549
        %v1747 = vpop.f32.mrf.mxu0
        %v1748 = vadd.f32 0.0, %v1747
        %v1749 = vpop.f32.mrf.mxu0
        %v1750 = vpop.f32.mrf.mxu0
        %v1751 = vadd.f32 0.0, %v1750
        %v1752 = vpop.f32.mrf.mxu0
        %1753 = vmatprep.mubr.bf16.mxu0 0
        %1754 = vmatmul.mubr.bf16.gmra.mxu0 %v1552
        %v1755 = vpop.f32.mrf.mxu0
        %v1756 = vadd.f32 0.0, %v1755
        %v1757 = vpop.f32.mrf.mxu0
        %v1758 = vpop.f32.mrf.mxu0
        %v1759 = vadd.f32 0.0, %v1758
        %v1760 = vpop.f32.mrf.mxu0
        %1761 = vmatprep.mubr.bf16.mxu0 0
        %1762 = vmatmul.mubr.bf16.gmra.mxu0 %v1555
        %v1763 = vpop.f32.mrf.mxu0
        %v1764 = vadd.f32 0.0, %v1763
        %v1765 = vpop.f32.mrf.mxu0
        %v1766 = vpop.f32.mrf.mxu0
        %v1767 = vadd.f32 0.0, %v1766
        %v1768 = vpop.f32.mrf.mxu0
        %1769 = vmatprep.mubr.bf16.mxu0 0
        %1770 = vmatmul.mubr.bf16.gmra.mxu0 %v1558
        %v1771 = vpop.f32.mrf.mxu0
        %v1772 = vadd.f32 0.0, %v1771
        %v1773 = vpop.f32.mrf.mxu0
        %v1774 = vpop.f32.mrf.mxu0
        %v1775 = vadd.f32 0.0, %v1774
        %v1776 = vpop.f32.mrf.mxu0
        %1777 = vmatprep.mubr.bf16.mxu0 0
        %1778 = vmatmul.mubr.bf16.gmra.mxu0 %v1561
        %v1779 = vpop.f32.mrf.mxu0
        %v1780 = vadd.f32 0.0, %v1779
        %v1781 = vpop.f32.mrf.mxu0
        %v1782 = vpop.f32.mrf.mxu0
        %v1783 = vadd.f32 0.0, %v1782
        %v1784 = vpop.f32.mrf.mxu0
        %1785 = vmatprep.mubr.bf16.mxu0 0
        %1786 = vmatmul.mubr.bf16.gmra.mxu0 %v1564
        %v1787 = vpop.f32.mrf.mxu0
        %v1788 = vadd.f32 0.0, %v1787
        %v1789 = vpop.f32.mrf.mxu0
        %v1790 = vpop.f32.mrf.mxu0
        %v1791 = vadd.f32 0.0, %v1790
        %v1792 = vpop.f32.mrf.mxu0
        %1793 = vmatprep.mubr.bf16.mxu0 0
        %1794 = vmatmul.mubr.bf16.gmra.mxu0 %v1567
        %v1795 = vpop.f32.mrf.mxu0
        %v1796 = vadd.f32 0.0, %v1795
        %v1797 = vpop.f32.mrf.mxu0
        %v1798 = vpop.f32.mrf.mxu0
        %v1799 = vadd.f32 0.0, %v1798
        %v1800 = vpop.f32.mrf.mxu0
        %1801 = vmatprep.mubr.bf16.mxu0 0
        %1802 = vmatmul.mubr.bf16.gmra.mxu0 %v1570
        %v1803 = vpop.f32.mrf.mxu0
        %v1804 = vadd.f32 0.0, %v1803
        %v1805 = vpop.f32.mrf.mxu0
        %v1806 = vpop.f32.mrf.mxu0
        %v1807 = vadd.f32 0.0, %v1806
        %v1808 = vpop.f32.mrf.mxu0
        %1809 = vmatprep.mubr.bf16.mxu0 0
        %1810 = vmatmul.mubr.bf16.gmra.mxu0 %v1573
        %v1811 = vpop.f32.mrf.mxu0
        %v1812 = vadd.f32 0.0, %v1811
        %v1813 = vpop.f32.mrf.mxu0
        %v1814 = vpop.f32.mrf.mxu0
        %v1815 = vadd.f32 0.0, %v1814
        %v1816 = vpop.f32.mrf.mxu0
        %1817 = vmatprep.mubr.bf16.mxu0 0
        %1818 = vmatmul.mubr.bf16.gmra.mxu0 %v1576
        %v1819 = vpop.f32.mrf.mxu0
        %v1820 = vadd.f32 0.0, %v1819
        %v1821 = vpop.f32.mrf.mxu0
        %v1822 = vpop.f32.mrf.mxu0
        %v1823 = vadd.f32 0.0, %v1822
        %v1824 = vpop.f32.mrf.mxu0
        %1825 = vmatprep.mubr.bf16.mxu0 0
        %1826 = vmatmul.mubr.bf16.gmra.mxu0 %v1579
        %v1827 = vpop.f32.mrf.mxu0
        %v1828 = vadd.f32 0.0, %v1827
        %v1829 = vpop.f32.mrf.mxu0
        %v1830 = vpop.f32.mrf.mxu0
        %v1831 = vadd.f32 0.0, %v1830
        %v1832 = vpop.f32.mrf.mxu0
        %1833 = vmatprep.mubr.bf16.mxu0 0
        %1834 = vmatmul.mubr.bf16.gmra.mxu0 %v1582
        %v1835 = vpop.f32.mrf.mxu0
        %v1836 = vadd.f32 0.0, %v1835
        %v1837 = vpop.f32.mrf.mxu0
        %v1838 = vpop.f32.mrf.mxu0
        %v1839 = vadd.f32 0.0, %v1838
        %v1840 = vpop.f32.mrf.mxu0
        %1841 = vmatprep.mubr.bf16.mxu0 0
        %1842 = vmatmul.mubr.bf16.gmra.mxu0 %v1585
        %v1843 = vpop.f32.mrf.mxu0
        %v1844 = vadd.f32 0.0, %v1843
        %v1845 = vpop.f32.mrf.mxu0
        %v1846 = vpop.f32.mrf.mxu0
        %v1847 = vadd.f32 0.0, %v1846
        %v1848 = vpop.f32.mrf.mxu0
        %1849 = vmatprep.mubr.bf16.mxu0 0
        %1850 = vmatmul.mubr.bf16.gmra.mxu0 %v1588
        %v1851 = vpop.f32.mrf.mxu0
        %v1852 = vadd.f32 0.0, %v1851
        %v1853 = vpop.f32.mrf.mxu0
        %v1854 = vpop.f32.mrf.mxu0
        %v1855 = vadd.f32 0.0, %v1854
        %v1856 = vpop.f32.mrf.mxu0
        %1857 = vmatprep.mubr.bf16.mxu0 0
        %1858 = vmatmul.mubr.bf16.gmra.mxu0 %v1591
        %v1859 = vpop.f32.mrf.mxu0
        %v1860 = vadd.f32 0.0, %v1859
        %v1861 = vpop.f32.mrf.mxu0
        %v1862 = vpop.f32.mrf.mxu0
        %v1863 = vadd.f32 0.0, %v1862
        %v1864 = vpop.f32.mrf.mxu0
        %1865 = vmatprep.mubr.bf16.mxu0 0
        %1866 = vmatmul.mubr.bf16.gmra.mxu0 %v1594
        %v1867 = vpop.f32.mrf.mxu0
        %v1868 = vadd.f32 0.0, %v1867
        %v1869 = vpop.f32.mrf.mxu0
        %v1870 = vpop.f32.mrf.mxu0
        %v1871 = vadd.f32 0.0, %v1870
        %v1872 = vpop.f32.mrf.mxu0
        %1873 = vmatprep.mubr.bf16.mxu0 0
        %1874 = vmatmul.mubr.bf16.gmra.mxu0 %v1597
        %v1875 = vpop.f32.mrf.mxu0
        %v1876 = vadd.f32 0.0, %v1875
        %v1877 = vpop.f32.mrf.mxu0
        %v1878 = vpop.f32.mrf.mxu0
        %v1879 = vadd.f32 0.0, %v1878
        %v1880 = vpop.f32.mrf.mxu0
        %1881 = vmatprep.mubr.bf16.mxu0 0
        %1882 = vmatmul.mubr.bf16.gmra.mxu0 %v1600
        %v1883 = vpop.f32.mrf.mxu0
        %v1884 = vadd.f32 0.0, %v1883
        %v1885 = vpop.f32.mrf.mxu0
        %v1886 = vpop.f32.mrf.mxu0
        %v1887 = vadd.f32 0.0, %v1886
        %v1888 = vpop.f32.mrf.mxu0
        %1889 = vmatprep.mubr.bf16.mxu0 0
        %1890 = vmatmul.mubr.bf16.gmra.mxu0 %v1603
        %v1891 = vpop.f32.mrf.mxu0
        %v1892 = vadd.f32 0.0, %v1891
        %v1893 = vpop.f32.mrf.mxu0
        %v1894 = vpop.f32.mrf.mxu0
        %v1895 = vadd.f32 0.0, %v1894
        %v1896 = vpop.f32.mrf.mxu0
        %1897 = vdwg.mxu0
        %v1962 = vunpack.c.l.b16 %v1185
        %v1963 = vunpack.c.l.b16 %v1186
        %v1964 = vunpack.c.l.b16 %v1187
        %v1965 = vunpack.c.l.b16 %v1188
        %v1966 = vunpack.c.l.b16 %v1189
        %v1967 = vunpack.c.l.b16 %v1190
        %v1968 = vunpack.c.l.b16 %v1191
        %v1969 = vunpack.c.l.b16 %v1192
        %v1970 = vunpack.c.l.b16 %v1193
        %v1971 = vunpack.c.l.b16 %v1194
        %v1972 = vunpack.c.l.b16 %v1195
        %v1973 = vunpack.c.l.b16 %v1196
        %v1974 = vunpack.c.l.b16 %v1197
        %v1975 = vunpack.c.l.b16 %v1198
        %v1976 = vunpack.c.l.b16 %v1199
        %v1977 = vunpack.c.l.b16 %v1200
        %v1978 = vunpack.c.l.b16 %v1201
        %v1979 = vunpack.c.l.b16 %v1202
        %v1980 = vunpack.c.l.b16 %v1203
        %v1981 = vunpack.c.l.b16 %v1204
        %v1982 = vunpack.c.l.b16 %v1205
        %v1983 = vunpack.c.l.b16 %v1206
        %v1984 = vunpack.c.l.b16 %v1207
        %v1985 = vunpack.c.l.b16 %v1208
        %v1986 = vunpack.c.l.b16 %v1209
        %v1987 = vunpack.c.l.b16 %v1210
        %v1988 = vunpack.c.l.b16 %v1211
        %v1989 = vunpack.c.l.b16 %v1212
        %v1990 = vunpack.c.l.b16 %v1213
        %v1991 = vunpack.c.l.b16 %v1214
        %v1992 = vunpack.c.l.b16 %v1215
        %v1993 = vunpack.c.l.b16 %v1216
        %v1994 = vunpack.c.l.b16 %v1217
        %v1995 = vunpack.c.l.b16 %v1218
        %v1996 = vunpack.c.l.b16 %v1219
        %v1997 = vunpack.c.l.b16 %v1220
        %v1998 = vunpack.c.l.b16 %v1221
        %v1999 = vunpack.c.l.b16 %v1222
        %v2000 = vunpack.c.l.b16 %v1223
        %v2001 = vunpack.c.l.b16 %v1224
        %v2002 = vunpack.c.l.b16 %v1225
        %v2003 = vunpack.c.l.b16 %v1226
        %v2004 = vunpack.c.l.b16 %v1227
        %v2005 = vunpack.c.l.b16 %v1228
        %v2006 = vunpack.c.l.b16 %v1229
        %v2007 = vunpack.c.l.b16 %v1230
        %v2008 = vunpack.c.l.b16 %v1231
        %v2009 = vunpack.c.l.b16 %v1232
        %v2010 = vunpack.c.l.b16 %v1233
        %v2011 = vunpack.c.l.b16 %v1234
        %v2012 = vunpack.c.l.b16 %v1235
        %v2013 = vunpack.c.l.b16 %v1236
        %v2014 = vunpack.c.l.b16 %v1237
        %v2015 = vunpack.c.l.b16 %v1238
        %v2016 = vunpack.c.l.b16 %v1239
        %v2017 = vunpack.c.l.b16 %v1240
        %v2018 = vunpack.c.l.b16 %v1241
        %v2019 = vunpack.c.l.b16 %v1242
        %v2020 = vunpack.c.l.b16 %v1243
        %v2021 = vunpack.c.l.b16 %v1244
        %v2022 = vunpack.c.l.b16 %v1245
        %v2023 = vunpack.c.l.b16 %v1246
        %v2024 = vunpack.c.l.b16 %v1247
        %v2025 = vunpack.c.l.b16 %v1248
        %v2026 = vpack.c.b16 %v1963, %v1962
        %v2027 = vpack.c.b16 %v1965, %v1964
        %v2028 = vpack.c.b16 %v1967, %v1966
        %v2029 = vpack.c.b16 %v1969, %v1968
        %v2030 = vpack.c.b16 %v1971, %v1970
        %v2031 = vpack.c.b16 %v1973, %v1972
        %v2032 = vpack.c.b16 %v1975, %v1974
        %v2033 = vpack.c.b16 %v1977, %v1976
        %v2034 = vpack.c.b16 %v1979, %v1978
        %v2035 = vpack.c.b16 %v1981, %v1980
        %v2036 = vpack.c.b16 %v1983, %v1982
        %v2037 = vpack.c.b16 %v1985, %v1984
        %v2038 = vpack.c.b16 %v1987, %v1986
        %v2039 = vpack.c.b16 %v1989, %v1988
        %v2040 = vpack.c.b16 %v1991, %v1990
        %v2041 = vpack.c.b16 %v1993, %v1992
        %v2042 = vpack.c.b16 %v1995, %v1994
        %v2043 = vpack.c.b16 %v1997, %v1996
        %v2044 = vpack.c.b16 %v1999, %v1998
        %v2045 = vpack.c.b16 %v2001, %v2000
        %v2046 = vpack.c.b16 %v2003, %v2002
        %v2047 = vpack.c.b16 %v2005, %v2004
        %v2048 = vpack.c.b16 %v2007, %v2006
        %v2049 = vpack.c.b16 %v2009, %v2008
        %v2050 = vpack.c.b16 %v2011, %v2010
        %v2051 = vpack.c.b16 %v2013, %v2012
        %v2052 = vpack.c.b16 %v2015, %v2014
        %v2053 = vpack.c.b16 %v2017, %v2016
        %v2054 = vpack.c.b16 %v2019, %v2018
        %v2055 = vpack.c.b16 %v2021, %v2020
        %v2056 = vpack.c.b16 %v2023, %v2022
        %v2057 = vpack.c.b16 %v2025, %v2024
        %v2065 = vunpack.c.l.b16 %v1249
        %v2066 = vunpack.c.l.b16 %v1250
        %v2067 = vunpack.c.l.b16 %v1251
        %v2068 = vunpack.c.l.b16 %v1252
        %v2069 = vunpack.c.l.b16 %v1253
        %v2070 = vunpack.c.l.b16 %v1254
        %v2071 = vunpack.c.l.b16 %v1255
        %v2072 = vpack.c.b16 %v2066, %v2065
        %v2073 = vpack.c.b16 %v2068, %v2067
        %v2074 = vpack.c.b16 %v2070, %v2069
        %v2075 = vpack.c.b16 %v2071, %v2071
        %v2080 = vsel %vm1508, %v2026, 0
        %v2083 = vsel %vm1508, %v2027, 0
        %v2086 = vsel %vm1508, %v2028, 0
        %v2089 = vsel %vm1508, %v2029, 0
        %v2092 = vsel %vm1508, %v2030, 0
        %v2095 = vsel %vm1508, %v2031, 0
        %v2098 = vsel %vm1508, %v2032, 0
        %v2101 = vsel %vm1508, %v2033, 0
        %v2104 = vsel %vm1508, %v2034, 0
        %v2107 = vsel %vm1508, %v2035, 0
        %v2110 = vsel %vm1508, %v2036, 0
        %v2113 = vsel %vm1508, %v2037, 0
        %v2116 = vsel %vm1508, %v2038, 0
        %v2119 = vsel %vm1508, %v2039, 0
        %v2122 = vsel %vm1508, %v2040, 0
        %v2125 = vsel %vm1508, %v2041, 0
        %v2128 = vsel %vm1508, %v2042, 0
        %v2131 = vsel %vm1508, %v2043, 0
        %v2134 = vsel %vm1508, %v2044, 0
        %v2137 = vsel %vm1508, %v2045, 0
        %v2140 = vsel %vm1508, %v2046, 0
        %v2143 = vsel %vm1508, %v2047, 0
        %v2146 = vsel %vm1508, %v2048, 0
        %v2149 = vsel %vm1508, %v2049, 0
        %v2152 = vsel %vm1508, %v2050, 0
        %v2155 = vsel %vm1508, %v2051, 0
        %v2158 = vsel %vm1508, %v2052, 0
        %v2161 = vsel %vm1508, %v2053, 0
        %v2164 = vsel %vm1508, %v2054, 0
        %v2167 = vsel %vm1508, %v2055, 0
        %v2170 = vsel %vm1508, %v2056, 0
        %v2173 = vsel %vm1508, %v2057, 0
        %v2176 = vsel %vm1605, %v2075, 0
        %2178 = vmatprep.subr.bf16.mxu0 0
        %2179 = vmatpush1.bf16.msra.mxu0 0
        %2180 = vmatprep.subr.bf16.mxu0 0
        %2181 = vmatpush1.bf16.msra.mxu0 0
        %2182 = vmatprep.subr.bf16.mxu0 0
        %2183 = vmatpush1.bf16.msra.mxu0 0
        %2184 = vmatprep.subr.bf16.mxu0 0
        %2185 = vmatpush1.bf16.msra.mxu0 0
        %2186 = vmatprep.subr.bf16.mxu0 0
        %2187 = vmatpush1.bf16.msra.mxu0 %v2176
        %2188 = vmatprep.subr.bf16.mxu0 0
        %2189 = vmatpush1.bf16.msra.mxu0 %v2074
        %2190 = vmatprep.subr.bf16.mxu0 0
        %2191 = vmatpush1.bf16.msra.mxu0 %v2073
        %2192 = vmatprep.subr.bf16.mxu0 0
        %2193 = vmatpush1.bf16.msra.mxu0 %v2072
        %2194 = vmatprep.subr.bf16.mxu0 0
        %2195 = vmatpush2.bf16.msra.mxu0 0
        %2196 = vmatprep.subr.bf16.mxu0 0
        %2197 = vmatpush2.bf16.msra.mxu0 0
        %2198 = vmatprep.subr.bf16.mxu0 0
        %2199 = vmatpush2.bf16.msra.mxu0 0
        %2200 = vmatprep.subr.bf16.mxu0 0
        %2201 = vmatpush2.bf16.msra.mxu0 0
        %2202 = vmatprep.subr.bf16.mxu0 0
        %2203 = vmatpush2.bf16.msra.mxu0 0
        %2204 = vmatprep.subr.bf16.mxu0 0
        %2205 = vmatpush2.bf16.msra.mxu0 0
        %2206 = vmatprep.subr.bf16.mxu0 0
        %2207 = vmatpush2.bf16.msra.mxu0 0
        %2208 = vmatprep.subr.bf16.mxu0 0
        %2209 = vmatpush2.bf16.msra.mxu0 0
        %2210 = vmatprep.mubr.bf16.mxu0 0
        %2211 = vmatmul.mubr.bf16.gmra.mxu0 %v2080
        %v2212 = vpop.f32.mrf.mxu0
        %v2213 = vadd.f32 %v1644, %v2212
        %v2214 = vpop.f32.mrf.mxu0
        %v2215 = vpop.f32.mrf.mxu0
        %v2216 = vadd.f32 %v1647, %v2215
        %v2217 = vpop.f32.mrf.mxu0
        %2218 = vmatprep.mubr.bf16.mxu0 0
        %2219 = vmatmul.mubr.bf16.gmra.mxu0 %v2083
        %v2220 = vpop.f32.mrf.mxu0
        %v2221 = vadd.f32 %v1652, %v2220
        %v2222 = vpop.f32.mrf.mxu0
        %v2223 = vpop.f32.mrf.mxu0
        %v2224 = vadd.f32 %v1655, %v2223
        %v2225 = vpop.f32.mrf.mxu0
        %2226 = vmatprep.mubr.bf16.mxu0 0
        %2227 = vmatmul.mubr.bf16.gmra.mxu0 %v2086
        %v2228 = vpop.f32.mrf.mxu0
        %v2229 = vadd.f32 %v1660, %v2228
        %v2230 = vpop.f32.mrf.mxu0
        %v2231 = vpop.f32.mrf.mxu0
        %v2232 = vadd.f32 %v1663, %v2231
        %v2233 = vpop.f32.mrf.mxu0
        %2234 = vmatprep.mubr.bf16.mxu0 0
        %2235 = vmatmul.mubr.bf16.gmra.mxu0 %v2089
        %v2236 = vpop.f32.mrf.mxu0
        %v2237 = vadd.f32 %v1668, %v2236
        %v2238 = vpop.f32.mrf.mxu0
        %v2239 = vpop.f32.mrf.mxu0
        %v2240 = vadd.f32 %v1671, %v2239
        %v2241 = vpop.f32.mrf.mxu0
        %2242 = vmatprep.mubr.bf16.mxu0 0
        %2243 = vmatmul.mubr.bf16.gmra.mxu0 %v2092
        %v2244 = vpop.f32.mrf.mxu0
        %v2245 = vadd.f32 %v1676, %v2244
        %v2246 = vpop.f32.mrf.mxu0
        %v2247 = vpop.f32.mrf.mxu0
        %v2248 = vadd.f32 %v1679, %v2247
        %v2249 = vpop.f32.mrf.mxu0
        %2250 = vmatprep.mubr.bf16.mxu0 0
        %2251 = vmatmul.mubr.bf16.gmra.mxu0 %v2095
        %v2252 = vpop.f32.mrf.mxu0
        %v2253 = vadd.f32 %v1684, %v2252
        %v2254 = vpop.f32.mrf.mxu0
        %v2255 = vpop.f32.mrf.mxu0
        %v2256 = vadd.f32 %v1687, %v2255
        %v2257 = vpop.f32.mrf.mxu0
        %2258 = vmatprep.mubr.bf16.mxu0 0
        %2259 = vmatmul.mubr.bf16.gmra.mxu0 %v2098
        %v2260 = vpop.f32.mrf.mxu0
        %v2261 = vadd.f32 %v1692, %v2260
        %v2262 = vpop.f32.mrf.mxu0
        %v2263 = vpop.f32.mrf.mxu0
        %v2264 = vadd.f32 %v1695, %v2263
        %v2265 = vpop.f32.mrf.mxu0
        %2266 = vmatprep.mubr.bf16.mxu0 0
        %2267 = vmatmul.mubr.bf16.gmra.mxu0 %v2101
        %v2268 = vpop.f32.mrf.mxu0
        %v2269 = vadd.f32 %v1700, %v2268
        %v2270 = vpop.f32.mrf.mxu0
        %v2271 = vpop.f32.mrf.mxu0
        %v2272 = vadd.f32 %v1703, %v2271
        %v2273 = vpop.f32.mrf.mxu0
        %2274 = vmatprep.mubr.bf16.mxu0 0
        %2275 = vmatmul.mubr.bf16.gmra.mxu0 %v2104
        %v2276 = vpop.f32.mrf.mxu0
        %v2277 = vadd.f32 %v1708, %v2276
        %v2278 = vpop.f32.mrf.mxu0
        %v2279 = vpop.f32.mrf.mxu0
        %v2280 = vadd.f32 %v1711, %v2279
        %v2281 = vpop.f32.mrf.mxu0
        %2282 = vmatprep.mubr.bf16.mxu0 0
        %2283 = vmatmul.mubr.bf16.gmra.mxu0 %v2107
        %v2284 = vpop.f32.mrf.mxu0
        %v2285 = vadd.f32 %v1716, %v2284
        %v2286 = vpop.f32.mrf.mxu0
        %v2287 = vpop.f32.mrf.mxu0
        %v2288 = vadd.f32 %v1719, %v2287
        %v2289 = vpop.f32.mrf.mxu0
        %2290 = vmatprep.mubr.bf16.mxu0 0
        %2291 = vmatmul.mubr.bf16.gmra.mxu0 %v2110
        %v2292 = vpop.f32.mrf.mxu0
        %v2293 = vadd.f32 %v1724, %v2292
        %v2294 = vpop.f32.mrf.mxu0
        %v2295 = vpop.f32.mrf.mxu0
        %v2296 = vadd.f32 %v1727, %v2295
        %v2297 = vpop.f32.mrf.mxu0
        %2298 = vmatprep.mubr.bf16.mxu0 0
        %2299 = vmatmul.mubr.bf16.gmra.mxu0 %v2113
        %v2300 = vpop.f32.mrf.mxu0
        %v2301 = vadd.f32 %v1732, %v2300
        %v2302 = vpop.f32.mrf.mxu0
        %v2303 = vpop.f32.mrf.mxu0
        %v2304 = vadd.f32 %v1735, %v2303
        %v2305 = vpop.f32.mrf.mxu0
        %2306 = vmatprep.mubr.bf16.mxu0 0
        %2307 = vmatmul.mubr.bf16.gmra.mxu0 %v2116
        %v2308 = vpop.f32.mrf.mxu0
        %v2309 = vadd.f32 %v1740, %v2308
        %v2310 = vpop.f32.mrf.mxu0
        %v2311 = vpop.f32.mrf.mxu0
        %v2312 = vadd.f32 %v1743, %v2311
        %v2313 = vpop.f32.mrf.mxu0
        %2314 = vmatprep.mubr.bf16.mxu0 0
        %2315 = vmatmul.mubr.bf16.gmra.mxu0 %v2119
        %v2316 = vpop.f32.mrf.mxu0
        %v2317 = vadd.f32 %v1748, %v2316
        %v2318 = vpop.f32.mrf.mxu0
        %v2319 = vpop.f32.mrf.mxu0
        %v2320 = vadd.f32 %v1751, %v2319
        %v2321 = vpop.f32.mrf.mxu0
        %2322 = vmatprep.mubr.bf16.mxu0 0
        %2323 = vmatmul.mubr.bf16.gmra.mxu0 %v2122
        %v2324 = vpop.f32.mrf.mxu0
        %v2325 = vadd.f32 %v1756, %v2324
        %v2326 = vpop.f32.mrf.mxu0
        %v2327 = vpop.f32.mrf.mxu0
        %v2328 = vadd.f32 %v1759, %v2327
        %v2329 = vpop.f32.mrf.mxu0
        %2330 = vmatprep.mubr.bf16.mxu0 0
        %2331 = vmatmul.mubr.bf16.gmra.mxu0 %v2125
        %v2332 = vpop.f32.mrf.mxu0
        %v2333 = vadd.f32 %v1764, %v2332
        %v2334 = vpop.f32.mrf.mxu0
        %v2335 = vpop.f32.mrf.mxu0
        %v2336 = vadd.f32 %v1767, %v2335
        %v2337 = vpop.f32.mrf.mxu0
        %2338 = vmatprep.mubr.bf16.mxu0 0
        %2339 = vmatmul.mubr.bf16.gmra.mxu0 %v2128
        %v2340 = vpop.f32.mrf.mxu0
        %v2341 = vadd.f32 %v1772, %v2340
        %v2342 = vpop.f32.mrf.mxu0
        %v2343 = vpop.f32.mrf.mxu0
        %v2344 = vadd.f32 %v1775, %v2343
        %v2345 = vpop.f32.mrf.mxu0
        %2346 = vmatprep.mubr.bf16.mxu0 0
        %2347 = vmatmul.mubr.bf16.gmra.mxu0 %v2131
        %v2348 = vpop.f32.mrf.mxu0
        %v2349 = vadd.f32 %v1780, %v2348
        %v2350 = vpop.f32.mrf.mxu0
        %v2351 = vpop.f32.mrf.mxu0
        %v2352 = vadd.f32 %v1783, %v2351
        %v2353 = vpop.f32.mrf.mxu0
        %2354 = vmatprep.mubr.bf16.mxu0 0
        %2355 = vmatmul.mubr.bf16.gmra.mxu0 %v2134
        %v2356 = vpop.f32.mrf.mxu0
        %v2357 = vadd.f32 %v1788, %v2356
        %v2358 = vpop.f32.mrf.mxu0
        %v2359 = vpop.f32.mrf.mxu0
        %v2360 = vadd.f32 %v1791, %v2359
        %v2361 = vpop.f32.mrf.mxu0
        %2362 = vmatprep.mubr.bf16.mxu0 0
        %2363 = vmatmul.mubr.bf16.gmra.mxu0 %v2137
        %v2364 = vpop.f32.mrf.mxu0
        %v2365 = vadd.f32 %v1796, %v2364
        %v2366 = vpop.f32.mrf.mxu0
        %v2367 = vpop.f32.mrf.mxu0
        %v2368 = vadd.f32 %v1799, %v2367
        %v2369 = vpop.f32.mrf.mxu0
        %2370 = vmatprep.mubr.bf16.mxu0 0
        %2371 = vmatmul.mubr.bf16.gmra.mxu0 %v2140
        %v2372 = vpop.f32.mrf.mxu0
        %v2373 = vadd.f32 %v1804, %v2372
        %v2374 = vpop.f32.mrf.mxu0
        %v2375 = vpop.f32.mrf.mxu0
        %v2376 = vadd.f32 %v1807, %v2375
        %v2377 = vpop.f32.mrf.mxu0
        %2378 = vmatprep.mubr.bf16.mxu0 0
        %2379 = vmatmul.mubr.bf16.gmra.mxu0 %v2143
        %v2380 = vpop.f32.mrf.mxu0
        %v2381 = vadd.f32 %v1812, %v2380
        %v2382 = vpop.f32.mrf.mxu0
        %v2383 = vpop.f32.mrf.mxu0
        %v2384 = vadd.f32 %v1815, %v2383
        %v2385 = vpop.f32.mrf.mxu0
        %2386 = vmatprep.mubr.bf16.mxu0 0
        %2387 = vmatmul.mubr.bf16.gmra.mxu0 %v2146
        %v2388 = vpop.f32.mrf.mxu0
        %v2389 = vadd.f32 %v1820, %v2388
        %v2390 = vpop.f32.mrf.mxu0
        %v2391 = vpop.f32.mrf.mxu0
        %v2392 = vadd.f32 %v1823, %v2391
        %v2393 = vpop.f32.mrf.mxu0
        %2394 = vmatprep.mubr.bf16.mxu0 0
        %2395 = vmatmul.mubr.bf16.gmra.mxu0 %v2149
        %v2396 = vpop.f32.mrf.mxu0
        %v2397 = vadd.f32 %v1828, %v2396
        %v2398 = vpop.f32.mrf.mxu0
        %v2399 = vpop.f32.mrf.mxu0
        %v2400 = vadd.f32 %v1831, %v2399
        %v2401 = vpop.f32.mrf.mxu0
        %2402 = vmatprep.mubr.bf16.mxu0 0
        %2403 = vmatmul.mubr.bf16.gmra.mxu0 %v2152
        %v2404 = vpop.f32.mrf.mxu0
        %v2405 = vadd.f32 %v1836, %v2404
        %v2406 = vpop.f32.mrf.mxu0
        %v2407 = vpop.f32.mrf.mxu0
        %v2408 = vadd.f32 %v1839, %v2407
        %v2409 = vpop.f32.mrf.mxu0
        %2410 = vmatprep.mubr.bf16.mxu0 0
        %2411 = vmatmul.mubr.bf16.gmra.mxu0 %v2155
        %v2412 = vpop.f32.mrf.mxu0
        %v2413 = vadd.f32 %v1844, %v2412
        %v2414 = vpop.f32.mrf.mxu0
        %v2415 = vpop.f32.mrf.mxu0
        %v2416 = vadd.f32 %v1847, %v2415
        %v2417 = vpop.f32.mrf.mxu0
        %2418 = vmatprep.mubr.bf16.mxu0 0
        %2419 = vmatmul.mubr.bf16.gmra.mxu0 %v2158
        %v2420 = vpop.f32.mrf.mxu0
        %v2421 = vadd.f32 %v1852, %v2420
        %v2422 = vpop.f32.mrf.mxu0
        %v2423 = vpop.f32.mrf.mxu0
        %v2424 = vadd.f32 %v1855, %v2423
        %v2425 = vpop.f32.mrf.mxu0
        %2426 = vmatprep.mubr.bf16.mxu0 0
        %2427 = vmatmul.mubr.bf16.gmra.mxu0 %v2161
        %v2428 = vpop.f32.mrf.mxu0
        %v2429 = vadd.f32 %v1860, %v2428
        %v2430 = vpop.f32.mrf.mxu0
        %v2431 = vpop.f32.mrf.mxu0
        %v2432 = vadd.f32 %v1863, %v2431
        %v2433 = vpop.f32.mrf.mxu0
        %2434 = vmatprep.mubr.bf16.mxu0 0
        %2435 = vmatmul.mubr.bf16.gmra.mxu0 %v2164
        %v2436 = vpop.f32.mrf.mxu0
        %v2437 = vadd.f32 %v1868, %v2436
        %v2438 = vpop.f32.mrf.mxu0
        %v2439 = vpop.f32.mrf.mxu0
        %v2440 = vadd.f32 %v1871, %v2439
        %v2441 = vpop.f32.mrf.mxu0
        %2442 = vmatprep.mubr.bf16.mxu0 0
        %2443 = vmatmul.mubr.bf16.gmra.mxu0 %v2167
        %v2444 = vpop.f32.mrf.mxu0
        %v2445 = vadd.f32 %v1876, %v2444
        %v2446 = vpop.f32.mrf.mxu0
        %v2447 = vpop.f32.mrf.mxu0
        %v2448 = vadd.f32 %v1879, %v2447
        %v2449 = vpop.f32.mrf.mxu0
        %2450 = vmatprep.mubr.bf16.mxu0 0
        %2451 = vmatmul.mubr.bf16.gmra.mxu0 %v2170
        %v2452 = vpop.f32.mrf.mxu0
        %v2453 = vadd.f32 %v1884, %v2452
        %v2454 = vpop.f32.mrf.mxu0
        %v2455 = vpop.f32.mrf.mxu0
        %v2456 = vadd.f32 %v1887, %v2455
        %v2457 = vpop.f32.mrf.mxu0
        %2458 = vmatprep.mubr.bf16.mxu0 0
        %2459 = vmatmul.mubr.bf16.gmra.mxu0 %v2173
        %v2460 = vpop.f32.mrf.mxu0
        %v2461 = vadd.f32 %v1892, %v2460
        %v2462 = vpop.f32.mrf.mxu0
        %v2463 = vpop.f32.mrf.mxu0
        %v2464 = vadd.f32 %v1895, %v2463
        %v2465 = vpop.f32.mrf.mxu0
        %2466 = vdwg.mxu0
        %v2467 = vpack.c.bf16 %v1122, %v1121
        %v2468 = vpack.c.bf16 %v1124, %v1123
        %v2469 = vpack.c.bf16 %v1126, %v1125
        %v2470 = vpack.c.bf16 %v1128, %v1127
        %v2471 = vpack.c.bf16 %v1130, %v1129
        %v2472 = vpack.c.bf16 %v1132, %v1131
        %v2473 = vpack.c.bf16 %v1134, %v1133
        %v2474 = vpack.c.bf16 %v1136, %v1135
        %v2475 = vpack.c.bf16 %v1138, %v1137
        %v2476 = vpack.c.bf16 %v1140, %v1139
        %v2477 = vpack.c.bf16 %v1142, %v1141
        %v2478 = vpack.c.bf16 %v1144, %v1143
        %v2479 = vpack.c.bf16 %v1146, %v1145
        %v2480 = vpack.c.bf16 %v1148, %v1147
        %v2481 = vpack.c.bf16 %v1150, %v1149
        %v2482 = vpack.c.bf16 %v1152, %v1151
        %v2483 = vpack.c.bf16 %v1154, %v1153
        %v2484 = vpack.c.bf16 %v1156, %v1155
        %v2485 = vpack.c.bf16 %v1158, %v1157
        %v2486 = vpack.c.bf16 %v1160, %v1159
        %v2487 = vpack.c.bf16 %v1162, %v1161
        %v2488 = vpack.c.bf16 %v1164, %v1163
        %v2489 = vpack.c.bf16 %v1166, %v1165
        %v2490 = vpack.c.bf16 %v1168, %v1167
        %v2491 = vpack.c.bf16 %v1170, %v1169
        %v2492 = vpack.c.bf16 %v1172, %v1171
        %v2493 = vpack.c.bf16 %v1174, %v1173
        %v2494 = vpack.c.bf16 %v1176, %v1175
        %v2495 = vpack.c.bf16 %v1178, %v1177
        %v2496 = vpack.c.bf16 %v1180, %v1179
        %v2497 = vpack.c.bf16 %v1182, %v1181
        %v2498 = vpack.c.bf16 %v1184, %v1183
        %v2499 = vld [vmem:[%s7] sm:$0xf]
        %v2500 = vld [vmem:[%s7 + $0x4] sm:$0xf]
        %v2501 = vld [vmem:[%s7 + $0x8] sm:$0xf]
        %v2502 = vld [vmem:[%s7 + $0xc] sm:$0xf]
        %v2503 = vld [vmem:[%s7 + $0x10] sm:$0xf]
        %v2504 = vld [vmem:[%s7 + $0x14] sm:$0xf]
        %v2505 = vld [vmem:[%s7 + $0x18] sm:$0xf]
        %v2506 = vld [vmem:[%s7 + $0x1c] sm:$0xf]
        %v2507 = vld [vmem:[%s7 + $0x20] sm:$0xf]
        %v2508 = vld [vmem:[%s7 + $0x24] sm:$0xf]
        %v2509 = vld [vmem:[%s7 + $0x28] sm:$0xf]
        %v2510 = vld [vmem:[%s7 + $0x2c] sm:$0xf]
        %v2511 = vld [vmem:[%s7 + $0x30] sm:$0xf]
        %v2512 = vld [vmem:[%s7 + $0x34] sm:$0xf]
        %v2513 = vld [vmem:[%s7 + $0x38] sm:$0xf]
        %v2514 = vld [vmem:[%s7 + $0x3c] sm:$0xf]
        %v2531 = vunpack.c.l.b16 %v2499
        %v2532 = vunpack.c.l.b16 %v2500
        %v2533 = vunpack.c.l.b16 %v2501
        %v2534 = vunpack.c.l.b16 %v2502
        %v2535 = vunpack.c.l.b16 %v2503
        %v2536 = vunpack.c.l.b16 %v2504
        %v2537 = vunpack.c.l.b16 %v2505
        %v2538 = vunpack.c.l.b16 %v2506
        %v2539 = vunpack.c.l.b16 %v2507
        %v2540 = vunpack.c.l.b16 %v2508
        %v2541 = vunpack.c.l.b16 %v2509
        %v2542 = vunpack.c.l.b16 %v2510
        %v2543 = vunpack.c.l.b16 %v2511
        %v2544 = vunpack.c.l.b16 %v2512
        %v2545 = vunpack.c.l.b16 %v2513
        %v2546 = vunpack.c.l.b16 %v2514
        %v2547 = vpack.c.b16 %v2532, %v2531
        %v2548 = vpack.c.b16 %v2534, %v2533
        %v2549 = vpack.c.b16 %v2536, %v2535
        %v2550 = vpack.c.b16 %v2538, %v2537
        %v2551 = vpack.c.b16 %v2540, %v2539
        %v2552 = vpack.c.b16 %v2542, %v2541
        %v2553 = vpack.c.b16 %v2544, %v2543
        %v2554 = vpack.c.b16 %v2546, %v2545
        %2563 = vmatprep.subr.bf16.mxu0 0
        %2564 = vmatpush1.bf16.msra.mxu0 %v2554
        %2565 = vmatprep.subr.bf16.mxu0 0
        %2566 = vmatpush1.bf16.msra.mxu0 %v2553
        %2567 = vmatprep.subr.bf16.mxu0 0
        %2568 = vmatpush1.bf16.msra.mxu0 %v2552
        %2569 = vmatprep.subr.bf16.mxu0 0
        %2570 = vmatpush1.bf16.msra.mxu0 %v2551
        %2571 = vmatprep.subr.bf16.mxu0 0
        %2572 = vmatpush1.bf16.msra.mxu0 %v2550
        %2573 = vmatprep.subr.bf16.mxu0 0
        %2574 = vmatpush1.bf16.msra.mxu0 %v2549
        %2575 = vmatprep.subr.bf16.mxu0 0
        %2576 = vmatpush1.bf16.msra.mxu0 %v2548
        %2577 = vmatprep.subr.bf16.mxu0 0
        %2578 = vmatpush1.bf16.msra.mxu0 %v2547
        %2579 = vmatprep.subr.bf16.mxu0 0
        %2580 = vmatpush2.bf16.msra.mxu0 0
        %2581 = vmatprep.subr.bf16.mxu0 0
        %2582 = vmatpush2.bf16.msra.mxu0 0
        %2583 = vmatprep.subr.bf16.mxu0 0
        %2584 = vmatpush2.bf16.msra.mxu0 0
        %2585 = vmatprep.subr.bf16.mxu0 0
        %2586 = vmatpush2.bf16.msra.mxu0 0
        %2587 = vmatprep.subr.bf16.mxu0 0
        %2588 = vmatpush2.bf16.msra.mxu0 0
        %2589 = vmatprep.subr.bf16.mxu0 0
        %2590 = vmatpush2.bf16.msra.mxu0 0
        %2591 = vmatprep.subr.bf16.mxu0 0
        %2592 = vmatpush2.bf16.msra.mxu0 0
        %2593 = vmatprep.subr.bf16.mxu0 0
        %2594 = vmatpush2.bf16.msra.mxu0 0
        %2595 = vmatprep.mubr.bf16.mxu0 0
        %2596 = vmatmul.mubr.bf16.gmra.mxu0 %v2467
        %v2597 = vpop.f32.mrf.mxu0
        %v2598 = vadd.f32 0.0, %v2597
        %v2599 = vpop.f32.mrf.mxu0
        %v2600 = vpop.f32.mrf.mxu0
        %v2601 = vadd.f32 0.0, %v2600
        %v2602 = vpop.f32.mrf.mxu0
        %2603 = vmatprep.mubr.bf16.mxu0 0
        %2604 = vmatmul.mubr.bf16.gmra.mxu0 %v2468
        %v2605 = vpop.f32.mrf.mxu0
        %v2606 = vadd.f32 0.0, %v2605
        %v2607 = vpop.f32.mrf.mxu0
        %v2608 = vpop.f32.mrf.mxu0
        %v2609 = vadd.f32 0.0, %v2608
        %v2610 = vpop.f32.mrf.mxu0
        %2611 = vmatprep.mubr.bf16.mxu0 0
        %2612 = vmatmul.mubr.bf16.gmra.mxu0 %v2469
        %v2613 = vpop.f32.mrf.mxu0
        %v2614 = vadd.f32 0.0, %v2613
        %v2615 = vpop.f32.mrf.mxu0
        %v2616 = vpop.f32.mrf.mxu0
        %v2617 = vadd.f32 0.0, %v2616
        %v2618 = vpop.f32.mrf.mxu0
        %2619 = vmatprep.mubr.bf16.mxu0 0
        %2620 = vmatmul.mubr.bf16.gmra.mxu0 %v2470
        %v2621 = vpop.f32.mrf.mxu0
        %v2622 = vadd.f32 0.0, %v2621
        %v2623 = vpop.f32.mrf.mxu0
        %v2624 = vpop.f32.mrf.mxu0
        %v2625 = vadd.f32 0.0, %v2624
        %v2626 = vpop.f32.mrf.mxu0
        %2627 = vmatprep.mubr.bf16.mxu0 0
        %2628 = vmatmul.mubr.bf16.gmra.mxu0 %v2471
        %v2629 = vpop.f32.mrf.mxu0
        %v2630 = vadd.f32 0.0, %v2629
        %v2631 = vpop.f32.mrf.mxu0
        %v2632 = vpop.f32.mrf.mxu0
        %v2633 = vadd.f32 0.0, %v2632
        %v2634 = vpop.f32.mrf.mxu0
        %2635 = vmatprep.mubr.bf16.mxu0 0
        %2636 = vmatmul.mubr.bf16.gmra.mxu0 %v2472
        %v2637 = vpop.f32.mrf.mxu0
        %v2638 = vadd.f32 0.0, %v2637
        %v2639 = vpop.f32.mrf.mxu0
        %v2640 = vpop.f32.mrf.mxu0
        %v2641 = vadd.f32 0.0, %v2640
        %v2642 = vpop.f32.mrf.mxu0
        %2643 = vmatprep.mubr.bf16.mxu0 0
        %2644 = vmatmul.mubr.bf16.gmra.mxu0 %v2473
        %v2645 = vpop.f32.mrf.mxu0
        %v2646 = vadd.f32 0.0, %v2645
        %v2647 = vpop.f32.mrf.mxu0
        %v2648 = vpop.f32.mrf.mxu0
        %v2649 = vadd.f32 0.0, %v2648
        %v2650 = vpop.f32.mrf.mxu0
        %2651 = vmatprep.mubr.bf16.mxu0 0
        %2652 = vmatmul.mubr.bf16.gmra.mxu0 %v2474
        %v2653 = vpop.f32.mrf.mxu0
        %v2654 = vadd.f32 0.0, %v2653
        %v2655 = vpop.f32.mrf.mxu0
        %v2656 = vpop.f32.mrf.mxu0
        %v2657 = vadd.f32 0.0, %v2656
        %v2658 = vpop.f32.mrf.mxu0
        %2659 = vmatprep.mubr.bf16.mxu0 0
        %2660 = vmatmul.mubr.bf16.gmra.mxu0 %v2475
        %v2661 = vpop.f32.mrf.mxu0
        %v2662 = vadd.f32 0.0, %v2661
        %v2663 = vpop.f32.mrf.mxu0
        %v2664 = vpop.f32.mrf.mxu0
        %v2665 = vadd.f32 0.0, %v2664
        %v2666 = vpop.f32.mrf.mxu0
        %2667 = vmatprep.mubr.bf16.mxu0 0
        %2668 = vmatmul.mubr.bf16.gmra.mxu0 %v2476
        %v2669 = vpop.f32.mrf.mxu0
        %v2670 = vadd.f32 0.0, %v2669
        %v2671 = vpop.f32.mrf.mxu0
        %v2672 = vpop.f32.mrf.mxu0
        %v2673 = vadd.f32 0.0, %v2672
        %v2674 = vpop.f32.mrf.mxu0
        %2675 = vmatprep.mubr.bf16.mxu0 0
        %2676 = vmatmul.mubr.bf16.gmra.mxu0 %v2477
        %v2677 = vpop.f32.mrf.mxu0
        %v2678 = vadd.f32 0.0, %v2677
        %v2679 = vpop.f32.mrf.mxu0
        %v2680 = vpop.f32.mrf.mxu0
        %v2681 = vadd.f32 0.0, %v2680
        %v2682 = vpop.f32.mrf.mxu0
        %2683 = vmatprep.mubr.bf16.mxu0 0
        %2684 = vmatmul.mubr.bf16.gmra.mxu0 %v2478
        %v2685 = vpop.f32.mrf.mxu0
        %v2686 = vadd.f32 0.0, %v2685
        %v2687 = vpop.f32.mrf.mxu0
        %v2688 = vpop.f32.mrf.mxu0
        %v2689 = vadd.f32 0.0, %v2688
        %v2690 = vpop.f32.mrf.mxu0
        %2691 = vmatprep.mubr.bf16.mxu0 0
        %2692 = vmatmul.mubr.bf16.gmra.mxu0 %v2479
        %v2693 = vpop.f32.mrf.mxu0
        %v2694 = vadd.f32 0.0, %v2693
        %v2695 = vpop.f32.mrf.mxu0
        %v2696 = vpop.f32.mrf.mxu0
        %v2697 = vadd.f32 0.0, %v2696
        %v2698 = vpop.f32.mrf.mxu0
        %2699 = vmatprep.mubr.bf16.mxu0 0
        %2700 = vmatmul.mubr.bf16.gmra.mxu0 %v2480
        %v2701 = vpop.f32.mrf.mxu0
        %v2702 = vadd.f32 0.0, %v2701
        %v2703 = vpop.f32.mrf.mxu0
        %v2704 = vpop.f32.mrf.mxu0
        %v2705 = vadd.f32 0.0, %v2704
        %v2706 = vpop.f32.mrf.mxu0
        %2707 = vmatprep.mubr.bf16.mxu0 0
        %2708 = vmatmul.mubr.bf16.gmra.mxu0 %v2481
        %v2709 = vpop.f32.mrf.mxu0
        %v2710 = vadd.f32 0.0, %v2709
        %v2711 = vpop.f32.mrf.mxu0
        %v2712 = vpop.f32.mrf.mxu0
        %v2713 = vadd.f32 0.0, %v2712
        %v2714 = vpop.f32.mrf.mxu0
        %2715 = vmatprep.mubr.bf16.mxu0 0
        %2716 = vmatmul.mubr.bf16.gmra.mxu0 %v2482
        %v2717 = vpop.f32.mrf.mxu0
        %v2718 = vadd.f32 0.0, %v2717
        %v2719 = vpop.f32.mrf.mxu0
        %v2720 = vpop.f32.mrf.mxu0
        %v2721 = vadd.f32 0.0, %v2720
        %v2722 = vpop.f32.mrf.mxu0
        %2723 = vmatprep.mubr.bf16.mxu0 0
        %2724 = vmatmul.mubr.bf16.gmra.mxu0 %v2483
        %v2725 = vpop.f32.mrf.mxu0
        %v2726 = vadd.f32 0.0, %v2725
        %v2727 = vpop.f32.mrf.mxu0
        %v2728 = vpop.f32.mrf.mxu0
        %v2729 = vadd.f32 0.0, %v2728
        %v2730 = vpop.f32.mrf.mxu0
        %2731 = vmatprep.mubr.bf16.mxu0 0
        %2732 = vmatmul.mubr.bf16.gmra.mxu0 %v2484
        %v2733 = vpop.f32.mrf.mxu0
        %v2734 = vadd.f32 0.0, %v2733
        %v2735 = vpop.f32.mrf.mxu0
        %v2736 = vpop.f32.mrf.mxu0
        %v2737 = vadd.f32 0.0, %v2736
        %v2738 = vpop.f32.mrf.mxu0
        %2739 = vmatprep.mubr.bf16.mxu0 0
        %2740 = vmatmul.mubr.bf16.gmra.mxu0 %v2485
        %v2741 = vpop.f32.mrf.mxu0
        %v2742 = vadd.f32 0.0, %v2741
        %v2743 = vpop.f32.mrf.mxu0
        %v2744 = vpop.f32.mrf.mxu0
        %v2745 = vadd.f32 0.0, %v2744
        %v2746 = vpop.f32.mrf.mxu0
        %2747 = vmatprep.mubr.bf16.mxu0 0
        %2748 = vmatmul.mubr.bf16.gmra.mxu0 %v2486
        %v2749 = vpop.f32.mrf.mxu0
        %v2750 = vadd.f32 0.0, %v2749
        %v2751 = vpop.f32.mrf.mxu0
        %v2752 = vpop.f32.mrf.mxu0
        %v2753 = vadd.f32 0.0, %v2752
        %v2754 = vpop.f32.mrf.mxu0
        %2755 = vmatprep.mubr.bf16.mxu0 0
        %2756 = vmatmul.mubr.bf16.gmra.mxu0 %v2487
        %v2757 = vpop.f32.mrf.mxu0
        %v2758 = vadd.f32 0.0, %v2757
        %v2759 = vpop.f32.mrf.mxu0
        %v2760 = vpop.f32.mrf.mxu0
        %v2761 = vadd.f32 0.0, %v2760
        %v2762 = vpop.f32.mrf.mxu0
        %2763 = vmatprep.mubr.bf16.mxu0 0
        %2764 = vmatmul.mubr.bf16.gmra.mxu0 %v2488
        %v2765 = vpop.f32.mrf.mxu0
        %v2766 = vadd.f32 0.0, %v2765
        %v2767 = vpop.f32.mrf.mxu0
        %v2768 = vpop.f32.mrf.mxu0
        %v2769 = vadd.f32 0.0, %v2768
        %v2770 = vpop.f32.mrf.mxu0
        %2771 = vmatprep.mubr.bf16.mxu0 0
        %2772 = vmatmul.mubr.bf16.gmra.mxu0 %v2489
        %v2773 = vpop.f32.mrf.mxu0
        %v2774 = vadd.f32 0.0, %v2773
        %v2775 = vpop.f32.mrf.mxu0
        %v2776 = vpop.f32.mrf.mxu0
        %v2777 = vadd.f32 0.0, %v2776
        %v2778 = vpop.f32.mrf.mxu0
        %2779 = vmatprep.mubr.bf16.mxu0 0
        %2780 = vmatmul.mubr.bf16.gmra.mxu0 %v2490
        %v2781 = vpop.f32.mrf.mxu0
        %v2782 = vadd.f32 0.0, %v2781
        %v2783 = vpop.f32.mrf.mxu0
        %v2784 = vpop.f32.mrf.mxu0
        %v2785 = vadd.f32 0.0, %v2784
        %v2786 = vpop.f32.mrf.mxu0
        %2787 = vmatprep.mubr.bf16.mxu0 0
        %2788 = vmatmul.mubr.bf16.gmra.mxu0 %v2491
        %v2789 = vpop.f32.mrf.mxu0
        %v2790 = vadd.f32 0.0, %v2789
        %v2791 = vpop.f32.mrf.mxu0
        %v2792 = vpop.f32.mrf.mxu0
        %v2793 = vadd.f32 0.0, %v2792
        %v2794 = vpop.f32.mrf.mxu0
        %2795 = vmatprep.mubr.bf16.mxu0 0
        %2796 = vmatmul.mubr.bf16.gmra.mxu0 %v2492
        %v2797 = vpop.f32.mrf.mxu0
        %v2798 = vadd.f32 0.0, %v2797
        %v2799 = vpop.f32.mrf.mxu0
        %v2800 = vpop.f32.mrf.mxu0
        %v2801 = vadd.f32 0.0, %v2800
        %v2802 = vpop.f32.mrf.mxu0
        %2803 = vmatprep.mubr.bf16.mxu0 0
        %2804 = vmatmul.mubr.bf16.gmra.mxu0 %v2493
        %v2805 = vpop.f32.mrf.mxu0
        %v2806 = vadd.f32 0.0, %v2805
        %v2807 = vpop.f32.mrf.mxu0
        %v2808 = vpop.f32.mrf.mxu0
        %v2809 = vadd.f32 0.0, %v2808
        %v2810 = vpop.f32.mrf.mxu0
        %2811 = vmatprep.mubr.bf16.mxu0 0
        %2812 = vmatmul.mubr.bf16.gmra.mxu0 %v2494
        %v2813 = vpop.f32.mrf.mxu0
        %v2814 = vadd.f32 0.0, %v2813
        %v2815 = vpop.f32.mrf.mxu0
        %v2816 = vpop.f32.mrf.mxu0
        %v2817 = vadd.f32 0.0, %v2816
        %v2818 = vpop.f32.mrf.mxu0
        %2819 = vmatprep.mubr.bf16.mxu0 0
        %2820 = vmatmul.mubr.bf16.gmra.mxu0 %v2495
        %v2821 = vpop.f32.mrf.mxu0
        %v2822 = vadd.f32 0.0, %v2821
        %v2823 = vpop.f32.mrf.mxu0
        %v2824 = vpop.f32.mrf.mxu0
        %v2825 = vadd.f32 0.0, %v2824
        %v2826 = vpop.f32.mrf.mxu0
        %2827 = vmatprep.mubr.bf16.mxu0 0
        %2828 = vmatmul.mubr.bf16.gmra.mxu0 %v2496
        %v2829 = vpop.f32.mrf.mxu0
        %v2830 = vadd.f32 0.0, %v2829
        %v2831 = vpop.f32.mrf.mxu0
        %v2832 = vpop.f32.mrf.mxu0
        %v2833 = vadd.f32 0.0, %v2832
        %v2834 = vpop.f32.mrf.mxu0
        %2835 = vmatprep.mubr.bf16.mxu0 0
        %2836 = vmatmul.mubr.bf16.gmra.mxu0 %v2497
        %v2837 = vpop.f32.mrf.mxu0
        %v2838 = vadd.f32 0.0, %v2837
        %v2839 = vpop.f32.mrf.mxu0
        %v2840 = vpop.f32.mrf.mxu0
        %v2841 = vadd.f32 0.0, %v2840
        %v2842 = vpop.f32.mrf.mxu0
        %2843 = vmatprep.mubr.bf16.mxu0 0
        %2844 = vmatmul.mubr.bf16.gmra.mxu0 %v2498
        %v2845 = vpop.f32.mrf.mxu0
        %v2846 = vadd.f32 0.0, %v2845
        %v2847 = vpop.f32.mrf.mxu0
        %v2848 = vpop.f32.mrf.mxu0
        %v2849 = vadd.f32 0.0, %v2848
        %v2850 = vpop.f32.mrf.mxu0
        %2851 = vdwg.mxu0
        %v2852 = vadd.f32 %v2213, %v2598
        %v2853 = vadd.f32 %v2216, %v2601
        %v2854 = vadd.f32 %v2221, %v2606
        %v2855 = vadd.f32 %v2224, %v2609
        %v2856 = vadd.f32 %v2229, %v2614
        %v2857 = vadd.f32 %v2232, %v2617
        %v2858 = vadd.f32 %v2237, %v2622
        %v2859 = vadd.f32 %v2240, %v2625
        %v2860 = vadd.f32 %v2245, %v2630
        %v2861 = vadd.f32 %v2248, %v2633
        %v2862 = vadd.f32 %v2253, %v2638
        %v2863 = vadd.f32 %v2256, %v2641
        %v2864 = vadd.f32 %v2261, %v2646
        %v2865 = vadd.f32 %v2264, %v2649
        %v2866 = vadd.f32 %v2269, %v2654
        %v2867 = vadd.f32 %v2272, %v2657
        %v2868 = vadd.f32 %v2277, %v2662
        %v2869 = vadd.f32 %v2280, %v2665
        %v2870 = vadd.f32 %v2285, %v2670
        %v2871 = vadd.f32 %v2288, %v2673
        %v2872 = vadd.f32 %v2293, %v2678
        %v2873 = vadd.f32 %v2296, %v2681
        %v2874 = vadd.f32 %v2301, %v2686
        %v2875 = vadd.f32 %v2304, %v2689
        %v2876 = vadd.f32 %v2309, %v2694
        %v2877 = vadd.f32 %v2312, %v2697
        %v2878 = vadd.f32 %v2317, %v2702
        %v2879 = vadd.f32 %v2320, %v2705
        %v2880 = vadd.f32 %v2325, %v2710
        %v2881 = vadd.f32 %v2328, %v2713
        %v2882 = vadd.f32 %v2333, %v2718
        %v2883 = vadd.f32 %v2336, %v2721
        %v2884 = vadd.f32 %v2341, %v2726
        %v2885 = vadd.f32 %v2344, %v2729
        %v2886 = vadd.f32 %v2349, %v2734
        %v2887 = vadd.f32 %v2352, %v2737
        %v2888 = vadd.f32 %v2357, %v2742
        %v2889 = vadd.f32 %v2360, %v2745
        %v2890 = vadd.f32 %v2365, %v2750
        %v2891 = vadd.f32 %v2368, %v2753
        %v2892 = vadd.f32 %v2373, %v2758
        %v2893 = vadd.f32 %v2376, %v2761
        %v2894 = vadd.f32 %v2381, %v2766
        %v2895 = vadd.f32 %v2384, %v2769
        %v2896 = vadd.f32 %v2389, %v2774
        %v2897 = vadd.f32 %v2392, %v2777
        %v2898 = vadd.f32 %v2397, %v2782
        %v2899 = vadd.f32 %v2400, %v2785
        %v2900 = vadd.f32 %v2405, %v2790
        %v2901 = vadd.f32 %v2408, %v2793
        %v2902 = vadd.f32 %v2413, %v2798
        %v2903 = vadd.f32 %v2416, %v2801
        %v2904 = vadd.f32 %v2421, %v2806
        %v2905 = vadd.f32 %v2424, %v2809
        %v2906 = vadd.f32 %v2429, %v2814
        %v2907 = vadd.f32 %v2432, %v2817
        %v2908 = vadd.f32 %v2437, %v2822
        %v2909 = vadd.f32 %v2440, %v2825
        %v2910 = vadd.f32 %v2445, %v2830
        %v2911 = vadd.f32 %v2448, %v2833
        %v2912 = vadd.f32 %v2453, %v2838
        %v2913 = vadd.f32 %v2456, %v2841
        %v2914 = vadd.f32 %v2461, %v2846
        %v2915 = vadd.f32 %v2464, %v2849
        %v2916 = vld [vmem:[%s8] sm:$0x1]
        %v2918 = vlaneseq
        %v2919 = vshrl.u32 %v2918, 7
        %v2920 = vsub.s32 0, %v2919
        %v2921 = vrot.slane %v2916, %v2920
        %v2923 = vadd.f32 %v2852, %v2921
        %v2924 = vadd.f32 %v2853, %v2921
        %v2925 = vadd.f32 %v2854, %v2921
        %v2926 = vadd.f32 %v2855, %v2921
        %v2927 = vadd.f32 %v2856, %v2921
        %v2928 = vadd.f32 %v2857, %v2921
        %v2929 = vadd.f32 %v2858, %v2921
        %v2930 = vadd.f32 %v2859, %v2921
        %v2931 = vadd.f32 %v2860, %v2921
        %v2932 = vadd.f32 %v2861, %v2921
        %v2933 = vadd.f32 %v2862, %v2921
        %v2934 = vadd.f32 %v2863, %v2921
        %v2935 = vadd.f32 %v2864, %v2921
        %v2936 = vadd.f32 %v2865, %v2921
        %v2937 = vadd.f32 %v2866, %v2921
        %v2938 = vadd.f32 %v2867, %v2921
        %v2939 = vadd.f32 %v2868, %v2921
        %v2940 = vadd.f32 %v2869, %v2921
        %v2941 = vadd.f32 %v2870, %v2921
        %v2942 = vadd.f32 %v2871, %v2921
        %v2943 = vadd.f32 %v2872, %v2921
        %v2944 = vadd.f32 %v2873, %v2921
        %v2945 = vadd.f32 %v2874, %v2921
        %v2946 = vadd.f32 %v2875, %v2921
        %v2947 = vadd.f32 %v2876, %v2921
        %v2948 = vadd.f32 %v2877, %v2921
        %v2949 = vadd.f32 %v2878, %v2921
        %v2950 = vadd.f32 %v2879, %v2921
        %v2951 = vadd.f32 %v2880, %v2921
        %v2952 = vadd.f32 %v2881, %v2921
        %v2953 = vadd.f32 %v2882, %v2921
        %v2954 = vadd.f32 %v2883, %v2921
        %v2955 = vadd.f32 %v2884, %v2921
        %v2956 = vadd.f32 %v2885, %v2921
        %v2957 = vadd.f32 %v2886, %v2921
        %v2958 = vadd.f32 %v2887, %v2921
        %v2959 = vadd.f32 %v2888, %v2921
        %v2960 = vadd.f32 %v2889, %v2921
        %v2961 = vadd.f32 %v2890, %v2921
        %v2962 = vadd.f32 %v2891, %v2921
        %v2963 = vadd.f32 %v2892, %v2921
        %v2964 = vadd.f32 %v2893, %v2921
        %v2965 = vadd.f32 %v2894, %v2921
        %v2966 = vadd.f32 %v2895, %v2921
        %v2967 = vadd.f32 %v2896, %v2921
        %v2968 = vadd.f32 %v2897, %v2921
        %v2969 = vadd.f32 %v2898, %v2921
        %v2970 = vadd.f32 %v2899, %v2921
        %v2971 = vadd.f32 %v2900, %v2921
        %v2972 = vadd.f32 %v2901, %v2921
        %v2973 = vadd.f32 %v2902, %v2921
        %v2974 = vadd.f32 %v2903, %v2921
        %v2975 = vadd.f32 %v2904, %v2921
        %v2976 = vadd.f32 %v2905, %v2921
        %v2977 = vadd.f32 %v2906, %v2921
        %v2978 = vadd.f32 %v2907, %v2921
        %v2979 = vadd.f32 %v2908, %v2921
        %v2980 = vadd.f32 %v2909, %v2921
        %v2981 = vadd.f32 %v2910, %v2921
        %v2982 = vadd.f32 %v2911, %v2921
        %v2983 = vadd.f32 %v2912, %v2921
        %v2984 = vadd.f32 %v2913, %v2921
        %v2985 = vadd.f32 %v2914, %v2921
        %v2986 = vadd.f32 %v2915, %v2921
        %v2987 = vmax.f32 %v2923, 0.0
        %v2988 = vmax.f32 %v2924, 0.0
        %v2989 = vmax.f32 %v2925, 0.0
        %v2990 = vmax.f32 %v2926, 0.0
        %v2991 = vmax.f32 %v2927, 0.0
        %v2992 = vmax.f32 %v2928, 0.0
        %v2993 = vmax.f32 %v2929, 0.0
        %v2994 = vmax.f32 %v2930, 0.0
        %v2995 = vmax.f32 %v2931, 0.0
        %v2996 = vmax.f32 %v2932, 0.0
        %v2997 = vmax.f32 %v2933, 0.0
        %v2998 = vmax.f32 %v2934, 0.0
        %v2999 = vmax.f32 %v2935, 0.0
        %v3000 = vmax.f32 %v2936, 0.0
        %v3001 = vmax.f32 %v2937, 0.0
        %v3002 = vmax.f32 %v2938, 0.0
        %v3003 = vmax.f32 %v2939, 0.0
        %v3004 = vmax.f32 %v2940, 0.0
        %v3005 = vmax.f32 %v2941, 0.0
        %v3006 = vmax.f32 %v2942, 0.0
        %v3007 = vmax.f32 %v2943, 0.0
        %v3008 = vmax.f32 %v2944, 0.0
        %v3009 = vmax.f32 %v2945, 0.0
        %v3010 = vmax.f32 %v2946, 0.0
        %v3011 = vmax.f32 %v2947, 0.0
        %v3012 = vmax.f32 %v2948, 0.0
        %v3013 = vmax.f32 %v2949, 0.0
        %v3014 = vmax.f32 %v2950, 0.0
        %v3015 = vmax.f32 %v2951, 0.0
        %v3016 = vmax.f32 %v2952, 0.0
        %v3017 = vmax.f32 %v2953, 0.0
        %v3018 = vmax.f32 %v2954, 0.0
        %v3019 = vmax.f32 %v2955, 0.0
        %v3020 = vmax.f32 %v2956, 0.0
        %v3021 = vmax.f32 %v2957, 0.0
        %v3022 = vmax.f32 %v2958, 0.0
        %v3023 = vmax.f32 %v2959, 0.0
        %v3024 = vmax.f32 %v2960, 0.0
        %v3025 = vmax.f32 %v2961, 0.0
        %v3026 = vmax.f32 %v2962, 0.0
        %v3027 = vmax.f32 %v2963, 0.0
        %v3028 = vmax.f32 %v2964, 0.0
        %v3029 = vmax.f32 %v2965, 0.0
        %v3030 = vmax.f32 %v2966, 0.0
        %v3031 = vmax.f32 %v2967, 0.0
        %v3032 = vmax.f32 %v2968, 0.0
        %v3033 = vmax.f32 %v2969, 0.0
        %v3034 = vmax.f32 %v2970, 0.0
        %v3035 = vmax.f32 %v2971, 0.0
        %v3036 = vmax.f32 %v2972, 0.0
        %v3037 = vmax.f32 %v2973, 0.0
        %v3038 = vmax.f32 %v2974, 0.0
        %v3039 = vmax.f32 %v2975, 0.0
        %v3040 = vmax.f32 %v2976, 0.0
        %v3041 = vmax.f32 %v2977, 0.0
        %v3042 = vmax.f32 %v2978, 0.0
        %v3043 = vmax.f32 %v2979, 0.0
        %v3044 = vmax.f32 %v2980, 0.0
        %v3045 = vmax.f32 %v2981, 0.0
        %v3046 = vmax.f32 %v2982, 0.0
        %v3047 = vmax.f32 %v2983, 0.0
        %v3048 = vmax.f32 %v2984, 0.0
        %v3049 = vmax.f32 %v2985, 0.0
        %v3050 = vmax.f32 %v2986, 0.0
        %v3051 = vpack.c.bf16 %v2988, %v2987
        %v3052 = vpack.c.bf16 %v2990, %v2989
        %v3053 = vpack.c.bf16 %v2992, %v2991
        %v3054 = vpack.c.bf16 %v2994, %v2993
        %v3055 = vpack.c.bf16 %v2996, %v2995
        %v3056 = vpack.c.bf16 %v2998, %v2997
        %v3057 = vpack.c.bf16 %v3000, %v2999
        %v3058 = vpack.c.bf16 %v3002, %v3001
        %v3059 = vpack.c.bf16 %v3004, %v3003
        %v3060 = vpack.c.bf16 %v3006, %v3005
        %v3061 = vpack.c.bf16 %v3008, %v3007
        %v3062 = vpack.c.bf16 %v3010, %v3009
        %v3063 = vpack.c.bf16 %v3012, %v3011
        %v3064 = vpack.c.bf16 %v3014, %v3013
        %v3065 = vpack.c.bf16 %v3016, %v3015
        %v3066 = vpack.c.bf16 %v3018, %v3017
        %v3067 = vpack.c.bf16 %v3020, %v3019
        %v3068 = vpack.c.bf16 %v3022, %v3021
        %v3069 = vpack.c.bf16 %v3024, %v3023
        %v3070 = vpack.c.bf16 %v3026, %v3025
        %v3071 = vpack.c.bf16 %v3028, %v3027
        %v3072 = vpack.c.bf16 %v3030, %v3029
        %v3073 = vpack.c.bf16 %v3032, %v3031
        %v3074 = vpack.c.bf16 %v3034, %v3033
        %v3075 = vpack.c.bf16 %v3036, %v3035
        %v3076 = vpack.c.bf16 %v3038, %v3037
        %v3077 = vpack.c.bf16 %v3040, %v3039
        %v3078 = vpack.c.bf16 %v3042, %v3041
        %v3079 = vpack.c.bf16 %v3044, %v3043
        %v3080 = vpack.c.bf16 %v3046, %v3045
        %v3081 = vpack.c.bf16 %v3048, %v3047
        %v3082 = vpack.c.bf16 %v3050, %v3049
        %v3083 = vld [vmem:[%s9] sm:$0xf]
        %v3084 = vld [vmem:[%s9 + $0x4] sm:$0xf]
        %v3085 = vld [vmem:[%s9 + $0x8] sm:$0xf]
        %v3086 = vld [vmem:[%s9 + $0xc] sm:$0xf]
        %v3087 = vld [vmem:[%s9 + $0x10] sm:$0xf]
        %v3088 = vld [vmem:[%s9 + $0x14] sm:$0xf]
        %v3089 = vld [vmem:[%s9 + $0x18] sm:$0xf]
        %v3090 = vld [vmem:[%s9 + $0x1c] sm:$0xf]
        %v3091 = vld [vmem:[%s9 + $0x20] sm:$0xf]
        %v3092 = vld [vmem:[%s9 + $0x24] sm:$0xf]
        %v3093 = vld [vmem:[%s9 + $0x28] sm:$0xf]
        %v3094 = vld [vmem:[%s9 + $0x2c] sm:$0xf]
        %v3095 = vld [vmem:[%s9 + $0x30] sm:$0xf]
        %v3096 = vld [vmem:[%s9 + $0x34] sm:$0xf]
        %v3097 = vld [vmem:[%s9 + $0x38] sm:$0xf]
        %v3098 = vld [vmem:[%s9 + $0x3c] sm:$0xf]
        %v3099 = vld [vmem:[%s10] sm:$0x1]
        %v3101 = vlaneseq
        %v3102 = vshrl.u32 %v3101, 7
        %v3103 = vsub.s32 0, %v3102
        %v3104 = vrot.slane %v3099, %v3103
        %v3122 = vunpack.c.l.b16 %v3083
        %v3123 = vunpack.c.l.b16 %v3084
        %v3124 = vunpack.c.l.b16 %v3085
        %v3125 = vunpack.c.l.b16 %v3086
        %v3126 = vunpack.c.l.b16 %v3087
        %v3127 = vunpack.c.l.b16 %v3088
        %v3128 = vunpack.c.l.b16 %v3089
        %v3129 = vunpack.c.l.b16 %v3090
        %v3130 = vunpack.c.l.b16 %v3091
        %v3131 = vunpack.c.l.b16 %v3092
        %v3132 = vunpack.c.l.b16 %v3093
        %v3133 = vunpack.c.l.b16 %v3094
        %v3134 = vunpack.c.l.b16 %v3095
        %v3135 = vunpack.c.l.b16 %v3096
        %v3136 = vunpack.c.l.b16 %v3097
        %v3137 = vunpack.c.l.b16 %v3098
        %v3138 = vpack.c.b16 %v3123, %v3122
        %v3139 = vpack.c.b16 %v3125, %v3124
        %v3140 = vpack.c.b16 %v3127, %v3126
        %v3141 = vpack.c.b16 %v3129, %v3128
        %v3142 = vpack.c.b16 %v3131, %v3130
        %v3143 = vpack.c.b16 %v3133, %v3132
        %v3144 = vpack.c.b16 %v3135, %v3134
        %v3145 = vpack.c.b16 %v3137, %v3136
        %3154 = vmatprep.subr.bf16.mxu0 0
        %3155 = vmatpush1.bf16.msra.mxu0 %v3145
        %3156 = vmatprep.subr.bf16.mxu0 0
        %3157 = vmatpush1.bf16.msra.mxu0 %v3144
        %3158 = vmatprep.subr.bf16.mxu0 0
        %3159 = vmatpush1.bf16.msra.mxu0 %v3143
        %3160 = vmatprep.subr.bf16.mxu0 0
        %3161 = vmatpush1.bf16.msra.mxu0 %v3142
        %3162 = vmatprep.subr.bf16.mxu0 0
        %3163 = vmatpush1.bf16.msra.mxu0 %v3141
        %3164 = vmatprep.subr.bf16.mxu0 0
        %3165 = vmatpush1.bf16.msra.mxu0 %v3140
        %3166 = vmatprep.subr.bf16.mxu0 0
        %3167 = vmatpush1.bf16.msra.mxu0 %v3139
        %3168 = vmatprep.subr.bf16.mxu0 0
        %3169 = vmatpush1.bf16.msra.mxu0 %v3138
        %3170 = vmatprep.subr.bf16.mxu0 0
        %3171 = vmatpush2.bf16.msra.mxu0 0
        %3172 = vmatprep.subr.bf16.mxu0 0
        %3173 = vmatpush2.bf16.msra.mxu0 0
        %3174 = vmatprep.subr.bf16.mxu0 0
        %3175 = vmatpush2.bf16.msra.mxu0 0
        %3176 = vmatprep.subr.bf16.mxu0 0
        %3177 = vmatpush2.bf16.msra.mxu0 0
        %3178 = vmatprep.subr.bf16.mxu0 0
        %3179 = vmatpush2.bf16.msra.mxu0 0
        %3180 = vmatprep.subr.bf16.mxu0 0
        %3181 = vmatpush2.bf16.msra.mxu0 0
        %3182 = vmatprep.subr.bf16.mxu0 0
        %3183 = vmatpush2.bf16.msra.mxu0 0
        %3184 = vmatprep.subr.bf16.mxu0 0
        %3185 = vmatpush2.bf16.msra.mxu0 0
        %3186 = vmatprep.mubr.bf16.mxu0 0
        %3187 = vmatmul.mubr.bf16.gmra.mxu0 %v3051
        %v3188 = vpop.f32.mrf.mxu0
        %v3189 = vadd.f32 %v3104, %v3188
        %v3190 = vpop.f32.mrf.mxu0
        %v3191 = vpop.f32.mrf.mxu0
        %v3192 = vadd.f32 %v3104, %v3191
        %v3193 = vpop.f32.mrf.mxu0
        %3194 = vmatprep.mubr.bf16.mxu0 0
        %3195 = vmatmul.mubr.bf16.gmra.mxu0 %v3052
        %v3196 = vpop.f32.mrf.mxu0
        %v3197 = vadd.f32 %v3104, %v3196
        %v3198 = vpop.f32.mrf.mxu0
        %v3199 = vpop.f32.mrf.mxu0
        %v3200 = vadd.f32 %v3104, %v3199
        %v3201 = vpop.f32.mrf.mxu0
        %3202 = vmatprep.mubr.bf16.mxu0 0
        %3203 = vmatmul.mubr.bf16.gmra.mxu0 %v3053
        %v3204 = vpop.f32.mrf.mxu0
        %v3205 = vadd.f32 %v3104, %v3204
        %v3206 = vpop.f32.mrf.mxu0
        %v3207 = vpop.f32.mrf.mxu0
        %v3208 = vadd.f32 %v3104, %v3207
        %v3209 = vpop.f32.mrf.mxu0
        %3210 = vmatprep.mubr.bf16.mxu0 0
        %3211 = vmatmul.mubr.bf16.gmra.mxu0 %v3054
        %v3212 = vpop.f32.mrf.mxu0
        %v3213 = vadd.f32 %v3104, %v3212
        %v3214 = vpop.f32.mrf.mxu0
        %v3215 = vpop.f32.mrf.mxu0
        %v3216 = vadd.f32 %v3104, %v3215
        %v3217 = vpop.f32.mrf.mxu0
        %3218 = vmatprep.mubr.bf16.mxu0 0
        %3219 = vmatmul.mubr.bf16.gmra.mxu0 %v3055
        %v3220 = vpop.f32.mrf.mxu0
        %v3221 = vadd.f32 %v3104, %v3220
        %v3222 = vpop.f32.mrf.mxu0
        %v3223 = vpop.f32.mrf.mxu0
        %v3224 = vadd.f32 %v3104, %v3223
        %v3225 = vpop.f32.mrf.mxu0
        %3226 = vmatprep.mubr.bf16.mxu0 0
        %3227 = vmatmul.mubr.bf16.gmra.mxu0 %v3056
        %v3228 = vpop.f32.mrf.mxu0
        %v3229 = vadd.f32 %v3104, %v3228
        %v3230 = vpop.f32.mrf.mxu0
        %v3231 = vpop.f32.mrf.mxu0
        %v3232 = vadd.f32 %v3104, %v3231
        %v3233 = vpop.f32.mrf.mxu0
        %3234 = vmatprep.mubr.bf16.mxu0 0
        %3235 = vmatmul.mubr.bf16.gmra.mxu0 %v3057
        %v3236 = vpop.f32.mrf.mxu0
        %v3237 = vadd.f32 %v3104, %v3236
        %v3238 = vpop.f32.mrf.mxu0
        %v3239 = vpop.f32.mrf.mxu0
        %v3240 = vadd.f32 %v3104, %v3239
        %v3241 = vpop.f32.mrf.mxu0
        %3242 = vmatprep.mubr.bf16.mxu0 0
        %3243 = vmatmul.mubr.bf16.gmra.mxu0 %v3058
        %v3244 = vpop.f32.mrf.mxu0
        %v3245 = vadd.f32 %v3104, %v3244
        %v3246 = vpop.f32.mrf.mxu0
        %v3247 = vpop.f32.mrf.mxu0
        %v3248 = vadd.f32 %v3104, %v3247
        %v3249 = vpop.f32.mrf.mxu0
        %3250 = vmatprep.mubr.bf16.mxu0 0
        %3251 = vmatmul.mubr.bf16.gmra.mxu0 %v3059
        %v3252 = vpop.f32.mrf.mxu0
        %v3253 = vadd.f32 %v3104, %v3252
        %v3254 = vpop.f32.mrf.mxu0
        %v3255 = vpop.f32.mrf.mxu0
        %v3256 = vadd.f32 %v3104, %v3255
        %v3257 = vpop.f32.mrf.mxu0
        %3258 = vmatprep.mubr.bf16.mxu0 0
        %3259 = vmatmul.mubr.bf16.gmra.mxu0 %v3060
        %v3260 = vpop.f32.mrf.mxu0
        %v3261 = vadd.f32 %v3104, %v3260
        %v3262 = vpop.f32.mrf.mxu0
        %v3263 = vpop.f32.mrf.mxu0
        %v3264 = vadd.f32 %v3104, %v3263
        %v3265 = vpop.f32.mrf.mxu0
        %3266 = vmatprep.mubr.bf16.mxu0 0
        %3267 = vmatmul.mubr.bf16.gmra.mxu0 %v3061
        %v3268 = vpop.f32.mrf.mxu0
        %v3269 = vadd.f32 %v3104, %v3268
        %v3270 = vpop.f32.mrf.mxu0
        %v3271 = vpop.f32.mrf.mxu0
        %v3272 = vadd.f32 %v3104, %v3271
        %v3273 = vpop.f32.mrf.mxu0
        %3274 = vmatprep.mubr.bf16.mxu0 0
        %3275 = vmatmul.mubr.bf16.gmra.mxu0 %v3062
        %v3276 = vpop.f32.mrf.mxu0
        %v3277 = vadd.f32 %v3104, %v3276
        %v3278 = vpop.f32.mrf.mxu0
        %v3279 = vpop.f32.mrf.mxu0
        %v3280 = vadd.f32 %v3104, %v3279
        %v3281 = vpop.f32.mrf.mxu0
        %3282 = vmatprep.mubr.bf16.mxu0 0
        %3283 = vmatmul.mubr.bf16.gmra.mxu0 %v3063
        %v3284 = vpop.f32.mrf.mxu0
        %v3285 = vadd.f32 %v3104, %v3284
        %v3286 = vpop.f32.mrf.mxu0
        %v3287 = vpop.f32.mrf.mxu0
        %v3288 = vadd.f32 %v3104, %v3287
        %v3289 = vpop.f32.mrf.mxu0
        %3290 = vmatprep.mubr.bf16.mxu0 0
        %3291 = vmatmul.mubr.bf16.gmra.mxu0 %v3064
        %v3292 = vpop.f32.mrf.mxu0
        %v3293 = vadd.f32 %v3104, %v3292
        %v3294 = vpop.f32.mrf.mxu0
        %v3295 = vpop.f32.mrf.mxu0
        %v3296 = vadd.f32 %v3104, %v3295
        %v3297 = vpop.f32.mrf.mxu0
        %3298 = vmatprep.mubr.bf16.mxu0 0
        %3299 = vmatmul.mubr.bf16.gmra.mxu0 %v3065
        %v3300 = vpop.f32.mrf.mxu0
        %v3301 = vadd.f32 %v3104, %v3300
        %v3302 = vpop.f32.mrf.mxu0
        %v3303 = vpop.f32.mrf.mxu0
        %v3304 = vadd.f32 %v3104, %v3303
        %v3305 = vpop.f32.mrf.mxu0
        %3306 = vmatprep.mubr.bf16.mxu0 0
        %3307 = vmatmul.mubr.bf16.gmra.mxu0 %v3066
        %v3308 = vpop.f32.mrf.mxu0
        %v3309 = vadd.f32 %v3104, %v3308
        %v3310 = vpop.f32.mrf.mxu0
        %v3311 = vpop.f32.mrf.mxu0
        %v3312 = vadd.f32 %v3104, %v3311
        %v3313 = vpop.f32.mrf.mxu0
        %3314 = vmatprep.mubr.bf16.mxu0 0
        %3315 = vmatmul.mubr.bf16.gmra.mxu0 %v3067
        %v3316 = vpop.f32.mrf.mxu0
        %v3317 = vadd.f32 %v3104, %v3316
        %v3318 = vpop.f32.mrf.mxu0
        %v3319 = vpop.f32.mrf.mxu0
        %v3320 = vadd.f32 %v3104, %v3319
        %v3321 = vpop.f32.mrf.mxu0
        %3322 = vmatprep.mubr.bf16.mxu0 0
        %3323 = vmatmul.mubr.bf16.gmra.mxu0 %v3068
        %v3324 = vpop.f32.mrf.mxu0
        %v3325 = vadd.f32 %v3104, %v3324
        %v3326 = vpop.f32.mrf.mxu0
        %v3327 = vpop.f32.mrf.mxu0
        %v3328 = vadd.f32 %v3104, %v3327
        %v3329 = vpop.f32.mrf.mxu0
        %3330 = vmatprep.mubr.bf16.mxu0 0
        %3331 = vmatmul.mubr.bf16.gmra.mxu0 %v3069
        %v3332 = vpop.f32.mrf.mxu0
        %v3333 = vadd.f32 %v3104, %v3332
        %v3334 = vpop.f32.mrf.mxu0
        %v3335 = vpop.f32.mrf.mxu0
        %v3336 = vadd.f32 %v3104, %v3335
        %v3337 = vpop.f32.mrf.mxu0
        %3338 = vmatprep.mubr.bf16.mxu0 0
        %3339 = vmatmul.mubr.bf16.gmra.mxu0 %v3070
        %v3340 = vpop.f32.mrf.mxu0
        %v3341 = vadd.f32 %v3104, %v3340
        %v3342 = vpop.f32.mrf.mxu0
        %v3343 = vpop.f32.mrf.mxu0
        %v3344 = vadd.f32 %v3104, %v3343
        %v3345 = vpop.f32.mrf.mxu0
        %3346 = vmatprep.mubr.bf16.mxu0 0
        %3347 = vmatmul.mubr.bf16.gmra.mxu0 %v3071
        %v3348 = vpop.f32.mrf.mxu0
        %v3349 = vadd.f32 %v3104, %v3348
        %v3350 = vpop.f32.mrf.mxu0
        %v3351 = vpop.f32.mrf.mxu0
        %v3352 = vadd.f32 %v3104, %v3351
        %v3353 = vpop.f32.mrf.mxu0
        %3354 = vmatprep.mubr.bf16.mxu0 0
        %3355 = vmatmul.mubr.bf16.gmra.mxu0 %v3072
        %v3356 = vpop.f32.mrf.mxu0
        %v3357 = vadd.f32 %v3104, %v3356
        %v3358 = vpop.f32.mrf.mxu0
        %v3359 = vpop.f32.mrf.mxu0
        %v3360 = vadd.f32 %v3104, %v3359
        %v3361 = vpop.f32.mrf.mxu0
        %3362 = vmatprep.mubr.bf16.mxu0 0
        %3363 = vmatmul.mubr.bf16.gmra.mxu0 %v3073
        %v3364 = vpop.f32.mrf.mxu0
        %v3365 = vadd.f32 %v3104, %v3364
        %v3366 = vpop.f32.mrf.mxu0
        %v3367 = vpop.f32.mrf.mxu0
        %v3368 = vadd.f32 %v3104, %v3367
        %v3369 = vpop.f32.mrf.mxu0
        %3370 = vmatprep.mubr.bf16.mxu0 0
        %3371 = vmatmul.mubr.bf16.gmra.mxu0 %v3074
        %v3372 = vpop.f32.mrf.mxu0
        %v3373 = vadd.f32 %v3104, %v3372
        %v3374 = vpop.f32.mrf.mxu0
        %v3375 = vpop.f32.mrf.mxu0
        %v3376 = vadd.f32 %v3104, %v3375
        %v3377 = vpop.f32.mrf.mxu0
        %3378 = vmatprep.mubr.bf16.mxu0 0
        %3379 = vmatmul.mubr.bf16.gmra.mxu0 %v3075
        %v3380 = vpop.f32.mrf.mxu0
        %v3381 = vadd.f32 %v3104, %v3380
        %v3382 = vpop.f32.mrf.mxu0
        %v3383 = vpop.f32.mrf.mxu0
        %v3384 = vadd.f32 %v3104, %v3383
        %v3385 = vpop.f32.mrf.mxu0
        %3386 = vmatprep.mubr.bf16.mxu0 0
        %3387 = vmatmul.mubr.bf16.gmra.mxu0 %v3076
        %v3388 = vpop.f32.mrf.mxu0
        %v3389 = vadd.f32 %v3104, %v3388
        %v3390 = vpop.f32.mrf.mxu0
        %v3391 = vpop.f32.mrf.mxu0
        %v3392 = vadd.f32 %v3104, %v3391
        %v3393 = vpop.f32.mrf.mxu0
        %3394 = vmatprep.mubr.bf16.mxu0 0
        %3395 = vmatmul.mubr.bf16.gmra.mxu0 %v3077
        %v3396 = vpop.f32.mrf.mxu0
        %v3397 = vadd.f32 %v3104, %v3396
        %v3398 = vpop.f32.mrf.mxu0
        %v3399 = vpop.f32.mrf.mxu0
        %v3400 = vadd.f32 %v3104, %v3399
        %v3401 = vpop.f32.mrf.mxu0
        %3402 = vmatprep.mubr.bf16.mxu0 0
        %3403 = vmatmul.mubr.bf16.gmra.mxu0 %v3078
        %v3404 = vpop.f32.mrf.mxu0
        %v3405 = vadd.f32 %v3104, %v3404
        %v3406 = vpop.f32.mrf.mxu0
        %v3407 = vpop.f32.mrf.mxu0
        %v3408 = vadd.f32 %v3104, %v3407
        %v3409 = vpop.f32.mrf.mxu0
        %3410 = vmatprep.mubr.bf16.mxu0 0
        %3411 = vmatmul.mubr.bf16.gmra.mxu0 %v3079
        %v3412 = vpop.f32.mrf.mxu0
        %v3413 = vadd.f32 %v3104, %v3412
        %v3414 = vpop.f32.mrf.mxu0
        %v3415 = vpop.f32.mrf.mxu0
        %v3416 = vadd.f32 %v3104, %v3415
        %v3417 = vpop.f32.mrf.mxu0
        %3418 = vmatprep.mubr.bf16.mxu0 0
        %3419 = vmatmul.mubr.bf16.gmra.mxu0 %v3080
        %v3420 = vpop.f32.mrf.mxu0
        %v3421 = vadd.f32 %v3104, %v3420
        %v3422 = vpop.f32.mrf.mxu0
        %v3423 = vpop.f32.mrf.mxu0
        %v3424 = vadd.f32 %v3104, %v3423
        %v3425 = vpop.f32.mrf.mxu0
        %3426 = vmatprep.mubr.bf16.mxu0 0
        %3427 = vmatmul.mubr.bf16.gmra.mxu0 %v3081
        %v3428 = vpop.f32.mrf.mxu0
        %v3429 = vadd.f32 %v3104, %v3428
        %v3430 = vpop.f32.mrf.mxu0
        %v3431 = vpop.f32.mrf.mxu0
        %v3432 = vadd.f32 %v3104, %v3431
        %v3433 = vpop.f32.mrf.mxu0
        %3434 = vmatprep.mubr.bf16.mxu0 0
        %3435 = vmatmul.mubr.bf16.gmra.mxu0 %v3082
        %v3436 = vpop.f32.mrf.mxu0
        %v3437 = vadd.f32 %v3104, %v3436
        %v3438 = vpop.f32.mrf.mxu0
        %v3439 = vpop.f32.mrf.mxu0
        %v3440 = vadd.f32 %v3104, %v3439
        %v3441 = vpop.f32.mrf.mxu0
        %3442 = vdwg.mxu0
        %v3443 = vmax.f32 %v3189, 0.0
        %v3444 = vmax.f32 %v3192, 0.0
        %v3445 = vmax.f32 %v3197, 0.0
        %v3446 = vmax.f32 %v3200, 0.0
        %v3447 = vmax.f32 %v3205, 0.0
        %v3448 = vmax.f32 %v3208, 0.0
        %v3449 = vmax.f32 %v3213, 0.0
        %v3450 = vmax.f32 %v3216, 0.0
        %v3451 = vmax.f32 %v3221, 0.0
        %v3452 = vmax.f32 %v3224, 0.0
        %v3453 = vmax.f32 %v3229, 0.0
        %v3454 = vmax.f32 %v3232, 0.0
        %v3455 = vmax.f32 %v3237, 0.0
        %v3456 = vmax.f32 %v3240, 0.0
        %v3457 = vmax.f32 %v3245, 0.0
        %v3458 = vmax.f32 %v3248, 0.0
        %v3459 = vmax.f32 %v3253, 0.0
        %v3460 = vmax.f32 %v3256, 0.0
        %v3461 = vmax.f32 %v3261, 0.0
        %v3462 = vmax.f32 %v3264, 0.0
        %v3463 = vmax.f32 %v3269, 0.0
        %v3464 = vmax.f32 %v3272, 0.0
        %v3465 = vmax.f32 %v3277, 0.0
        %v3466 = vmax.f32 %v3280, 0.0
        %v3467 = vmax.f32 %v3285, 0.0
        %v3468 = vmax.f32 %v3288, 0.0
        %v3469 = vmax.f32 %v3293, 0.0
        %v3470 = vmax.f32 %v3296, 0.0
        %v3471 = vmax.f32 %v3301, 0.0
        %v3472 = vmax.f32 %v3304, 0.0
        %v3473 = vmax.f32 %v3309, 0.0
        %v3474 = vmax.f32 %v3312, 0.0
        %v3475 = vmax.f32 %v3317, 0.0
        %v3476 = vmax.f32 %v3320, 0.0
        %v3477 = vmax.f32 %v3325, 0.0
        %v3478 = vmax.f32 %v3328, 0.0
        %v3479 = vmax.f32 %v3333, 0.0
        %v3480 = vmax.f32 %v3336, 0.0
        %v3481 = vmax.f32 %v3341, 0.0
        %v3482 = vmax.f32 %v3344, 0.0
        %v3483 = vmax.f32 %v3349, 0.0
        %v3484 = vmax.f32 %v3352, 0.0
        %v3485 = vmax.f32 %v3357, 0.0
        %v3486 = vmax.f32 %v3360, 0.0
        %v3487 = vmax.f32 %v3365, 0.0
        %v3488 = vmax.f32 %v3368, 0.0
        %v3489 = vmax.f32 %v3373, 0.0
        %v3490 = vmax.f32 %v3376, 0.0
        %v3491 = vmax.f32 %v3381, 0.0
        %v3492 = vmax.f32 %v3384, 0.0
        %v3493 = vmax.f32 %v3389, 0.0
        %v3494 = vmax.f32 %v3392, 0.0
        %v3495 = vmax.f32 %v3397, 0.0
        %v3496 = vmax.f32 %v3400, 0.0
        %v3497 = vmax.f32 %v3405, 0.0
        %v3498 = vmax.f32 %v3408, 0.0
        %v3499 = vmax.f32 %v3413, 0.0
        %v3500 = vmax.f32 %v3416, 0.0
        %v3501 = vmax.f32 %v3421, 0.0
        %v3502 = vmax.f32 %v3424, 0.0
        %v3503 = vmax.f32 %v3429, 0.0
        %v3504 = vmax.f32 %v3432, 0.0
        %v3505 = vmax.f32 %v3437, 0.0
        %v3506 = vmax.f32 %v3440, 0.0
        %v3507 = vld [vmem:[%s11] sm:$0x1]
        %v3509 = vlaneseq
        %v3510 = vshrl.u32 %v3509, 7
        %v3511 = vsub.s32 0, %v3510
        %v3512 = vrot.slane %v3507, %v3511
        %v3514 = vmul.f32 %v3443, %v3512
        %v3515 = vmul.f32 %v3444, %v3512
        %v3516 = vmul.f32 %v3445, %v3512
        %v3517 = vmul.f32 %v3446, %v3512
        %v3518 = vmul.f32 %v3447, %v3512
        %v3519 = vmul.f32 %v3448, %v3512
        %v3520 = vmul.f32 %v3449, %v3512
        %v3521 = vmul.f32 %v3450, %v3512
        %v3522 = vmul.f32 %v3451, %v3512
        %v3523 = vmul.f32 %v3452, %v3512
        %v3524 = vmul.f32 %v3453, %v3512
        %v3525 = vmul.f32 %v3454, %v3512
        %v3526 = vmul.f32 %v3455, %v3512
        %v3527 = vmul.f32 %v3456, %v3512
        %v3528 = vmul.f32 %v3457, %v3512
        %v3529 = vmul.f32 %v3458, %v3512
        %v3530 = vmul.f32 %v3459, %v3512
        %v3531 = vmul.f32 %v3460, %v3512
        %v3532 = vmul.f32 %v3461, %v3512
        %v3533 = vmul.f32 %v3462, %v3512
        %v3534 = vmul.f32 %v3463, %v3512
        %v3535 = vmul.f32 %v3464, %v3512
        %v3536 = vmul.f32 %v3465, %v3512
        %v3537 = vmul.f32 %v3466, %v3512
        %v3538 = vmul.f32 %v3467, %v3512
        %v3539 = vmul.f32 %v3468, %v3512
        %v3540 = vmul.f32 %v3469, %v3512
        %v3541 = vmul.f32 %v3470, %v3512
        %v3542 = vmul.f32 %v3471, %v3512
        %v3543 = vmul.f32 %v3472, %v3512
        %v3544 = vmul.f32 %v3473, %v3512
        %v3545 = vmul.f32 %v3474, %v3512
        %v3546 = vmul.f32 %v3475, %v3512
        %v3547 = vmul.f32 %v3476, %v3512
        %v3548 = vmul.f32 %v3477, %v3512
        %v3549 = vmul.f32 %v3478, %v3512
        %v3550 = vmul.f32 %v3479, %v3512
        %v3551 = vmul.f32 %v3480, %v3512
        %v3552 = vmul.f32 %v3481, %v3512
        %v3553 = vmul.f32 %v3482, %v3512
        %v3554 = vmul.f32 %v3483, %v3512
        %v3555 = vmul.f32 %v3484, %v3512
        %v3556 = vmul.f32 %v3485, %v3512
        %v3557 = vmul.f32 %v3486, %v3512
        %v3558 = vmul.f32 %v3487, %v3512
        %v3559 = vmul.f32 %v3488, %v3512
        %v3560 = vmul.f32 %v3489, %v3512
        %v3561 = vmul.f32 %v3490, %v3512
        %v3562 = vmul.f32 %v3491, %v3512
        %v3563 = vmul.f32 %v3492, %v3512
        %v3564 = vmul.f32 %v3493, %v3512
        %v3565 = vmul.f32 %v3494, %v3512
        %v3566 = vmul.f32 %v3495, %v3512
        %v3567 = vmul.f32 %v3496, %v3512
        %v3568 = vmul.f32 %v3497, %v3512
        %v3569 = vmul.f32 %v3498, %v3512
        %v3570 = vmul.f32 %v3499, %v3512
        %v3571 = vmul.f32 %v3500, %v3512
        %v3572 = vmul.f32 %v3501, %v3512
        %v3573 = vmul.f32 %v3502, %v3512
        %v3574 = vmul.f32 %v3503, %v3512
        %v3575 = vmul.f32 %v3504, %v3512
        %v3576 = vmul.f32 %v3505, %v3512
        %v3577 = vmul.f32 %v3506, %v3512
        %3578 = vadd.xlane.f32.xlu0 %v3514
        %v3579 = vpop.xlane.xlu0 %3578
        %3580 = vadd.xlane.f32.xlu0 %v3515
        %v3581 = vpop.xlane.xlu0 %3580
        %3582 = vadd.xlane.f32.xlu0 %v3516
        %v3583 = vpop.xlane.xlu0 %3582
        %3584 = vadd.xlane.f32.xlu0 %v3517
        %v3585 = vpop.xlane.xlu0 %3584
        %3586 = vadd.xlane.f32.xlu0 %v3518
        %v3587 = vpop.xlane.xlu0 %3586
        %3588 = vadd.xlane.f32.xlu0 %v3519
        %v3589 = vpop.xlane.xlu0 %3588
        %3590 = vadd.xlane.f32.xlu0 %v3520
        %v3591 = vpop.xlane.xlu0 %3590
        %3592 = vadd.xlane.f32.xlu0 %v3521
        %v3593 = vpop.xlane.xlu0 %3592
        %3594 = vadd.xlane.f32.xlu0 %v3522
        %v3595 = vpop.xlane.xlu0 %3594
        %3596 = vadd.xlane.f32.xlu0 %v3523
        %v3597 = vpop.xlane.xlu0 %3596
        %3598 = vadd.xlane.f32.xlu0 %v3524
        %v3599 = vpop.xlane.xlu0 %3598
        %3600 = vadd.xlane.f32.xlu0 %v3525
        %v3601 = vpop.xlane.xlu0 %3600
        %3602 = vadd.xlane.f32.xlu0 %v3526
        %v3603 = vpop.xlane.xlu0 %3602
        %3604 = vadd.xlane.f32.xlu0 %v3527
        %v3605 = vpop.xlane.xlu0 %3604
        %3606 = vadd.xlane.f32.xlu0 %v3528
        %v3607 = vpop.xlane.xlu0 %3606
        %3608 = vadd.xlane.f32.xlu0 %v3529
        %v3609 = vpop.xlane.xlu0 %3608
        %3610 = vadd.xlane.f32.xlu0 %v3530
        %v3611 = vpop.xlane.xlu0 %3610
        %3612 = vadd.xlane.f32.xlu0 %v3531
        %v3613 = vpop.xlane.xlu0 %3612
        %3614 = vadd.xlane.f32.xlu0 %v3532
        %v3615 = vpop.xlane.xlu0 %3614
        %3616 = vadd.xlane.f32.xlu0 %v3533
        %v3617 = vpop.xlane.xlu0 %3616
        %3618 = vadd.xlane.f32.xlu0 %v3534
        %v3619 = vpop.xlane.xlu0 %3618
        %3620 = vadd.xlane.f32.xlu0 %v3535
        %v3621 = vpop.xlane.xlu0 %3620
        %3622 = vadd.xlane.f32.xlu0 %v3536
        %v3623 = vpop.xlane.xlu0 %3622
        %3624 = vadd.xlane.f32.xlu0 %v3537
        %v3625 = vpop.xlane.xlu0 %3624
        %3626 = vadd.xlane.f32.xlu0 %v3538
        %v3627 = vpop.xlane.xlu0 %3626
        %3628 = vadd.xlane.f32.xlu0 %v3539
        %v3629 = vpop.xlane.xlu0 %3628
        %3630 = vadd.xlane.f32.xlu0 %v3540
        %v3631 = vpop.xlane.xlu0 %3630
        %3632 = vadd.xlane.f32.xlu0 %v3541
        %v3633 = vpop.xlane.xlu0 %3632
        %3634 = vadd.xlane.f32.xlu0 %v3542
        %v3635 = vpop.xlane.xlu0 %3634
        %3636 = vadd.xlane.f32.xlu0 %v3543
        %v3637 = vpop.xlane.xlu0 %3636
        %3638 = vadd.xlane.f32.xlu0 %v3544
        %v3639 = vpop.xlane.xlu0 %3638
        %3640 = vadd.xlane.f32.xlu0 %v3545
        %v3641 = vpop.xlane.xlu0 %3640
        %3642 = vadd.xlane.f32.xlu0 %v3546
        %v3643 = vpop.xlane.xlu0 %3642
        %3644 = vadd.xlane.f32.xlu0 %v3547
        %v3645 = vpop.xlane.xlu0 %3644
        %3646 = vadd.xlane.f32.xlu0 %v3548
        %v3647 = vpop.xlane.xlu0 %3646
        %3648 = vadd.xlane.f32.xlu0 %v3549
        %v3649 = vpop.xlane.xlu0 %3648
        %3650 = vadd.xlane.f32.xlu0 %v3550
        %v3651 = vpop.xlane.xlu0 %3650
        %3652 = vadd.xlane.f32.xlu0 %v3551
        %v3653 = vpop.xlane.xlu0 %3652
        %3654 = vadd.xlane.f32.xlu0 %v3552
        %v3655 = vpop.xlane.xlu0 %3654
        %3656 = vadd.xlane.f32.xlu0 %v3553
        %v3657 = vpop.xlane.xlu0 %3656
        %3658 = vadd.xlane.f32.xlu0 %v3554
        %v3659 = vpop.xlane.xlu0 %3658
        %3660 = vadd.xlane.f32.xlu0 %v3555
        %v3661 = vpop.xlane.xlu0 %3660
        %3662 = vadd.xlane.f32.xlu0 %v3556
        %v3663 = vpop.xlane.xlu0 %3662
        %3664 = vadd.xlane.f32.xlu0 %v3557
        %v3665 = vpop.xlane.xlu0 %3664
        %3666 = vadd.xlane.f32.xlu0 %v3558
        %v3667 = vpop.xlane.xlu0 %3666
        %3668 = vadd.xlane.f32.xlu0 %v3559
        %v3669 = vpop.xlane.xlu0 %3668
        %3670 = vadd.xlane.f32.xlu0 %v3560
        %v3671 = vpop.xlane.xlu0 %3670
        %3672 = vadd.xlane.f32.xlu0 %v3561
        %v3673 = vpop.xlane.xlu0 %3672
        %3674 = vadd.xlane.f32.xlu0 %v3562
        %v3675 = vpop.xlane.xlu0 %3674
        %3676 = vadd.xlane.f32.xlu0 %v3563
        %v3677 = vpop.xlane.xlu0 %3676
        %3678 = vadd.xlane.f32.xlu0 %v3564
        %v3679 = vpop.xlane.xlu0 %3678
        %3680 = vadd.xlane.f32.xlu0 %v3565
        %v3681 = vpop.xlane.xlu0 %3680
        %3682 = vadd.xlane.f32.xlu0 %v3566
        %v3683 = vpop.xlane.xlu0 %3682
        %3684 = vadd.xlane.f32.xlu0 %v3567
        %v3685 = vpop.xlane.xlu0 %3684
        %3686 = vadd.xlane.f32.xlu0 %v3568
        %v3687 = vpop.xlane.xlu0 %3686
        %3688 = vadd.xlane.f32.xlu0 %v3569
        %v3689 = vpop.xlane.xlu0 %3688
        %3690 = vadd.xlane.f32.xlu0 %v3570
        %v3691 = vpop.xlane.xlu0 %3690
        %3692 = vadd.xlane.f32.xlu0 %v3571
        %v3693 = vpop.xlane.xlu0 %3692
        %3694 = vadd.xlane.f32.xlu0 %v3572
        %v3695 = vpop.xlane.xlu0 %3694
        %3696 = vadd.xlane.f32.xlu0 %v3573
        %v3697 = vpop.xlane.xlu0 %3696
        %3698 = vadd.xlane.f32.xlu0 %v3574
        %v3699 = vpop.xlane.xlu0 %3698
        %3700 = vadd.xlane.f32.xlu0 %v3575
        %v3701 = vpop.xlane.xlu0 %3700
        %3702 = vadd.xlane.f32.xlu0 %v3576
        %v3703 = vpop.xlane.xlu0 %3702
        %3704 = vadd.xlane.f32.xlu0 %v3577
        %v3705 = vpop.xlane.xlu0 %3704
        %s3706 = sld [smem:[#allocation2]]
        %v3707 = vstv %s3706
        %v3708 = vadd.f32 %v3579, %v3707
        %v3709 = vadd.f32 %v3581, %v3707
        %v3710 = vadd.f32 %v3583, %v3707
        %v3711 = vadd.f32 %v3585, %v3707
        %v3712 = vadd.f32 %v3587, %v3707
        %v3713 = vadd.f32 %v3589, %v3707
        %v3714 = vadd.f32 %v3591, %v3707
        %v3715 = vadd.f32 %v3593, %v3707
        %v3716 = vadd.f32 %v3595, %v3707
        %v3717 = vadd.f32 %v3597, %v3707
        %v3718 = vadd.f32 %v3599, %v3707
        %v3719 = vadd.f32 %v3601, %v3707
        %v3720 = vadd.f32 %v3603, %v3707
        %v3721 = vadd.f32 %v3605, %v3707
        %v3722 = vadd.f32 %v3607, %v3707
        %v3723 = vadd.f32 %v3609, %v3707
        %v3724 = vadd.f32 %v3611, %v3707
        %v3725 = vadd.f32 %v3613, %v3707
        %v3726 = vadd.f32 %v3615, %v3707
        %v3727 = vadd.f32 %v3617, %v3707
        %v3728 = vadd.f32 %v3619, %v3707
        %v3729 = vadd.f32 %v3621, %v3707
        %v3730 = vadd.f32 %v3623, %v3707
        %v3731 = vadd.f32 %v3625, %v3707
        %v3732 = vadd.f32 %v3627, %v3707
        %v3733 = vadd.f32 %v3629, %v3707
        %v3734 = vadd.f32 %v3631, %v3707
        %v3735 = vadd.f32 %v3633, %v3707
        %v3736 = vadd.f32 %v3635, %v3707
        %v3737 = vadd.f32 %v3637, %v3707
        %v3738 = vadd.f32 %v3639, %v3707
        %v3739 = vadd.f32 %v3641, %v3707
        %v3740 = vadd.f32 %v3643, %v3707
        %v3741 = vadd.f32 %v3645, %v3707
        %v3742 = vadd.f32 %v3647, %v3707
        %v3743 = vadd.f32 %v3649, %v3707
        %v3744 = vadd.f32 %v3651, %v3707
        %v3745 = vadd.f32 %v3653, %v3707
        %v3746 = vadd.f32 %v3655, %v3707
        %v3747 = vadd.f32 %v3657, %v3707
        %v3748 = vadd.f32 %v3659, %v3707
        %v3749 = vadd.f32 %v3661, %v3707
        %v3750 = vadd.f32 %v3663, %v3707
        %v3751 = vadd.f32 %v3665, %v3707
        %v3752 = vadd.f32 %v3667, %v3707
        %v3753 = vadd.f32 %v3669, %v3707
        %v3754 = vadd.f32 %v3671, %v3707
        %v3755 = vadd.f32 %v3673, %v3707
        %v3756 = vadd.f32 %v3675, %v3707
        %v3757 = vadd.f32 %v3677, %v3707
        %v3758 = vadd.f32 %v3679, %v3707
        %v3759 = vadd.f32 %v3681, %v3707
        %v3760 = vadd.f32 %v3683, %v3707
        %v3761 = vadd.f32 %v3685, %v3707
        %v3762 = vadd.f32 %v3687, %v3707
        %v3763 = vadd.f32 %v3689, %v3707
        %v3764 = vadd.f32 %v3691, %v3707
        %v3765 = vadd.f32 %v3693, %v3707
        %v3766 = vadd.f32 %v3695, %v3707
        %v3767 = vadd.f32 %v3697, %v3707
        %v3768 = vadd.f32 %v3699, %v3707
        %v3769 = vadd.f32 %v3701, %v3707
        %v3770 = vadd.f32 %v3703, %v3707
        %v3771 = vadd.f32 %v3705, %v3707
        %v3836 = vlaneseq
        %v3837 = vshrl.u32 %v3836, 7
        %v3838 = vsub.s32 0, %v3837
        %v3839 = vrot.slane %v3708, %v3838
        %v3840 = vlaneseq
        %v3841 = vshrl.u32 %v3840, 7
        %v3842 = vsub.s32 1, %v3841
        %v3843 = vrot.slane %v3708, %v3842
        %v3844 = vlaneseq
        %v3845 = vshrl.u32 %v3844, 7
        %v3846 = vsub.s32 2, %v3845
        %v3847 = vrot.slane %v3708, %v3846
        %v3848 = vlaneseq
        %v3849 = vshrl.u32 %v3848, 7
        %v3850 = vsub.s32 3, %v3849
        %v3851 = vrot.slane %v3708, %v3850
        %v3852 = vlaneseq
        %v3853 = vshrl.u32 %v3852, 7
        %v3854 = vsub.s32 4, %v3853
        %v3855 = vrot.slane %v3708, %v3854
        %v3856 = vlaneseq
        %v3857 = vshrl.u32 %v3856, 7
        %v3858 = vsub.s32 5, %v3857
        %v3859 = vrot.slane %v3708, %v3858
        %v3860 = vlaneseq
        %v3861 = vshrl.u32 %v3860, 7
        %v3862 = vsub.s32 6, %v3861
        %v3863 = vrot.slane %v3708, %v3862
        %v3864 = vlaneseq
        %v3865 = vshrl.u32 %v3864, 7
        %v3866 = vsub.s32 7, %v3865
        %v3867 = vrot.slane %v3708, %v3866
        %v3868 = vlaneseq
        %v3869 = vshrl.u32 %v3868, 7
        %v3870 = vsub.s32 0, %v3869
        %v3871 = vrot.slane %v3709, %v3870
        %v3872 = vlaneseq
        %v3873 = vshrl.u32 %v3872, 7
        %v3874 = vsub.s32 1, %v3873
        %v3875 = vrot.slane %v3709, %v3874
        %v3876 = vlaneseq
        %v3877 = vshrl.u32 %v3876, 7
        %v3878 = vsub.s32 2, %v3877
        %v3879 = vrot.slane %v3709, %v3878
        %v3880 = vlaneseq
        %v3881 = vshrl.u32 %v3880, 7
        %v3882 = vsub.s32 3, %v3881
        %v3883 = vrot.slane %v3709, %v3882
        %v3884 = vlaneseq
        %v3885 = vshrl.u32 %v3884, 7
        %v3886 = vsub.s32 4, %v3885
        %v3887 = vrot.slane %v3709, %v3886
        %v3888 = vlaneseq
        %v3889 = vshrl.u32 %v3888, 7
        %v3890 = vsub.s32 5, %v3889
        %v3891 = vrot.slane %v3709, %v3890
        %v3892 = vlaneseq
        %v3893 = vshrl.u32 %v3892, 7
        %v3894 = vsub.s32 6, %v3893
        %v3895 = vrot.slane %v3709, %v3894
        %v3896 = vlaneseq
        %v3897 = vshrl.u32 %v3896, 7
        %v3898 = vsub.s32 7, %v3897
        %v3899 = vrot.slane %v3709, %v3898
        %v3900 = vlaneseq
        %v3901 = vshrl.u32 %v3900, 7
        %v3902 = vsub.s32 0, %v3901
        %v3903 = vrot.slane %v3710, %v3902
        %v3904 = vlaneseq
        %v3905 = vshrl.u32 %v3904, 7
        %v3906 = vsub.s32 1, %v3905
        %v3907 = vrot.slane %v3710, %v3906
        %v3908 = vlaneseq
        %v3909 = vshrl.u32 %v3908, 7
        %v3910 = vsub.s32 2, %v3909
        %v3911 = vrot.slane %v3710, %v3910
        %v3912 = vlaneseq
        %v3913 = vshrl.u32 %v3912, 7
        %v3914 = vsub.s32 3, %v3913
        %v3915 = vrot.slane %v3710, %v3914
        %v3916 = vlaneseq
        %v3917 = vshrl.u32 %v3916, 7
        %v3918 = vsub.s32 4, %v3917
        %v3919 = vrot.slane %v3710, %v3918
        %v3920 = vlaneseq
        %v3921 = vshrl.u32 %v3920, 7
        %v3922 = vsub.s32 5, %v3921
        %v3923 = vrot.slane %v3710, %v3922
        %v3924 = vlaneseq
        %v3925 = vshrl.u32 %v3924, 7
        %v3926 = vsub.s32 6, %v3925
        %v3927 = vrot.slane %v3710, %v3926
        %v3928 = vlaneseq
        %v3929 = vshrl.u32 %v3928, 7
        %v3930 = vsub.s32 7, %v3929
        %v3931 = vrot.slane %v3710, %v3930
        %v3932 = vlaneseq
        %v3933 = vshrl.u32 %v3932, 7
        %v3934 = vsub.s32 0, %v3933
        %v3935 = vrot.slane %v3711, %v3934
        %v3936 = vlaneseq
        %v3937 = vshrl.u32 %v3936, 7
        %v3938 = vsub.s32 1, %v3937
        %v3939 = vrot.slane %v3711, %v3938
        %v3940 = vlaneseq
        %v3941 = vshrl.u32 %v3940, 7
        %v3942 = vsub.s32 2, %v3941
        %v3943 = vrot.slane %v3711, %v3942
        %v3944 = vlaneseq
        %v3945 = vshrl.u32 %v3944, 7
        %v3946 = vsub.s32 3, %v3945
        %v3947 = vrot.slane %v3711, %v3946
        %v3948 = vlaneseq
        %v3949 = vshrl.u32 %v3948, 7
        %v3950 = vsub.s32 4, %v3949
        %v3951 = vrot.slane %v3711, %v3950
        %v3952 = vlaneseq
        %v3953 = vshrl.u32 %v3952, 7
        %v3954 = vsub.s32 5, %v3953
        %v3955 = vrot.slane %v3711, %v3954
        %v3956 = vlaneseq
        %v3957 = vshrl.u32 %v3956, 7
        %v3958 = vsub.s32 6, %v3957
        %v3959 = vrot.slane %v3711, %v3958
        %v3960 = vlaneseq
        %v3961 = vshrl.u32 %v3960, 7
        %v3962 = vsub.s32 7, %v3961
        %v3963 = vrot.slane %v3711, %v3962
        %v3964 = vlaneseq
        %v3965 = vshrl.u32 %v3964, 7
        %v3966 = vsub.s32 0, %v3965
        %v3967 = vrot.slane %v3712, %v3966
        %v3968 = vlaneseq
        %v3969 = vshrl.u32 %v3968, 7
        %v3970 = vsub.s32 1, %v3969
        %v3971 = vrot.slane %v3712, %v3970
        %v3972 = vlaneseq
        %v3973 = vshrl.u32 %v3972, 7
        %v3974 = vsub.s32 2, %v3973
        %v3975 = vrot.slane %v3712, %v3974
        %v3976 = vlaneseq
        %v3977 = vshrl.u32 %v3976, 7
        %v3978 = vsub.s32 3, %v3977
        %v3979 = vrot.slane %v3712, %v3978
        %v3980 = vlaneseq
        %v3981 = vshrl.u32 %v3980, 7
        %v3982 = vsub.s32 4, %v3981
        %v3983 = vrot.slane %v3712, %v3982
        %v3984 = vlaneseq
        %v3985 = vshrl.u32 %v3984, 7
        %v3986 = vsub.s32 5, %v3985
        %v3987 = vrot.slane %v3712, %v3986
        %v3988 = vlaneseq
        %v3989 = vshrl.u32 %v3988, 7
        %v3990 = vsub.s32 6, %v3989
        %v3991 = vrot.slane %v3712, %v3990
        %v3992 = vlaneseq
        %v3993 = vshrl.u32 %v3992, 7
        %v3994 = vsub.s32 7, %v3993
        %v3995 = vrot.slane %v3712, %v3994
        %v3996 = vlaneseq
        %v3997 = vshrl.u32 %v3996, 7
        %v3998 = vsub.s32 0, %v3997
        %v3999 = vrot.slane %v3713, %v3998
        %v4000 = vlaneseq
        %v4001 = vshrl.u32 %v4000, 7
        %v4002 = vsub.s32 1, %v4001
        %v4003 = vrot.slane %v3713, %v4002
        %v4004 = vlaneseq
        %v4005 = vshrl.u32 %v4004, 7
        %v4006 = vsub.s32 2, %v4005
        %v4007 = vrot.slane %v3713, %v4006
        %v4008 = vlaneseq
        %v4009 = vshrl.u32 %v4008, 7
        %v4010 = vsub.s32 3, %v4009
        %v4011 = vrot.slane %v3713, %v4010
        %v4012 = vlaneseq
        %v4013 = vshrl.u32 %v4012, 7
        %v4014 = vsub.s32 4, %v4013
        %v4015 = vrot.slane %v3713, %v4014
        %v4016 = vlaneseq
        %v4017 = vshrl.u32 %v4016, 7
        %v4018 = vsub.s32 5, %v4017
        %v4019 = vrot.slane %v3713, %v4018
        %v4020 = vlaneseq
        %v4021 = vshrl.u32 %v4020, 7
        %v4022 = vsub.s32 6, %v4021
        %v4023 = vrot.slane %v3713, %v4022
        %v4024 = vlaneseq
        %v4025 = vshrl.u32 %v4024, 7
        %v4026 = vsub.s32 7, %v4025
        %v4027 = vrot.slane %v3713, %v4026
        %v4028 = vlaneseq
        %v4029 = vshrl.u32 %v4028, 7
        %v4030 = vsub.s32 0, %v4029
        %v4031 = vrot.slane %v3714, %v4030
        %v4032 = vlaneseq
        %v4033 = vshrl.u32 %v4032, 7
        %v4034 = vsub.s32 1, %v4033
        %v4035 = vrot.slane %v3714, %v4034
        %v4036 = vlaneseq
        %v4037 = vshrl.u32 %v4036, 7
        %v4038 = vsub.s32 2, %v4037
        %v4039 = vrot.slane %v3714, %v4038
        %v4040 = vlaneseq
        %v4041 = vshrl.u32 %v4040, 7
        %v4042 = vsub.s32 3, %v4041
        %v4043 = vrot.slane %v3714, %v4042
        %v4044 = vlaneseq
        %v4045 = vshrl.u32 %v4044, 7
        %v4046 = vsub.s32 4, %v4045
        %v4047 = vrot.slane %v3714, %v4046
        %v4048 = vlaneseq
        %v4049 = vshrl.u32 %v4048, 7
        %v4050 = vsub.s32 5, %v4049
        %v4051 = vrot.slane %v3714, %v4050
        %v4052 = vlaneseq
        %v4053 = vshrl.u32 %v4052, 7
        %v4054 = vsub.s32 6, %v4053
        %v4055 = vrot.slane %v3714, %v4054
        %v4056 = vlaneseq
        %v4057 = vshrl.u32 %v4056, 7
        %v4058 = vsub.s32 7, %v4057
        %v4059 = vrot.slane %v3714, %v4058
        %v4060 = vlaneseq
        %v4061 = vshrl.u32 %v4060, 7
        %v4062 = vsub.s32 0, %v4061
        %v4063 = vrot.slane %v3715, %v4062
        %v4064 = vlaneseq
        %v4065 = vshrl.u32 %v4064, 7
        %v4066 = vsub.s32 1, %v4065
        %v4067 = vrot.slane %v3715, %v4066
        %v4068 = vlaneseq
        %v4069 = vshrl.u32 %v4068, 7
        %v4070 = vsub.s32 2, %v4069
        %v4071 = vrot.slane %v3715, %v4070
        %v4072 = vlaneseq
        %v4073 = vshrl.u32 %v4072, 7
        %v4074 = vsub.s32 3, %v4073
        %v4075 = vrot.slane %v3715, %v4074
        %v4076 = vlaneseq
        %v4077 = vshrl.u32 %v4076, 7
        %v4078 = vsub.s32 4, %v4077
        %v4079 = vrot.slane %v3715, %v4078
        %v4080 = vlaneseq
        %v4081 = vshrl.u32 %v4080, 7
        %v4082 = vsub.s32 5, %v4081
        %v4083 = vrot.slane %v3715, %v4082
        %v4084 = vlaneseq
        %v4085 = vshrl.u32 %v4084, 7
        %v4086 = vsub.s32 6, %v4085
        %v4087 = vrot.slane %v3715, %v4086
        %v4088 = vlaneseq
        %v4089 = vshrl.u32 %v4088, 7
        %v4090 = vsub.s32 7, %v4089
        %v4091 = vrot.slane %v3715, %v4090
        %v4092 = vlaneseq
        %v4093 = vshrl.u32 %v4092, 7
        %v4094 = vsub.s32 0, %v4093
        %v4095 = vrot.slane %v3716, %v4094
        %v4096 = vlaneseq
        %v4097 = vshrl.u32 %v4096, 7
        %v4098 = vsub.s32 1, %v4097
        %v4099 = vrot.slane %v3716, %v4098
        %v4100 = vlaneseq
        %v4101 = vshrl.u32 %v4100, 7
        %v4102 = vsub.s32 2, %v4101
        %v4103 = vrot.slane %v3716, %v4102
        %v4104 = vlaneseq
        %v4105 = vshrl.u32 %v4104, 7
        %v4106 = vsub.s32 3, %v4105
        %v4107 = vrot.slane %v3716, %v4106
        %v4108 = vlaneseq
        %v4109 = vshrl.u32 %v4108, 7
        %v4110 = vsub.s32 4, %v4109
        %v4111 = vrot.slane %v3716, %v4110
        %v4112 = vlaneseq
        %v4113 = vshrl.u32 %v4112, 7
        %v4114 = vsub.s32 5, %v4113
        %v4115 = vrot.slane %v3716, %v4114
        %v4116 = vlaneseq
        %v4117 = vshrl.u32 %v4116, 7
        %v4118 = vsub.s32 6, %v4117
        %v4119 = vrot.slane %v3716, %v4118
        %v4120 = vlaneseq
        %v4121 = vshrl.u32 %v4120, 7
        %v4122 = vsub.s32 7, %v4121
        %v4123 = vrot.slane %v3716, %v4122
        %v4124 = vlaneseq
        %v4125 = vshrl.u32 %v4124, 7
        %v4126 = vsub.s32 0, %v4125
        %v4127 = vrot.slane %v3717, %v4126
        %v4128 = vlaneseq
        %v4129 = vshrl.u32 %v4128, 7
        %v4130 = vsub.s32 1, %v4129
        %v4131 = vrot.slane %v3717, %v4130
        %v4132 = vlaneseq
        %v4133 = vshrl.u32 %v4132, 7
        %v4134 = vsub.s32 2, %v4133
        %v4135 = vrot.slane %v3717, %v4134
        %v4136 = vlaneseq
        %v4137 = vshrl.u32 %v4136, 7
        %v4138 = vsub.s32 3, %v4137
        %v4139 = vrot.slane %v3717, %v4138
        %v4140 = vlaneseq
        %v4141 = vshrl.u32 %v4140, 7
        %v4142 = vsub.s32 4, %v4141
        %v4143 = vrot.slane %v3717, %v4142
        %v4144 = vlaneseq
        %v4145 = vshrl.u32 %v4144, 7
        %v4146 = vsub.s32 5, %v4145
        %v4147 = vrot.slane %v3717, %v4146
        %v4148 = vlaneseq
        %v4149 = vshrl.u32 %v4148, 7
        %v4150 = vsub.s32 6, %v4149
        %v4151 = vrot.slane %v3717, %v4150
        %v4152 = vlaneseq
        %v4153 = vshrl.u32 %v4152, 7
        %v4154 = vsub.s32 7, %v4153
        %v4155 = vrot.slane %v3717, %v4154
        %v4156 = vlaneseq
        %v4157 = vshrl.u32 %v4156, 7
        %v4158 = vsub.s32 0, %v4157
        %v4159 = vrot.slane %v3718, %v4158
        %v4160 = vlaneseq
        %v4161 = vshrl.u32 %v4160, 7
        %v4162 = vsub.s32 1, %v4161
        %v4163 = vrot.slane %v3718, %v4162
        %v4164 = vlaneseq
        %v4165 = vshrl.u32 %v4164, 7
        %v4166 = vsub.s32 2, %v4165
        %v4167 = vrot.slane %v3718, %v4166
        %v4168 = vlaneseq
        %v4169 = vshrl.u32 %v4168, 7
        %v4170 = vsub.s32 3, %v4169
        %v4171 = vrot.slane %v3718, %v4170
        %v4172 = vlaneseq
        %v4173 = vshrl.u32 %v4172, 7
        %v4174 = vsub.s32 4, %v4173
        %v4175 = vrot.slane %v3718, %v4174
        %v4176 = vlaneseq
        %v4177 = vshrl.u32 %v4176, 7
        %v4178 = vsub.s32 5, %v4177
        %v4179 = vrot.slane %v3718, %v4178
        %v4180 = vlaneseq
        %v4181 = vshrl.u32 %v4180, 7
        %v4182 = vsub.s32 6, %v4181
        %v4183 = vrot.slane %v3718, %v4182
        %v4184 = vlaneseq
        %v4185 = vshrl.u32 %v4184, 7
        %v4186 = vsub.s32 7, %v4185
        %v4187 = vrot.slane %v3718, %v4186
        %v4188 = vlaneseq
        %v4189 = vshrl.u32 %v4188, 7
        %v4190 = vsub.s32 0, %v4189
        %v4191 = vrot.slane %v3719, %v4190
        %v4192 = vlaneseq
        %v4193 = vshrl.u32 %v4192, 7
        %v4194 = vsub.s32 1, %v4193
        %v4195 = vrot.slane %v3719, %v4194
        %v4196 = vlaneseq
        %v4197 = vshrl.u32 %v4196, 7
        %v4198 = vsub.s32 2, %v4197
        %v4199 = vrot.slane %v3719, %v4198
        %v4200 = vlaneseq
        %v4201 = vshrl.u32 %v4200, 7
        %v4202 = vsub.s32 3, %v4201
        %v4203 = vrot.slane %v3719, %v4202
        %v4204 = vlaneseq
        %v4205 = vshrl.u32 %v4204, 7
        %v4206 = vsub.s32 4, %v4205
        %v4207 = vrot.slane %v3719, %v4206
        %v4208 = vlaneseq
        %v4209 = vshrl.u32 %v4208, 7
        %v4210 = vsub.s32 5, %v4209
        %v4211 = vrot.slane %v3719, %v4210
        %v4212 = vlaneseq
        %v4213 = vshrl.u32 %v4212, 7
        %v4214 = vsub.s32 6, %v4213
        %v4215 = vrot.slane %v3719, %v4214
        %v4216 = vlaneseq
        %v4217 = vshrl.u32 %v4216, 7
        %v4218 = vsub.s32 7, %v4217
        %v4219 = vrot.slane %v3719, %v4218
        %v4220 = vlaneseq
        %v4221 = vshrl.u32 %v4220, 7
        %v4222 = vsub.s32 0, %v4221
        %v4223 = vrot.slane %v3720, %v4222
        %v4224 = vlaneseq
        %v4225 = vshrl.u32 %v4224, 7
        %v4226 = vsub.s32 1, %v4225
        %v4227 = vrot.slane %v3720, %v4226
        %v4228 = vlaneseq
        %v4229 = vshrl.u32 %v4228, 7
        %v4230 = vsub.s32 2, %v4229
        %v4231 = vrot.slane %v3720, %v4230
        %v4232 = vlaneseq
        %v4233 = vshrl.u32 %v4232, 7
        %v4234 = vsub.s32 3, %v4233
        %v4235 = vrot.slane %v3720, %v4234
        %v4236 = vlaneseq
        %v4237 = vshrl.u32 %v4236, 7
        %v4238 = vsub.s32 4, %v4237
        %v4239 = vrot.slane %v3720, %v4238
        %v4240 = vlaneseq
        %v4241 = vshrl.u32 %v4240, 7
        %v4242 = vsub.s32 5, %v4241
        %v4243 = vrot.slane %v3720, %v4242
        %v4244 = vlaneseq
        %v4245 = vshrl.u32 %v4244, 7
        %v4246 = vsub.s32 6, %v4245
        %v4247 = vrot.slane %v3720, %v4246
        %v4248 = vlaneseq
        %v4249 = vshrl.u32 %v4248, 7
        %v4250 = vsub.s32 7, %v4249
        %v4251 = vrot.slane %v3720, %v4250
        %v4252 = vlaneseq
        %v4253 = vshrl.u32 %v4252, 7
        %v4254 = vsub.s32 0, %v4253
        %v4255 = vrot.slane %v3721, %v4254
        %v4256 = vlaneseq
        %v4257 = vshrl.u32 %v4256, 7
        %v4258 = vsub.s32 1, %v4257
        %v4259 = vrot.slane %v3721, %v4258
        %v4260 = vlaneseq
        %v4261 = vshrl.u32 %v4260, 7
        %v4262 = vsub.s32 2, %v4261
        %v4263 = vrot.slane %v3721, %v4262
        %v4264 = vlaneseq
        %v4265 = vshrl.u32 %v4264, 7
        %v4266 = vsub.s32 3, %v4265
        %v4267 = vrot.slane %v3721, %v4266
        %v4268 = vlaneseq
        %v4269 = vshrl.u32 %v4268, 7
        %v4270 = vsub.s32 4, %v4269
        %v4271 = vrot.slane %v3721, %v4270
        %v4272 = vlaneseq
        %v4273 = vshrl.u32 %v4272, 7
        %v4274 = vsub.s32 5, %v4273
        %v4275 = vrot.slane %v3721, %v4274
        %v4276 = vlaneseq
        %v4277 = vshrl.u32 %v4276, 7
        %v4278 = vsub.s32 6, %v4277
        %v4279 = vrot.slane %v3721, %v4278
        %v4280 = vlaneseq
        %v4281 = vshrl.u32 %v4280, 7
        %v4282 = vsub.s32 7, %v4281
        %v4283 = vrot.slane %v3721, %v4282
        %v4284 = vlaneseq
        %v4285 = vshrl.u32 %v4284, 7
        %v4286 = vsub.s32 0, %v4285
        %v4287 = vrot.slane %v3722, %v4286
        %v4288 = vlaneseq
        %v4289 = vshrl.u32 %v4288, 7
        %v4290 = vsub.s32 1, %v4289
        %v4291 = vrot.slane %v3722, %v4290
        %v4292 = vlaneseq
        %v4293 = vshrl.u32 %v4292, 7
        %v4294 = vsub.s32 2, %v4293
        %v4295 = vrot.slane %v3722, %v4294
        %v4296 = vlaneseq
        %v4297 = vshrl.u32 %v4296, 7
        %v4298 = vsub.s32 3, %v4297
        %v4299 = vrot.slane %v3722, %v4298
        %v4300 = vlaneseq
        %v4301 = vshrl.u32 %v4300, 7
        %v4302 = vsub.s32 4, %v4301
        %v4303 = vrot.slane %v3722, %v4302
        %v4304 = vlaneseq
        %v4305 = vshrl.u32 %v4304, 7
        %v4306 = vsub.s32 5, %v4305
        %v4307 = vrot.slane %v3722, %v4306
        %v4308 = vlaneseq
        %v4309 = vshrl.u32 %v4308, 7
        %v4310 = vsub.s32 6, %v4309
        %v4311 = vrot.slane %v3722, %v4310
        %v4312 = vlaneseq
        %v4313 = vshrl.u32 %v4312, 7
        %v4314 = vsub.s32 7, %v4313
        %v4315 = vrot.slane %v3722, %v4314
        %v4316 = vlaneseq
        %v4317 = vshrl.u32 %v4316, 7
        %v4318 = vsub.s32 0, %v4317
        %v4319 = vrot.slane %v3723, %v4318
        %v4320 = vlaneseq
        %v4321 = vshrl.u32 %v4320, 7
        %v4322 = vsub.s32 1, %v4321
        %v4323 = vrot.slane %v3723, %v4322
        %v4324 = vlaneseq
        %v4325 = vshrl.u32 %v4324, 7
        %v4326 = vsub.s32 2, %v4325
        %v4327 = vrot.slane %v3723, %v4326
        %v4328 = vlaneseq
        %v4329 = vshrl.u32 %v4328, 7
        %v4330 = vsub.s32 3, %v4329
        %v4331 = vrot.slane %v3723, %v4330
        %v4332 = vlaneseq
        %v4333 = vshrl.u32 %v4332, 7
        %v4334 = vsub.s32 4, %v4333
        %v4335 = vrot.slane %v3723, %v4334
        %v4336 = vlaneseq
        %v4337 = vshrl.u32 %v4336, 7
        %v4338 = vsub.s32 5, %v4337
        %v4339 = vrot.slane %v3723, %v4338
        %v4340 = vlaneseq
        %v4341 = vshrl.u32 %v4340, 7
        %v4342 = vsub.s32 6, %v4341
        %v4343 = vrot.slane %v3723, %v4342
        %v4344 = vlaneseq
        %v4345 = vshrl.u32 %v4344, 7
        %v4346 = vsub.s32 7, %v4345
        %v4347 = vrot.slane %v3723, %v4346
        %v4348 = vlaneseq
        %v4349 = vshrl.u32 %v4348, 7
        %v4350 = vsub.s32 0, %v4349
        %v4351 = vrot.slane %v3724, %v4350
        %v4352 = vlaneseq
        %v4353 = vshrl.u32 %v4352, 7
        %v4354 = vsub.s32 1, %v4353
        %v4355 = vrot.slane %v3724, %v4354
        %v4356 = vlaneseq
        %v4357 = vshrl.u32 %v4356, 7
        %v4358 = vsub.s32 2, %v4357
        %v4359 = vrot.slane %v3724, %v4358
        %v4360 = vlaneseq
        %v4361 = vshrl.u32 %v4360, 7
        %v4362 = vsub.s32 3, %v4361
        %v4363 = vrot.slane %v3724, %v4362
        %v4364 = vlaneseq
        %v4365 = vshrl.u32 %v4364, 7
        %v4366 = vsub.s32 4, %v4365
        %v4367 = vrot.slane %v3724, %v4366
        %v4368 = vlaneseq
        %v4369 = vshrl.u32 %v4368, 7
        %v4370 = vsub.s32 5, %v4369
        %v4371 = vrot.slane %v3724, %v4370
        %v4372 = vlaneseq
        %v4373 = vshrl.u32 %v4372, 7
        %v4374 = vsub.s32 6, %v4373
        %v4375 = vrot.slane %v3724, %v4374
        %v4376 = vlaneseq
        %v4377 = vshrl.u32 %v4376, 7
        %v4378 = vsub.s32 7, %v4377
        %v4379 = vrot.slane %v3724, %v4378
        %v4380 = vlaneseq
        %v4381 = vshrl.u32 %v4380, 7
        %v4382 = vsub.s32 0, %v4381
        %v4383 = vrot.slane %v3725, %v4382
        %v4384 = vlaneseq
        %v4385 = vshrl.u32 %v4384, 7
        %v4386 = vsub.s32 1, %v4385
        %v4387 = vrot.slane %v3725, %v4386
        %v4388 = vlaneseq
        %v4389 = vshrl.u32 %v4388, 7
        %v4390 = vsub.s32 2, %v4389
        %v4391 = vrot.slane %v3725, %v4390
        %v4392 = vlaneseq
        %v4393 = vshrl.u32 %v4392, 7
        %v4394 = vsub.s32 3, %v4393
        %v4395 = vrot.slane %v3725, %v4394
        %v4396 = vlaneseq
        %v4397 = vshrl.u32 %v4396, 7
        %v4398 = vsub.s32 4, %v4397
        %v4399 = vrot.slane %v3725, %v4398
        %v4400 = vlaneseq
        %v4401 = vshrl.u32 %v4400, 7
        %v4402 = vsub.s32 5, %v4401
        %v4403 = vrot.slane %v3725, %v4402
        %v4404 = vlaneseq
        %v4405 = vshrl.u32 %v4404, 7
        %v4406 = vsub.s32 6, %v4405
        %v4407 = vrot.slane %v3725, %v4406
        %v4408 = vlaneseq
        %v4409 = vshrl.u32 %v4408, 7
        %v4410 = vsub.s32 7, %v4409
        %v4411 = vrot.slane %v3725, %v4410
        %v4412 = vlaneseq
        %v4413 = vshrl.u32 %v4412, 7
        %v4414 = vsub.s32 0, %v4413
        %v4415 = vrot.slane %v3726, %v4414
        %v4416 = vlaneseq
        %v4417 = vshrl.u32 %v4416, 7
        %v4418 = vsub.s32 1, %v4417
        %v4419 = vrot.slane %v3726, %v4418
        %v4420 = vlaneseq
        %v4421 = vshrl.u32 %v4420, 7
        %v4422 = vsub.s32 2, %v4421
        %v4423 = vrot.slane %v3726, %v4422
        %v4424 = vlaneseq
        %v4425 = vshrl.u32 %v4424, 7
        %v4426 = vsub.s32 3, %v4425
        %v4427 = vrot.slane %v3726, %v4426
        %v4428 = vlaneseq
        %v4429 = vshrl.u32 %v4428, 7
        %v4430 = vsub.s32 4, %v4429
        %v4431 = vrot.slane %v3726, %v4430
        %v4432 = vlaneseq
        %v4433 = vshrl.u32 %v4432, 7
        %v4434 = vsub.s32 5, %v4433
        %v4435 = vrot.slane %v3726, %v4434
        %v4436 = vlaneseq
        %v4437 = vshrl.u32 %v4436, 7
        %v4438 = vsub.s32 6, %v4437
        %v4439 = vrot.slane %v3726, %v4438
        %v4440 = vlaneseq
        %v4441 = vshrl.u32 %v4440, 7
        %v4442 = vsub.s32 7, %v4441
        %v4443 = vrot.slane %v3726, %v4442
        %v4444 = vlaneseq
        %v4445 = vshrl.u32 %v4444, 7
        %v4446 = vsub.s32 0, %v4445
        %v4447 = vrot.slane %v3727, %v4446
        %v4448 = vlaneseq
        %v4449 = vshrl.u32 %v4448, 7
        %v4450 = vsub.s32 1, %v4449
        %v4451 = vrot.slane %v3727, %v4450
        %v4452 = vlaneseq
        %v4453 = vshrl.u32 %v4452, 7
        %v4454 = vsub.s32 2, %v4453
        %v4455 = vrot.slane %v3727, %v4454
        %v4456 = vlaneseq
        %v4457 = vshrl.u32 %v4456, 7
        %v4458 = vsub.s32 3, %v4457
        %v4459 = vrot.slane %v3727, %v4458
        %v4460 = vlaneseq
        %v4461 = vshrl.u32 %v4460, 7
        %v4462 = vsub.s32 4, %v4461
        %v4463 = vrot.slane %v3727, %v4462
        %v4464 = vlaneseq
        %v4465 = vshrl.u32 %v4464, 7
        %v4466 = vsub.s32 5, %v4465
        %v4467 = vrot.slane %v3727, %v4466
        %v4468 = vlaneseq
        %v4469 = vshrl.u32 %v4468, 7
        %v4470 = vsub.s32 6, %v4469
        %v4471 = vrot.slane %v3727, %v4470
        %v4472 = vlaneseq
        %v4473 = vshrl.u32 %v4472, 7
        %v4474 = vsub.s32 7, %v4473
        %v4475 = vrot.slane %v3727, %v4474
        %v4476 = vlaneseq
        %v4477 = vshrl.u32 %v4476, 7
        %v4478 = vsub.s32 0, %v4477
        %v4479 = vrot.slane %v3728, %v4478
        %v4480 = vlaneseq
        %v4481 = vshrl.u32 %v4480, 7
        %v4482 = vsub.s32 1, %v4481
        %v4483 = vrot.slane %v3728, %v4482
        %v4484 = vlaneseq
        %v4485 = vshrl.u32 %v4484, 7
        %v4486 = vsub.s32 2, %v4485
        %v4487 = vrot.slane %v3728, %v4486
        %v4488 = vlaneseq
        %v4489 = vshrl.u32 %v4488, 7
        %v4490 = vsub.s32 3, %v4489
        %v4491 = vrot.slane %v3728, %v4490
        %v4492 = vlaneseq
        %v4493 = vshrl.u32 %v4492, 7
        %v4494 = vsub.s32 4, %v4493
        %v4495 = vrot.slane %v3728, %v4494
        %v4496 = vlaneseq
        %v4497 = vshrl.u32 %v4496, 7
        %v4498 = vsub.s32 5, %v4497
        %v4499 = vrot.slane %v3728, %v4498
        %v4500 = vlaneseq
        %v4501 = vshrl.u32 %v4500, 7
        %v4502 = vsub.s32 6, %v4501
        %v4503 = vrot.slane %v3728, %v4502
        %v4504 = vlaneseq
        %v4505 = vshrl.u32 %v4504, 7
        %v4506 = vsub.s32 7, %v4505
        %v4507 = vrot.slane %v3728, %v4506
        %v4508 = vlaneseq
        %v4509 = vshrl.u32 %v4508, 7
        %v4510 = vsub.s32 0, %v4509
        %v4511 = vrot.slane %v3729, %v4510
        %v4512 = vlaneseq
        %v4513 = vshrl.u32 %v4512, 7
        %v4514 = vsub.s32 1, %v4513
        %v4515 = vrot.slane %v3729, %v4514
        %v4516 = vlaneseq
        %v4517 = vshrl.u32 %v4516, 7
        %v4518 = vsub.s32 2, %v4517
        %v4519 = vrot.slane %v3729, %v4518
        %v4520 = vlaneseq
        %v4521 = vshrl.u32 %v4520, 7
        %v4522 = vsub.s32 3, %v4521
        %v4523 = vrot.slane %v3729, %v4522
        %v4524 = vlaneseq
        %v4525 = vshrl.u32 %v4524, 7
        %v4526 = vsub.s32 4, %v4525
        %v4527 = vrot.slane %v3729, %v4526
        %v4528 = vlaneseq
        %v4529 = vshrl.u32 %v4528, 7
        %v4530 = vsub.s32 5, %v4529
        %v4531 = vrot.slane %v3729, %v4530
        %v4532 = vlaneseq
        %v4533 = vshrl.u32 %v4532, 7
        %v4534 = vsub.s32 6, %v4533
        %v4535 = vrot.slane %v3729, %v4534
        %v4536 = vlaneseq
        %v4537 = vshrl.u32 %v4536, 7
        %v4538 = vsub.s32 7, %v4537
        %v4539 = vrot.slane %v3729, %v4538
        %v4540 = vlaneseq
        %v4541 = vshrl.u32 %v4540, 7
        %v4542 = vsub.s32 0, %v4541
        %v4543 = vrot.slane %v3730, %v4542
        %v4544 = vlaneseq
        %v4545 = vshrl.u32 %v4544, 7
        %v4546 = vsub.s32 1, %v4545
        %v4547 = vrot.slane %v3730, %v4546
        %v4548 = vlaneseq
        %v4549 = vshrl.u32 %v4548, 7
        %v4550 = vsub.s32 2, %v4549
        %v4551 = vrot.slane %v3730, %v4550
        %v4552 = vlaneseq
        %v4553 = vshrl.u32 %v4552, 7
        %v4554 = vsub.s32 3, %v4553
        %v4555 = vrot.slane %v3730, %v4554
        %v4556 = vlaneseq
        %v4557 = vshrl.u32 %v4556, 7
        %v4558 = vsub.s32 4, %v4557
        %v4559 = vrot.slane %v3730, %v4558
        %v4560 = vlaneseq
        %v4561 = vshrl.u32 %v4560, 7
        %v4562 = vsub.s32 5, %v4561
        %v4563 = vrot.slane %v3730, %v4562
        %v4564 = vlaneseq
        %v4565 = vshrl.u32 %v4564, 7
        %v4566 = vsub.s32 6, %v4565
        %v4567 = vrot.slane %v3730, %v4566
        %v4568 = vlaneseq
        %v4569 = vshrl.u32 %v4568, 7
        %v4570 = vsub.s32 7, %v4569
        %v4571 = vrot.slane %v3730, %v4570
        %v4572 = vlaneseq
        %v4573 = vshrl.u32 %v4572, 7
        %v4574 = vsub.s32 0, %v4573
        %v4575 = vrot.slane %v3731, %v4574
        %v4576 = vlaneseq
        %v4577 = vshrl.u32 %v4576, 7
        %v4578 = vsub.s32 1, %v4577
        %v4579 = vrot.slane %v3731, %v4578
        %v4580 = vlaneseq
        %v4581 = vshrl.u32 %v4580, 7
        %v4582 = vsub.s32 2, %v4581
        %v4583 = vrot.slane %v3731, %v4582
        %v4584 = vlaneseq
        %v4585 = vshrl.u32 %v4584, 7
        %v4586 = vsub.s32 3, %v4585
        %v4587 = vrot.slane %v3731, %v4586
        %v4588 = vlaneseq
        %v4589 = vshrl.u32 %v4588, 7
        %v4590 = vsub.s32 4, %v4589
        %v4591 = vrot.slane %v3731, %v4590
        %v4592 = vlaneseq
        %v4593 = vshrl.u32 %v4592, 7
        %v4594 = vsub.s32 5, %v4593
        %v4595 = vrot.slane %v3731, %v4594
        %v4596 = vlaneseq
        %v4597 = vshrl.u32 %v4596, 7
        %v4598 = vsub.s32 6, %v4597
        %v4599 = vrot.slane %v3731, %v4598
        %v4600 = vlaneseq
        %v4601 = vshrl.u32 %v4600, 7
        %v4602 = vsub.s32 7, %v4601
        %v4603 = vrot.slane %v3731, %v4602
        %v4604 = vlaneseq
        %v4605 = vshrl.u32 %v4604, 7
        %v4606 = vsub.s32 0, %v4605
        %v4607 = vrot.slane %v3732, %v4606
        %v4608 = vlaneseq
        %v4609 = vshrl.u32 %v4608, 7
        %v4610 = vsub.s32 1, %v4609
        %v4611 = vrot.slane %v3732, %v4610
        %v4612 = vlaneseq
        %v4613 = vshrl.u32 %v4612, 7
        %v4614 = vsub.s32 2, %v4613
        %v4615 = vrot.slane %v3732, %v4614
        %v4616 = vlaneseq
        %v4617 = vshrl.u32 %v4616, 7
        %v4618 = vsub.s32 3, %v4617
        %v4619 = vrot.slane %v3732, %v4618
        %v4620 = vlaneseq
        %v4621 = vshrl.u32 %v4620, 7
        %v4622 = vsub.s32 4, %v4621
        %v4623 = vrot.slane %v3732, %v4622
        %v4624 = vlaneseq
        %v4625 = vshrl.u32 %v4624, 7
        %v4626 = vsub.s32 5, %v4625
        %v4627 = vrot.slane %v3732, %v4626
        %v4628 = vlaneseq
        %v4629 = vshrl.u32 %v4628, 7
        %v4630 = vsub.s32 6, %v4629
        %v4631 = vrot.slane %v3732, %v4630
        %v4632 = vlaneseq
        %v4633 = vshrl.u32 %v4632, 7
        %v4634 = vsub.s32 7, %v4633
        %v4635 = vrot.slane %v3732, %v4634
        %v4636 = vlaneseq
        %v4637 = vshrl.u32 %v4636, 7
        %v4638 = vsub.s32 0, %v4637
        %v4639 = vrot.slane %v3733, %v4638
        %v4640 = vlaneseq
        %v4641 = vshrl.u32 %v4640, 7
        %v4642 = vsub.s32 1, %v4641
        %v4643 = vrot.slane %v3733, %v4642
        %v4644 = vlaneseq
        %v4645 = vshrl.u32 %v4644, 7
        %v4646 = vsub.s32 2, %v4645
        %v4647 = vrot.slane %v3733, %v4646
        %v4648 = vlaneseq
        %v4649 = vshrl.u32 %v4648, 7
        %v4650 = vsub.s32 3, %v4649
        %v4651 = vrot.slane %v3733, %v4650
        %v4652 = vlaneseq
        %v4653 = vshrl.u32 %v4652, 7
        %v4654 = vsub.s32 4, %v4653
        %v4655 = vrot.slane %v3733, %v4654
        %v4656 = vlaneseq
        %v4657 = vshrl.u32 %v4656, 7
        %v4658 = vsub.s32 5, %v4657
        %v4659 = vrot.slane %v3733, %v4658
        %v4660 = vlaneseq
        %v4661 = vshrl.u32 %v4660, 7
        %v4662 = vsub.s32 6, %v4661
        %v4663 = vrot.slane %v3733, %v4662
        %v4664 = vlaneseq
        %v4665 = vshrl.u32 %v4664, 7
        %v4666 = vsub.s32 7, %v4665
        %v4667 = vrot.slane %v3733, %v4666
        %v4668 = vlaneseq
        %v4669 = vshrl.u32 %v4668, 7
        %v4670 = vsub.s32 0, %v4669
        %v4671 = vrot.slane %v3734, %v4670
        %v4672 = vlaneseq
        %v4673 = vshrl.u32 %v4672, 7
        %v4674 = vsub.s32 1, %v4673
        %v4675 = vrot.slane %v3734, %v4674
        %v4676 = vlaneseq
        %v4677 = vshrl.u32 %v4676, 7
        %v4678 = vsub.s32 2, %v4677
        %v4679 = vrot.slane %v3734, %v4678
        %v4680 = vlaneseq
        %v4681 = vshrl.u32 %v4680, 7
        %v4682 = vsub.s32 3, %v4681
        %v4683 = vrot.slane %v3734, %v4682
        %v4684 = vlaneseq
        %v4685 = vshrl.u32 %v4684, 7
        %v4686 = vsub.s32 4, %v4685
        %v4687 = vrot.slane %v3734, %v4686
        %v4688 = vlaneseq
        %v4689 = vshrl.u32 %v4688, 7
        %v4690 = vsub.s32 5, %v4689
        %v4691 = vrot.slane %v3734, %v4690
        %v4692 = vlaneseq
        %v4693 = vshrl.u32 %v4692, 7
        %v4694 = vsub.s32 6, %v4693
        %v4695 = vrot.slane %v3734, %v4694
        %v4696 = vlaneseq
        %v4697 = vshrl.u32 %v4696, 7
        %v4698 = vsub.s32 7, %v4697
        %v4699 = vrot.slane %v3734, %v4698
        %v4700 = vlaneseq
        %v4701 = vshrl.u32 %v4700, 7
        %v4702 = vsub.s32 0, %v4701
        %v4703 = vrot.slane %v3735, %v4702
        %v4704 = vlaneseq
        %v4705 = vshrl.u32 %v4704, 7
        %v4706 = vsub.s32 1, %v4705
        %v4707 = vrot.slane %v3735, %v4706
        %v4708 = vlaneseq
        %v4709 = vshrl.u32 %v4708, 7
        %v4710 = vsub.s32 2, %v4709
        %v4711 = vrot.slane %v3735, %v4710
        %v4712 = vlaneseq
        %v4713 = vshrl.u32 %v4712, 7
        %v4714 = vsub.s32 3, %v4713
        %v4715 = vrot.slane %v3735, %v4714
        %v4716 = vlaneseq
        %v4717 = vshrl.u32 %v4716, 7
        %v4718 = vsub.s32 4, %v4717
        %v4719 = vrot.slane %v3735, %v4718
        %v4720 = vlaneseq
        %v4721 = vshrl.u32 %v4720, 7
        %v4722 = vsub.s32 5, %v4721
        %v4723 = vrot.slane %v3735, %v4722
        %v4724 = vlaneseq
        %v4725 = vshrl.u32 %v4724, 7
        %v4726 = vsub.s32 6, %v4725
        %v4727 = vrot.slane %v3735, %v4726
        %v4728 = vlaneseq
        %v4729 = vshrl.u32 %v4728, 7
        %v4730 = vsub.s32 7, %v4729
        %v4731 = vrot.slane %v3735, %v4730
        %v4732 = vlaneseq
        %v4733 = vshrl.u32 %v4732, 7
        %v4734 = vsub.s32 0, %v4733
        %v4735 = vrot.slane %v3736, %v4734
        %v4736 = vlaneseq
        %v4737 = vshrl.u32 %v4736, 7
        %v4738 = vsub.s32 1, %v4737
        %v4739 = vrot.slane %v3736, %v4738
        %v4740 = vlaneseq
        %v4741 = vshrl.u32 %v4740, 7
        %v4742 = vsub.s32 2, %v4741
        %v4743 = vrot.slane %v3736, %v4742
        %v4744 = vlaneseq
        %v4745 = vshrl.u32 %v4744, 7
        %v4746 = vsub.s32 3, %v4745
        %v4747 = vrot.slane %v3736, %v4746
        %v4748 = vlaneseq
        %v4749 = vshrl.u32 %v4748, 7
        %v4750 = vsub.s32 4, %v4749
        %v4751 = vrot.slane %v3736, %v4750
        %v4752 = vlaneseq
        %v4753 = vshrl.u32 %v4752, 7
        %v4754 = vsub.s32 5, %v4753
        %v4755 = vrot.slane %v3736, %v4754
        %v4756 = vlaneseq
        %v4757 = vshrl.u32 %v4756, 7
        %v4758 = vsub.s32 6, %v4757
        %v4759 = vrot.slane %v3736, %v4758
        %v4760 = vlaneseq
        %v4761 = vshrl.u32 %v4760, 7
        %v4762 = vsub.s32 7, %v4761
        %v4763 = vrot.slane %v3736, %v4762
        %v4764 = vlaneseq
        %v4765 = vshrl.u32 %v4764, 7
        %v4766 = vsub.s32 0, %v4765
        %v4767 = vrot.slane %v3737, %v4766
        %v4768 = vlaneseq
        %v4769 = vshrl.u32 %v4768, 7
        %v4770 = vsub.s32 1, %v4769
        %v4771 = vrot.slane %v3737, %v4770
        %v4772 = vlaneseq
        %v4773 = vshrl.u32 %v4772, 7
        %v4774 = vsub.s32 2, %v4773
        %v4775 = vrot.slane %v3737, %v4774
        %v4776 = vlaneseq
        %v4777 = vshrl.u32 %v4776, 7
        %v4778 = vsub.s32 3, %v4777
        %v4779 = vrot.slane %v3737, %v4778
        %v4780 = vlaneseq
        %v4781 = vshrl.u32 %v4780, 7
        %v4782 = vsub.s32 4, %v4781
        %v4783 = vrot.slane %v3737, %v4782
        %v4784 = vlaneseq
        %v4785 = vshrl.u32 %v4784, 7
        %v4786 = vsub.s32 5, %v4785
        %v4787 = vrot.slane %v3737, %v4786
        %v4788 = vlaneseq
        %v4789 = vshrl.u32 %v4788, 7
        %v4790 = vsub.s32 6, %v4789
        %v4791 = vrot.slane %v3737, %v4790
        %v4792 = vlaneseq
        %v4793 = vshrl.u32 %v4792, 7
        %v4794 = vsub.s32 7, %v4793
        %v4795 = vrot.slane %v3737, %v4794
        %v4796 = vlaneseq
        %v4797 = vshrl.u32 %v4796, 7
        %v4798 = vsub.s32 0, %v4797
        %v4799 = vrot.slane %v3738, %v4798
        %v4800 = vlaneseq
        %v4801 = vshrl.u32 %v4800, 7
        %v4802 = vsub.s32 1, %v4801
        %v4803 = vrot.slane %v3738, %v4802
        %v4804 = vlaneseq
        %v4805 = vshrl.u32 %v4804, 7
        %v4806 = vsub.s32 2, %v4805
        %v4807 = vrot.slane %v3738, %v4806
        %v4808 = vlaneseq
        %v4809 = vshrl.u32 %v4808, 7
        %v4810 = vsub.s32 3, %v4809
        %v4811 = vrot.slane %v3738, %v4810
        %v4812 = vlaneseq
        %v4813 = vshrl.u32 %v4812, 7
        %v4814 = vsub.s32 4, %v4813
        %v4815 = vrot.slane %v3738, %v4814
        %v4816 = vlaneseq
        %v4817 = vshrl.u32 %v4816, 7
        %v4818 = vsub.s32 5, %v4817
        %v4819 = vrot.slane %v3738, %v4818
        %v4820 = vlaneseq
        %v4821 = vshrl.u32 %v4820, 7
        %v4822 = vsub.s32 6, %v4821
        %v4823 = vrot.slane %v3738, %v4822
        %v4824 = vlaneseq
        %v4825 = vshrl.u32 %v4824, 7
        %v4826 = vsub.s32 7, %v4825
        %v4827 = vrot.slane %v3738, %v4826
        %v4828 = vlaneseq
        %v4829 = vshrl.u32 %v4828, 7
        %v4830 = vsub.s32 0, %v4829
        %v4831 = vrot.slane %v3739, %v4830
        %v4832 = vlaneseq
        %v4833 = vshrl.u32 %v4832, 7
        %v4834 = vsub.s32 1, %v4833
        %v4835 = vrot.slane %v3739, %v4834
        %v4836 = vlaneseq
        %v4837 = vshrl.u32 %v4836, 7
        %v4838 = vsub.s32 2, %v4837
        %v4839 = vrot.slane %v3739, %v4838
        %v4840 = vlaneseq
        %v4841 = vshrl.u32 %v4840, 7
        %v4842 = vsub.s32 3, %v4841
        %v4843 = vrot.slane %v3739, %v4842
        %v4844 = vlaneseq
        %v4845 = vshrl.u32 %v4844, 7
        %v4846 = vsub.s32 4, %v4845
        %v4847 = vrot.slane %v3739, %v4846
        %v4848 = vlaneseq
        %v4849 = vshrl.u32 %v4848, 7
        %v4850 = vsub.s32 5, %v4849
        %v4851 = vrot.slane %v3739, %v4850
        %v4852 = vlaneseq
        %v4853 = vshrl.u32 %v4852, 7
        %v4854 = vsub.s32 6, %v4853
        %v4855 = vrot.slane %v3739, %v4854
        %v4856 = vlaneseq
        %v4857 = vshrl.u32 %v4856, 7
        %v4858 = vsub.s32 7, %v4857
        %v4859 = vrot.slane %v3739, %v4858
        %v4860 = vlaneseq
        %v4861 = vshrl.u32 %v4860, 7
        %v4862 = vsub.s32 0, %v4861
        %v4863 = vrot.slane %v3740, %v4862
        %v4864 = vlaneseq
        %v4865 = vshrl.u32 %v4864, 7
        %v4866 = vsub.s32 1, %v4865
        %v4867 = vrot.slane %v3740, %v4866
        %v4868 = vlaneseq
        %v4869 = vshrl.u32 %v4868, 7
        %v4870 = vsub.s32 2, %v4869
        %v4871 = vrot.slane %v3740, %v4870
        %v4872 = vlaneseq
        %v4873 = vshrl.u32 %v4872, 7
        %v4874 = vsub.s32 3, %v4873
        %v4875 = vrot.slane %v3740, %v4874
        %v4876 = vlaneseq
        %v4877 = vshrl.u32 %v4876, 7
        %v4878 = vsub.s32 4, %v4877
        %v4879 = vrot.slane %v3740, %v4878
        %v4880 = vlaneseq
        %v4881 = vshrl.u32 %v4880, 7
        %v4882 = vsub.s32 5, %v4881
        %v4883 = vrot.slane %v3740, %v4882
        %v4884 = vlaneseq
        %v4885 = vshrl.u32 %v4884, 7
        %v4886 = vsub.s32 6, %v4885
        %v4887 = vrot.slane %v3740, %v4886
        %v4888 = vlaneseq
        %v4889 = vshrl.u32 %v4888, 7
        %v4890 = vsub.s32 7, %v4889
        %v4891 = vrot.slane %v3740, %v4890
        %v4892 = vlaneseq
        %v4893 = vshrl.u32 %v4892, 7
        %v4894 = vsub.s32 0, %v4893
        %v4895 = vrot.slane %v3741, %v4894
        %v4896 = vlaneseq
        %v4897 = vshrl.u32 %v4896, 7
        %v4898 = vsub.s32 1, %v4897
        %v4899 = vrot.slane %v3741, %v4898
        %v4900 = vlaneseq
        %v4901 = vshrl.u32 %v4900, 7
        %v4902 = vsub.s32 2, %v4901
        %v4903 = vrot.slane %v3741, %v4902
        %v4904 = vlaneseq
        %v4905 = vshrl.u32 %v4904, 7
        %v4906 = vsub.s32 3, %v4905
        %v4907 = vrot.slane %v3741, %v4906
        %v4908 = vlaneseq
        %v4909 = vshrl.u32 %v4908, 7
        %v4910 = vsub.s32 4, %v4909
        %v4911 = vrot.slane %v3741, %v4910
        %v4912 = vlaneseq
        %v4913 = vshrl.u32 %v4912, 7
        %v4914 = vsub.s32 5, %v4913
        %v4915 = vrot.slane %v3741, %v4914
        %v4916 = vlaneseq
        %v4917 = vshrl.u32 %v4916, 7
        %v4918 = vsub.s32 6, %v4917
        %v4919 = vrot.slane %v3741, %v4918
        %v4920 = vlaneseq
        %v4921 = vshrl.u32 %v4920, 7
        %v4922 = vsub.s32 7, %v4921
        %v4923 = vrot.slane %v3741, %v4922
        %v4924 = vlaneseq
        %v4925 = vshrl.u32 %v4924, 7
        %v4926 = vsub.s32 0, %v4925
        %v4927 = vrot.slane %v3742, %v4926
        %v4928 = vlaneseq
        %v4929 = vshrl.u32 %v4928, 7
        %v4930 = vsub.s32 1, %v4929
        %v4931 = vrot.slane %v3742, %v4930
        %v4932 = vlaneseq
        %v4933 = vshrl.u32 %v4932, 7
        %v4934 = vsub.s32 2, %v4933
        %v4935 = vrot.slane %v3742, %v4934
        %v4936 = vlaneseq
        %v4937 = vshrl.u32 %v4936, 7
        %v4938 = vsub.s32 3, %v4937
        %v4939 = vrot.slane %v3742, %v4938
        %v4940 = vlaneseq
        %v4941 = vshrl.u32 %v4940, 7
        %v4942 = vsub.s32 4, %v4941
        %v4943 = vrot.slane %v3742, %v4942
        %v4944 = vlaneseq
        %v4945 = vshrl.u32 %v4944, 7
        %v4946 = vsub.s32 5, %v4945
        %v4947 = vrot.slane %v3742, %v4946
        %v4948 = vlaneseq
        %v4949 = vshrl.u32 %v4948, 7
        %v4950 = vsub.s32 6, %v4949
        %v4951 = vrot.slane %v3742, %v4950
        %v4952 = vlaneseq
        %v4953 = vshrl.u32 %v4952, 7
        %v4954 = vsub.s32 7, %v4953
        %v4955 = vrot.slane %v3742, %v4954
        %v4956 = vlaneseq
        %v4957 = vshrl.u32 %v4956, 7
        %v4958 = vsub.s32 0, %v4957
        %v4959 = vrot.slane %v3743, %v4958
        %v4960 = vlaneseq
        %v4961 = vshrl.u32 %v4960, 7
        %v4962 = vsub.s32 1, %v4961
        %v4963 = vrot.slane %v3743, %v4962
        %v4964 = vlaneseq
        %v4965 = vshrl.u32 %v4964, 7
        %v4966 = vsub.s32 2, %v4965
        %v4967 = vrot.slane %v3743, %v4966
        %v4968 = vlaneseq
        %v4969 = vshrl.u32 %v4968, 7
        %v4970 = vsub.s32 3, %v4969
        %v4971 = vrot.slane %v3743, %v4970
        %v4972 = vlaneseq
        %v4973 = vshrl.u32 %v4972, 7
        %v4974 = vsub.s32 4, %v4973
        %v4975 = vrot.slane %v3743, %v4974
        %v4976 = vlaneseq
        %v4977 = vshrl.u32 %v4976, 7
        %v4978 = vsub.s32 5, %v4977
        %v4979 = vrot.slane %v3743, %v4978
        %v4980 = vlaneseq
        %v4981 = vshrl.u32 %v4980, 7
        %v4982 = vsub.s32 6, %v4981
        %v4983 = vrot.slane %v3743, %v4982
        %v4984 = vlaneseq
        %v4985 = vshrl.u32 %v4984, 7
        %v4986 = vsub.s32 7, %v4985
        %v4987 = vrot.slane %v3743, %v4986
        %v4988 = vlaneseq
        %v4989 = vshrl.u32 %v4988, 7
        %v4990 = vsub.s32 0, %v4989
        %v4991 = vrot.slane %v3744, %v4990
        %v4992 = vlaneseq
        %v4993 = vshrl.u32 %v4992, 7
        %v4994 = vsub.s32 1, %v4993
        %v4995 = vrot.slane %v3744, %v4994
        %v4996 = vlaneseq
        %v4997 = vshrl.u32 %v4996, 7
        %v4998 = vsub.s32 2, %v4997
        %v4999 = vrot.slane %v3744, %v4998
        %v5000 = vlaneseq
        %v5001 = vshrl.u32 %v5000, 7
        %v5002 = vsub.s32 3, %v5001
        %v5003 = vrot.slane %v3744, %v5002
        %v5004 = vlaneseq
        %v5005 = vshrl.u32 %v5004, 7
        %v5006 = vsub.s32 4, %v5005
        %v5007 = vrot.slane %v3744, %v5006
        %v5008 = vlaneseq
        %v5009 = vshrl.u32 %v5008, 7
        %v5010 = vsub.s32 5, %v5009
        %v5011 = vrot.slane %v3744, %v5010
        %v5012 = vlaneseq
        %v5013 = vshrl.u32 %v5012, 7
        %v5014 = vsub.s32 6, %v5013
        %v5015 = vrot.slane %v3744, %v5014
        %v5016 = vlaneseq
        %v5017 = vshrl.u32 %v5016, 7
        %v5018 = vsub.s32 7, %v5017
        %v5019 = vrot.slane %v3744, %v5018
        %v5020 = vlaneseq
        %v5021 = vshrl.u32 %v5020, 7
        %v5022 = vsub.s32 0, %v5021
        %v5023 = vrot.slane %v3745, %v5022
        %v5024 = vlaneseq
        %v5025 = vshrl.u32 %v5024, 7
        %v5026 = vsub.s32 1, %v5025
        %v5027 = vrot.slane %v3745, %v5026
        %v5028 = vlaneseq
        %v5029 = vshrl.u32 %v5028, 7
        %v5030 = vsub.s32 2, %v5029
        %v5031 = vrot.slane %v3745, %v5030
        %v5032 = vlaneseq
        %v5033 = vshrl.u32 %v5032, 7
        %v5034 = vsub.s32 3, %v5033
        %v5035 = vrot.slane %v3745, %v5034
        %v5036 = vlaneseq
        %v5037 = vshrl.u32 %v5036, 7
        %v5038 = vsub.s32 4, %v5037
        %v5039 = vrot.slane %v3745, %v5038
        %v5040 = vlaneseq
        %v5041 = vshrl.u32 %v5040, 7
        %v5042 = vsub.s32 5, %v5041
        %v5043 = vrot.slane %v3745, %v5042
        %v5044 = vlaneseq
        %v5045 = vshrl.u32 %v5044, 7
        %v5046 = vsub.s32 6, %v5045
        %v5047 = vrot.slane %v3745, %v5046
        %v5048 = vlaneseq
        %v5049 = vshrl.u32 %v5048, 7
        %v5050 = vsub.s32 7, %v5049
        %v5051 = vrot.slane %v3745, %v5050
        %v5052 = vlaneseq
        %v5053 = vshrl.u32 %v5052, 7
        %v5054 = vsub.s32 0, %v5053
        %v5055 = vrot.slane %v3746, %v5054
        %v5056 = vlaneseq
        %v5057 = vshrl.u32 %v5056, 7
        %v5058 = vsub.s32 1, %v5057
        %v5059 = vrot.slane %v3746, %v5058
        %v5060 = vlaneseq
        %v5061 = vshrl.u32 %v5060, 7
        %v5062 = vsub.s32 2, %v5061
        %v5063 = vrot.slane %v3746, %v5062
        %v5064 = vlaneseq
        %v5065 = vshrl.u32 %v5064, 7
        %v5066 = vsub.s32 3, %v5065
        %v5067 = vrot.slane %v3746, %v5066
        %v5068 = vlaneseq
        %v5069 = vshrl.u32 %v5068, 7
        %v5070 = vsub.s32 4, %v5069
        %v5071 = vrot.slane %v3746, %v5070
        %v5072 = vlaneseq
        %v5073 = vshrl.u32 %v5072, 7
        %v5074 = vsub.s32 5, %v5073
        %v5075 = vrot.slane %v3746, %v5074
        %v5076 = vlaneseq
        %v5077 = vshrl.u32 %v5076, 7
        %v5078 = vsub.s32 6, %v5077
        %v5079 = vrot.slane %v3746, %v5078
        %v5080 = vlaneseq
        %v5081 = vshrl.u32 %v5080, 7
        %v5082 = vsub.s32 7, %v5081
        %v5083 = vrot.slane %v3746, %v5082
        %v5084 = vlaneseq
        %v5085 = vshrl.u32 %v5084, 7
        %v5086 = vsub.s32 0, %v5085
        %v5087 = vrot.slane %v3747, %v5086
        %v5088 = vlaneseq
        %v5089 = vshrl.u32 %v5088, 7
        %v5090 = vsub.s32 1, %v5089
        %v5091 = vrot.slane %v3747, %v5090
        %v5092 = vlaneseq
        %v5093 = vshrl.u32 %v5092, 7
        %v5094 = vsub.s32 2, %v5093
        %v5095 = vrot.slane %v3747, %v5094
        %v5096 = vlaneseq
        %v5097 = vshrl.u32 %v5096, 7
        %v5098 = vsub.s32 3, %v5097
        %v5099 = vrot.slane %v3747, %v5098
        %v5100 = vlaneseq
        %v5101 = vshrl.u32 %v5100, 7
        %v5102 = vsub.s32 4, %v5101
        %v5103 = vrot.slane %v3747, %v5102
        %v5104 = vlaneseq
        %v5105 = vshrl.u32 %v5104, 7
        %v5106 = vsub.s32 5, %v5105
        %v5107 = vrot.slane %v3747, %v5106
        %v5108 = vlaneseq
        %v5109 = vshrl.u32 %v5108, 7
        %v5110 = vsub.s32 6, %v5109
        %v5111 = vrot.slane %v3747, %v5110
        %v5112 = vlaneseq
        %v5113 = vshrl.u32 %v5112, 7
        %v5114 = vsub.s32 7, %v5113
        %v5115 = vrot.slane %v3747, %v5114
        %v5116 = vlaneseq
        %v5117 = vshrl.u32 %v5116, 7
        %v5118 = vsub.s32 0, %v5117
        %v5119 = vrot.slane %v3748, %v5118
        %v5120 = vlaneseq
        %v5121 = vshrl.u32 %v5120, 7
        %v5122 = vsub.s32 1, %v5121
        %v5123 = vrot.slane %v3748, %v5122
        %v5124 = vlaneseq
        %v5125 = vshrl.u32 %v5124, 7
        %v5126 = vsub.s32 2, %v5125
        %v5127 = vrot.slane %v3748, %v5126
        %v5128 = vlaneseq
        %v5129 = vshrl.u32 %v5128, 7
        %v5130 = vsub.s32 3, %v5129
        %v5131 = vrot.slane %v3748, %v5130
        %v5132 = vlaneseq
        %v5133 = vshrl.u32 %v5132, 7
        %v5134 = vsub.s32 4, %v5133
        %v5135 = vrot.slane %v3748, %v5134
        %v5136 = vlaneseq
        %v5137 = vshrl.u32 %v5136, 7
        %v5138 = vsub.s32 5, %v5137
        %v5139 = vrot.slane %v3748, %v5138
        %v5140 = vlaneseq
        %v5141 = vshrl.u32 %v5140, 7
        %v5142 = vsub.s32 6, %v5141
        %v5143 = vrot.slane %v3748, %v5142
        %v5144 = vlaneseq
        %v5145 = vshrl.u32 %v5144, 7
        %v5146 = vsub.s32 7, %v5145
        %v5147 = vrot.slane %v3748, %v5146
        %v5148 = vlaneseq
        %v5149 = vshrl.u32 %v5148, 7
        %v5150 = vsub.s32 0, %v5149
        %v5151 = vrot.slane %v3749, %v5150
        %v5152 = vlaneseq
        %v5153 = vshrl.u32 %v5152, 7
        %v5154 = vsub.s32 1, %v5153
        %v5155 = vrot.slane %v3749, %v5154
        %v5156 = vlaneseq
        %v5157 = vshrl.u32 %v5156, 7
        %v5158 = vsub.s32 2, %v5157
        %v5159 = vrot.slane %v3749, %v5158
        %v5160 = vlaneseq
        %v5161 = vshrl.u32 %v5160, 7
        %v5162 = vsub.s32 3, %v5161
        %v5163 = vrot.slane %v3749, %v5162
        %v5164 = vlaneseq
        %v5165 = vshrl.u32 %v5164, 7
        %v5166 = vsub.s32 4, %v5165
        %v5167 = vrot.slane %v3749, %v5166
        %v5168 = vlaneseq
        %v5169 = vshrl.u32 %v5168, 7
        %v5170 = vsub.s32 5, %v5169
        %v5171 = vrot.slane %v3749, %v5170
        %v5172 = vlaneseq
        %v5173 = vshrl.u32 %v5172, 7
        %v5174 = vsub.s32 6, %v5173
        %v5175 = vrot.slane %v3749, %v5174
        %v5176 = vlaneseq
        %v5177 = vshrl.u32 %v5176, 7
        %v5178 = vsub.s32 7, %v5177
        %v5179 = vrot.slane %v3749, %v5178
        %v5180 = vlaneseq
        %v5181 = vshrl.u32 %v5180, 7
        %v5182 = vsub.s32 0, %v5181
        %v5183 = vrot.slane %v3750, %v5182
        %v5184 = vlaneseq
        %v5185 = vshrl.u32 %v5184, 7
        %v5186 = vsub.s32 1, %v5185
        %v5187 = vrot.slane %v3750, %v5186
        %v5188 = vlaneseq
        %v5189 = vshrl.u32 %v5188, 7
        %v5190 = vsub.s32 2, %v5189
        %v5191 = vrot.slane %v3750, %v5190
        %v5192 = vlaneseq
        %v5193 = vshrl.u32 %v5192, 7
        %v5194 = vsub.s32 3, %v5193
        %v5195 = vrot.slane %v3750, %v5194
        %v5196 = vlaneseq
        %v5197 = vshrl.u32 %v5196, 7
        %v5198 = vsub.s32 4, %v5197
        %v5199 = vrot.slane %v3750, %v5198
        %v5200 = vlaneseq
        %v5201 = vshrl.u32 %v5200, 7
        %v5202 = vsub.s32 5, %v5201
        %v5203 = vrot.slane %v3750, %v5202
        %v5204 = vlaneseq
        %v5205 = vshrl.u32 %v5204, 7
        %v5206 = vsub.s32 6, %v5205
        %v5207 = vrot.slane %v3750, %v5206
        %v5208 = vlaneseq
        %v5209 = vshrl.u32 %v5208, 7
        %v5210 = vsub.s32 7, %v5209
        %v5211 = vrot.slane %v3750, %v5210
        %v5212 = vlaneseq
        %v5213 = vshrl.u32 %v5212, 7
        %v5214 = vsub.s32 0, %v5213
        %v5215 = vrot.slane %v3751, %v5214
        %v5216 = vlaneseq
        %v5217 = vshrl.u32 %v5216, 7
        %v5218 = vsub.s32 1, %v5217
        %v5219 = vrot.slane %v3751, %v5218
        %v5220 = vlaneseq
        %v5221 = vshrl.u32 %v5220, 7
        %v5222 = vsub.s32 2, %v5221
        %v5223 = vrot.slane %v3751, %v5222
        %v5224 = vlaneseq
        %v5225 = vshrl.u32 %v5224, 7
        %v5226 = vsub.s32 3, %v5225
        %v5227 = vrot.slane %v3751, %v5226
        %v5228 = vlaneseq
        %v5229 = vshrl.u32 %v5228, 7
        %v5230 = vsub.s32 4, %v5229
        %v5231 = vrot.slane %v3751, %v5230
        %v5232 = vlaneseq
        %v5233 = vshrl.u32 %v5232, 7
        %v5234 = vsub.s32 5, %v5233
        %v5235 = vrot.slane %v3751, %v5234
        %v5236 = vlaneseq
        %v5237 = vshrl.u32 %v5236, 7
        %v5238 = vsub.s32 6, %v5237
        %v5239 = vrot.slane %v3751, %v5238
        %v5240 = vlaneseq
        %v5241 = vshrl.u32 %v5240, 7
        %v5242 = vsub.s32 7, %v5241
        %v5243 = vrot.slane %v3751, %v5242
        %v5244 = vlaneseq
        %v5245 = vshrl.u32 %v5244, 7
        %v5246 = vsub.s32 0, %v5245
        %v5247 = vrot.slane %v3752, %v5246
        %v5248 = vlaneseq
        %v5249 = vshrl.u32 %v5248, 7
        %v5250 = vsub.s32 1, %v5249
        %v5251 = vrot.slane %v3752, %v5250
        %v5252 = vlaneseq
        %v5253 = vshrl.u32 %v5252, 7
        %v5254 = vsub.s32 2, %v5253
        %v5255 = vrot.slane %v3752, %v5254
        %v5256 = vlaneseq
        %v5257 = vshrl.u32 %v5256, 7
        %v5258 = vsub.s32 3, %v5257
        %v5259 = vrot.slane %v3752, %v5258
        %v5260 = vlaneseq
        %v5261 = vshrl.u32 %v5260, 7
        %v5262 = vsub.s32 4, %v5261
        %v5263 = vrot.slane %v3752, %v5262
        %v5264 = vlaneseq
        %v5265 = vshrl.u32 %v5264, 7
        %v5266 = vsub.s32 5, %v5265
        %v5267 = vrot.slane %v3752, %v5266
        %v5268 = vlaneseq
        %v5269 = vshrl.u32 %v5268, 7
        %v5270 = vsub.s32 6, %v5269
        %v5271 = vrot.slane %v3752, %v5270
        %v5272 = vlaneseq
        %v5273 = vshrl.u32 %v5272, 7
        %v5274 = vsub.s32 7, %v5273
        %v5275 = vrot.slane %v3752, %v5274
        %v5276 = vlaneseq
        %v5277 = vshrl.u32 %v5276, 7
        %v5278 = vsub.s32 0, %v5277
        %v5279 = vrot.slane %v3753, %v5278
        %v5280 = vlaneseq
        %v5281 = vshrl.u32 %v5280, 7
        %v5282 = vsub.s32 1, %v5281
        %v5283 = vrot.slane %v3753, %v5282
        %v5284 = vlaneseq
        %v5285 = vshrl.u32 %v5284, 7
        %v5286 = vsub.s32 2, %v5285
        %v5287 = vrot.slane %v3753, %v5286
        %v5288 = vlaneseq
        %v5289 = vshrl.u32 %v5288, 7
        %v5290 = vsub.s32 3, %v5289
        %v5291 = vrot.slane %v3753, %v5290
        %v5292 = vlaneseq
        %v5293 = vshrl.u32 %v5292, 7
        %v5294 = vsub.s32 4, %v5293
        %v5295 = vrot.slane %v3753, %v5294
        %v5296 = vlaneseq
        %v5297 = vshrl.u32 %v5296, 7
        %v5298 = vsub.s32 5, %v5297
        %v5299 = vrot.slane %v3753, %v5298
        %v5300 = vlaneseq
        %v5301 = vshrl.u32 %v5300, 7
        %v5302 = vsub.s32 6, %v5301
        %v5303 = vrot.slane %v3753, %v5302
        %v5304 = vlaneseq
        %v5305 = vshrl.u32 %v5304, 7
        %v5306 = vsub.s32 7, %v5305
        %v5307 = vrot.slane %v3753, %v5306
        %v5308 = vlaneseq
        %v5309 = vshrl.u32 %v5308, 7
        %v5310 = vsub.s32 0, %v5309
        %v5311 = vrot.slane %v3754, %v5310
        %v5312 = vlaneseq
        %v5313 = vshrl.u32 %v5312, 7
        %v5314 = vsub.s32 1, %v5313
        %v5315 = vrot.slane %v3754, %v5314
        %v5316 = vlaneseq
        %v5317 = vshrl.u32 %v5316, 7
        %v5318 = vsub.s32 2, %v5317
        %v5319 = vrot.slane %v3754, %v5318
        %v5320 = vlaneseq
        %v5321 = vshrl.u32 %v5320, 7
        %v5322 = vsub.s32 3, %v5321
        %v5323 = vrot.slane %v3754, %v5322
        %v5324 = vlaneseq
        %v5325 = vshrl.u32 %v5324, 7
        %v5326 = vsub.s32 4, %v5325
        %v5327 = vrot.slane %v3754, %v5326
        %v5328 = vlaneseq
        %v5329 = vshrl.u32 %v5328, 7
        %v5330 = vsub.s32 5, %v5329
        %v5331 = vrot.slane %v3754, %v5330
        %v5332 = vlaneseq
        %v5333 = vshrl.u32 %v5332, 7
        %v5334 = vsub.s32 6, %v5333
        %v5335 = vrot.slane %v3754, %v5334
        %v5336 = vlaneseq
        %v5337 = vshrl.u32 %v5336, 7
        %v5338 = vsub.s32 7, %v5337
        %v5339 = vrot.slane %v3754, %v5338
        %v5340 = vlaneseq
        %v5341 = vshrl.u32 %v5340, 7
        %v5342 = vsub.s32 0, %v5341
        %v5343 = vrot.slane %v3755, %v5342
        %v5344 = vlaneseq
        %v5345 = vshrl.u32 %v5344, 7
        %v5346 = vsub.s32 1, %v5345
        %v5347 = vrot.slane %v3755, %v5346
        %v5348 = vlaneseq
        %v5349 = vshrl.u32 %v5348, 7
        %v5350 = vsub.s32 2, %v5349
        %v5351 = vrot.slane %v3755, %v5350
        %v5352 = vlaneseq
        %v5353 = vshrl.u32 %v5352, 7
        %v5354 = vsub.s32 3, %v5353
        %v5355 = vrot.slane %v3755, %v5354
        %v5356 = vlaneseq
        %v5357 = vshrl.u32 %v5356, 7
        %v5358 = vsub.s32 4, %v5357
        %v5359 = vrot.slane %v3755, %v5358
        %v5360 = vlaneseq
        %v5361 = vshrl.u32 %v5360, 7
        %v5362 = vsub.s32 5, %v5361
        %v5363 = vrot.slane %v3755, %v5362
        %v5364 = vlaneseq
        %v5365 = vshrl.u32 %v5364, 7
        %v5366 = vsub.s32 6, %v5365
        %v5367 = vrot.slane %v3755, %v5366
        %v5368 = vlaneseq
        %v5369 = vshrl.u32 %v5368, 7
        %v5370 = vsub.s32 7, %v5369
        %v5371 = vrot.slane %v3755, %v5370
        %v5372 = vlaneseq
        %v5373 = vshrl.u32 %v5372, 7
        %v5374 = vsub.s32 0, %v5373
        %v5375 = vrot.slane %v3756, %v5374
        %v5376 = vlaneseq
        %v5377 = vshrl.u32 %v5376, 7
        %v5378 = vsub.s32 1, %v5377
        %v5379 = vrot.slane %v3756, %v5378
        %v5380 = vlaneseq
        %v5381 = vshrl.u32 %v5380, 7
        %v5382 = vsub.s32 2, %v5381
        %v5383 = vrot.slane %v3756, %v5382
        %v5384 = vlaneseq
        %v5385 = vshrl.u32 %v5384, 7
        %v5386 = vsub.s32 3, %v5385
        %v5387 = vrot.slane %v3756, %v5386
        %v5388 = vlaneseq
        %v5389 = vshrl.u32 %v5388, 7
        %v5390 = vsub.s32 4, %v5389
        %v5391 = vrot.slane %v3756, %v5390
        %v5392 = vlaneseq
        %v5393 = vshrl.u32 %v5392, 7
        %v5394 = vsub.s32 5, %v5393
        %v5395 = vrot.slane %v3756, %v5394
        %v5396 = vlaneseq
        %v5397 = vshrl.u32 %v5396, 7
        %v5398 = vsub.s32 6, %v5397
        %v5399 = vrot.slane %v3756, %v5398
        %v5400 = vlaneseq
        %v5401 = vshrl.u32 %v5400, 7
        %v5402 = vsub.s32 7, %v5401
        %v5403 = vrot.slane %v3756, %v5402
        %v5404 = vlaneseq
        %v5405 = vshrl.u32 %v5404, 7
        %v5406 = vsub.s32 0, %v5405
        %v5407 = vrot.slane %v3757, %v5406
        %v5408 = vlaneseq
        %v5409 = vshrl.u32 %v5408, 7
        %v5410 = vsub.s32 1, %v5409
        %v5411 = vrot.slane %v3757, %v5410
        %v5412 = vlaneseq
        %v5413 = vshrl.u32 %v5412, 7
        %v5414 = vsub.s32 2, %v5413
        %v5415 = vrot.slane %v3757, %v5414
        %v5416 = vlaneseq
        %v5417 = vshrl.u32 %v5416, 7
        %v5418 = vsub.s32 3, %v5417
        %v5419 = vrot.slane %v3757, %v5418
        %v5420 = vlaneseq
        %v5421 = vshrl.u32 %v5420, 7
        %v5422 = vsub.s32 4, %v5421
        %v5423 = vrot.slane %v3757, %v5422
        %v5424 = vlaneseq
        %v5425 = vshrl.u32 %v5424, 7
        %v5426 = vsub.s32 5, %v5425
        %v5427 = vrot.slane %v3757, %v5426
        %v5428 = vlaneseq
        %v5429 = vshrl.u32 %v5428, 7
        %v5430 = vsub.s32 6, %v5429
        %v5431 = vrot.slane %v3757, %v5430
        %v5432 = vlaneseq
        %v5433 = vshrl.u32 %v5432, 7
        %v5434 = vsub.s32 7, %v5433
        %v5435 = vrot.slane %v3757, %v5434
        %v5436 = vlaneseq
        %v5437 = vshrl.u32 %v5436, 7
        %v5438 = vsub.s32 0, %v5437
        %v5439 = vrot.slane %v3758, %v5438
        %v5440 = vlaneseq
        %v5441 = vshrl.u32 %v5440, 7
        %v5442 = vsub.s32 1, %v5441
        %v5443 = vrot.slane %v3758, %v5442
        %v5444 = vlaneseq
        %v5445 = vshrl.u32 %v5444, 7
        %v5446 = vsub.s32 2, %v5445
        %v5447 = vrot.slane %v3758, %v5446
        %v5448 = vlaneseq
        %v5449 = vshrl.u32 %v5448, 7
        %v5450 = vsub.s32 3, %v5449
        %v5451 = vrot.slane %v3758, %v5450
        %v5452 = vlaneseq
        %v5453 = vshrl.u32 %v5452, 7
        %v5454 = vsub.s32 4, %v5453
        %v5455 = vrot.slane %v3758, %v5454
        %v5456 = vlaneseq
        %v5457 = vshrl.u32 %v5456, 7
        %v5458 = vsub.s32 5, %v5457
        %v5459 = vrot.slane %v3758, %v5458
        %v5460 = vlaneseq
        %v5461 = vshrl.u32 %v5460, 7
        %v5462 = vsub.s32 6, %v5461
        %v5463 = vrot.slane %v3758, %v5462
        %v5464 = vlaneseq
        %v5465 = vshrl.u32 %v5464, 7
        %v5466 = vsub.s32 7, %v5465
        %v5467 = vrot.slane %v3758, %v5466
        %v5468 = vlaneseq
        %v5469 = vshrl.u32 %v5468, 7
        %v5470 = vsub.s32 0, %v5469
        %v5471 = vrot.slane %v3759, %v5470
        %v5472 = vlaneseq
        %v5473 = vshrl.u32 %v5472, 7
        %v5474 = vsub.s32 1, %v5473
        %v5475 = vrot.slane %v3759, %v5474
        %v5476 = vlaneseq
        %v5477 = vshrl.u32 %v5476, 7
        %v5478 = vsub.s32 2, %v5477
        %v5479 = vrot.slane %v3759, %v5478
        %v5480 = vlaneseq
        %v5481 = vshrl.u32 %v5480, 7
        %v5482 = vsub.s32 3, %v5481
        %v5483 = vrot.slane %v3759, %v5482
        %v5484 = vlaneseq
        %v5485 = vshrl.u32 %v5484, 7
        %v5486 = vsub.s32 4, %v5485
        %v5487 = vrot.slane %v3759, %v5486
        %v5488 = vlaneseq
        %v5489 = vshrl.u32 %v5488, 7
        %v5490 = vsub.s32 5, %v5489
        %v5491 = vrot.slane %v3759, %v5490
        %v5492 = vlaneseq
        %v5493 = vshrl.u32 %v5492, 7
        %v5494 = vsub.s32 6, %v5493
        %v5495 = vrot.slane %v3759, %v5494
        %v5496 = vlaneseq
        %v5497 = vshrl.u32 %v5496, 7
        %v5498 = vsub.s32 7, %v5497
        %v5499 = vrot.slane %v3759, %v5498
        %v5500 = vlaneseq
        %v5501 = vshrl.u32 %v5500, 7
        %v5502 = vsub.s32 0, %v5501
        %v5503 = vrot.slane %v3760, %v5502
        %v5504 = vlaneseq
        %v5505 = vshrl.u32 %v5504, 7
        %v5506 = vsub.s32 1, %v5505
        %v5507 = vrot.slane %v3760, %v5506
        %v5508 = vlaneseq
        %v5509 = vshrl.u32 %v5508, 7
        %v5510 = vsub.s32 2, %v5509
        %v5511 = vrot.slane %v3760, %v5510
        %v5512 = vlaneseq
        %v5513 = vshrl.u32 %v5512, 7
        %v5514 = vsub.s32 3, %v5513
        %v5515 = vrot.slane %v3760, %v5514
        %v5516 = vlaneseq
        %v5517 = vshrl.u32 %v5516, 7
        %v5518 = vsub.s32 4, %v5517
        %v5519 = vrot.slane %v3760, %v5518
        %v5520 = vlaneseq
        %v5521 = vshrl.u32 %v5520, 7
        %v5522 = vsub.s32 5, %v5521
        %v5523 = vrot.slane %v3760, %v5522
        %v5524 = vlaneseq
        %v5525 = vshrl.u32 %v5524, 7
        %v5526 = vsub.s32 6, %v5525
        %v5527 = vrot.slane %v3760, %v5526
        %v5528 = vlaneseq
        %v5529 = vshrl.u32 %v5528, 7
        %v5530 = vsub.s32 7, %v5529
        %v5531 = vrot.slane %v3760, %v5530
        %v5532 = vlaneseq
        %v5533 = vshrl.u32 %v5532, 7
        %v5534 = vsub.s32 0, %v5533
        %v5535 = vrot.slane %v3761, %v5534
        %v5536 = vlaneseq
        %v5537 = vshrl.u32 %v5536, 7
        %v5538 = vsub.s32 1, %v5537
        %v5539 = vrot.slane %v3761, %v5538
        %v5540 = vlaneseq
        %v5541 = vshrl.u32 %v5540, 7
        %v5542 = vsub.s32 2, %v5541
        %v5543 = vrot.slane %v3761, %v5542
        %v5544 = vlaneseq
        %v5545 = vshrl.u32 %v5544, 7
        %v5546 = vsub.s32 3, %v5545
        %v5547 = vrot.slane %v3761, %v5546
        %v5548 = vlaneseq
        %v5549 = vshrl.u32 %v5548, 7
        %v5550 = vsub.s32 4, %v5549
        %v5551 = vrot.slane %v3761, %v5550
        %v5552 = vlaneseq
        %v5553 = vshrl.u32 %v5552, 7
        %v5554 = vsub.s32 5, %v5553
        %v5555 = vrot.slane %v3761, %v5554
        %v5556 = vlaneseq
        %v5557 = vshrl.u32 %v5556, 7
        %v5558 = vsub.s32 6, %v5557
        %v5559 = vrot.slane %v3761, %v5558
        %v5560 = vlaneseq
        %v5561 = vshrl.u32 %v5560, 7
        %v5562 = vsub.s32 7, %v5561
        %v5563 = vrot.slane %v3761, %v5562
        %v5564 = vlaneseq
        %v5565 = vshrl.u32 %v5564, 7
        %v5566 = vsub.s32 0, %v5565
        %v5567 = vrot.slane %v3762, %v5566
        %v5568 = vlaneseq
        %v5569 = vshrl.u32 %v5568, 7
        %v5570 = vsub.s32 1, %v5569
        %v5571 = vrot.slane %v3762, %v5570
        %v5572 = vlaneseq
        %v5573 = vshrl.u32 %v5572, 7
        %v5574 = vsub.s32 2, %v5573
        %v5575 = vrot.slane %v3762, %v5574
        %v5576 = vlaneseq
        %v5577 = vshrl.u32 %v5576, 7
        %v5578 = vsub.s32 3, %v5577
        %v5579 = vrot.slane %v3762, %v5578
        %v5580 = vlaneseq
        %v5581 = vshrl.u32 %v5580, 7
        %v5582 = vsub.s32 4, %v5581
        %v5583 = vrot.slane %v3762, %v5582
        %v5584 = vlaneseq
        %v5585 = vshrl.u32 %v5584, 7
        %v5586 = vsub.s32 5, %v5585
        %v5587 = vrot.slane %v3762, %v5586
        %v5588 = vlaneseq
        %v5589 = vshrl.u32 %v5588, 7
        %v5590 = vsub.s32 6, %v5589
        %v5591 = vrot.slane %v3762, %v5590
        %v5592 = vlaneseq
        %v5593 = vshrl.u32 %v5592, 7
        %v5594 = vsub.s32 7, %v5593
        %v5595 = vrot.slane %v3762, %v5594
        %v5596 = vlaneseq
        %v5597 = vshrl.u32 %v5596, 7
        %v5598 = vsub.s32 0, %v5597
        %v5599 = vrot.slane %v3763, %v5598
        %v5600 = vlaneseq
        %v5601 = vshrl.u32 %v5600, 7
        %v5602 = vsub.s32 1, %v5601
        %v5603 = vrot.slane %v3763, %v5602
        %v5604 = vlaneseq
        %v5605 = vshrl.u32 %v5604, 7
        %v5606 = vsub.s32 2, %v5605
        %v5607 = vrot.slane %v3763, %v5606
        %v5608 = vlaneseq
        %v5609 = vshrl.u32 %v5608, 7
        %v5610 = vsub.s32 3, %v5609
        %v5611 = vrot.slane %v3763, %v5610
        %v5612 = vlaneseq
        %v5613 = vshrl.u32 %v5612, 7
        %v5614 = vsub.s32 4, %v5613
        %v5615 = vrot.slane %v3763, %v5614
        %v5616 = vlaneseq
        %v5617 = vshrl.u32 %v5616, 7
        %v5618 = vsub.s32 5, %v5617
        %v5619 = vrot.slane %v3763, %v5618
        %v5620 = vlaneseq
        %v5621 = vshrl.u32 %v5620, 7
        %v5622 = vsub.s32 6, %v5621
        %v5623 = vrot.slane %v3763, %v5622
        %v5624 = vlaneseq
        %v5625 = vshrl.u32 %v5624, 7
        %v5626 = vsub.s32 7, %v5625
        %v5627 = vrot.slane %v3763, %v5626
        %v5628 = vlaneseq
        %v5629 = vshrl.u32 %v5628, 7
        %v5630 = vsub.s32 0, %v5629
        %v5631 = vrot.slane %v3764, %v5630
        %v5632 = vlaneseq
        %v5633 = vshrl.u32 %v5632, 7
        %v5634 = vsub.s32 1, %v5633
        %v5635 = vrot.slane %v3764, %v5634
        %v5636 = vlaneseq
        %v5637 = vshrl.u32 %v5636, 7
        %v5638 = vsub.s32 2, %v5637
        %v5639 = vrot.slane %v3764, %v5638
        %v5640 = vlaneseq
        %v5641 = vshrl.u32 %v5640, 7
        %v5642 = vsub.s32 3, %v5641
        %v5643 = vrot.slane %v3764, %v5642
        %v5644 = vlaneseq
        %v5645 = vshrl.u32 %v5644, 7
        %v5646 = vsub.s32 4, %v5645
        %v5647 = vrot.slane %v3764, %v5646
        %v5648 = vlaneseq
        %v5649 = vshrl.u32 %v5648, 7
        %v5650 = vsub.s32 5, %v5649
        %v5651 = vrot.slane %v3764, %v5650
        %v5652 = vlaneseq
        %v5653 = vshrl.u32 %v5652, 7
        %v5654 = vsub.s32 6, %v5653
        %v5655 = vrot.slane %v3764, %v5654
        %v5656 = vlaneseq
        %v5657 = vshrl.u32 %v5656, 7
        %v5658 = vsub.s32 7, %v5657
        %v5659 = vrot.slane %v3764, %v5658
        %v5660 = vlaneseq
        %v5661 = vshrl.u32 %v5660, 7
        %v5662 = vsub.s32 0, %v5661
        %v5663 = vrot.slane %v3765, %v5662
        %v5664 = vlaneseq
        %v5665 = vshrl.u32 %v5664, 7
        %v5666 = vsub.s32 1, %v5665
        %v5667 = vrot.slane %v3765, %v5666
        %v5668 = vlaneseq
        %v5669 = vshrl.u32 %v5668, 7
        %v5670 = vsub.s32 2, %v5669
        %v5671 = vrot.slane %v3765, %v5670
        %v5672 = vlaneseq
        %v5673 = vshrl.u32 %v5672, 7
        %v5674 = vsub.s32 3, %v5673
        %v5675 = vrot.slane %v3765, %v5674
        %v5676 = vlaneseq
        %v5677 = vshrl.u32 %v5676, 7
        %v5678 = vsub.s32 4, %v5677
        %v5679 = vrot.slane %v3765, %v5678
        %v5680 = vlaneseq
        %v5681 = vshrl.u32 %v5680, 7
        %v5682 = vsub.s32 5, %v5681
        %v5683 = vrot.slane %v3765, %v5682
        %v5684 = vlaneseq
        %v5685 = vshrl.u32 %v5684, 7
        %v5686 = vsub.s32 6, %v5685
        %v5687 = vrot.slane %v3765, %v5686
        %v5688 = vlaneseq
        %v5689 = vshrl.u32 %v5688, 7
        %v5690 = vsub.s32 7, %v5689
        %v5691 = vrot.slane %v3765, %v5690
        %v5692 = vlaneseq
        %v5693 = vshrl.u32 %v5692, 7
        %v5694 = vsub.s32 0, %v5693
        %v5695 = vrot.slane %v3766, %v5694
        %v5696 = vlaneseq
        %v5697 = vshrl.u32 %v5696, 7
        %v5698 = vsub.s32 1, %v5697
        %v5699 = vrot.slane %v3766, %v5698
        %v5700 = vlaneseq
        %v5701 = vshrl.u32 %v5700, 7
        %v5702 = vsub.s32 2, %v5701
        %v5703 = vrot.slane %v3766, %v5702
        %v5704 = vlaneseq
        %v5705 = vshrl.u32 %v5704, 7
        %v5706 = vsub.s32 3, %v5705
        %v5707 = vrot.slane %v3766, %v5706
        %v5708 = vlaneseq
        %v5709 = vshrl.u32 %v5708, 7
        %v5710 = vsub.s32 4, %v5709
        %v5711 = vrot.slane %v3766, %v5710
        %v5712 = vlaneseq
        %v5713 = vshrl.u32 %v5712, 7
        %v5714 = vsub.s32 5, %v5713
        %v5715 = vrot.slane %v3766, %v5714
        %v5716 = vlaneseq
        %v5717 = vshrl.u32 %v5716, 7
        %v5718 = vsub.s32 6, %v5717
        %v5719 = vrot.slane %v3766, %v5718
        %v5720 = vlaneseq
        %v5721 = vshrl.u32 %v5720, 7
        %v5722 = vsub.s32 7, %v5721
        %v5723 = vrot.slane %v3766, %v5722
        %v5724 = vlaneseq
        %v5725 = vshrl.u32 %v5724, 7
        %v5726 = vsub.s32 0, %v5725
        %v5727 = vrot.slane %v3767, %v5726
        %v5728 = vlaneseq
        %v5729 = vshrl.u32 %v5728, 7
        %v5730 = vsub.s32 1, %v5729
        %v5731 = vrot.slane %v3767, %v5730
        %v5732 = vlaneseq
        %v5733 = vshrl.u32 %v5732, 7
        %v5734 = vsub.s32 2, %v5733
        %v5735 = vrot.slane %v3767, %v5734
        %v5736 = vlaneseq
        %v5737 = vshrl.u32 %v5736, 7
        %v5738 = vsub.s32 3, %v5737
        %v5739 = vrot.slane %v3767, %v5738
        %v5740 = vlaneseq
        %v5741 = vshrl.u32 %v5740, 7
        %v5742 = vsub.s32 4, %v5741
        %v5743 = vrot.slane %v3767, %v5742
        %v5744 = vlaneseq
        %v5745 = vshrl.u32 %v5744, 7
        %v5746 = vsub.s32 5, %v5745
        %v5747 = vrot.slane %v3767, %v5746
        %v5748 = vlaneseq
        %v5749 = vshrl.u32 %v5748, 7
        %v5750 = vsub.s32 6, %v5749
        %v5751 = vrot.slane %v3767, %v5750
        %v5752 = vlaneseq
        %v5753 = vshrl.u32 %v5752, 7
        %v5754 = vsub.s32 7, %v5753
        %v5755 = vrot.slane %v3767, %v5754
        %v5756 = vlaneseq
        %v5757 = vshrl.u32 %v5756, 7
        %v5758 = vsub.s32 0, %v5757
        %v5759 = vrot.slane %v3768, %v5758
        %v5760 = vlaneseq
        %v5761 = vshrl.u32 %v5760, 7
        %v5762 = vsub.s32 1, %v5761
        %v5763 = vrot.slane %v3768, %v5762
        %v5764 = vlaneseq
        %v5765 = vshrl.u32 %v5764, 7
        %v5766 = vsub.s32 2, %v5765
        %v5767 = vrot.slane %v3768, %v5766
        %v5768 = vlaneseq
        %v5769 = vshrl.u32 %v5768, 7
        %v5770 = vsub.s32 3, %v5769
        %v5771 = vrot.slane %v3768, %v5770
        %v5772 = vlaneseq
        %v5773 = vshrl.u32 %v5772, 7
        %v5774 = vsub.s32 4, %v5773
        %v5775 = vrot.slane %v3768, %v5774
        %v5776 = vlaneseq
        %v5777 = vshrl.u32 %v5776, 7
        %v5778 = vsub.s32 5, %v5777
        %v5779 = vrot.slane %v3768, %v5778
        %v5780 = vlaneseq
        %v5781 = vshrl.u32 %v5780, 7
        %v5782 = vsub.s32 6, %v5781
        %v5783 = vrot.slane %v3768, %v5782
        %v5784 = vlaneseq
        %v5785 = vshrl.u32 %v5784, 7
        %v5786 = vsub.s32 7, %v5785
        %v5787 = vrot.slane %v3768, %v5786
        %v5788 = vlaneseq
        %v5789 = vshrl.u32 %v5788, 7
        %v5790 = vsub.s32 0, %v5789
        %v5791 = vrot.slane %v3769, %v5790
        %v5792 = vlaneseq
        %v5793 = vshrl.u32 %v5792, 7
        %v5794 = vsub.s32 1, %v5793
        %v5795 = vrot.slane %v3769, %v5794
        %v5796 = vlaneseq
        %v5797 = vshrl.u32 %v5796, 7
        %v5798 = vsub.s32 2, %v5797
        %v5799 = vrot.slane %v3769, %v5798
        %v5800 = vlaneseq
        %v5801 = vshrl.u32 %v5800, 7
        %v5802 = vsub.s32 3, %v5801
        %v5803 = vrot.slane %v3769, %v5802
        %v5804 = vlaneseq
        %v5805 = vshrl.u32 %v5804, 7
        %v5806 = vsub.s32 4, %v5805
        %v5807 = vrot.slane %v3769, %v5806
        %v5808 = vlaneseq
        %v5809 = vshrl.u32 %v5808, 7
        %v5810 = vsub.s32 5, %v5809
        %v5811 = vrot.slane %v3769, %v5810
        %v5812 = vlaneseq
        %v5813 = vshrl.u32 %v5812, 7
        %v5814 = vsub.s32 6, %v5813
        %v5815 = vrot.slane %v3769, %v5814
        %v5816 = vlaneseq
        %v5817 = vshrl.u32 %v5816, 7
        %v5818 = vsub.s32 7, %v5817
        %v5819 = vrot.slane %v3769, %v5818
        %v5820 = vlaneseq
        %v5821 = vshrl.u32 %v5820, 7
        %v5822 = vsub.s32 0, %v5821
        %v5823 = vrot.slane %v3770, %v5822
        %v5824 = vlaneseq
        %v5825 = vshrl.u32 %v5824, 7
        %v5826 = vsub.s32 1, %v5825
        %v5827 = vrot.slane %v3770, %v5826
        %v5828 = vlaneseq
        %v5829 = vshrl.u32 %v5828, 7
        %v5830 = vsub.s32 2, %v5829
        %v5831 = vrot.slane %v3770, %v5830
        %v5832 = vlaneseq
        %v5833 = vshrl.u32 %v5832, 7
        %v5834 = vsub.s32 3, %v5833
        %v5835 = vrot.slane %v3770, %v5834
        %v5836 = vlaneseq
        %v5837 = vshrl.u32 %v5836, 7
        %v5838 = vsub.s32 4, %v5837
        %v5839 = vrot.slane %v3770, %v5838
        %v5840 = vlaneseq
        %v5841 = vshrl.u32 %v5840, 7
        %v5842 = vsub.s32 5, %v5841
        %v5843 = vrot.slane %v3770, %v5842
        %v5844 = vlaneseq
        %v5845 = vshrl.u32 %v5844, 7
        %v5846 = vsub.s32 6, %v5845
        %v5847 = vrot.slane %v3770, %v5846
        %v5848 = vlaneseq
        %v5849 = vshrl.u32 %v5848, 7
        %v5850 = vsub.s32 7, %v5849
        %v5851 = vrot.slane %v3770, %v5850
        %v5852 = vlaneseq
        %v5853 = vshrl.u32 %v5852, 7
        %v5854 = vsub.s32 0, %v5853
        %v5855 = vrot.slane %v3771, %v5854
        %v5856 = vlaneseq
        %v5857 = vshrl.u32 %v5856, 7
        %v5858 = vsub.s32 1, %v5857
        %v5859 = vrot.slane %v3771, %v5858
        %v5860 = vlaneseq
        %v5861 = vshrl.u32 %v5860, 7
        %v5862 = vsub.s32 2, %v5861
        %v5863 = vrot.slane %v3771, %v5862
        %v5864 = vlaneseq
        %v5865 = vshrl.u32 %v5864, 7
        %v5866 = vsub.s32 3, %v5865
        %v5867 = vrot.slane %v3771, %v5866
        %v5868 = vlaneseq
        %v5869 = vshrl.u32 %v5868, 7
        %v5870 = vsub.s32 4, %v5869
        %v5871 = vrot.slane %v3771, %v5870
        %v5872 = vlaneseq
        %v5873 = vshrl.u32 %v5872, 7
        %v5874 = vsub.s32 5, %v5873
        %v5875 = vrot.slane %v3771, %v5874
        %v5876 = vlaneseq
        %v5877 = vshrl.u32 %v5876, 7
        %v5878 = vsub.s32 6, %v5877
        %v5879 = vrot.slane %v3771, %v5878
        %v5880 = vlaneseq
        %v5881 = vshrl.u32 %v5880, 7
        %v5882 = vsub.s32 7, %v5881
        %v5883 = vrot.slane %v3771, %v5882
        %v5884 = vcombine.low %v3839, %v3843
        %v5885 = vcombine.low %v3847, %v3851
        %v5886 = vcombine.low %v3855, %v3859
        %v5887 = vcombine.low %v3863, %v3867
        %v5889 = vunpack.c.l.s4 1966171168
        %v5890 = vunpack.c.0.s8 %v5889
        %v5891 = vlaneseq
        %v5892 = vshrl.u32 %v5891, 7
        %v5893 = vsub.s32 %v5890, %v5892
        %v5894 = vrot.slane %v5884, %v5893
        %v5896 = vunpack.c.l.s4 1966171168
        %v5897 = vunpack.c.0.s8 %v5896
        %v5898 = vlaneseq
        %v5899 = vshrl.u32 %v5898, 7
        %v5900 = vsub.s32 %v5897, %v5899
        %v5901 = vrot.slane %v5885, %v5900
        %v5903 = vunpack.c.l.s4 1966171168
        %v5904 = vunpack.c.0.s8 %v5903
        %v5905 = vlaneseq
        %v5906 = vshrl.u32 %v5905, 7
        %v5907 = vsub.s32 %v5904, %v5906
        %v5908 = vrot.slane %v5886, %v5907
        %v5910 = vunpack.c.l.s4 1966171168
        %v5911 = vunpack.c.0.s8 %v5910
        %v5912 = vlaneseq
        %v5913 = vshrl.u32 %v5912, 7
        %v5914 = vsub.s32 %v5911, %v5913
        %v5915 = vrot.slane %v5887, %v5914
        %v5916 = vcombine.low %v5894, %v5901
        %v5917 = vcombine.low %v5908, %v5915
        %v5919 = vunpack.c.l.s4 1966171168
        %v5920 = vunpack.c.0.s8 %v5919
        %v5921 = vlaneseq
        %v5922 = vshrl.u32 %v5921, 7
        %v5923 = vsub.s32 %v5920, %v5922
        %v5924 = vrot.slane %v5916, %v5923
        %v5926 = vunpack.c.l.s4 1966171168
        %v5927 = vunpack.c.0.s8 %v5926
        %v5928 = vlaneseq
        %v5929 = vshrl.u32 %v5928, 7
        %v5930 = vsub.s32 %v5927, %v5929
        %v5931 = vrot.slane %v5917, %v5930
        %v5932 = vcombine.low %v5924, %v5931
        %v5933 = vcombine.low %v3871, %v3875
        %v5934 = vcombine.low %v3879, %v3883
        %v5935 = vcombine.low %v3887, %v3891
        %v5936 = vcombine.low %v3895, %v3899
        %v5938 = vunpack.c.l.s4 1966171168
        %v5939 = vunpack.c.0.s8 %v5938
        %v5940 = vlaneseq
        %v5941 = vshrl.u32 %v5940, 7
        %v5942 = vsub.s32 %v5939, %v5941
        %v5943 = vrot.slane %v5933, %v5942
        %v5945 = vunpack.c.l.s4 1966171168
        %v5946 = vunpack.c.0.s8 %v5945
        %v5947 = vlaneseq
        %v5948 = vshrl.u32 %v5947, 7
        %v5949 = vsub.s32 %v5946, %v5948
        %v5950 = vrot.slane %v5934, %v5949
        %v5952 = vunpack.c.l.s4 1966171168
        %v5953 = vunpack.c.0.s8 %v5952
        %v5954 = vlaneseq
        %v5955 = vshrl.u32 %v5954, 7
        %v5956 = vsub.s32 %v5953, %v5955
        %v5957 = vrot.slane %v5935, %v5956
        %v5959 = vunpack.c.l.s4 1966171168
        %v5960 = vunpack.c.0.s8 %v5959
        %v5961 = vlaneseq
        %v5962 = vshrl.u32 %v5961, 7
        %v5963 = vsub.s32 %v5960, %v5962
        %v5964 = vrot.slane %v5936, %v5963
        %v5965 = vcombine.low %v5943, %v5950
        %v5966 = vcombine.low %v5957, %v5964
        %v5968 = vunpack.c.l.s4 1966171168
        %v5969 = vunpack.c.0.s8 %v5968
        %v5970 = vlaneseq
        %v5971 = vshrl.u32 %v5970, 7
        %v5972 = vsub.s32 %v5969, %v5971
        %v5973 = vrot.slane %v5965, %v5972
        %v5975 = vunpack.c.l.s4 1966171168
        %v5976 = vunpack.c.0.s8 %v5975
        %v5977 = vlaneseq
        %v5978 = vshrl.u32 %v5977, 7
        %v5979 = vsub.s32 %v5976, %v5978
        %v5980 = vrot.slane %v5966, %v5979
        %v5981 = vcombine.low %v5973, %v5980
        %v5982 = vcombine.low %v3903, %v3907
        %v5983 = vcombine.low %v3911, %v3915
        %v5984 = vcombine.low %v3919, %v3923
        %v5985 = vcombine.low %v3927, %v3931
        %v5987 = vunpack.c.l.s4 1966171168
        %v5988 = vunpack.c.0.s8 %v5987
        %v5989 = vlaneseq
        %v5990 = vshrl.u32 %v5989, 7
        %v5991 = vsub.s32 %v5988, %v5990
        %v5992 = vrot.slane %v5982, %v5991
        %v5994 = vunpack.c.l.s4 1966171168
        %v5995 = vunpack.c.0.s8 %v5994
        %v5996 = vlaneseq
        %v5997 = vshrl.u32 %v5996, 7
        %v5998 = vsub.s32 %v5995, %v5997
        %v5999 = vrot.slane %v5983, %v5998
        %v6001 = vunpack.c.l.s4 1966171168
        %v6002 = vunpack.c.0.s8 %v6001
        %v6003 = vlaneseq
        %v6004 = vshrl.u32 %v6003, 7
        %v6005 = vsub.s32 %v6002, %v6004
        %v6006 = vrot.slane %v5984, %v6005
        %v6008 = vunpack.c.l.s4 1966171168
        %v6009 = vunpack.c.0.s8 %v6008
        %v6010 = vlaneseq
        %v6011 = vshrl.u32 %v6010, 7
        %v6012 = vsub.s32 %v6009, %v6011
        %v6013 = vrot.slane %v5985, %v6012
        %v6014 = vcombine.low %v5992, %v5999
        %v6015 = vcombine.low %v6006, %v6013
        %v6017 = vunpack.c.l.s4 1966171168
        %v6018 = vunpack.c.0.s8 %v6017
        %v6019 = vlaneseq
        %v6020 = vshrl.u32 %v6019, 7
        %v6021 = vsub.s32 %v6018, %v6020
        %v6022 = vrot.slane %v6014, %v6021
        %v6024 = vunpack.c.l.s4 1966171168
        %v6025 = vunpack.c.0.s8 %v6024
        %v6026 = vlaneseq
        %v6027 = vshrl.u32 %v6026, 7
        %v6028 = vsub.s32 %v6025, %v6027
        %v6029 = vrot.slane %v6015, %v6028
        %v6030 = vcombine.low %v6022, %v6029
        %v6031 = vcombine.low %v3935, %v3939
        %v6032 = vcombine.low %v3943, %v3947
        %v6033 = vcombine.low %v3951, %v3955
        %v6034 = vcombine.low %v3959, %v3963
        %v6036 = vunpack.c.l.s4 1966171168
        %v6037 = vunpack.c.0.s8 %v6036
        %v6038 = vlaneseq
        %v6039 = vshrl.u32 %v6038, 7
        %v6040 = vsub.s32 %v6037, %v6039
        %v6041 = vrot.slane %v6031, %v6040
        %v6043 = vunpack.c.l.s4 1966171168
        %v6044 = vunpack.c.0.s8 %v6043
        %v6045 = vlaneseq
        %v6046 = vshrl.u32 %v6045, 7
        %v6047 = vsub.s32 %v6044, %v6046
        %v6048 = vrot.slane %v6032, %v6047
        %v6050 = vunpack.c.l.s4 1966171168
        %v6051 = vunpack.c.0.s8 %v6050
        %v6052 = vlaneseq
        %v6053 = vshrl.u32 %v6052, 7
        %v6054 = vsub.s32 %v6051, %v6053
        %v6055 = vrot.slane %v6033, %v6054
        %v6057 = vunpack.c.l.s4 1966171168
        %v6058 = vunpack.c.0.s8 %v6057
        %v6059 = vlaneseq
        %v6060 = vshrl.u32 %v6059, 7
        %v6061 = vsub.s32 %v6058, %v6060
        %v6062 = vrot.slane %v6034, %v6061
        %v6063 = vcombine.low %v6041, %v6048
        %v6064 = vcombine.low %v6055, %v6062
        %v6066 = vunpack.c.l.s4 1966171168
        %v6067 = vunpack.c.0.s8 %v6066
        %v6068 = vlaneseq
        %v6069 = vshrl.u32 %v6068, 7
        %v6070 = vsub.s32 %v6067, %v6069
        %v6071 = vrot.slane %v6063, %v6070
        %v6073 = vunpack.c.l.s4 1966171168
        %v6074 = vunpack.c.0.s8 %v6073
        %v6075 = vlaneseq
        %v6076 = vshrl.u32 %v6075, 7
        %v6077 = vsub.s32 %v6074, %v6076
        %v6078 = vrot.slane %v6064, %v6077
        %v6079 = vcombine.low %v6071, %v6078
        %v6080 = vcombine.low %v3967, %v3971
        %v6081 = vcombine.low %v3975, %v3979
        %v6082 = vcombine.low %v3983, %v3987
        %v6083 = vcombine.low %v3991, %v3995
        %v6085 = vunpack.c.l.s4 1966171168
        %v6086 = vunpack.c.0.s8 %v6085
        %v6087 = vlaneseq
        %v6088 = vshrl.u32 %v6087, 7
        %v6089 = vsub.s32 %v6086, %v6088
        %v6090 = vrot.slane %v6080, %v6089
        %v6092 = vunpack.c.l.s4 1966171168
        %v6093 = vunpack.c.0.s8 %v6092
        %v6094 = vlaneseq
        %v6095 = vshrl.u32 %v6094, 7
        %v6096 = vsub.s32 %v6093, %v6095
        %v6097 = vrot.slane %v6081, %v6096
        %v6099 = vunpack.c.l.s4 1966171168
        %v6100 = vunpack.c.0.s8 %v6099
        %v6101 = vlaneseq
        %v6102 = vshrl.u32 %v6101, 7
        %v6103 = vsub.s32 %v6100, %v6102
        %v6104 = vrot.slane %v6082, %v6103
        %v6106 = vunpack.c.l.s4 1966171168
        %v6107 = vunpack.c.0.s8 %v6106
        %v6108 = vlaneseq
        %v6109 = vshrl.u32 %v6108, 7
        %v6110 = vsub.s32 %v6107, %v6109
        %v6111 = vrot.slane %v6083, %v6110
        %v6112 = vcombine.low %v6090, %v6097
        %v6113 = vcombine.low %v6104, %v6111
        %v6115 = vunpack.c.l.s4 1966171168
        %v6116 = vunpack.c.0.s8 %v6115
        %v6117 = vlaneseq
        %v6118 = vshrl.u32 %v6117, 7
        %v6119 = vsub.s32 %v6116, %v6118
        %v6120 = vrot.slane %v6112, %v6119
        %v6122 = vunpack.c.l.s4 1966171168
        %v6123 = vunpack.c.0.s8 %v6122
        %v6124 = vlaneseq
        %v6125 = vshrl.u32 %v6124, 7
        %v6126 = vsub.s32 %v6123, %v6125
        %v6127 = vrot.slane %v6113, %v6126
        %v6128 = vcombine.low %v6120, %v6127
        %v6129 = vcombine.low %v3999, %v4003
        %v6130 = vcombine.low %v4007, %v4011
        %v6131 = vcombine.low %v4015, %v4019
        %v6132 = vcombine.low %v4023, %v4027
        %v6134 = vunpack.c.l.s4 1966171168
        %v6135 = vunpack.c.0.s8 %v6134
        %v6136 = vlaneseq
        %v6137 = vshrl.u32 %v6136, 7
        %v6138 = vsub.s32 %v6135, %v6137
        %v6139 = vrot.slane %v6129, %v6138
        %v6141 = vunpack.c.l.s4 1966171168
        %v6142 = vunpack.c.0.s8 %v6141
        %v6143 = vlaneseq
        %v6144 = vshrl.u32 %v6143, 7
        %v6145 = vsub.s32 %v6142, %v6144
        %v6146 = vrot.slane %v6130, %v6145
        %v6148 = vunpack.c.l.s4 1966171168
        %v6149 = vunpack.c.0.s8 %v6148
        %v6150 = vlaneseq
        %v6151 = vshrl.u32 %v6150, 7
        %v6152 = vsub.s32 %v6149, %v6151
        %v6153 = vrot.slane %v6131, %v6152
        %v6155 = vunpack.c.l.s4 1966171168
        %v6156 = vunpack.c.0.s8 %v6155
        %v6157 = vlaneseq
        %v6158 = vshrl.u32 %v6157, 7
        %v6159 = vsub.s32 %v6156, %v6158
        %v6160 = vrot.slane %v6132, %v6159
        %v6161 = vcombine.low %v6139, %v6146
        %v6162 = vcombine.low %v6153, %v6160
        %v6164 = vunpack.c.l.s4 1966171168
        %v6165 = vunpack.c.0.s8 %v6164
        %v6166 = vlaneseq
        %v6167 = vshrl.u32 %v6166, 7
        %v6168 = vsub.s32 %v6165, %v6167
        %v6169 = vrot.slane %v6161, %v6168
        %v6171 = vunpack.c.l.s4 1966171168
        %v6172 = vunpack.c.0.s8 %v6171
        %v6173 = vlaneseq
        %v6174 = vshrl.u32 %v6173, 7
        %v6175 = vsub.s32 %v6172, %v6174
        %v6176 = vrot.slane %v6162, %v6175
        %v6177 = vcombine.low %v6169, %v6176
        %v6178 = vcombine.low %v4031, %v4035
        %v6179 = vcombine.low %v4039, %v4043
        %v6180 = vcombine.low %v4047, %v4051
        %v6181 = vcombine.low %v4055, %v4059
        %v6183 = vunpack.c.l.s4 1966171168
        %v6184 = vunpack.c.0.s8 %v6183
        %v6185 = vlaneseq
        %v6186 = vshrl.u32 %v6185, 7
        %v6187 = vsub.s32 %v6184, %v6186
        %v6188 = vrot.slane %v6178, %v6187
        %v6190 = vunpack.c.l.s4 1966171168
        %v6191 = vunpack.c.0.s8 %v6190
        %v6192 = vlaneseq
        %v6193 = vshrl.u32 %v6192, 7
        %v6194 = vsub.s32 %v6191, %v6193
        %v6195 = vrot.slane %v6179, %v6194
        %v6197 = vunpack.c.l.s4 1966171168
        %v6198 = vunpack.c.0.s8 %v6197
        %v6199 = vlaneseq
        %v6200 = vshrl.u32 %v6199, 7
        %v6201 = vsub.s32 %v6198, %v6200
        %v6202 = vrot.slane %v6180, %v6201
        %v6204 = vunpack.c.l.s4 1966171168
        %v6205 = vunpack.c.0.s8 %v6204
        %v6206 = vlaneseq
        %v6207 = vshrl.u32 %v6206, 7
        %v6208 = vsub.s32 %v6205, %v6207
        %v6209 = vrot.slane %v6181, %v6208
        %v6210 = vcombine.low %v6188, %v6195
        %v6211 = vcombine.low %v6202, %v6209
        %v6213 = vunpack.c.l.s4 1966171168
        %v6214 = vunpack.c.0.s8 %v6213
        %v6215 = vlaneseq
        %v6216 = vshrl.u32 %v6215, 7
        %v6217 = vsub.s32 %v6214, %v6216
        %v6218 = vrot.slane %v6210, %v6217
        %v6220 = vunpack.c.l.s4 1966171168
        %v6221 = vunpack.c.0.s8 %v6220
        %v6222 = vlaneseq
        %v6223 = vshrl.u32 %v6222, 7
        %v6224 = vsub.s32 %v6221, %v6223
        %v6225 = vrot.slane %v6211, %v6224
        %v6226 = vcombine.low %v6218, %v6225
        %v6227 = vcombine.low %v4063, %v4067
        %v6228 = vcombine.low %v4071, %v4075
        %v6229 = vcombine.low %v4079, %v4083
        %v6230 = vcombine.low %v4087, %v4091
        %v6232 = vunpack.c.l.s4 1966171168
        %v6233 = vunpack.c.0.s8 %v6232
        %v6234 = vlaneseq
        %v6235 = vshrl.u32 %v6234, 7
        %v6236 = vsub.s32 %v6233, %v6235
        %v6237 = vrot.slane %v6227, %v6236
        %v6239 = vunpack.c.l.s4 1966171168
        %v6240 = vunpack.c.0.s8 %v6239
        %v6241 = vlaneseq
        %v6242 = vshrl.u32 %v6241, 7
        %v6243 = vsub.s32 %v6240, %v6242
        %v6244 = vrot.slane %v6228, %v6243
        %v6246 = vunpack.c.l.s4 1966171168
        %v6247 = vunpack.c.0.s8 %v6246
        %v6248 = vlaneseq
        %v6249 = vshrl.u32 %v6248, 7
        %v6250 = vsub.s32 %v6247, %v6249
        %v6251 = vrot.slane %v6229, %v6250
        %v6253 = vunpack.c.l.s4 1966171168
        %v6254 = vunpack.c.0.s8 %v6253
        %v6255 = vlaneseq
        %v6256 = vshrl.u32 %v6255, 7
        %v6257 = vsub.s32 %v6254, %v6256
        %v6258 = vrot.slane %v6230, %v6257
        %v6259 = vcombine.low %v6237, %v6244
        %v6260 = vcombine.low %v6251, %v6258
        %v6262 = vunpack.c.l.s4 1966171168
        %v6263 = vunpack.c.0.s8 %v6262
        %v6264 = vlaneseq
        %v6265 = vshrl.u32 %v6264, 7
        %v6266 = vsub.s32 %v6263, %v6265
        %v6267 = vrot.slane %v6259, %v6266
        %v6269 = vunpack.c.l.s4 1966171168
        %v6270 = vunpack.c.0.s8 %v6269
        %v6271 = vlaneseq
        %v6272 = vshrl.u32 %v6271, 7
        %v6273 = vsub.s32 %v6270, %v6272
        %v6274 = vrot.slane %v6260, %v6273
        %v6275 = vcombine.low %v6267, %v6274
        %v6276 = vcombine.low %v4095, %v4099
        %v6277 = vcombine.low %v4103, %v4107
        %v6278 = vcombine.low %v4111, %v4115
        %v6279 = vcombine.low %v4119, %v4123
        %v6281 = vunpack.c.l.s4 1966171168
        %v6282 = vunpack.c.0.s8 %v6281
        %v6283 = vlaneseq
        %v6284 = vshrl.u32 %v6283, 7
        %v6285 = vsub.s32 %v6282, %v6284
        %v6286 = vrot.slane %v6276, %v6285
        %v6288 = vunpack.c.l.s4 1966171168
        %v6289 = vunpack.c.0.s8 %v6288
        %v6290 = vlaneseq
        %v6291 = vshrl.u32 %v6290, 7
        %v6292 = vsub.s32 %v6289, %v6291
        %v6293 = vrot.slane %v6277, %v6292
        %v6295 = vunpack.c.l.s4 1966171168
        %v6296 = vunpack.c.0.s8 %v6295
        %v6297 = vlaneseq
        %v6298 = vshrl.u32 %v6297, 7
        %v6299 = vsub.s32 %v6296, %v6298
        %v6300 = vrot.slane %v6278, %v6299
        %v6302 = vunpack.c.l.s4 1966171168
        %v6303 = vunpack.c.0.s8 %v6302
        %v6304 = vlaneseq
        %v6305 = vshrl.u32 %v6304, 7
        %v6306 = vsub.s32 %v6303, %v6305
        %v6307 = vrot.slane %v6279, %v6306
        %v6308 = vcombine.low %v6286, %v6293
        %v6309 = vcombine.low %v6300, %v6307
        %v6311 = vunpack.c.l.s4 1966171168
        %v6312 = vunpack.c.0.s8 %v6311
        %v6313 = vlaneseq
        %v6314 = vshrl.u32 %v6313, 7
        %v6315 = vsub.s32 %v6312, %v6314
        %v6316 = vrot.slane %v6308, %v6315
        %v6318 = vunpack.c.l.s4 1966171168
        %v6319 = vunpack.c.0.s8 %v6318
        %v6320 = vlaneseq
        %v6321 = vshrl.u32 %v6320, 7
        %v6322 = vsub.s32 %v6319, %v6321
        %v6323 = vrot.slane %v6309, %v6322
        %v6324 = vcombine.low %v6316, %v6323
        %v6325 = vcombine.low %v4127, %v4131
        %v6326 = vcombine.low %v4135, %v4139
        %v6327 = vcombine.low %v4143, %v4147
        %v6328 = vcombine.low %v4151, %v4155
        %v6330 = vunpack.c.l.s4 1966171168
        %v6331 = vunpack.c.0.s8 %v6330
        %v6332 = vlaneseq
        %v6333 = vshrl.u32 %v6332, 7
        %v6334 = vsub.s32 %v6331, %v6333
        %v6335 = vrot.slane %v6325, %v6334
        %v6337 = vunpack.c.l.s4 1966171168
        %v6338 = vunpack.c.0.s8 %v6337
        %v6339 = vlaneseq
        %v6340 = vshrl.u32 %v6339, 7
        %v6341 = vsub.s32 %v6338, %v6340
        %v6342 = vrot.slane %v6326, %v6341
        %v6344 = vunpack.c.l.s4 1966171168
        %v6345 = vunpack.c.0.s8 %v6344
        %v6346 = vlaneseq
        %v6347 = vshrl.u32 %v6346, 7
        %v6348 = vsub.s32 %v6345, %v6347
        %v6349 = vrot.slane %v6327, %v6348
        %v6351 = vunpack.c.l.s4 1966171168
        %v6352 = vunpack.c.0.s8 %v6351
        %v6353 = vlaneseq
        %v6354 = vshrl.u32 %v6353, 7
        %v6355 = vsub.s32 %v6352, %v6354
        %v6356 = vrot.slane %v6328, %v6355
        %v6357 = vcombine.low %v6335, %v6342
        %v6358 = vcombine.low %v6349, %v6356
        %v6360 = vunpack.c.l.s4 1966171168
        %v6361 = vunpack.c.0.s8 %v6360
        %v6362 = vlaneseq
        %v6363 = vshrl.u32 %v6362, 7
        %v6364 = vsub.s32 %v6361, %v6363
        %v6365 = vrot.slane %v6357, %v6364
        %v6367 = vunpack.c.l.s4 1966171168
        %v6368 = vunpack.c.0.s8 %v6367
        %v6369 = vlaneseq
        %v6370 = vshrl.u32 %v6369, 7
        %v6371 = vsub.s32 %v6368, %v6370
        %v6372 = vrot.slane %v6358, %v6371
        %v6373 = vcombine.low %v6365, %v6372
        %v6374 = vcombine.low %v4159, %v4163
        %v6375 = vcombine.low %v4167, %v4171
        %v6376 = vcombine.low %v4175, %v4179
        %v6377 = vcombine.low %v4183, %v4187
        %v6379 = vunpack.c.l.s4 1966171168
        %v6380 = vunpack.c.0.s8 %v6379
        %v6381 = vlaneseq
        %v6382 = vshrl.u32 %v6381, 7
        %v6383 = vsub.s32 %v6380, %v6382
        %v6384 = vrot.slane %v6374, %v6383
        %v6386 = vunpack.c.l.s4 1966171168
        %v6387 = vunpack.c.0.s8 %v6386
        %v6388 = vlaneseq
        %v6389 = vshrl.u32 %v6388, 7
        %v6390 = vsub.s32 %v6387, %v6389
        %v6391 = vrot.slane %v6375, %v6390
        %v6393 = vunpack.c.l.s4 1966171168
        %v6394 = vunpack.c.0.s8 %v6393
        %v6395 = vlaneseq
        %v6396 = vshrl.u32 %v6395, 7
        %v6397 = vsub.s32 %v6394, %v6396
        %v6398 = vrot.slane %v6376, %v6397
        %v6400 = vunpack.c.l.s4 1966171168
        %v6401 = vunpack.c.0.s8 %v6400
        %v6402 = vlaneseq
        %v6403 = vshrl.u32 %v6402, 7
        %v6404 = vsub.s32 %v6401, %v6403
        %v6405 = vrot.slane %v6377, %v6404
        %v6406 = vcombine.low %v6384, %v6391
        %v6407 = vcombine.low %v6398, %v6405
        %v6409 = vunpack.c.l.s4 1966171168
        %v6410 = vunpack.c.0.s8 %v6409
        %v6411 = vlaneseq
        %v6412 = vshrl.u32 %v6411, 7
        %v6413 = vsub.s32 %v6410, %v6412
        %v6414 = vrot.slane %v6406, %v6413
        %v6416 = vunpack.c.l.s4 1966171168
        %v6417 = vunpack.c.0.s8 %v6416
        %v6418 = vlaneseq
        %v6419 = vshrl.u32 %v6418, 7
        %v6420 = vsub.s32 %v6417, %v6419
        %v6421 = vrot.slane %v6407, %v6420
        %v6422 = vcombine.low %v6414, %v6421
        %v6423 = vcombine.low %v4191, %v4195
        %v6424 = vcombine.low %v4199, %v4203
        %v6425 = vcombine.low %v4207, %v4211
        %v6426 = vcombine.low %v4215, %v4219
        %v6428 = vunpack.c.l.s4 1966171168
        %v6429 = vunpack.c.0.s8 %v6428
        %v6430 = vlaneseq
        %v6431 = vshrl.u32 %v6430, 7
        %v6432 = vsub.s32 %v6429, %v6431
        %v6433 = vrot.slane %v6423, %v6432
        %v6435 = vunpack.c.l.s4 1966171168
        %v6436 = vunpack.c.0.s8 %v6435
        %v6437 = vlaneseq
        %v6438 = vshrl.u32 %v6437, 7
        %v6439 = vsub.s32 %v6436, %v6438
        %v6440 = vrot.slane %v6424, %v6439
        %v6442 = vunpack.c.l.s4 1966171168
        %v6443 = vunpack.c.0.s8 %v6442
        %v6444 = vlaneseq
        %v6445 = vshrl.u32 %v6444, 7
        %v6446 = vsub.s32 %v6443, %v6445
        %v6447 = vrot.slane %v6425, %v6446
        %v6449 = vunpack.c.l.s4 1966171168
        %v6450 = vunpack.c.0.s8 %v6449
        %v6451 = vlaneseq
        %v6452 = vshrl.u32 %v6451, 7
        %v6453 = vsub.s32 %v6450, %v6452
        %v6454 = vrot.slane %v6426, %v6453
        %v6455 = vcombine.low %v6433, %v6440
        %v6456 = vcombine.low %v6447, %v6454
        %v6458 = vunpack.c.l.s4 1966171168
        %v6459 = vunpack.c.0.s8 %v6458
        %v6460 = vlaneseq
        %v6461 = vshrl.u32 %v6460, 7
        %v6462 = vsub.s32 %v6459, %v6461
        %v6463 = vrot.slane %v6455, %v6462
        %v6465 = vunpack.c.l.s4 1966171168
        %v6466 = vunpack.c.0.s8 %v6465
        %v6467 = vlaneseq
        %v6468 = vshrl.u32 %v6467, 7
        %v6469 = vsub.s32 %v6466, %v6468
        %v6470 = vrot.slane %v6456, %v6469
        %v6471 = vcombine.low %v6463, %v6470
        %v6472 = vcombine.low %v4223, %v4227
        %v6473 = vcombine.low %v4231, %v4235
        %v6474 = vcombine.low %v4239, %v4243
        %v6475 = vcombine.low %v4247, %v4251
        %v6477 = vunpack.c.l.s4 1966171168
        %v6478 = vunpack.c.0.s8 %v6477
        %v6479 = vlaneseq
        %v6480 = vshrl.u32 %v6479, 7
        %v6481 = vsub.s32 %v6478, %v6480
        %v6482 = vrot.slane %v6472, %v6481
        %v6484 = vunpack.c.l.s4 1966171168
        %v6485 = vunpack.c.0.s8 %v6484
        %v6486 = vlaneseq
        %v6487 = vshrl.u32 %v6486, 7
        %v6488 = vsub.s32 %v6485, %v6487
        %v6489 = vrot.slane %v6473, %v6488
        %v6491 = vunpack.c.l.s4 1966171168
        %v6492 = vunpack.c.0.s8 %v6491
        %v6493 = vlaneseq
        %v6494 = vshrl.u32 %v6493, 7
        %v6495 = vsub.s32 %v6492, %v6494
        %v6496 = vrot.slane %v6474, %v6495
        %v6498 = vunpack.c.l.s4 1966171168
        %v6499 = vunpack.c.0.s8 %v6498
        %v6500 = vlaneseq
        %v6501 = vshrl.u32 %v6500, 7
        %v6502 = vsub.s32 %v6499, %v6501
        %v6503 = vrot.slane %v6475, %v6502
        %v6504 = vcombine.low %v6482, %v6489
        %v6505 = vcombine.low %v6496, %v6503
        %v6507 = vunpack.c.l.s4 1966171168
        %v6508 = vunpack.c.0.s8 %v6507
        %v6509 = vlaneseq
        %v6510 = vshrl.u32 %v6509, 7
        %v6511 = vsub.s32 %v6508, %v6510
        %v6512 = vrot.slane %v6504, %v6511
        %v6514 = vunpack.c.l.s4 1966171168
        %v6515 = vunpack.c.0.s8 %v6514
        %v6516 = vlaneseq
        %v6517 = vshrl.u32 %v6516, 7
        %v6518 = vsub.s32 %v6515, %v6517
        %v6519 = vrot.slane %v6505, %v6518
        %v6520 = vcombine.low %v6512, %v6519
        %v6521 = vcombine.low %v4255, %v4259
        %v6522 = vcombine.low %v4263, %v4267
        %v6523 = vcombine.low %v4271, %v4275
        %v6524 = vcombine.low %v4279, %v4283
        %v6526 = vunpack.c.l.s4 1966171168
        %v6527 = vunpack.c.0.s8 %v6526
        %v6528 = vlaneseq
        %v6529 = vshrl.u32 %v6528, 7
        %v6530 = vsub.s32 %v6527, %v6529
        %v6531 = vrot.slane %v6521, %v6530
        %v6533 = vunpack.c.l.s4 1966171168
        %v6534 = vunpack.c.0.s8 %v6533
        %v6535 = vlaneseq
        %v6536 = vshrl.u32 %v6535, 7
        %v6537 = vsub.s32 %v6534, %v6536
        %v6538 = vrot.slane %v6522, %v6537
        %v6540 = vunpack.c.l.s4 1966171168
        %v6541 = vunpack.c.0.s8 %v6540
        %v6542 = vlaneseq
        %v6543 = vshrl.u32 %v6542, 7
        %v6544 = vsub.s32 %v6541, %v6543
        %v6545 = vrot.slane %v6523, %v6544
        %v6547 = vunpack.c.l.s4 1966171168
        %v6548 = vunpack.c.0.s8 %v6547
        %v6549 = vlaneseq
        %v6550 = vshrl.u32 %v6549, 7
        %v6551 = vsub.s32 %v6548, %v6550
        %v6552 = vrot.slane %v6524, %v6551
        %v6553 = vcombine.low %v6531, %v6538
        %v6554 = vcombine.low %v6545, %v6552
        %v6556 = vunpack.c.l.s4 1966171168
        %v6557 = vunpack.c.0.s8 %v6556
        %v6558 = vlaneseq
        %v6559 = vshrl.u32 %v6558, 7
        %v6560 = vsub.s32 %v6557, %v6559
        %v6561 = vrot.slane %v6553, %v6560
        %v6563 = vunpack.c.l.s4 1966171168
        %v6564 = vunpack.c.0.s8 %v6563
        %v6565 = vlaneseq
        %v6566 = vshrl.u32 %v6565, 7
        %v6567 = vsub.s32 %v6564, %v6566
        %v6568 = vrot.slane %v6554, %v6567
        %v6569 = vcombine.low %v6561, %v6568
        %v6570 = vcombine.low %v4287, %v4291
        %v6571 = vcombine.low %v4295, %v4299
        %v6572 = vcombine.low %v4303, %v4307
        %v6573 = vcombine.low %v4311, %v4315
        %v6575 = vunpack.c.l.s4 1966171168
        %v6576 = vunpack.c.0.s8 %v6575
        %v6577 = vlaneseq
        %v6578 = vshrl.u32 %v6577, 7
        %v6579 = vsub.s32 %v6576, %v6578
        %v6580 = vrot.slane %v6570, %v6579
        %v6582 = vunpack.c.l.s4 1966171168
        %v6583 = vunpack.c.0.s8 %v6582
        %v6584 = vlaneseq
        %v6585 = vshrl.u32 %v6584, 7
        %v6586 = vsub.s32 %v6583, %v6585
        %v6587 = vrot.slane %v6571, %v6586
        %v6589 = vunpack.c.l.s4 1966171168
        %v6590 = vunpack.c.0.s8 %v6589
        %v6591 = vlaneseq
        %v6592 = vshrl.u32 %v6591, 7
        %v6593 = vsub.s32 %v6590, %v6592
        %v6594 = vrot.slane %v6572, %v6593
        %v6596 = vunpack.c.l.s4 1966171168
        %v6597 = vunpack.c.0.s8 %v6596
        %v6598 = vlaneseq
        %v6599 = vshrl.u32 %v6598, 7
        %v6600 = vsub.s32 %v6597, %v6599
        %v6601 = vrot.slane %v6573, %v6600
        %v6602 = vcombine.low %v6580, %v6587
        %v6603 = vcombine.low %v6594, %v6601
        %v6605 = vunpack.c.l.s4 1966171168
        %v6606 = vunpack.c.0.s8 %v6605
        %v6607 = vlaneseq
        %v6608 = vshrl.u32 %v6607, 7
        %v6609 = vsub.s32 %v6606, %v6608
        %v6610 = vrot.slane %v6602, %v6609
        %v6612 = vunpack.c.l.s4 1966171168
        %v6613 = vunpack.c.0.s8 %v6612
        %v6614 = vlaneseq
        %v6615 = vshrl.u32 %v6614, 7
        %v6616 = vsub.s32 %v6613, %v6615
        %v6617 = vrot.slane %v6603, %v6616
        %v6618 = vcombine.low %v6610, %v6617
        %v6619 = vcombine.low %v4319, %v4323
        %v6620 = vcombine.low %v4327, %v4331
        %v6621 = vcombine.low %v4335, %v4339
        %v6622 = vcombine.low %v4343, %v4347
        %v6624 = vunpack.c.l.s4 1966171168
        %v6625 = vunpack.c.0.s8 %v6624
        %v6626 = vlaneseq
        %v6627 = vshrl.u32 %v6626, 7
        %v6628 = vsub.s32 %v6625, %v6627
        %v6629 = vrot.slane %v6619, %v6628
        %v6631 = vunpack.c.l.s4 1966171168
        %v6632 = vunpack.c.0.s8 %v6631
        %v6633 = vlaneseq
        %v6634 = vshrl.u32 %v6633, 7
        %v6635 = vsub.s32 %v6632, %v6634
        %v6636 = vrot.slane %v6620, %v6635
        %v6638 = vunpack.c.l.s4 1966171168
        %v6639 = vunpack.c.0.s8 %v6638
        %v6640 = vlaneseq
        %v6641 = vshrl.u32 %v6640, 7
        %v6642 = vsub.s32 %v6639, %v6641
        %v6643 = vrot.slane %v6621, %v6642
        %v6645 = vunpack.c.l.s4 1966171168
        %v6646 = vunpack.c.0.s8 %v6645
        %v6647 = vlaneseq
        %v6648 = vshrl.u32 %v6647, 7
        %v6649 = vsub.s32 %v6646, %v6648
        %v6650 = vrot.slane %v6622, %v6649
        %v6651 = vcombine.low %v6629, %v6636
        %v6652 = vcombine.low %v6643, %v6650
        %v6654 = vunpack.c.l.s4 1966171168
        %v6655 = vunpack.c.0.s8 %v6654
        %v6656 = vlaneseq
        %v6657 = vshrl.u32 %v6656, 7
        %v6658 = vsub.s32 %v6655, %v6657
        %v6659 = vrot.slane %v6651, %v6658
        %v6661 = vunpack.c.l.s4 1966171168
        %v6662 = vunpack.c.0.s8 %v6661
        %v6663 = vlaneseq
        %v6664 = vshrl.u32 %v6663, 7
        %v6665 = vsub.s32 %v6662, %v6664
        %v6666 = vrot.slane %v6652, %v6665
        %v6667 = vcombine.low %v6659, %v6666
        %v6668 = vcombine.low %v4351, %v4355
        %v6669 = vcombine.low %v4359, %v4363
        %v6670 = vcombine.low %v4367, %v4371
        %v6671 = vcombine.low %v4375, %v4379
        %v6673 = vunpack.c.l.s4 1966171168
        %v6674 = vunpack.c.0.s8 %v6673
        %v6675 = vlaneseq
        %v6676 = vshrl.u32 %v6675, 7
        %v6677 = vsub.s32 %v6674, %v6676
        %v6678 = vrot.slane %v6668, %v6677
        %v6680 = vunpack.c.l.s4 1966171168
        %v6681 = vunpack.c.0.s8 %v6680
        %v6682 = vlaneseq
        %v6683 = vshrl.u32 %v6682, 7
        %v6684 = vsub.s32 %v6681, %v6683
        %v6685 = vrot.slane %v6669, %v6684
        %v6687 = vunpack.c.l.s4 1966171168
        %v6688 = vunpack.c.0.s8 %v6687
        %v6689 = vlaneseq
        %v6690 = vshrl.u32 %v6689, 7
        %v6691 = vsub.s32 %v6688, %v6690
        %v6692 = vrot.slane %v6670, %v6691
        %v6694 = vunpack.c.l.s4 1966171168
        %v6695 = vunpack.c.0.s8 %v6694
        %v6696 = vlaneseq
        %v6697 = vshrl.u32 %v6696, 7
        %v6698 = vsub.s32 %v6695, %v6697
        %v6699 = vrot.slane %v6671, %v6698
        %v6700 = vcombine.low %v6678, %v6685
        %v6701 = vcombine.low %v6692, %v6699
        %v6703 = vunpack.c.l.s4 1966171168
        %v6704 = vunpack.c.0.s8 %v6703
        %v6705 = vlaneseq
        %v6706 = vshrl.u32 %v6705, 7
        %v6707 = vsub.s32 %v6704, %v6706
        %v6708 = vrot.slane %v6700, %v6707
        %v6710 = vunpack.c.l.s4 1966171168
        %v6711 = vunpack.c.0.s8 %v6710
        %v6712 = vlaneseq
        %v6713 = vshrl.u32 %v6712, 7
        %v6714 = vsub.s32 %v6711, %v6713
        %v6715 = vrot.slane %v6701, %v6714
        %v6716 = vcombine.low %v6708, %v6715
        %v6717 = vcombine.low %v4383, %v4387
        %v6718 = vcombine.low %v4391, %v4395
        %v6719 = vcombine.low %v4399, %v4403
        %v6720 = vcombine.low %v4407, %v4411
        %v6722 = vunpack.c.l.s4 1966171168
        %v6723 = vunpack.c.0.s8 %v6722
        %v6724 = vlaneseq
        %v6725 = vshrl.u32 %v6724, 7
        %v6726 = vsub.s32 %v6723, %v6725
        %v6727 = vrot.slane %v6717, %v6726
        %v6729 = vunpack.c.l.s4 1966171168
        %v6730 = vunpack.c.0.s8 %v6729
        %v6731 = vlaneseq
        %v6732 = vshrl.u32 %v6731, 7
        %v6733 = vsub.s32 %v6730, %v6732
        %v6734 = vrot.slane %v6718, %v6733
        %v6736 = vunpack.c.l.s4 1966171168
        %v6737 = vunpack.c.0.s8 %v6736
        %v6738 = vlaneseq
        %v6739 = vshrl.u32 %v6738, 7
        %v6740 = vsub.s32 %v6737, %v6739
        %v6741 = vrot.slane %v6719, %v6740
        %v6743 = vunpack.c.l.s4 1966171168
        %v6744 = vunpack.c.0.s8 %v6743
        %v6745 = vlaneseq
        %v6746 = vshrl.u32 %v6745, 7
        %v6747 = vsub.s32 %v6744, %v6746
        %v6748 = vrot.slane %v6720, %v6747
        %v6749 = vcombine.low %v6727, %v6734
        %v6750 = vcombine.low %v6741, %v6748
        %v6752 = vunpack.c.l.s4 1966171168
        %v6753 = vunpack.c.0.s8 %v6752
        %v6754 = vlaneseq
        %v6755 = vshrl.u32 %v6754, 7
        %v6756 = vsub.s32 %v6753, %v6755
        %v6757 = vrot.slane %v6749, %v6756
        %v6759 = vunpack.c.l.s4 1966171168
        %v6760 = vunpack.c.0.s8 %v6759
        %v6761 = vlaneseq
        %v6762 = vshrl.u32 %v6761, 7
        %v6763 = vsub.s32 %v6760, %v6762
        %v6764 = vrot.slane %v6750, %v6763
        %v6765 = vcombine.low %v6757, %v6764
        %v6766 = vcombine.low %v4415, %v4419
        %v6767 = vcombine.low %v4423, %v4427
        %v6768 = vcombine.low %v4431, %v4435
        %v6769 = vcombine.low %v4439, %v4443
        %v6771 = vunpack.c.l.s4 1966171168
        %v6772 = vunpack.c.0.s8 %v6771
        %v6773 = vlaneseq
        %v6774 = vshrl.u32 %v6773, 7
        %v6775 = vsub.s32 %v6772, %v6774
        %v6776 = vrot.slane %v6766, %v6775
        %v6778 = vunpack.c.l.s4 1966171168
        %v6779 = vunpack.c.0.s8 %v6778
        %v6780 = vlaneseq
        %v6781 = vshrl.u32 %v6780, 7
        %v6782 = vsub.s32 %v6779, %v6781
        %v6783 = vrot.slane %v6767, %v6782
        %v6785 = vunpack.c.l.s4 1966171168
        %v6786 = vunpack.c.0.s8 %v6785
        %v6787 = vlaneseq
        %v6788 = vshrl.u32 %v6787, 7
        %v6789 = vsub.s32 %v6786, %v6788
        %v6790 = vrot.slane %v6768, %v6789
        %v6792 = vunpack.c.l.s4 1966171168
        %v6793 = vunpack.c.0.s8 %v6792
        %v6794 = vlaneseq
        %v6795 = vshrl.u32 %v6794, 7
        %v6796 = vsub.s32 %v6793, %v6795
        %v6797 = vrot.slane %v6769, %v6796
        %v6798 = vcombine.low %v6776, %v6783
        %v6799 = vcombine.low %v6790, %v6797
        %v6801 = vunpack.c.l.s4 1966171168
        %v6802 = vunpack.c.0.s8 %v6801
        %v6803 = vlaneseq
        %v6804 = vshrl.u32 %v6803, 7
        %v6805 = vsub.s32 %v6802, %v6804
        %v6806 = vrot.slane %v6798, %v6805
        %v6808 = vunpack.c.l.s4 1966171168
        %v6809 = vunpack.c.0.s8 %v6808
        %v6810 = vlaneseq
        %v6811 = vshrl.u32 %v6810, 7
        %v6812 = vsub.s32 %v6809, %v6811
        %v6813 = vrot.slane %v6799, %v6812
        %v6814 = vcombine.low %v6806, %v6813
        %v6815 = vcombine.low %v4447, %v4451
        %v6816 = vcombine.low %v4455, %v4459
        %v6817 = vcombine.low %v4463, %v4467
        %v6818 = vcombine.low %v4471, %v4475
        %v6820 = vunpack.c.l.s4 1966171168
        %v6821 = vunpack.c.0.s8 %v6820
        %v6822 = vlaneseq
        %v6823 = vshrl.u32 %v6822, 7
        %v6824 = vsub.s32 %v6821, %v6823
        %v6825 = vrot.slane %v6815, %v6824
        %v6827 = vunpack.c.l.s4 1966171168
        %v6828 = vunpack.c.0.s8 %v6827
        %v6829 = vlaneseq
        %v6830 = vshrl.u32 %v6829, 7
        %v6831 = vsub.s32 %v6828, %v6830
        %v6832 = vrot.slane %v6816, %v6831
        %v6834 = vunpack.c.l.s4 1966171168
        %v6835 = vunpack.c.0.s8 %v6834
        %v6836 = vlaneseq
        %v6837 = vshrl.u32 %v6836, 7
        %v6838 = vsub.s32 %v6835, %v6837
        %v6839 = vrot.slane %v6817, %v6838
        %v6841 = vunpack.c.l.s4 1966171168
        %v6842 = vunpack.c.0.s8 %v6841
        %v6843 = vlaneseq
        %v6844 = vshrl.u32 %v6843, 7
        %v6845 = vsub.s32 %v6842, %v6844
        %v6846 = vrot.slane %v6818, %v6845
        %v6847 = vcombine.low %v6825, %v6832
        %v6848 = vcombine.low %v6839, %v6846
        %v6850 = vunpack.c.l.s4 1966171168
        %v6851 = vunpack.c.0.s8 %v6850
        %v6852 = vlaneseq
        %v6853 = vshrl.u32 %v6852, 7
        %v6854 = vsub.s32 %v6851, %v6853
        %v6855 = vrot.slane %v6847, %v6854
        %v6857 = vunpack.c.l.s4 1966171168
        %v6858 = vunpack.c.0.s8 %v6857
        %v6859 = vlaneseq
        %v6860 = vshrl.u32 %v6859, 7
        %v6861 = vsub.s32 %v6858, %v6860
        %v6862 = vrot.slane %v6848, %v6861
        %v6863 = vcombine.low %v6855, %v6862
        %v6864 = vcombine.low %v4479, %v4483
        %v6865 = vcombine.low %v4487, %v4491
        %v6866 = vcombine.low %v4495, %v4499
        %v6867 = vcombine.low %v4503, %v4507
        %v6869 = vunpack.c.l.s4 1966171168
        %v6870 = vunpack.c.0.s8 %v6869
        %v6871 = vlaneseq
        %v6872 = vshrl.u32 %v6871, 7
        %v6873 = vsub.s32 %v6870, %v6872
        %v6874 = vrot.slane %v6864, %v6873
        %v6876 = vunpack.c.l.s4 1966171168
        %v6877 = vunpack.c.0.s8 %v6876
        %v6878 = vlaneseq
        %v6879 = vshrl.u32 %v6878, 7
        %v6880 = vsub.s32 %v6877, %v6879
        %v6881 = vrot.slane %v6865, %v6880
        %v6883 = vunpack.c.l.s4 1966171168
        %v6884 = vunpack.c.0.s8 %v6883
        %v6885 = vlaneseq
        %v6886 = vshrl.u32 %v6885, 7
        %v6887 = vsub.s32 %v6884, %v6886
        %v6888 = vrot.slane %v6866, %v6887
        %v6890 = vunpack.c.l.s4 1966171168
        %v6891 = vunpack.c.0.s8 %v6890
        %v6892 = vlaneseq
        %v6893 = vshrl.u32 %v6892, 7
        %v6894 = vsub.s32 %v6891, %v6893
        %v6895 = vrot.slane %v6867, %v6894
        %v6896 = vcombine.low %v6874, %v6881
        %v6897 = vcombine.low %v6888, %v6895
        %v6899 = vunpack.c.l.s4 1966171168
        %v6900 = vunpack.c.0.s8 %v6899
        %v6901 = vlaneseq
        %v6902 = vshrl.u32 %v6901, 7
        %v6903 = vsub.s32 %v6900, %v6902
        %v6904 = vrot.slane %v6896, %v6903
        %v6906 = vunpack.c.l.s4 1966171168
        %v6907 = vunpack.c.0.s8 %v6906
        %v6908 = vlaneseq
        %v6909 = vshrl.u32 %v6908, 7
        %v6910 = vsub.s32 %v6907, %v6909
        %v6911 = vrot.slane %v6897, %v6910
        %v6912 = vcombine.low %v6904, %v6911
        %v6913 = vcombine.low %v4511, %v4515
        %v6914 = vcombine.low %v4519, %v4523
        %v6915 = vcombine.low %v4527, %v4531
        %v6916 = vcombine.low %v4535, %v4539
        %v6918 = vunpack.c.l.s4 1966171168
        %v6919 = vunpack.c.0.s8 %v6918
        %v6920 = vlaneseq
        %v6921 = vshrl.u32 %v6920, 7
        %v6922 = vsub.s32 %v6919, %v6921
        %v6923 = vrot.slane %v6913, %v6922
        %v6925 = vunpack.c.l.s4 1966171168
        %v6926 = vunpack.c.0.s8 %v6925
        %v6927 = vlaneseq
        %v6928 = vshrl.u32 %v6927, 7
        %v6929 = vsub.s32 %v6926, %v6928
        %v6930 = vrot.slane %v6914, %v6929
        %v6932 = vunpack.c.l.s4 1966171168
        %v6933 = vunpack.c.0.s8 %v6932
        %v6934 = vlaneseq
        %v6935 = vshrl.u32 %v6934, 7
        %v6936 = vsub.s32 %v6933, %v6935
        %v6937 = vrot.slane %v6915, %v6936
        %v6939 = vunpack.c.l.s4 1966171168
        %v6940 = vunpack.c.0.s8 %v6939
        %v6941 = vlaneseq
        %v6942 = vshrl.u32 %v6941, 7
        %v6943 = vsub.s32 %v6940, %v6942
        %v6944 = vrot.slane %v6916, %v6943
        %v6945 = vcombine.low %v6923, %v6930
        %v6946 = vcombine.low %v6937, %v6944
        %v6948 = vunpack.c.l.s4 1966171168
        %v6949 = vunpack.c.0.s8 %v6948
        %v6950 = vlaneseq
        %v6951 = vshrl.u32 %v6950, 7
        %v6952 = vsub.s32 %v6949, %v6951
        %v6953 = vrot.slane %v6945, %v6952
        %v6955 = vunpack.c.l.s4 1966171168
        %v6956 = vunpack.c.0.s8 %v6955
        %v6957 = vlaneseq
        %v6958 = vshrl.u32 %v6957, 7
        %v6959 = vsub.s32 %v6956, %v6958
        %v6960 = vrot.slane %v6946, %v6959
        %v6961 = vcombine.low %v6953, %v6960
        %v6962 = vcombine.low %v4543, %v4547
        %v6963 = vcombine.low %v4551, %v4555
        %v6964 = vcombine.low %v4559, %v4563
        %v6965 = vcombine.low %v4567, %v4571
        %v6967 = vunpack.c.l.s4 1966171168
        %v6968 = vunpack.c.0.s8 %v6967
        %v6969 = vlaneseq
        %v6970 = vshrl.u32 %v6969, 7
        %v6971 = vsub.s32 %v6968, %v6970
        %v6972 = vrot.slane %v6962, %v6971
        %v6974 = vunpack.c.l.s4 1966171168
        %v6975 = vunpack.c.0.s8 %v6974
        %v6976 = vlaneseq
        %v6977 = vshrl.u32 %v6976, 7
        %v6978 = vsub.s32 %v6975, %v6977
        %v6979 = vrot.slane %v6963, %v6978
        %v6981 = vunpack.c.l.s4 1966171168
        %v6982 = vunpack.c.0.s8 %v6981
        %v6983 = vlaneseq
        %v6984 = vshrl.u32 %v6983, 7
        %v6985 = vsub.s32 %v6982, %v6984
        %v6986 = vrot.slane %v6964, %v6985
        %v6988 = vunpack.c.l.s4 1966171168
        %v6989 = vunpack.c.0.s8 %v6988
        %v6990 = vlaneseq
        %v6991 = vshrl.u32 %v6990, 7
        %v6992 = vsub.s32 %v6989, %v6991
        %v6993 = vrot.slane %v6965, %v6992
        %v6994 = vcombine.low %v6972, %v6979
        %v6995 = vcombine.low %v6986, %v6993
        %v6997 = vunpack.c.l.s4 1966171168
        %v6998 = vunpack.c.0.s8 %v6997
        %v6999 = vlaneseq
        %v7000 = vshrl.u32 %v6999, 7
        %v7001 = vsub.s32 %v6998, %v7000
        %v7002 = vrot.slane %v6994, %v7001
        %v7004 = vunpack.c.l.s4 1966171168
        %v7005 = vunpack.c.0.s8 %v7004
        %v7006 = vlaneseq
        %v7007 = vshrl.u32 %v7006, 7
        %v7008 = vsub.s32 %v7005, %v7007
        %v7009 = vrot.slane %v6995, %v7008
        %v7010 = vcombine.low %v7002, %v7009
        %v7011 = vcombine.low %v4575, %v4579
        %v7012 = vcombine.low %v4583, %v4587
        %v7013 = vcombine.low %v4591, %v4595
        %v7014 = vcombine.low %v4599, %v4603
        %v7016 = vunpack.c.l.s4 1966171168
        %v7017 = vunpack.c.0.s8 %v7016
        %v7018 = vlaneseq
        %v7019 = vshrl.u32 %v7018, 7
        %v7020 = vsub.s32 %v7017, %v7019
        %v7021 = vrot.slane %v7011, %v7020
        %v7023 = vunpack.c.l.s4 1966171168
        %v7024 = vunpack.c.0.s8 %v7023
        %v7025 = vlaneseq
        %v7026 = vshrl.u32 %v7025, 7
        %v7027 = vsub.s32 %v7024, %v7026
        %v7028 = vrot.slane %v7012, %v7027
        %v7030 = vunpack.c.l.s4 1966171168
        %v7031 = vunpack.c.0.s8 %v7030
        %v7032 = vlaneseq
        %v7033 = vshrl.u32 %v7032, 7
        %v7034 = vsub.s32 %v7031, %v7033
        %v7035 = vrot.slane %v7013, %v7034
        %v7037 = vunpack.c.l.s4 1966171168
        %v7038 = vunpack.c.0.s8 %v7037
        %v7039 = vlaneseq
        %v7040 = vshrl.u32 %v7039, 7
        %v7041 = vsub.s32 %v7038, %v7040
        %v7042 = vrot.slane %v7014, %v7041
        %v7043 = vcombine.low %v7021, %v7028
        %v7044 = vcombine.low %v7035, %v7042
        %v7046 = vunpack.c.l.s4 1966171168
        %v7047 = vunpack.c.0.s8 %v7046
        %v7048 = vlaneseq
        %v7049 = vshrl.u32 %v7048, 7
        %v7050 = vsub.s32 %v7047, %v7049
        %v7051 = vrot.slane %v7043, %v7050
        %v7053 = vunpack.c.l.s4 1966171168
        %v7054 = vunpack.c.0.s8 %v7053
        %v7055 = vlaneseq
        %v7056 = vshrl.u32 %v7055, 7
        %v7057 = vsub.s32 %v7054, %v7056
        %v7058 = vrot.slane %v7044, %v7057
        %v7059 = vcombine.low %v7051, %v7058
        %v7060 = vcombine.low %v4607, %v4611
        %v7061 = vcombine.low %v4615, %v4619
        %v7062 = vcombine.low %v4623, %v4627
        %v7063 = vcombine.low %v4631, %v4635
        %v7065 = vunpack.c.l.s4 1966171168
        %v7066 = vunpack.c.0.s8 %v7065
        %v7067 = vlaneseq
        %v7068 = vshrl.u32 %v7067, 7
        %v7069 = vsub.s32 %v7066, %v7068
        %v7070 = vrot.slane %v7060, %v7069
        %v7072 = vunpack.c.l.s4 1966171168
        %v7073 = vunpack.c.0.s8 %v7072
        %v7074 = vlaneseq
        %v7075 = vshrl.u32 %v7074, 7
        %v7076 = vsub.s32 %v7073, %v7075
        %v7077 = vrot.slane %v7061, %v7076
        %v7079 = vunpack.c.l.s4 1966171168
        %v7080 = vunpack.c.0.s8 %v7079
        %v7081 = vlaneseq
        %v7082 = vshrl.u32 %v7081, 7
        %v7083 = vsub.s32 %v7080, %v7082
        %v7084 = vrot.slane %v7062, %v7083
        %v7086 = vunpack.c.l.s4 1966171168
        %v7087 = vunpack.c.0.s8 %v7086
        %v7088 = vlaneseq
        %v7089 = vshrl.u32 %v7088, 7
        %v7090 = vsub.s32 %v7087, %v7089
        %v7091 = vrot.slane %v7063, %v7090
        %v7092 = vcombine.low %v7070, %v7077
        %v7093 = vcombine.low %v7084, %v7091
        %v7095 = vunpack.c.l.s4 1966171168
        %v7096 = vunpack.c.0.s8 %v7095
        %v7097 = vlaneseq
        %v7098 = vshrl.u32 %v7097, 7
        %v7099 = vsub.s32 %v7096, %v7098
        %v7100 = vrot.slane %v7092, %v7099
        %v7102 = vunpack.c.l.s4 1966171168
        %v7103 = vunpack.c.0.s8 %v7102
        %v7104 = vlaneseq
        %v7105 = vshrl.u32 %v7104, 7
        %v7106 = vsub.s32 %v7103, %v7105
        %v7107 = vrot.slane %v7093, %v7106
        %v7108 = vcombine.low %v7100, %v7107
        %v7109 = vcombine.low %v4639, %v4643
        %v7110 = vcombine.low %v4647, %v4651
        %v7111 = vcombine.low %v4655, %v4659
        %v7112 = vcombine.low %v4663, %v4667
        %v7114 = vunpack.c.l.s4 1966171168
        %v7115 = vunpack.c.0.s8 %v7114
        %v7116 = vlaneseq
        %v7117 = vshrl.u32 %v7116, 7
        %v7118 = vsub.s32 %v7115, %v7117
        %v7119 = vrot.slane %v7109, %v7118
        %v7121 = vunpack.c.l.s4 1966171168
        %v7122 = vunpack.c.0.s8 %v7121
        %v7123 = vlaneseq
        %v7124 = vshrl.u32 %v7123, 7
        %v7125 = vsub.s32 %v7122, %v7124
        %v7126 = vrot.slane %v7110, %v7125
        %v7128 = vunpack.c.l.s4 1966171168
        %v7129 = vunpack.c.0.s8 %v7128
        %v7130 = vlaneseq
        %v7131 = vshrl.u32 %v7130, 7
        %v7132 = vsub.s32 %v7129, %v7131
        %v7133 = vrot.slane %v7111, %v7132
        %v7135 = vunpack.c.l.s4 1966171168
        %v7136 = vunpack.c.0.s8 %v7135
        %v7137 = vlaneseq
        %v7138 = vshrl.u32 %v7137, 7
        %v7139 = vsub.s32 %v7136, %v7138
        %v7140 = vrot.slane %v7112, %v7139
        %v7141 = vcombine.low %v7119, %v7126
        %v7142 = vcombine.low %v7133, %v7140
        %v7144 = vunpack.c.l.s4 1966171168
        %v7145 = vunpack.c.0.s8 %v7144
        %v7146 = vlaneseq
        %v7147 = vshrl.u32 %v7146, 7
        %v7148 = vsub.s32 %v7145, %v7147
        %v7149 = vrot.slane %v7141, %v7148
        %v7151 = vunpack.c.l.s4 1966171168
        %v7152 = vunpack.c.0.s8 %v7151
        %v7153 = vlaneseq
        %v7154 = vshrl.u32 %v7153, 7
        %v7155 = vsub.s32 %v7152, %v7154
        %v7156 = vrot.slane %v7142, %v7155
        %v7157 = vcombine.low %v7149, %v7156
        %v7158 = vcombine.low %v4671, %v4675
        %v7159 = vcombine.low %v4679, %v4683
        %v7160 = vcombine.low %v4687, %v4691
        %v7161 = vcombine.low %v4695, %v4699
        %v7163 = vunpack.c.l.s4 1966171168
        %v7164 = vunpack.c.0.s8 %v7163
        %v7165 = vlaneseq
        %v7166 = vshrl.u32 %v7165, 7
        %v7167 = vsub.s32 %v7164, %v7166
        %v7168 = vrot.slane %v7158, %v7167
        %v7170 = vunpack.c.l.s4 1966171168
        %v7171 = vunpack.c.0.s8 %v7170
        %v7172 = vlaneseq
        %v7173 = vshrl.u32 %v7172, 7
        %v7174 = vsub.s32 %v7171, %v7173
        %v7175 = vrot.slane %v7159, %v7174
        %v7177 = vunpack.c.l.s4 1966171168
        %v7178 = vunpack.c.0.s8 %v7177
        %v7179 = vlaneseq
        %v7180 = vshrl.u32 %v7179, 7
        %v7181 = vsub.s32 %v7178, %v7180
        %v7182 = vrot.slane %v7160, %v7181
        %v7184 = vunpack.c.l.s4 1966171168
        %v7185 = vunpack.c.0.s8 %v7184
        %v7186 = vlaneseq
        %v7187 = vshrl.u32 %v7186, 7
        %v7188 = vsub.s32 %v7185, %v7187
        %v7189 = vrot.slane %v7161, %v7188
        %v7190 = vcombine.low %v7168, %v7175
        %v7191 = vcombine.low %v7182, %v7189
        %v7193 = vunpack.c.l.s4 1966171168
        %v7194 = vunpack.c.0.s8 %v7193
        %v7195 = vlaneseq
        %v7196 = vshrl.u32 %v7195, 7
        %v7197 = vsub.s32 %v7194, %v7196
        %v7198 = vrot.slane %v7190, %v7197
        %v7200 = vunpack.c.l.s4 1966171168
        %v7201 = vunpack.c.0.s8 %v7200
        %v7202 = vlaneseq
        %v7203 = vshrl.u32 %v7202, 7
        %v7204 = vsub.s32 %v7201, %v7203
        %v7205 = vrot.slane %v7191, %v7204
        %v7206 = vcombine.low %v7198, %v7205
        %v7207 = vcombine.low %v4703, %v4707
        %v7208 = vcombine.low %v4711, %v4715
        %v7209 = vcombine.low %v4719, %v4723
        %v7210 = vcombine.low %v4727, %v4731
        %v7212 = vunpack.c.l.s4 1966171168
        %v7213 = vunpack.c.0.s8 %v7212
        %v7214 = vlaneseq
        %v7215 = vshrl.u32 %v7214, 7
        %v7216 = vsub.s32 %v7213, %v7215
        %v7217 = vrot.slane %v7207, %v7216
        %v7219 = vunpack.c.l.s4 1966171168
        %v7220 = vunpack.c.0.s8 %v7219
        %v7221 = vlaneseq
        %v7222 = vshrl.u32 %v7221, 7
        %v7223 = vsub.s32 %v7220, %v7222
        %v7224 = vrot.slane %v7208, %v7223
        %v7226 = vunpack.c.l.s4 1966171168
        %v7227 = vunpack.c.0.s8 %v7226
        %v7228 = vlaneseq
        %v7229 = vshrl.u32 %v7228, 7
        %v7230 = vsub.s32 %v7227, %v7229
        %v7231 = vrot.slane %v7209, %v7230
        %v7233 = vunpack.c.l.s4 1966171168
        %v7234 = vunpack.c.0.s8 %v7233
        %v7235 = vlaneseq
        %v7236 = vshrl.u32 %v7235, 7
        %v7237 = vsub.s32 %v7234, %v7236
        %v7238 = vrot.slane %v7210, %v7237
        %v7239 = vcombine.low %v7217, %v7224
        %v7240 = vcombine.low %v7231, %v7238
        %v7242 = vunpack.c.l.s4 1966171168
        %v7243 = vunpack.c.0.s8 %v7242
        %v7244 = vlaneseq
        %v7245 = vshrl.u32 %v7244, 7
        %v7246 = vsub.s32 %v7243, %v7245
        %v7247 = vrot.slane %v7239, %v7246
        %v7249 = vunpack.c.l.s4 1966171168
        %v7250 = vunpack.c.0.s8 %v7249
        %v7251 = vlaneseq
        %v7252 = vshrl.u32 %v7251, 7
        %v7253 = vsub.s32 %v7250, %v7252
        %v7254 = vrot.slane %v7240, %v7253
        %v7255 = vcombine.low %v7247, %v7254
        %v7256 = vcombine.low %v4735, %v4739
        %v7257 = vcombine.low %v4743, %v4747
        %v7258 = vcombine.low %v4751, %v4755
        %v7259 = vcombine.low %v4759, %v4763
        %v7261 = vunpack.c.l.s4 1966171168
        %v7262 = vunpack.c.0.s8 %v7261
        %v7263 = vlaneseq
        %v7264 = vshrl.u32 %v7263, 7
        %v7265 = vsub.s32 %v7262, %v7264
        %v7266 = vrot.slane %v7256, %v7265
        %v7268 = vunpack.c.l.s4 1966171168
        %v7269 = vunpack.c.0.s8 %v7268
        %v7270 = vlaneseq
        %v7271 = vshrl.u32 %v7270, 7
        %v7272 = vsub.s32 %v7269, %v7271
        %v7273 = vrot.slane %v7257, %v7272
        %v7275 = vunpack.c.l.s4 1966171168
        %v7276 = vunpack.c.0.s8 %v7275
        %v7277 = vlaneseq
        %v7278 = vshrl.u32 %v7277, 7
        %v7279 = vsub.s32 %v7276, %v7278
        %v7280 = vrot.slane %v7258, %v7279
        %v7282 = vunpack.c.l.s4 1966171168
        %v7283 = vunpack.c.0.s8 %v7282
        %v7284 = vlaneseq
        %v7285 = vshrl.u32 %v7284, 7
        %v7286 = vsub.s32 %v7283, %v7285
        %v7287 = vrot.slane %v7259, %v7286
        %v7288 = vcombine.low %v7266, %v7273
        %v7289 = vcombine.low %v7280, %v7287
        %v7291 = vunpack.c.l.s4 1966171168
        %v7292 = vunpack.c.0.s8 %v7291
        %v7293 = vlaneseq
        %v7294 = vshrl.u32 %v7293, 7
        %v7295 = vsub.s32 %v7292, %v7294
        %v7296 = vrot.slane %v7288, %v7295
        %v7298 = vunpack.c.l.s4 1966171168
        %v7299 = vunpack.c.0.s8 %v7298
        %v7300 = vlaneseq
        %v7301 = vshrl.u32 %v7300, 7
        %v7302 = vsub.s32 %v7299, %v7301
        %v7303 = vrot.slane %v7289, %v7302
        %v7304 = vcombine.low %v7296, %v7303
        %v7305 = vcombine.low %v4767, %v4771
        %v7306 = vcombine.low %v4775, %v4779
        %v7307 = vcombine.low %v4783, %v4787
        %v7308 = vcombine.low %v4791, %v4795
        %v7310 = vunpack.c.l.s4 1966171168
        %v7311 = vunpack.c.0.s8 %v7310
        %v7312 = vlaneseq
        %v7313 = vshrl.u32 %v7312, 7
        %v7314 = vsub.s32 %v7311, %v7313
        %v7315 = vrot.slane %v7305, %v7314
        %v7317 = vunpack.c.l.s4 1966171168
        %v7318 = vunpack.c.0.s8 %v7317
        %v7319 = vlaneseq
        %v7320 = vshrl.u32 %v7319, 7
        %v7321 = vsub.s32 %v7318, %v7320
        %v7322 = vrot.slane %v7306, %v7321
        %v7324 = vunpack.c.l.s4 1966171168
        %v7325 = vunpack.c.0.s8 %v7324
        %v7326 = vlaneseq
        %v7327 = vshrl.u32 %v7326, 7
        %v7328 = vsub.s32 %v7325, %v7327
        %v7329 = vrot.slane %v7307, %v7328
        %v7331 = vunpack.c.l.s4 1966171168
        %v7332 = vunpack.c.0.s8 %v7331
        %v7333 = vlaneseq
        %v7334 = vshrl.u32 %v7333, 7
        %v7335 = vsub.s32 %v7332, %v7334
        %v7336 = vrot.slane %v7308, %v7335
        %v7337 = vcombine.low %v7315, %v7322
        %v7338 = vcombine.low %v7329, %v7336
        %v7340 = vunpack.c.l.s4 1966171168
        %v7341 = vunpack.c.0.s8 %v7340
        %v7342 = vlaneseq
        %v7343 = vshrl.u32 %v7342, 7
        %v7344 = vsub.s32 %v7341, %v7343
        %v7345 = vrot.slane %v7337, %v7344
        %v7347 = vunpack.c.l.s4 1966171168
        %v7348 = vunpack.c.0.s8 %v7347
        %v7349 = vlaneseq
        %v7350 = vshrl.u32 %v7349, 7
        %v7351 = vsub.s32 %v7348, %v7350
        %v7352 = vrot.slane %v7338, %v7351
        %v7353 = vcombine.low %v7345, %v7352
        %v7354 = vcombine.low %v4799, %v4803
        %v7355 = vcombine.low %v4807, %v4811
        %v7356 = vcombine.low %v4815, %v4819
        %v7357 = vcombine.low %v4823, %v4827
        %v7359 = vunpack.c.l.s4 1966171168
        %v7360 = vunpack.c.0.s8 %v7359
        %v7361 = vlaneseq
        %v7362 = vshrl.u32 %v7361, 7
        %v7363 = vsub.s32 %v7360, %v7362
        %v7364 = vrot.slane %v7354, %v7363
        %v7366 = vunpack.c.l.s4 1966171168
        %v7367 = vunpack.c.0.s8 %v7366
        %v7368 = vlaneseq
        %v7369 = vshrl.u32 %v7368, 7
        %v7370 = vsub.s32 %v7367, %v7369
        %v7371 = vrot.slane %v7355, %v7370
        %v7373 = vunpack.c.l.s4 1966171168
        %v7374 = vunpack.c.0.s8 %v7373
        %v7375 = vlaneseq
        %v7376 = vshrl.u32 %v7375, 7
        %v7377 = vsub.s32 %v7374, %v7376
        %v7378 = vrot.slane %v7356, %v7377
        %v7380 = vunpack.c.l.s4 1966171168
        %v7381 = vunpack.c.0.s8 %v7380
        %v7382 = vlaneseq
        %v7383 = vshrl.u32 %v7382, 7
        %v7384 = vsub.s32 %v7381, %v7383
        %v7385 = vrot.slane %v7357, %v7384
        %v7386 = vcombine.low %v7364, %v7371
        %v7387 = vcombine.low %v7378, %v7385
        %v7389 = vunpack.c.l.s4 1966171168
        %v7390 = vunpack.c.0.s8 %v7389
        %v7391 = vlaneseq
        %v7392 = vshrl.u32 %v7391, 7
        %v7393 = vsub.s32 %v7390, %v7392
        %v7394 = vrot.slane %v7386, %v7393
        %v7396 = vunpack.c.l.s4 1966171168
        %v7397 = vunpack.c.0.s8 %v7396
        %v7398 = vlaneseq
        %v7399 = vshrl.u32 %v7398, 7
        %v7400 = vsub.s32 %v7397, %v7399
        %v7401 = vrot.slane %v7387, %v7400
        %v7402 = vcombine.low %v7394, %v7401
        %v7403 = vcombine.low %v4831, %v4835
        %v7404 = vcombine.low %v4839, %v4843
        %v7405 = vcombine.low %v4847, %v4851
        %v7406 = vcombine.low %v4855, %v4859
        %v7408 = vunpack.c.l.s4 1966171168
        %v7409 = vunpack.c.0.s8 %v7408
        %v7410 = vlaneseq
        %v7411 = vshrl.u32 %v7410, 7
        %v7412 = vsub.s32 %v7409, %v7411
        %v7413 = vrot.slane %v7403, %v7412
        %v7415 = vunpack.c.l.s4 1966171168
        %v7416 = vunpack.c.0.s8 %v7415
        %v7417 = vlaneseq
        %v7418 = vshrl.u32 %v7417, 7
        %v7419 = vsub.s32 %v7416, %v7418
        %v7420 = vrot.slane %v7404, %v7419
        %v7422 = vunpack.c.l.s4 1966171168
        %v7423 = vunpack.c.0.s8 %v7422
        %v7424 = vlaneseq
        %v7425 = vshrl.u32 %v7424, 7
        %v7426 = vsub.s32 %v7423, %v7425
        %v7427 = vrot.slane %v7405, %v7426
        %v7429 = vunpack.c.l.s4 1966171168
        %v7430 = vunpack.c.0.s8 %v7429
        %v7431 = vlaneseq
        %v7432 = vshrl.u32 %v7431, 7
        %v7433 = vsub.s32 %v7430, %v7432
        %v7434 = vrot.slane %v7406, %v7433
        %v7435 = vcombine.low %v7413, %v7420
        %v7436 = vcombine.low %v7427, %v7434
        %v7438 = vunpack.c.l.s4 1966171168
        %v7439 = vunpack.c.0.s8 %v7438
        %v7440 = vlaneseq
        %v7441 = vshrl.u32 %v7440, 7
        %v7442 = vsub.s32 %v7439, %v7441
        %v7443 = vrot.slane %v7435, %v7442
        %v7445 = vunpack.c.l.s4 1966171168
        %v7446 = vunpack.c.0.s8 %v7445
        %v7447 = vlaneseq
        %v7448 = vshrl.u32 %v7447, 7
        %v7449 = vsub.s32 %v7446, %v7448
        %v7450 = vrot.slane %v7436, %v7449
        %v7451 = vcombine.low %v7443, %v7450
        %v7452 = vcombine.low %v4863, %v4867
        %v7453 = vcombine.low %v4871, %v4875
        %v7454 = vcombine.low %v4879, %v4883
        %v7455 = vcombine.low %v4887, %v4891
        %v7457 = vunpack.c.l.s4 1966171168
        %v7458 = vunpack.c.0.s8 %v7457
        %v7459 = vlaneseq
        %v7460 = vshrl.u32 %v7459, 7
        %v7461 = vsub.s32 %v7458, %v7460
        %v7462 = vrot.slane %v7452, %v7461
        %v7464 = vunpack.c.l.s4 1966171168
        %v7465 = vunpack.c.0.s8 %v7464
        %v7466 = vlaneseq
        %v7467 = vshrl.u32 %v7466, 7
        %v7468 = vsub.s32 %v7465, %v7467
        %v7469 = vrot.slane %v7453, %v7468
        %v7471 = vunpack.c.l.s4 1966171168
        %v7472 = vunpack.c.0.s8 %v7471
        %v7473 = vlaneseq
        %v7474 = vshrl.u32 %v7473, 7
        %v7475 = vsub.s32 %v7472, %v7474
        %v7476 = vrot.slane %v7454, %v7475
        %v7478 = vunpack.c.l.s4 1966171168
        %v7479 = vunpack.c.0.s8 %v7478
        %v7480 = vlaneseq
        %v7481 = vshrl.u32 %v7480, 7
        %v7482 = vsub.s32 %v7479, %v7481
        %v7483 = vrot.slane %v7455, %v7482
        %v7484 = vcombine.low %v7462, %v7469
        %v7485 = vcombine.low %v7476, %v7483
        %v7487 = vunpack.c.l.s4 1966171168
        %v7488 = vunpack.c.0.s8 %v7487
        %v7489 = vlaneseq
        %v7490 = vshrl.u32 %v7489, 7
        %v7491 = vsub.s32 %v7488, %v7490
        %v7492 = vrot.slane %v7484, %v7491
        %v7494 = vunpack.c.l.s4 1966171168
        %v7495 = vunpack.c.0.s8 %v7494
        %v7496 = vlaneseq
        %v7497 = vshrl.u32 %v7496, 7
        %v7498 = vsub.s32 %v7495, %v7497
        %v7499 = vrot.slane %v7485, %v7498
        %v7500 = vcombine.low %v7492, %v7499
        %v7501 = vcombine.low %v4895, %v4899
        %v7502 = vcombine.low %v4903, %v4907
        %v7503 = vcombine.low %v4911, %v4915
        %v7504 = vcombine.low %v4919, %v4923
        %v7506 = vunpack.c.l.s4 1966171168
        %v7507 = vunpack.c.0.s8 %v7506
        %v7508 = vlaneseq
        %v7509 = vshrl.u32 %v7508, 7
        %v7510 = vsub.s32 %v7507, %v7509
        %v7511 = vrot.slane %v7501, %v7510
        %v7513 = vunpack.c.l.s4 1966171168
        %v7514 = vunpack.c.0.s8 %v7513
        %v7515 = vlaneseq
        %v7516 = vshrl.u32 %v7515, 7
        %v7517 = vsub.s32 %v7514, %v7516
        %v7518 = vrot.slane %v7502, %v7517
        %v7520 = vunpack.c.l.s4 1966171168
        %v7521 = vunpack.c.0.s8 %v7520
        %v7522 = vlaneseq
        %v7523 = vshrl.u32 %v7522, 7
        %v7524 = vsub.s32 %v7521, %v7523
        %v7525 = vrot.slane %v7503, %v7524
        %v7527 = vunpack.c.l.s4 1966171168
        %v7528 = vunpack.c.0.s8 %v7527
        %v7529 = vlaneseq
        %v7530 = vshrl.u32 %v7529, 7
        %v7531 = vsub.s32 %v7528, %v7530
        %v7532 = vrot.slane %v7504, %v7531
        %v7533 = vcombine.low %v7511, %v7518
        %v7534 = vcombine.low %v7525, %v7532
        %v7536 = vunpack.c.l.s4 1966171168
        %v7537 = vunpack.c.0.s8 %v7536
        %v7538 = vlaneseq
        %v7539 = vshrl.u32 %v7538, 7
        %v7540 = vsub.s32 %v7537, %v7539
        %v7541 = vrot.slane %v7533, %v7540
        %v7543 = vunpack.c.l.s4 1966171168
        %v7544 = vunpack.c.0.s8 %v7543
        %v7545 = vlaneseq
        %v7546 = vshrl.u32 %v7545, 7
        %v7547 = vsub.s32 %v7544, %v7546
        %v7548 = vrot.slane %v7534, %v7547
        %v7549 = vcombine.low %v7541, %v7548
        %v7550 = vcombine.low %v4927, %v4931
        %v7551 = vcombine.low %v4935, %v4939
        %v7552 = vcombine.low %v4943, %v4947
        %v7553 = vcombine.low %v4951, %v4955
        %v7555 = vunpack.c.l.s4 1966171168
        %v7556 = vunpack.c.0.s8 %v7555
        %v7557 = vlaneseq
        %v7558 = vshrl.u32 %v7557, 7
        %v7559 = vsub.s32 %v7556, %v7558
        %v7560 = vrot.slane %v7550, %v7559
        %v7562 = vunpack.c.l.s4 1966171168
        %v7563 = vunpack.c.0.s8 %v7562
        %v7564 = vlaneseq
        %v7565 = vshrl.u32 %v7564, 7
        %v7566 = vsub.s32 %v7563, %v7565
        %v7567 = vrot.slane %v7551, %v7566
        %v7569 = vunpack.c.l.s4 1966171168
        %v7570 = vunpack.c.0.s8 %v7569
        %v7571 = vlaneseq
        %v7572 = vshrl.u32 %v7571, 7
        %v7573 = vsub.s32 %v7570, %v7572
        %v7574 = vrot.slane %v7552, %v7573
        %v7576 = vunpack.c.l.s4 1966171168
        %v7577 = vunpack.c.0.s8 %v7576
        %v7578 = vlaneseq
        %v7579 = vshrl.u32 %v7578, 7
        %v7580 = vsub.s32 %v7577, %v7579
        %v7581 = vrot.slane %v7553, %v7580
        %v7582 = vcombine.low %v7560, %v7567
        %v7583 = vcombine.low %v7574, %v7581
        %v7585 = vunpack.c.l.s4 1966171168
        %v7586 = vunpack.c.0.s8 %v7585
        %v7587 = vlaneseq
        %v7588 = vshrl.u32 %v7587, 7
        %v7589 = vsub.s32 %v7586, %v7588
        %v7590 = vrot.slane %v7582, %v7589
        %v7592 = vunpack.c.l.s4 1966171168
        %v7593 = vunpack.c.0.s8 %v7592
        %v7594 = vlaneseq
        %v7595 = vshrl.u32 %v7594, 7
        %v7596 = vsub.s32 %v7593, %v7595
        %v7597 = vrot.slane %v7583, %v7596
        %v7598 = vcombine.low %v7590, %v7597
        %v7599 = vcombine.low %v4959, %v4963
        %v7600 = vcombine.low %v4967, %v4971
        %v7601 = vcombine.low %v4975, %v4979
        %v7602 = vcombine.low %v4983, %v4987
        %v7604 = vunpack.c.l.s4 1966171168
        %v7605 = vunpack.c.0.s8 %v7604
        %v7606 = vlaneseq
        %v7607 = vshrl.u32 %v7606, 7
        %v7608 = vsub.s32 %v7605, %v7607
        %v7609 = vrot.slane %v7599, %v7608
        %v7611 = vunpack.c.l.s4 1966171168
        %v7612 = vunpack.c.0.s8 %v7611
        %v7613 = vlaneseq
        %v7614 = vshrl.u32 %v7613, 7
        %v7615 = vsub.s32 %v7612, %v7614
        %v7616 = vrot.slane %v7600, %v7615
        %v7618 = vunpack.c.l.s4 1966171168
        %v7619 = vunpack.c.0.s8 %v7618
        %v7620 = vlaneseq
        %v7621 = vshrl.u32 %v7620, 7
        %v7622 = vsub.s32 %v7619, %v7621
        %v7623 = vrot.slane %v7601, %v7622
        %v7625 = vunpack.c.l.s4 1966171168
        %v7626 = vunpack.c.0.s8 %v7625
        %v7627 = vlaneseq
        %v7628 = vshrl.u32 %v7627, 7
        %v7629 = vsub.s32 %v7626, %v7628
        %v7630 = vrot.slane %v7602, %v7629
        %v7631 = vcombine.low %v7609, %v7616
        %v7632 = vcombine.low %v7623, %v7630
        %v7634 = vunpack.c.l.s4 1966171168
        %v7635 = vunpack.c.0.s8 %v7634
        %v7636 = vlaneseq
        %v7637 = vshrl.u32 %v7636, 7
        %v7638 = vsub.s32 %v7635, %v7637
        %v7639 = vrot.slane %v7631, %v7638
        %v7641 = vunpack.c.l.s4 1966171168
        %v7642 = vunpack.c.0.s8 %v7641
        %v7643 = vlaneseq
        %v7644 = vshrl.u32 %v7643, 7
        %v7645 = vsub.s32 %v7642, %v7644
        %v7646 = vrot.slane %v7632, %v7645
        %v7647 = vcombine.low %v7639, %v7646
        %v7648 = vcombine.low %v4991, %v4995
        %v7649 = vcombine.low %v4999, %v5003
        %v7650 = vcombine.low %v5007, %v5011
        %v7651 = vcombine.low %v5015, %v5019
        %v7653 = vunpack.c.l.s4 1966171168
        %v7654 = vunpack.c.0.s8 %v7653
        %v7655 = vlaneseq
        %v7656 = vshrl.u32 %v7655, 7
        %v7657 = vsub.s32 %v7654, %v7656
        %v7658 = vrot.slane %v7648, %v7657
        %v7660 = vunpack.c.l.s4 1966171168
        %v7661 = vunpack.c.0.s8 %v7660
        %v7662 = vlaneseq
        %v7663 = vshrl.u32 %v7662, 7
        %v7664 = vsub.s32 %v7661, %v7663
        %v7665 = vrot.slane %v7649, %v7664
        %v7667 = vunpack.c.l.s4 1966171168
        %v7668 = vunpack.c.0.s8 %v7667
        %v7669 = vlaneseq
        %v7670 = vshrl.u32 %v7669, 7
        %v7671 = vsub.s32 %v7668, %v7670
        %v7672 = vrot.slane %v7650, %v7671
        %v7674 = vunpack.c.l.s4 1966171168
        %v7675 = vunpack.c.0.s8 %v7674
        %v7676 = vlaneseq
        %v7677 = vshrl.u32 %v7676, 7
        %v7678 = vsub.s32 %v7675, %v7677
        %v7679 = vrot.slane %v7651, %v7678
        %v7680 = vcombine.low %v7658, %v7665
        %v7681 = vcombine.low %v7672, %v7679
        %v7683 = vunpack.c.l.s4 1966171168
        %v7684 = vunpack.c.0.s8 %v7683
        %v7685 = vlaneseq
        %v7686 = vshrl.u32 %v7685, 7
        %v7687 = vsub.s32 %v7684, %v7686
        %v7688 = vrot.slane %v7680, %v7687
        %v7690 = vunpack.c.l.s4 1966171168
        %v7691 = vunpack.c.0.s8 %v7690
        %v7692 = vlaneseq
        %v7693 = vshrl.u32 %v7692, 7
        %v7694 = vsub.s32 %v7691, %v7693
        %v7695 = vrot.slane %v7681, %v7694
        %v7696 = vcombine.low %v7688, %v7695
        %v7697 = vcombine.low %v5023, %v5027
        %v7698 = vcombine.low %v5031, %v5035
        %v7699 = vcombine.low %v5039, %v5043
        %v7700 = vcombine.low %v5047, %v5051
        %v7702 = vunpack.c.l.s4 1966171168
        %v7703 = vunpack.c.0.s8 %v7702
        %v7704 = vlaneseq
        %v7705 = vshrl.u32 %v7704, 7
        %v7706 = vsub.s32 %v7703, %v7705
        %v7707 = vrot.slane %v7697, %v7706
        %v7709 = vunpack.c.l.s4 1966171168
        %v7710 = vunpack.c.0.s8 %v7709
        %v7711 = vlaneseq
        %v7712 = vshrl.u32 %v7711, 7
        %v7713 = vsub.s32 %v7710, %v7712
        %v7714 = vrot.slane %v7698, %v7713
        %v7716 = vunpack.c.l.s4 1966171168
        %v7717 = vunpack.c.0.s8 %v7716
        %v7718 = vlaneseq
        %v7719 = vshrl.u32 %v7718, 7
        %v7720 = vsub.s32 %v7717, %v7719
        %v7721 = vrot.slane %v7699, %v7720
        %v7723 = vunpack.c.l.s4 1966171168
        %v7724 = vunpack.c.0.s8 %v7723
        %v7725 = vlaneseq
        %v7726 = vshrl.u32 %v7725, 7
        %v7727 = vsub.s32 %v7724, %v7726
        %v7728 = vrot.slane %v7700, %v7727
        %v7729 = vcombine.low %v7707, %v7714
        %v7730 = vcombine.low %v7721, %v7728
        %v7732 = vunpack.c.l.s4 1966171168
        %v7733 = vunpack.c.0.s8 %v7732
        %v7734 = vlaneseq
        %v7735 = vshrl.u32 %v7734, 7
        %v7736 = vsub.s32 %v7733, %v7735
        %v7737 = vrot.slane %v7729, %v7736
        %v7739 = vunpack.c.l.s4 1966171168
        %v7740 = vunpack.c.0.s8 %v7739
        %v7741 = vlaneseq
        %v7742 = vshrl.u32 %v7741, 7
        %v7743 = vsub.s32 %v7740, %v7742
        %v7744 = vrot.slane %v7730, %v7743
        %v7745 = vcombine.low %v7737, %v7744
        %v7746 = vcombine.low %v5055, %v5059
        %v7747 = vcombine.low %v5063, %v5067
        %v7748 = vcombine.low %v5071, %v5075
        %v7749 = vcombine.low %v5079, %v5083
        %v7751 = vunpack.c.l.s4 1966171168
        %v7752 = vunpack.c.0.s8 %v7751
        %v7753 = vlaneseq
        %v7754 = vshrl.u32 %v7753, 7
        %v7755 = vsub.s32 %v7752, %v7754
        %v7756 = vrot.slane %v7746, %v7755
        %v7758 = vunpack.c.l.s4 1966171168
        %v7759 = vunpack.c.0.s8 %v7758
        %v7760 = vlaneseq
        %v7761 = vshrl.u32 %v7760, 7
        %v7762 = vsub.s32 %v7759, %v7761
        %v7763 = vrot.slane %v7747, %v7762
        %v7765 = vunpack.c.l.s4 1966171168
        %v7766 = vunpack.c.0.s8 %v7765
        %v7767 = vlaneseq
        %v7768 = vshrl.u32 %v7767, 7
        %v7769 = vsub.s32 %v7766, %v7768
        %v7770 = vrot.slane %v7748, %v7769
        %v7772 = vunpack.c.l.s4 1966171168
        %v7773 = vunpack.c.0.s8 %v7772
        %v7774 = vlaneseq
        %v7775 = vshrl.u32 %v7774, 7
        %v7776 = vsub.s32 %v7773, %v7775
        %v7777 = vrot.slane %v7749, %v7776
        %v7778 = vcombine.low %v7756, %v7763
        %v7779 = vcombine.low %v7770, %v7777
        %v7781 = vunpack.c.l.s4 1966171168
        %v7782 = vunpack.c.0.s8 %v7781
        %v7783 = vlaneseq
        %v7784 = vshrl.u32 %v7783, 7
        %v7785 = vsub.s32 %v7782, %v7784
        %v7786 = vrot.slane %v7778, %v7785
        %v7788 = vunpack.c.l.s4 1966171168
        %v7789 = vunpack.c.0.s8 %v7788
        %v7790 = vlaneseq
        %v7791 = vshrl.u32 %v7790, 7
        %v7792 = vsub.s32 %v7789, %v7791
        %v7793 = vrot.slane %v7779, %v7792
        %v7794 = vcombine.low %v7786, %v7793
        %v7795 = vcombine.low %v5087, %v5091
        %v7796 = vcombine.low %v5095, %v5099
        %v7797 = vcombine.low %v5103, %v5107
        %v7798 = vcombine.low %v5111, %v5115
        %v7800 = vunpack.c.l.s4 1966171168
        %v7801 = vunpack.c.0.s8 %v7800
        %v7802 = vlaneseq
        %v7803 = vshrl.u32 %v7802, 7
        %v7804 = vsub.s32 %v7801, %v7803
        %v7805 = vrot.slane %v7795, %v7804
        %v7807 = vunpack.c.l.s4 1966171168
        %v7808 = vunpack.c.0.s8 %v7807
        %v7809 = vlaneseq
        %v7810 = vshrl.u32 %v7809, 7
        %v7811 = vsub.s32 %v7808, %v7810
        %v7812 = vrot.slane %v7796, %v7811
        %v7814 = vunpack.c.l.s4 1966171168
        %v7815 = vunpack.c.0.s8 %v7814
        %v7816 = vlaneseq
        %v7817 = vshrl.u32 %v7816, 7
        %v7818 = vsub.s32 %v7815, %v7817
        %v7819 = vrot.slane %v7797, %v7818
        %v7821 = vunpack.c.l.s4 1966171168
        %v7822 = vunpack.c.0.s8 %v7821
        %v7823 = vlaneseq
        %v7824 = vshrl.u32 %v7823, 7
        %v7825 = vsub.s32 %v7822, %v7824
        %v7826 = vrot.slane %v7798, %v7825
        %v7827 = vcombine.low %v7805, %v7812
        %v7828 = vcombine.low %v7819, %v7826
        %v7830 = vunpack.c.l.s4 1966171168
        %v7831 = vunpack.c.0.s8 %v7830
        %v7832 = vlaneseq
        %v7833 = vshrl.u32 %v7832, 7
        %v7834 = vsub.s32 %v7831, %v7833
        %v7835 = vrot.slane %v7827, %v7834
        %v7837 = vunpack.c.l.s4 1966171168
        %v7838 = vunpack.c.0.s8 %v7837
        %v7839 = vlaneseq
        %v7840 = vshrl.u32 %v7839, 7
        %v7841 = vsub.s32 %v7838, %v7840
        %v7842 = vrot.slane %v7828, %v7841
        %v7843 = vcombine.low %v7835, %v7842
        %v7844 = vcombine.low %v5119, %v5123
        %v7845 = vcombine.low %v5127, %v5131
        %v7846 = vcombine.low %v5135, %v5139
        %v7847 = vcombine.low %v5143, %v5147
        %v7849 = vunpack.c.l.s4 1966171168
        %v7850 = vunpack.c.0.s8 %v7849
        %v7851 = vlaneseq
        %v7852 = vshrl.u32 %v7851, 7
        %v7853 = vsub.s32 %v7850, %v7852
        %v7854 = vrot.slane %v7844, %v7853
        %v7856 = vunpack.c.l.s4 1966171168
        %v7857 = vunpack.c.0.s8 %v7856
        %v7858 = vlaneseq
        %v7859 = vshrl.u32 %v7858, 7
        %v7860 = vsub.s32 %v7857, %v7859
        %v7861 = vrot.slane %v7845, %v7860
        %v7863 = vunpack.c.l.s4 1966171168
        %v7864 = vunpack.c.0.s8 %v7863
        %v7865 = vlaneseq
        %v7866 = vshrl.u32 %v7865, 7
        %v7867 = vsub.s32 %v7864, %v7866
        %v7868 = vrot.slane %v7846, %v7867
        %v7870 = vunpack.c.l.s4 1966171168
        %v7871 = vunpack.c.0.s8 %v7870
        %v7872 = vlaneseq
        %v7873 = vshrl.u32 %v7872, 7
        %v7874 = vsub.s32 %v7871, %v7873
        %v7875 = vrot.slane %v7847, %v7874
        %v7876 = vcombine.low %v7854, %v7861
        %v7877 = vcombine.low %v7868, %v7875
        %v7879 = vunpack.c.l.s4 1966171168
        %v7880 = vunpack.c.0.s8 %v7879
        %v7881 = vlaneseq
        %v7882 = vshrl.u32 %v7881, 7
        %v7883 = vsub.s32 %v7880, %v7882
        %v7884 = vrot.slane %v7876, %v7883
        %v7886 = vunpack.c.l.s4 1966171168
        %v7887 = vunpack.c.0.s8 %v7886
        %v7888 = vlaneseq
        %v7889 = vshrl.u32 %v7888, 7
        %v7890 = vsub.s32 %v7887, %v7889
        %v7891 = vrot.slane %v7877, %v7890
        %v7892 = vcombine.low %v7884, %v7891
        %v7893 = vcombine.low %v5151, %v5155
        %v7894 = vcombine.low %v5159, %v5163
        %v7895 = vcombine.low %v5167, %v5171
        %v7896 = vcombine.low %v5175, %v5179
        %v7898 = vunpack.c.l.s4 1966171168
        %v7899 = vunpack.c.0.s8 %v7898
        %v7900 = vlaneseq
        %v7901 = vshrl.u32 %v7900, 7
        %v7902 = vsub.s32 %v7899, %v7901
        %v7903 = vrot.slane %v7893, %v7902
        %v7905 = vunpack.c.l.s4 1966171168
        %v7906 = vunpack.c.0.s8 %v7905
        %v7907 = vlaneseq
        %v7908 = vshrl.u32 %v7907, 7
        %v7909 = vsub.s32 %v7906, %v7908
        %v7910 = vrot.slane %v7894, %v7909
        %v7912 = vunpack.c.l.s4 1966171168
        %v7913 = vunpack.c.0.s8 %v7912
        %v7914 = vlaneseq
        %v7915 = vshrl.u32 %v7914, 7
        %v7916 = vsub.s32 %v7913, %v7915
        %v7917 = vrot.slane %v7895, %v7916
        %v7919 = vunpack.c.l.s4 1966171168
        %v7920 = vunpack.c.0.s8 %v7919
        %v7921 = vlaneseq
        %v7922 = vshrl.u32 %v7921, 7
        %v7923 = vsub.s32 %v7920, %v7922
        %v7924 = vrot.slane %v7896, %v7923
        %v7925 = vcombine.low %v7903, %v7910
        %v7926 = vcombine.low %v7917, %v7924
        %v7928 = vunpack.c.l.s4 1966171168
        %v7929 = vunpack.c.0.s8 %v7928
        %v7930 = vlaneseq
        %v7931 = vshrl.u32 %v7930, 7
        %v7932 = vsub.s32 %v7929, %v7931
        %v7933 = vrot.slane %v7925, %v7932
        %v7935 = vunpack.c.l.s4 1966171168
        %v7936 = vunpack.c.0.s8 %v7935
        %v7937 = vlaneseq
        %v7938 = vshrl.u32 %v7937, 7
        %v7939 = vsub.s32 %v7936, %v7938
        %v7940 = vrot.slane %v7926, %v7939
        %v7941 = vcombine.low %v7933, %v7940
        %v7942 = vcombine.low %v5183, %v5187
        %v7943 = vcombine.low %v5191, %v5195
        %v7944 = vcombine.low %v5199, %v5203
        %v7945 = vcombine.low %v5207, %v5211
        %v7947 = vunpack.c.l.s4 1966171168
        %v7948 = vunpack.c.0.s8 %v7947
        %v7949 = vlaneseq
        %v7950 = vshrl.u32 %v7949, 7
        %v7951 = vsub.s32 %v7948, %v7950
        %v7952 = vrot.slane %v7942, %v7951
        %v7954 = vunpack.c.l.s4 1966171168
        %v7955 = vunpack.c.0.s8 %v7954
        %v7956 = vlaneseq
        %v7957 = vshrl.u32 %v7956, 7
        %v7958 = vsub.s32 %v7955, %v7957
        %v7959 = vrot.slane %v7943, %v7958
        %v7961 = vunpack.c.l.s4 1966171168
        %v7962 = vunpack.c.0.s8 %v7961
        %v7963 = vlaneseq
        %v7964 = vshrl.u32 %v7963, 7
        %v7965 = vsub.s32 %v7962, %v7964
        %v7966 = vrot.slane %v7944, %v7965
        %v7968 = vunpack.c.l.s4 1966171168
        %v7969 = vunpack.c.0.s8 %v7968
        %v7970 = vlaneseq
        %v7971 = vshrl.u32 %v7970, 7
        %v7972 = vsub.s32 %v7969, %v7971
        %v7973 = vrot.slane %v7945, %v7972
        %v7974 = vcombine.low %v7952, %v7959
        %v7975 = vcombine.low %v7966, %v7973
        %v7977 = vunpack.c.l.s4 1966171168
        %v7978 = vunpack.c.0.s8 %v7977
        %v7979 = vlaneseq
        %v7980 = vshrl.u32 %v7979, 7
        %v7981 = vsub.s32 %v7978, %v7980
        %v7982 = vrot.slane %v7974, %v7981
        %v7984 = vunpack.c.l.s4 1966171168
        %v7985 = vunpack.c.0.s8 %v7984
        %v7986 = vlaneseq
        %v7987 = vshrl.u32 %v7986, 7
        %v7988 = vsub.s32 %v7985, %v7987
        %v7989 = vrot.slane %v7975, %v7988
        %v7990 = vcombine.low %v7982, %v7989
        %v7991 = vcombine.low %v5215, %v5219
        %v7992 = vcombine.low %v5223, %v5227
        %v7993 = vcombine.low %v5231, %v5235
        %v7994 = vcombine.low %v5239, %v5243
        %v7996 = vunpack.c.l.s4 1966171168
        %v7997 = vunpack.c.0.s8 %v7996
        %v7998 = vlaneseq
        %v7999 = vshrl.u32 %v7998, 7
        %v8000 = vsub.s32 %v7997, %v7999
        %v8001 = vrot.slane %v7991, %v8000
        %v8003 = vunpack.c.l.s4 1966171168
        %v8004 = vunpack.c.0.s8 %v8003
        %v8005 = vlaneseq
        %v8006 = vshrl.u32 %v8005, 7
        %v8007 = vsub.s32 %v8004, %v8006
        %v8008 = vrot.slane %v7992, %v8007
        %v8010 = vunpack.c.l.s4 1966171168
        %v8011 = vunpack.c.0.s8 %v8010
        %v8012 = vlaneseq
        %v8013 = vshrl.u32 %v8012, 7
        %v8014 = vsub.s32 %v8011, %v8013
        %v8015 = vrot.slane %v7993, %v8014
        %v8017 = vunpack.c.l.s4 1966171168
        %v8018 = vunpack.c.0.s8 %v8017
        %v8019 = vlaneseq
        %v8020 = vshrl.u32 %v8019, 7
        %v8021 = vsub.s32 %v8018, %v8020
        %v8022 = vrot.slane %v7994, %v8021
        %v8023 = vcombine.low %v8001, %v8008
        %v8024 = vcombine.low %v8015, %v8022
        %v8026 = vunpack.c.l.s4 1966171168
        %v8027 = vunpack.c.0.s8 %v8026
        %v8028 = vlaneseq
        %v8029 = vshrl.u32 %v8028, 7
        %v8030 = vsub.s32 %v8027, %v8029
        %v8031 = vrot.slane %v8023, %v8030
        %v8033 = vunpack.c.l.s4 1966171168
        %v8034 = vunpack.c.0.s8 %v8033
        %v8035 = vlaneseq
        %v8036 = vshrl.u32 %v8035, 7
        %v8037 = vsub.s32 %v8034, %v8036
        %v8038 = vrot.slane %v8024, %v8037
        %v8039 = vcombine.low %v8031, %v8038
        %v8040 = vcombine.low %v5247, %v5251
        %v8041 = vcombine.low %v5255, %v5259
        %v8042 = vcombine.low %v5263, %v5267
        %v8043 = vcombine.low %v5271, %v5275
        %v8045 = vunpack.c.l.s4 1966171168
        %v8046 = vunpack.c.0.s8 %v8045
        %v8047 = vlaneseq
        %v8048 = vshrl.u32 %v8047, 7
        %v8049 = vsub.s32 %v8046, %v8048
        %v8050 = vrot.slane %v8040, %v8049
        %v8052 = vunpack.c.l.s4 1966171168
        %v8053 = vunpack.c.0.s8 %v8052
        %v8054 = vlaneseq
        %v8055 = vshrl.u32 %v8054, 7
        %v8056 = vsub.s32 %v8053, %v8055
        %v8057 = vrot.slane %v8041, %v8056
        %v8059 = vunpack.c.l.s4 1966171168
        %v8060 = vunpack.c.0.s8 %v8059
        %v8061 = vlaneseq
        %v8062 = vshrl.u32 %v8061, 7
        %v8063 = vsub.s32 %v8060, %v8062
        %v8064 = vrot.slane %v8042, %v8063
        %v8066 = vunpack.c.l.s4 1966171168
        %v8067 = vunpack.c.0.s8 %v8066
        %v8068 = vlaneseq
        %v8069 = vshrl.u32 %v8068, 7
        %v8070 = vsub.s32 %v8067, %v8069
        %v8071 = vrot.slane %v8043, %v8070
        %v8072 = vcombine.low %v8050, %v8057
        %v8073 = vcombine.low %v8064, %v8071
        %v8075 = vunpack.c.l.s4 1966171168
        %v8076 = vunpack.c.0.s8 %v8075
        %v8077 = vlaneseq
        %v8078 = vshrl.u32 %v8077, 7
        %v8079 = vsub.s32 %v8076, %v8078
        %v8080 = vrot.slane %v8072, %v8079
        %v8082 = vunpack.c.l.s4 1966171168
        %v8083 = vunpack.c.0.s8 %v8082
        %v8084 = vlaneseq
        %v8085 = vshrl.u32 %v8084, 7
        %v8086 = vsub.s32 %v8083, %v8085
        %v8087 = vrot.slane %v8073, %v8086
        %v8088 = vcombine.low %v8080, %v8087
        %v8089 = vcombine.low %v5279, %v5283
        %v8090 = vcombine.low %v5287, %v5291
        %v8091 = vcombine.low %v5295, %v5299
        %v8092 = vcombine.low %v5303, %v5307
        %v8094 = vunpack.c.l.s4 1966171168
        %v8095 = vunpack.c.0.s8 %v8094
        %v8096 = vlaneseq
        %v8097 = vshrl.u32 %v8096, 7
        %v8098 = vsub.s32 %v8095, %v8097
        %v8099 = vrot.slane %v8089, %v8098
        %v8101 = vunpack.c.l.s4 1966171168
        %v8102 = vunpack.c.0.s8 %v8101
        %v8103 = vlaneseq
        %v8104 = vshrl.u32 %v8103, 7
        %v8105 = vsub.s32 %v8102, %v8104
        %v8106 = vrot.slane %v8090, %v8105
        %v8108 = vunpack.c.l.s4 1966171168
        %v8109 = vunpack.c.0.s8 %v8108
        %v8110 = vlaneseq
        %v8111 = vshrl.u32 %v8110, 7
        %v8112 = vsub.s32 %v8109, %v8111
        %v8113 = vrot.slane %v8091, %v8112
        %v8115 = vunpack.c.l.s4 1966171168
        %v8116 = vunpack.c.0.s8 %v8115
        %v8117 = vlaneseq
        %v8118 = vshrl.u32 %v8117, 7
        %v8119 = vsub.s32 %v8116, %v8118
        %v8120 = vrot.slane %v8092, %v8119
        %v8121 = vcombine.low %v8099, %v8106
        %v8122 = vcombine.low %v8113, %v8120
        %v8124 = vunpack.c.l.s4 1966171168
        %v8125 = vunpack.c.0.s8 %v8124
        %v8126 = vlaneseq
        %v8127 = vshrl.u32 %v8126, 7
        %v8128 = vsub.s32 %v8125, %v8127
        %v8129 = vrot.slane %v8121, %v8128
        %v8131 = vunpack.c.l.s4 1966171168
        %v8132 = vunpack.c.0.s8 %v8131
        %v8133 = vlaneseq
        %v8134 = vshrl.u32 %v8133, 7
        %v8135 = vsub.s32 %v8132, %v8134
        %v8136 = vrot.slane %v8122, %v8135
        %v8137 = vcombine.low %v8129, %v8136
        %v8138 = vcombine.low %v5311, %v5315
        %v8139 = vcombine.low %v5319, %v5323
        %v8140 = vcombine.low %v5327, %v5331
        %v8141 = vcombine.low %v5335, %v5339
        %v8143 = vunpack.c.l.s4 1966171168
        %v8144 = vunpack.c.0.s8 %v8143
        %v8145 = vlaneseq
        %v8146 = vshrl.u32 %v8145, 7
        %v8147 = vsub.s32 %v8144, %v8146
        %v8148 = vrot.slane %v8138, %v8147
        %v8150 = vunpack.c.l.s4 1966171168
        %v8151 = vunpack.c.0.s8 %v8150
        %v8152 = vlaneseq
        %v8153 = vshrl.u32 %v8152, 7
        %v8154 = vsub.s32 %v8151, %v8153
        %v8155 = vrot.slane %v8139, %v8154
        %v8157 = vunpack.c.l.s4 1966171168
        %v8158 = vunpack.c.0.s8 %v8157
        %v8159 = vlaneseq
        %v8160 = vshrl.u32 %v8159, 7
        %v8161 = vsub.s32 %v8158, %v8160
        %v8162 = vrot.slane %v8140, %v8161
        %v8164 = vunpack.c.l.s4 1966171168
        %v8165 = vunpack.c.0.s8 %v8164
        %v8166 = vlaneseq
        %v8167 = vshrl.u32 %v8166, 7
        %v8168 = vsub.s32 %v8165, %v8167
        %v8169 = vrot.slane %v8141, %v8168
        %v8170 = vcombine.low %v8148, %v8155
        %v8171 = vcombine.low %v8162, %v8169
        %v8173 = vunpack.c.l.s4 1966171168
        %v8174 = vunpack.c.0.s8 %v8173
        %v8175 = vlaneseq
        %v8176 = vshrl.u32 %v8175, 7
        %v8177 = vsub.s32 %v8174, %v8176
        %v8178 = vrot.slane %v8170, %v8177
        %v8180 = vunpack.c.l.s4 1966171168
        %v8181 = vunpack.c.0.s8 %v8180
        %v8182 = vlaneseq
        %v8183 = vshrl.u32 %v8182, 7
        %v8184 = vsub.s32 %v8181, %v8183
        %v8185 = vrot.slane %v8171, %v8184
        %v8186 = vcombine.low %v8178, %v8185
        %v8187 = vcombine.low %v5343, %v5347
        %v8188 = vcombine.low %v5351, %v5355
        %v8189 = vcombine.low %v5359, %v5363
        %v8190 = vcombine.low %v5367, %v5371
        %v8192 = vunpack.c.l.s4 1966171168
        %v8193 = vunpack.c.0.s8 %v8192
        %v8194 = vlaneseq
        %v8195 = vshrl.u32 %v8194, 7
        %v8196 = vsub.s32 %v8193, %v8195
        %v8197 = vrot.slane %v8187, %v8196
        %v8199 = vunpack.c.l.s4 1966171168
        %v8200 = vunpack.c.0.s8 %v8199
        %v8201 = vlaneseq
        %v8202 = vshrl.u32 %v8201, 7
        %v8203 = vsub.s32 %v8200, %v8202
        %v8204 = vrot.slane %v8188, %v8203
        %v8206 = vunpack.c.l.s4 1966171168
        %v8207 = vunpack.c.0.s8 %v8206
        %v8208 = vlaneseq
        %v8209 = vshrl.u32 %v8208, 7
        %v8210 = vsub.s32 %v8207, %v8209
        %v8211 = vrot.slane %v8189, %v8210
        %v8213 = vunpack.c.l.s4 1966171168
        %v8214 = vunpack.c.0.s8 %v8213
        %v8215 = vlaneseq
        %v8216 = vshrl.u32 %v8215, 7
        %v8217 = vsub.s32 %v8214, %v8216
        %v8218 = vrot.slane %v8190, %v8217
        %v8219 = vcombine.low %v8197, %v8204
        %v8220 = vcombine.low %v8211, %v8218
        %v8222 = vunpack.c.l.s4 1966171168
        %v8223 = vunpack.c.0.s8 %v8222
        %v8224 = vlaneseq
        %v8225 = vshrl.u32 %v8224, 7
        %v8226 = vsub.s32 %v8223, %v8225
        %v8227 = vrot.slane %v8219, %v8226
        %v8229 = vunpack.c.l.s4 1966171168
        %v8230 = vunpack.c.0.s8 %v8229
        %v8231 = vlaneseq
        %v8232 = vshrl.u32 %v8231, 7
        %v8233 = vsub.s32 %v8230, %v8232
        %v8234 = vrot.slane %v8220, %v8233
        %v8235 = vcombine.low %v8227, %v8234
        %v8236 = vcombine.low %v5375, %v5379
        %v8237 = vcombine.low %v5383, %v5387
        %v8238 = vcombine.low %v5391, %v5395
        %v8239 = vcombine.low %v5399, %v5403
        %v8241 = vunpack.c.l.s4 1966171168
        %v8242 = vunpack.c.0.s8 %v8241
        %v8243 = vlaneseq
        %v8244 = vshrl.u32 %v8243, 7
        %v8245 = vsub.s32 %v8242, %v8244
        %v8246 = vrot.slane %v8236, %v8245
        %v8248 = vunpack.c.l.s4 1966171168
        %v8249 = vunpack.c.0.s8 %v8248
        %v8250 = vlaneseq
        %v8251 = vshrl.u32 %v8250, 7
        %v8252 = vsub.s32 %v8249, %v8251
        %v8253 = vrot.slane %v8237, %v8252
        %v8255 = vunpack.c.l.s4 1966171168
        %v8256 = vunpack.c.0.s8 %v8255
        %v8257 = vlaneseq
        %v8258 = vshrl.u32 %v8257, 7
        %v8259 = vsub.s32 %v8256, %v8258
        %v8260 = vrot.slane %v8238, %v8259
        %v8262 = vunpack.c.l.s4 1966171168
        %v8263 = vunpack.c.0.s8 %v8262
        %v8264 = vlaneseq
        %v8265 = vshrl.u32 %v8264, 7
        %v8266 = vsub.s32 %v8263, %v8265
        %v8267 = vrot.slane %v8239, %v8266
        %v8268 = vcombine.low %v8246, %v8253
        %v8269 = vcombine.low %v8260, %v8267
        %v8271 = vunpack.c.l.s4 1966171168
        %v8272 = vunpack.c.0.s8 %v8271
        %v8273 = vlaneseq
        %v8274 = vshrl.u32 %v8273, 7
        %v8275 = vsub.s32 %v8272, %v8274
        %v8276 = vrot.slane %v8268, %v8275
        %v8278 = vunpack.c.l.s4 1966171168
        %v8279 = vunpack.c.0.s8 %v8278
        %v8280 = vlaneseq
        %v8281 = vshrl.u32 %v8280, 7
        %v8282 = vsub.s32 %v8279, %v8281
        %v8283 = vrot.slane %v8269, %v8282
        %v8284 = vcombine.low %v8276, %v8283
        %v8285 = vcombine.low %v5407, %v5411
        %v8286 = vcombine.low %v5415, %v5419
        %v8287 = vcombine.low %v5423, %v5427
        %v8288 = vcombine.low %v5431, %v5435
        %v8290 = vunpack.c.l.s4 1966171168
        %v8291 = vunpack.c.0.s8 %v8290
        %v8292 = vlaneseq
        %v8293 = vshrl.u32 %v8292, 7
        %v8294 = vsub.s32 %v8291, %v8293
        %v8295 = vrot.slane %v8285, %v8294
        %v8297 = vunpack.c.l.s4 1966171168
        %v8298 = vunpack.c.0.s8 %v8297
        %v8299 = vlaneseq
        %v8300 = vshrl.u32 %v8299, 7
        %v8301 = vsub.s32 %v8298, %v8300
        %v8302 = vrot.slane %v8286, %v8301
        %v8304 = vunpack.c.l.s4 1966171168
        %v8305 = vunpack.c.0.s8 %v8304
        %v8306 = vlaneseq
        %v8307 = vshrl.u32 %v8306, 7
        %v8308 = vsub.s32 %v8305, %v8307
        %v8309 = vrot.slane %v8287, %v8308
        %v8311 = vunpack.c.l.s4 1966171168
        %v8312 = vunpack.c.0.s8 %v8311
        %v8313 = vlaneseq
        %v8314 = vshrl.u32 %v8313, 7
        %v8315 = vsub.s32 %v8312, %v8314
        %v8316 = vrot.slane %v8288, %v8315
        %v8317 = vcombine.low %v8295, %v8302
        %v8318 = vcombine.low %v8309, %v8316
        %v8320 = vunpack.c.l.s4 1966171168
        %v8321 = vunpack.c.0.s8 %v8320
        %v8322 = vlaneseq
        %v8323 = vshrl.u32 %v8322, 7
        %v8324 = vsub.s32 %v8321, %v8323
        %v8325 = vrot.slane %v8317, %v8324
        %v8327 = vunpack.c.l.s4 1966171168
        %v8328 = vunpack.c.0.s8 %v8327
        %v8329 = vlaneseq
        %v8330 = vshrl.u32 %v8329, 7
        %v8331 = vsub.s32 %v8328, %v8330
        %v8332 = vrot.slane %v8318, %v8331
        %v8333 = vcombine.low %v8325, %v8332
        %v8334 = vcombine.low %v5439, %v5443
        %v8335 = vcombine.low %v5447, %v5451
        %v8336 = vcombine.low %v5455, %v5459
        %v8337 = vcombine.low %v5463, %v5467
        %v8339 = vunpack.c.l.s4 1966171168
        %v8340 = vunpack.c.0.s8 %v8339
        %v8341 = vlaneseq
        %v8342 = vshrl.u32 %v8341, 7
        %v8343 = vsub.s32 %v8340, %v8342
        %v8344 = vrot.slane %v8334, %v8343
        %v8346 = vunpack.c.l.s4 1966171168
        %v8347 = vunpack.c.0.s8 %v8346
        %v8348 = vlaneseq
        %v8349 = vshrl.u32 %v8348, 7
        %v8350 = vsub.s32 %v8347, %v8349
        %v8351 = vrot.slane %v8335, %v8350
        %v8353 = vunpack.c.l.s4 1966171168
        %v8354 = vunpack.c.0.s8 %v8353
        %v8355 = vlaneseq
        %v8356 = vshrl.u32 %v8355, 7
        %v8357 = vsub.s32 %v8354, %v8356
        %v8358 = vrot.slane %v8336, %v8357
        %v8360 = vunpack.c.l.s4 1966171168
        %v8361 = vunpack.c.0.s8 %v8360
        %v8362 = vlaneseq
        %v8363 = vshrl.u32 %v8362, 7
        %v8364 = vsub.s32 %v8361, %v8363
        %v8365 = vrot.slane %v8337, %v8364
        %v8366 = vcombine.low %v8344, %v8351
        %v8367 = vcombine.low %v8358, %v8365
        %v8369 = vunpack.c.l.s4 1966171168
        %v8370 = vunpack.c.0.s8 %v8369
        %v8371 = vlaneseq
        %v8372 = vshrl.u32 %v8371, 7
        %v8373 = vsub.s32 %v8370, %v8372
        %v8374 = vrot.slane %v8366, %v8373
        %v8376 = vunpack.c.l.s4 1966171168
        %v8377 = vunpack.c.0.s8 %v8376
        %v8378 = vlaneseq
        %v8379 = vshrl.u32 %v8378, 7
        %v8380 = vsub.s32 %v8377, %v8379
        %v8381 = vrot.slane %v8367, %v8380
        %v8382 = vcombine.low %v8374, %v8381
        %v8383 = vcombine.low %v5471, %v5475
        %v8384 = vcombine.low %v5479, %v5483
        %v8385 = vcombine.low %v5487, %v5491
        %v8386 = vcombine.low %v5495, %v5499
        %v8388 = vunpack.c.l.s4 1966171168
        %v8389 = vunpack.c.0.s8 %v8388
        %v8390 = vlaneseq
        %v8391 = vshrl.u32 %v8390, 7
        %v8392 = vsub.s32 %v8389, %v8391
        %v8393 = vrot.slane %v8383, %v8392
        %v8395 = vunpack.c.l.s4 1966171168
        %v8396 = vunpack.c.0.s8 %v8395
        %v8397 = vlaneseq
        %v8398 = vshrl.u32 %v8397, 7
        %v8399 = vsub.s32 %v8396, %v8398
        %v8400 = vrot.slane %v8384, %v8399
        %v8402 = vunpack.c.l.s4 1966171168
        %v8403 = vunpack.c.0.s8 %v8402
        %v8404 = vlaneseq
        %v8405 = vshrl.u32 %v8404, 7
        %v8406 = vsub.s32 %v8403, %v8405
        %v8407 = vrot.slane %v8385, %v8406
        %v8409 = vunpack.c.l.s4 1966171168
        %v8410 = vunpack.c.0.s8 %v8409
        %v8411 = vlaneseq
        %v8412 = vshrl.u32 %v8411, 7
        %v8413 = vsub.s32 %v8410, %v8412
        %v8414 = vrot.slane %v8386, %v8413
        %v8415 = vcombine.low %v8393, %v8400
        %v8416 = vcombine.low %v8407, %v8414
        %v8418 = vunpack.c.l.s4 1966171168
        %v8419 = vunpack.c.0.s8 %v8418
        %v8420 = vlaneseq
        %v8421 = vshrl.u32 %v8420, 7
        %v8422 = vsub.s32 %v8419, %v8421
        %v8423 = vrot.slane %v8415, %v8422
        %v8425 = vunpack.c.l.s4 1966171168
        %v8426 = vunpack.c.0.s8 %v8425
        %v8427 = vlaneseq
        %v8428 = vshrl.u32 %v8427, 7
        %v8429 = vsub.s32 %v8426, %v8428
        %v8430 = vrot.slane %v8416, %v8429
        %v8431 = vcombine.low %v8423, %v8430
        %v8432 = vcombine.low %v5503, %v5507
        %v8433 = vcombine.low %v5511, %v5515
        %v8434 = vcombine.low %v5519, %v5523
        %v8435 = vcombine.low %v5527, %v5531
        %v8437 = vunpack.c.l.s4 1966171168
        %v8438 = vunpack.c.0.s8 %v8437
        %v8439 = vlaneseq
        %v8440 = vshrl.u32 %v8439, 7
        %v8441 = vsub.s32 %v8438, %v8440
        %v8442 = vrot.slane %v8432, %v8441
        %v8444 = vunpack.c.l.s4 1966171168
        %v8445 = vunpack.c.0.s8 %v8444
        %v8446 = vlaneseq
        %v8447 = vshrl.u32 %v8446, 7
        %v8448 = vsub.s32 %v8445, %v8447
        %v8449 = vrot.slane %v8433, %v8448
        %v8451 = vunpack.c.l.s4 1966171168
        %v8452 = vunpack.c.0.s8 %v8451
        %v8453 = vlaneseq
        %v8454 = vshrl.u32 %v8453, 7
        %v8455 = vsub.s32 %v8452, %v8454
        %v8456 = vrot.slane %v8434, %v8455
        %v8458 = vunpack.c.l.s4 1966171168
        %v8459 = vunpack.c.0.s8 %v8458
        %v8460 = vlaneseq
        %v8461 = vshrl.u32 %v8460, 7
        %v8462 = vsub.s32 %v8459, %v8461
        %v8463 = vrot.slane %v8435, %v8462
        %v8464 = vcombine.low %v8442, %v8449
        %v8465 = vcombine.low %v8456, %v8463
        %v8467 = vunpack.c.l.s4 1966171168
        %v8468 = vunpack.c.0.s8 %v8467
        %v8469 = vlaneseq
        %v8470 = vshrl.u32 %v8469, 7
        %v8471 = vsub.s32 %v8468, %v8470
        %v8472 = vrot.slane %v8464, %v8471
        %v8474 = vunpack.c.l.s4 1966171168
        %v8475 = vunpack.c.0.s8 %v8474
        %v8476 = vlaneseq
        %v8477 = vshrl.u32 %v8476, 7
        %v8478 = vsub.s32 %v8475, %v8477
        %v8479 = vrot.slane %v8465, %v8478
        %v8480 = vcombine.low %v8472, %v8479
        %v8481 = vcombine.low %v5535, %v5539
        %v8482 = vcombine.low %v5543, %v5547
        %v8483 = vcombine.low %v5551, %v5555
        %v8484 = vcombine.low %v5559, %v5563
        %v8486 = vunpack.c.l.s4 1966171168
        %v8487 = vunpack.c.0.s8 %v8486
        %v8488 = vlaneseq
        %v8489 = vshrl.u32 %v8488, 7
        %v8490 = vsub.s32 %v8487, %v8489
        %v8491 = vrot.slane %v8481, %v8490
        %v8493 = vunpack.c.l.s4 1966171168
        %v8494 = vunpack.c.0.s8 %v8493
        %v8495 = vlaneseq
        %v8496 = vshrl.u32 %v8495, 7
        %v8497 = vsub.s32 %v8494, %v8496
        %v8498 = vrot.slane %v8482, %v8497
        %v8500 = vunpack.c.l.s4 1966171168
        %v8501 = vunpack.c.0.s8 %v8500
        %v8502 = vlaneseq
        %v8503 = vshrl.u32 %v8502, 7
        %v8504 = vsub.s32 %v8501, %v8503
        %v8505 = vrot.slane %v8483, %v8504
        %v8507 = vunpack.c.l.s4 1966171168
        %v8508 = vunpack.c.0.s8 %v8507
        %v8509 = vlaneseq
        %v8510 = vshrl.u32 %v8509, 7
        %v8511 = vsub.s32 %v8508, %v8510
        %v8512 = vrot.slane %v8484, %v8511
        %v8513 = vcombine.low %v8491, %v8498
        %v8514 = vcombine.low %v8505, %v8512
        %v8516 = vunpack.c.l.s4 1966171168
        %v8517 = vunpack.c.0.s8 %v8516
        %v8518 = vlaneseq
        %v8519 = vshrl.u32 %v8518, 7
        %v8520 = vsub.s32 %v8517, %v8519
        %v8521 = vrot.slane %v8513, %v8520
        %v8523 = vunpack.c.l.s4 1966171168
        %v8524 = vunpack.c.0.s8 %v8523
        %v8525 = vlaneseq
        %v8526 = vshrl.u32 %v8525, 7
        %v8527 = vsub.s32 %v8524, %v8526
        %v8528 = vrot.slane %v8514, %v8527
        %v8529 = vcombine.low %v8521, %v8528
        %v8530 = vcombine.low %v5567, %v5571
        %v8531 = vcombine.low %v5575, %v5579
        %v8532 = vcombine.low %v5583, %v5587
        %v8533 = vcombine.low %v5591, %v5595
        %v8535 = vunpack.c.l.s4 1966171168
        %v8536 = vunpack.c.0.s8 %v8535
        %v8537 = vlaneseq
        %v8538 = vshrl.u32 %v8537, 7
        %v8539 = vsub.s32 %v8536, %v8538
        %v8540 = vrot.slane %v8530, %v8539
        %v8542 = vunpack.c.l.s4 1966171168
        %v8543 = vunpack.c.0.s8 %v8542
        %v8544 = vlaneseq
        %v8545 = vshrl.u32 %v8544, 7
        %v8546 = vsub.s32 %v8543, %v8545
        %v8547 = vrot.slane %v8531, %v8546
        %v8549 = vunpack.c.l.s4 1966171168
        %v8550 = vunpack.c.0.s8 %v8549
        %v8551 = vlaneseq
        %v8552 = vshrl.u32 %v8551, 7
        %v8553 = vsub.s32 %v8550, %v8552
        %v8554 = vrot.slane %v8532, %v8553
        %v8556 = vunpack.c.l.s4 1966171168
        %v8557 = vunpack.c.0.s8 %v8556
        %v8558 = vlaneseq
        %v8559 = vshrl.u32 %v8558, 7
        %v8560 = vsub.s32 %v8557, %v8559
        %v8561 = vrot.slane %v8533, %v8560
        %v8562 = vcombine.low %v8540, %v8547
        %v8563 = vcombine.low %v8554, %v8561
        %v8565 = vunpack.c.l.s4 1966171168
        %v8566 = vunpack.c.0.s8 %v8565
        %v8567 = vlaneseq
        %v8568 = vshrl.u32 %v8567, 7
        %v8569 = vsub.s32 %v8566, %v8568
        %v8570 = vrot.slane %v8562, %v8569
        %v8572 = vunpack.c.l.s4 1966171168
        %v8573 = vunpack.c.0.s8 %v8572
        %v8574 = vlaneseq
        %v8575 = vshrl.u32 %v8574, 7
        %v8576 = vsub.s32 %v8573, %v8575
        %v8577 = vrot.slane %v8563, %v8576
        %v8578 = vcombine.low %v8570, %v8577
        %v8579 = vcombine.low %v5599, %v5603
        %v8580 = vcombine.low %v5607, %v5611
        %v8581 = vcombine.low %v5615, %v5619
        %v8582 = vcombine.low %v5623, %v5627
        %v8584 = vunpack.c.l.s4 1966171168
        %v8585 = vunpack.c.0.s8 %v8584
        %v8586 = vlaneseq
        %v8587 = vshrl.u32 %v8586, 7
        %v8588 = vsub.s32 %v8585, %v8587
        %v8589 = vrot.slane %v8579, %v8588
        %v8591 = vunpack.c.l.s4 1966171168
        %v8592 = vunpack.c.0.s8 %v8591
        %v8593 = vlaneseq
        %v8594 = vshrl.u32 %v8593, 7
        %v8595 = vsub.s32 %v8592, %v8594
        %v8596 = vrot.slane %v8580, %v8595
        %v8598 = vunpack.c.l.s4 1966171168
        %v8599 = vunpack.c.0.s8 %v8598
        %v8600 = vlaneseq
        %v8601 = vshrl.u32 %v8600, 7
        %v8602 = vsub.s32 %v8599, %v8601
        %v8603 = vrot.slane %v8581, %v8602
        %v8605 = vunpack.c.l.s4 1966171168
        %v8606 = vunpack.c.0.s8 %v8605
        %v8607 = vlaneseq
        %v8608 = vshrl.u32 %v8607, 7
        %v8609 = vsub.s32 %v8606, %v8608
        %v8610 = vrot.slane %v8582, %v8609
        %v8611 = vcombine.low %v8589, %v8596
        %v8612 = vcombine.low %v8603, %v8610
        %v8614 = vunpack.c.l.s4 1966171168
        %v8615 = vunpack.c.0.s8 %v8614
        %v8616 = vlaneseq
        %v8617 = vshrl.u32 %v8616, 7
        %v8618 = vsub.s32 %v8615, %v8617
        %v8619 = vrot.slane %v8611, %v8618
        %v8621 = vunpack.c.l.s4 1966171168
        %v8622 = vunpack.c.0.s8 %v8621
        %v8623 = vlaneseq
        %v8624 = vshrl.u32 %v8623, 7
        %v8625 = vsub.s32 %v8622, %v8624
        %v8626 = vrot.slane %v8612, %v8625
        %v8627 = vcombine.low %v8619, %v8626
        %v8628 = vcombine.low %v5631, %v5635
        %v8629 = vcombine.low %v5639, %v5643
        %v8630 = vcombine.low %v5647, %v5651
        %v8631 = vcombine.low %v5655, %v5659
        %v8633 = vunpack.c.l.s4 1966171168
        %v8634 = vunpack.c.0.s8 %v8633
        %v8635 = vlaneseq
        %v8636 = vshrl.u32 %v8635, 7
        %v8637 = vsub.s32 %v8634, %v8636
        %v8638 = vrot.slane %v8628, %v8637
        %v8640 = vunpack.c.l.s4 1966171168
        %v8641 = vunpack.c.0.s8 %v8640
        %v8642 = vlaneseq
        %v8643 = vshrl.u32 %v8642, 7
        %v8644 = vsub.s32 %v8641, %v8643
        %v8645 = vrot.slane %v8629, %v8644
        %v8647 = vunpack.c.l.s4 1966171168
        %v8648 = vunpack.c.0.s8 %v8647
        %v8649 = vlaneseq
        %v8650 = vshrl.u32 %v8649, 7
        %v8651 = vsub.s32 %v8648, %v8650
        %v8652 = vrot.slane %v8630, %v8651
        %v8654 = vunpack.c.l.s4 1966171168
        %v8655 = vunpack.c.0.s8 %v8654
        %v8656 = vlaneseq
        %v8657 = vshrl.u32 %v8656, 7
        %v8658 = vsub.s32 %v8655, %v8657
        %v8659 = vrot.slane %v8631, %v8658
        %v8660 = vcombine.low %v8638, %v8645
        %v8661 = vcombine.low %v8652, %v8659
        %v8663 = vunpack.c.l.s4 1966171168
        %v8664 = vunpack.c.0.s8 %v8663
        %v8665 = vlaneseq
        %v8666 = vshrl.u32 %v8665, 7
        %v8667 = vsub.s32 %v8664, %v8666
        %v8668 = vrot.slane %v8660, %v8667
        %v8670 = vunpack.c.l.s4 1966171168
        %v8671 = vunpack.c.0.s8 %v8670
        %v8672 = vlaneseq
        %v8673 = vshrl.u32 %v8672, 7
        %v8674 = vsub.s32 %v8671, %v8673
        %v8675 = vrot.slane %v8661, %v8674
        %v8676 = vcombine.low %v8668, %v8675
        %v8677 = vcombine.low %v5663, %v5667
        %v8678 = vcombine.low %v5671, %v5675
        %v8679 = vcombine.low %v5679, %v5683
        %v8680 = vcombine.low %v5687, %v5691
        %v8682 = vunpack.c.l.s4 1966171168
        %v8683 = vunpack.c.0.s8 %v8682
        %v8684 = vlaneseq
        %v8685 = vshrl.u32 %v8684, 7
        %v8686 = vsub.s32 %v8683, %v8685
        %v8687 = vrot.slane %v8677, %v8686
        %v8689 = vunpack.c.l.s4 1966171168
        %v8690 = vunpack.c.0.s8 %v8689
        %v8691 = vlaneseq
        %v8692 = vshrl.u32 %v8691, 7
        %v8693 = vsub.s32 %v8690, %v8692
        %v8694 = vrot.slane %v8678, %v8693
        %v8696 = vunpack.c.l.s4 1966171168
        %v8697 = vunpack.c.0.s8 %v8696
        %v8698 = vlaneseq
        %v8699 = vshrl.u32 %v8698, 7
        %v8700 = vsub.s32 %v8697, %v8699
        %v8701 = vrot.slane %v8679, %v8700
        %v8703 = vunpack.c.l.s4 1966171168
        %v8704 = vunpack.c.0.s8 %v8703
        %v8705 = vlaneseq
        %v8706 = vshrl.u32 %v8705, 7
        %v8707 = vsub.s32 %v8704, %v8706
        %v8708 = vrot.slane %v8680, %v8707
        %v8709 = vcombine.low %v8687, %v8694
        %v8710 = vcombine.low %v8701, %v8708
        %v8712 = vunpack.c.l.s4 1966171168
        %v8713 = vunpack.c.0.s8 %v8712
        %v8714 = vlaneseq
        %v8715 = vshrl.u32 %v8714, 7
        %v8716 = vsub.s32 %v8713, %v8715
        %v8717 = vrot.slane %v8709, %v8716
        %v8719 = vunpack.c.l.s4 1966171168
        %v8720 = vunpack.c.0.s8 %v8719
        %v8721 = vlaneseq
        %v8722 = vshrl.u32 %v8721, 7
        %v8723 = vsub.s32 %v8720, %v8722
        %v8724 = vrot.slane %v8710, %v8723
        %v8725 = vcombine.low %v8717, %v8724
        %v8726 = vcombine.low %v5695, %v5699
        %v8727 = vcombine.low %v5703, %v5707
        %v8728 = vcombine.low %v5711, %v5715
        %v8729 = vcombine.low %v5719, %v5723
        %v8731 = vunpack.c.l.s4 1966171168
        %v8732 = vunpack.c.0.s8 %v8731
        %v8733 = vlaneseq
        %v8734 = vshrl.u32 %v8733, 7
        %v8735 = vsub.s32 %v8732, %v8734
        %v8736 = vrot.slane %v8726, %v8735
        %v8738 = vunpack.c.l.s4 1966171168
        %v8739 = vunpack.c.0.s8 %v8738
        %v8740 = vlaneseq
        %v8741 = vshrl.u32 %v8740, 7
        %v8742 = vsub.s32 %v8739, %v8741
        %v8743 = vrot.slane %v8727, %v8742
        %v8745 = vunpack.c.l.s4 1966171168
        %v8746 = vunpack.c.0.s8 %v8745
        %v8747 = vlaneseq
        %v8748 = vshrl.u32 %v8747, 7
        %v8749 = vsub.s32 %v8746, %v8748
        %v8750 = vrot.slane %v8728, %v8749
        %v8752 = vunpack.c.l.s4 1966171168
        %v8753 = vunpack.c.0.s8 %v8752
        %v8754 = vlaneseq
        %v8755 = vshrl.u32 %v8754, 7
        %v8756 = vsub.s32 %v8753, %v8755
        %v8757 = vrot.slane %v8729, %v8756
        %v8758 = vcombine.low %v8736, %v8743
        %v8759 = vcombine.low %v8750, %v8757
        %v8761 = vunpack.c.l.s4 1966171168
        %v8762 = vunpack.c.0.s8 %v8761
        %v8763 = vlaneseq
        %v8764 = vshrl.u32 %v8763, 7
        %v8765 = vsub.s32 %v8762, %v8764
        %v8766 = vrot.slane %v8758, %v8765
        %v8768 = vunpack.c.l.s4 1966171168
        %v8769 = vunpack.c.0.s8 %v8768
        %v8770 = vlaneseq
        %v8771 = vshrl.u32 %v8770, 7
        %v8772 = vsub.s32 %v8769, %v8771
        %v8773 = vrot.slane %v8759, %v8772
        %v8774 = vcombine.low %v8766, %v8773
        %v8775 = vcombine.low %v5727, %v5731
        %v8776 = vcombine.low %v5735, %v5739
        %v8777 = vcombine.low %v5743, %v5747
        %v8778 = vcombine.low %v5751, %v5755
        %v8780 = vunpack.c.l.s4 1966171168
        %v8781 = vunpack.c.0.s8 %v8780
        %v8782 = vlaneseq
        %v8783 = vshrl.u32 %v8782, 7
        %v8784 = vsub.s32 %v8781, %v8783
        %v8785 = vrot.slane %v8775, %v8784
        %v8787 = vunpack.c.l.s4 1966171168
        %v8788 = vunpack.c.0.s8 %v8787
        %v8789 = vlaneseq
        %v8790 = vshrl.u32 %v8789, 7
        %v8791 = vsub.s32 %v8788, %v8790
        %v8792 = vrot.slane %v8776, %v8791
        %v8794 = vunpack.c.l.s4 1966171168
        %v8795 = vunpack.c.0.s8 %v8794
        %v8796 = vlaneseq
        %v8797 = vshrl.u32 %v8796, 7
        %v8798 = vsub.s32 %v8795, %v8797
        %v8799 = vrot.slane %v8777, %v8798
        %v8801 = vunpack.c.l.s4 1966171168
        %v8802 = vunpack.c.0.s8 %v8801
        %v8803 = vlaneseq
        %v8804 = vshrl.u32 %v8803, 7
        %v8805 = vsub.s32 %v8802, %v8804
        %v8806 = vrot.slane %v8778, %v8805
        %v8807 = vcombine.low %v8785, %v8792
        %v8808 = vcombine.low %v8799, %v8806
        %v8810 = vunpack.c.l.s4 1966171168
        %v8811 = vunpack.c.0.s8 %v8810
        %v8812 = vlaneseq
        %v8813 = vshrl.u32 %v8812, 7
        %v8814 = vsub.s32 %v8811, %v8813
        %v8815 = vrot.slane %v8807, %v8814
        %v8817 = vunpack.c.l.s4 1966171168
        %v8818 = vunpack.c.0.s8 %v8817
        %v8819 = vlaneseq
        %v8820 = vshrl.u32 %v8819, 7
        %v8821 = vsub.s32 %v8818, %v8820
        %v8822 = vrot.slane %v8808, %v8821
        %v8823 = vcombine.low %v8815, %v8822
        %v8824 = vcombine.low %v5759, %v5763
        %v8825 = vcombine.low %v5767, %v5771
        %v8826 = vcombine.low %v5775, %v5779
        %v8827 = vcombine.low %v5783, %v5787
        %v8829 = vunpack.c.l.s4 1966171168
        %v8830 = vunpack.c.0.s8 %v8829
        %v8831 = vlaneseq
        %v8832 = vshrl.u32 %v8831, 7
        %v8833 = vsub.s32 %v8830, %v8832
        %v8834 = vrot.slane %v8824, %v8833
        %v8836 = vunpack.c.l.s4 1966171168
        %v8837 = vunpack.c.0.s8 %v8836
        %v8838 = vlaneseq
        %v8839 = vshrl.u32 %v8838, 7
        %v8840 = vsub.s32 %v8837, %v8839
        %v8841 = vrot.slane %v8825, %v8840
        %v8843 = vunpack.c.l.s4 1966171168
        %v8844 = vunpack.c.0.s8 %v8843
        %v8845 = vlaneseq
        %v8846 = vshrl.u32 %v8845, 7
        %v8847 = vsub.s32 %v8844, %v8846
        %v8848 = vrot.slane %v8826, %v8847
        %v8850 = vunpack.c.l.s4 1966171168
        %v8851 = vunpack.c.0.s8 %v8850
        %v8852 = vlaneseq
        %v8853 = vshrl.u32 %v8852, 7
        %v8854 = vsub.s32 %v8851, %v8853
        %v8855 = vrot.slane %v8827, %v8854
        %v8856 = vcombine.low %v8834, %v8841
        %v8857 = vcombine.low %v8848, %v8855
        %v8859 = vunpack.c.l.s4 1966171168
        %v8860 = vunpack.c.0.s8 %v8859
        %v8861 = vlaneseq
        %v8862 = vshrl.u32 %v8861, 7
        %v8863 = vsub.s32 %v8860, %v8862
        %v8864 = vrot.slane %v8856, %v8863
        %v8866 = vunpack.c.l.s4 1966171168
        %v8867 = vunpack.c.0.s8 %v8866
        %v8868 = vlaneseq
        %v8869 = vshrl.u32 %v8868, 7
        %v8870 = vsub.s32 %v8867, %v8869
        %v8871 = vrot.slane %v8857, %v8870
        %v8872 = vcombine.low %v8864, %v8871
        %v8873 = vcombine.low %v5791, %v5795
        %v8874 = vcombine.low %v5799, %v5803
        %v8875 = vcombine.low %v5807, %v5811
        %v8876 = vcombine.low %v5815, %v5819
        %v8878 = vunpack.c.l.s4 1966171168
        %v8879 = vunpack.c.0.s8 %v8878
        %v8880 = vlaneseq
        %v8881 = vshrl.u32 %v8880, 7
        %v8882 = vsub.s32 %v8879, %v8881
        %v8883 = vrot.slane %v8873, %v8882
        %v8885 = vunpack.c.l.s4 1966171168
        %v8886 = vunpack.c.0.s8 %v8885
        %v8887 = vlaneseq
        %v8888 = vshrl.u32 %v8887, 7
        %v8889 = vsub.s32 %v8886, %v8888
        %v8890 = vrot.slane %v8874, %v8889
        %v8892 = vunpack.c.l.s4 1966171168
        %v8893 = vunpack.c.0.s8 %v8892
        %v8894 = vlaneseq
        %v8895 = vshrl.u32 %v8894, 7
        %v8896 = vsub.s32 %v8893, %v8895
        %v8897 = vrot.slane %v8875, %v8896
        %v8899 = vunpack.c.l.s4 1966171168
        %v8900 = vunpack.c.0.s8 %v8899
        %v8901 = vlaneseq
        %v8902 = vshrl.u32 %v8901, 7
        %v8903 = vsub.s32 %v8900, %v8902
        %v8904 = vrot.slane %v8876, %v8903
        %v8905 = vcombine.low %v8883, %v8890
        %v8906 = vcombine.low %v8897, %v8904
        %v8908 = vunpack.c.l.s4 1966171168
        %v8909 = vunpack.c.0.s8 %v8908
        %v8910 = vlaneseq
        %v8911 = vshrl.u32 %v8910, 7
        %v8912 = vsub.s32 %v8909, %v8911
        %v8913 = vrot.slane %v8905, %v8912
        %v8915 = vunpack.c.l.s4 1966171168
        %v8916 = vunpack.c.0.s8 %v8915
        %v8917 = vlaneseq
        %v8918 = vshrl.u32 %v8917, 7
        %v8919 = vsub.s32 %v8916, %v8918
        %v8920 = vrot.slane %v8906, %v8919
        %v8921 = vcombine.low %v8913, %v8920
        %v8922 = vcombine.low %v5823, %v5827
        %v8923 = vcombine.low %v5831, %v5835
        %v8924 = vcombine.low %v5839, %v5843
        %v8925 = vcombine.low %v5847, %v5851
        %v8927 = vunpack.c.l.s4 1966171168
        %v8928 = vunpack.c.0.s8 %v8927
        %v8929 = vlaneseq
        %v8930 = vshrl.u32 %v8929, 7
        %v8931 = vsub.s32 %v8928, %v8930
        %v8932 = vrot.slane %v8922, %v8931
        %v8934 = vunpack.c.l.s4 1966171168
        %v8935 = vunpack.c.0.s8 %v8934
        %v8936 = vlaneseq
        %v8937 = vshrl.u32 %v8936, 7
        %v8938 = vsub.s32 %v8935, %v8937
        %v8939 = vrot.slane %v8923, %v8938
        %v8941 = vunpack.c.l.s4 1966171168
        %v8942 = vunpack.c.0.s8 %v8941
        %v8943 = vlaneseq
        %v8944 = vshrl.u32 %v8943, 7
        %v8945 = vsub.s32 %v8942, %v8944
        %v8946 = vrot.slane %v8924, %v8945
        %v8948 = vunpack.c.l.s4 1966171168
        %v8949 = vunpack.c.0.s8 %v8948
        %v8950 = vlaneseq
        %v8951 = vshrl.u32 %v8950, 7
        %v8952 = vsub.s32 %v8949, %v8951
        %v8953 = vrot.slane %v8925, %v8952
        %v8954 = vcombine.low %v8932, %v8939
        %v8955 = vcombine.low %v8946, %v8953
        %v8957 = vunpack.c.l.s4 1966171168
        %v8958 = vunpack.c.0.s8 %v8957
        %v8959 = vlaneseq
        %v8960 = vshrl.u32 %v8959, 7
        %v8961 = vsub.s32 %v8958, %v8960
        %v8962 = vrot.slane %v8954, %v8961
        %v8964 = vunpack.c.l.s4 1966171168
        %v8965 = vunpack.c.0.s8 %v8964
        %v8966 = vlaneseq
        %v8967 = vshrl.u32 %v8966, 7
        %v8968 = vsub.s32 %v8965, %v8967
        %v8969 = vrot.slane %v8955, %v8968
        %v8970 = vcombine.low %v8962, %v8969
        %v8971 = vcombine.low %v5855, %v5859
        %v8972 = vcombine.low %v5863, %v5867
        %v8973 = vcombine.low %v5871, %v5875
        %v8974 = vcombine.low %v5879, %v5883
        %v8976 = vunpack.c.l.s4 1966171168
        %v8977 = vunpack.c.0.s8 %v8976
        %v8978 = vlaneseq
        %v8979 = vshrl.u32 %v8978, 7
        %v8980 = vsub.s32 %v8977, %v8979
        %v8981 = vrot.slane %v8971, %v8980
        %v8983 = vunpack.c.l.s4 1966171168
        %v8984 = vunpack.c.0.s8 %v8983
        %v8985 = vlaneseq
        %v8986 = vshrl.u32 %v8985, 7
        %v8987 = vsub.s32 %v8984, %v8986
        %v8988 = vrot.slane %v8972, %v8987
        %v8990 = vunpack.c.l.s4 1966171168
        %v8991 = vunpack.c.0.s8 %v8990
        %v8992 = vlaneseq
        %v8993 = vshrl.u32 %v8992, 7
        %v8994 = vsub.s32 %v8991, %v8993
        %v8995 = vrot.slane %v8973, %v8994
        %v8997 = vunpack.c.l.s4 1966171168
        %v8998 = vunpack.c.0.s8 %v8997
        %v8999 = vlaneseq
        %v9000 = vshrl.u32 %v8999, 7
        %v9001 = vsub.s32 %v8998, %v9000
        %v9002 = vrot.slane %v8974, %v9001
        %v9003 = vcombine.low %v8981, %v8988
        %v9004 = vcombine.low %v8995, %v9002
        %v9006 = vunpack.c.l.s4 1966171168
        %v9007 = vunpack.c.0.s8 %v9006
        %v9008 = vlaneseq
        %v9009 = vshrl.u32 %v9008, 7
        %v9010 = vsub.s32 %v9007, %v9009
        %v9011 = vrot.slane %v9003, %v9010
        %v9013 = vunpack.c.l.s4 1966171168
        %v9014 = vunpack.c.0.s8 %v9013
        %v9015 = vlaneseq
        %v9016 = vshrl.u32 %v9015, 7
        %v9017 = vsub.s32 %v9014, %v9016
        %v9018 = vrot.slane %v9004, %v9017
        %v9019 = vcombine.low %v9011, %v9018
        %9020 = vset.pattern.permute.xlu0 0
        %9021 = vperm.xlu0 %9020, %v5932
        %v9022 = vpop.permute.xlu0 %9021
        %9023 = vset.pattern.permute.xlu0 0
        %9024 = vperm.xlu0 %9023, %v5981
        %v9025 = vpop.permute.xlu0 %9024
        %9026 = vset.pattern.permute.xlu0 0
        %9027 = vperm.xlu0 %9026, %v6030
        %v9028 = vpop.permute.xlu0 %9027
        %9029 = vset.pattern.permute.xlu0 0
        %9030 = vperm.xlu0 %9029, %v6079
        %v9031 = vpop.permute.xlu0 %9030
        %9032 = vset.pattern.permute.xlu0 0
        %9033 = vperm.xlu0 %9032, %v6128
        %v9034 = vpop.permute.xlu0 %9033
        %9035 = vset.pattern.permute.xlu0 0
        %9036 = vperm.xlu0 %9035, %v6177
        %v9037 = vpop.permute.xlu0 %9036
        %9038 = vset.pattern.permute.xlu0 0
        %9039 = vperm.xlu0 %9038, %v6226
        %v9040 = vpop.permute.xlu0 %9039
        %9041 = vset.pattern.permute.xlu0 0
        %9042 = vperm.xlu0 %9041, %v6275
        %v9043 = vpop.permute.xlu0 %9042
        %9044 = vset.pattern.permute.xlu0 0
        %9045 = vperm.xlu0 %9044, %v6324
        %v9046 = vpop.permute.xlu0 %9045
        %9047 = vset.pattern.permute.xlu0 0
        %9048 = vperm.xlu0 %9047, %v6373
        %v9049 = vpop.permute.xlu0 %9048
        %9050 = vset.pattern.permute.xlu0 0
        %9051 = vperm.xlu0 %9050, %v6422
        %v9052 = vpop.permute.xlu0 %9051
        %9053 = vset.pattern.permute.xlu0 0
        %9054 = vperm.xlu0 %9053, %v6471
        %v9055 = vpop.permute.xlu0 %9054
        %9056 = vset.pattern.permute.xlu0 0
        %9057 = vperm.xlu0 %9056, %v6520
        %v9058 = vpop.permute.xlu0 %9057
        %9059 = vset.pattern.permute.xlu0 0
        %9060 = vperm.xlu0 %9059, %v6569
        %v9061 = vpop.permute.xlu0 %9060
        %9062 = vset.pattern.permute.xlu0 0
        %9063 = vperm.xlu0 %9062, %v6618
        %v9064 = vpop.permute.xlu0 %9063
        %9065 = vset.pattern.permute.xlu0 0
        %9066 = vperm.xlu0 %9065, %v6667
        %v9067 = vpop.permute.xlu0 %9066
        %9068 = vset.pattern.permute.xlu0 0
        %9069 = vperm.xlu0 %9068, %v6716
        %v9070 = vpop.permute.xlu0 %9069
        %9071 = vset.pattern.permute.xlu0 0
        %9072 = vperm.xlu0 %9071, %v6765
        %v9073 = vpop.permute.xlu0 %9072
        %9074 = vset.pattern.permute.xlu0 0
        %9075 = vperm.xlu0 %9074, %v6814
        %v9076 = vpop.permute.xlu0 %9075
        %9077 = vset.pattern.permute.xlu0 0
        %9078 = vperm.xlu0 %9077, %v6863
        %v9079 = vpop.permute.xlu0 %9078
        %9080 = vset.pattern.permute.xlu0 0
        %9081 = vperm.xlu0 %9080, %v6912
        %v9082 = vpop.permute.xlu0 %9081
        %9083 = vset.pattern.permute.xlu0 0
        %9084 = vperm.xlu0 %9083, %v6961
        %v9085 = vpop.permute.xlu0 %9084
        %9086 = vset.pattern.permute.xlu0 0
        %9087 = vperm.xlu0 %9086, %v7010
        %v9088 = vpop.permute.xlu0 %9087
        %9089 = vset.pattern.permute.xlu0 0
        %9090 = vperm.xlu0 %9089, %v7059
        %v9091 = vpop.permute.xlu0 %9090
        %9092 = vset.pattern.permute.xlu0 0
        %9093 = vperm.xlu0 %9092, %v7108
        %v9094 = vpop.permute.xlu0 %9093
        %9095 = vset.pattern.permute.xlu0 0
        %9096 = vperm.xlu0 %9095, %v7157
        %v9097 = vpop.permute.xlu0 %9096
        %9098 = vset.pattern.permute.xlu0 0
        %9099 = vperm.xlu0 %9098, %v7206
        %v9100 = vpop.permute.xlu0 %9099
        %9101 = vset.pattern.permute.xlu0 0
        %9102 = vperm.xlu0 %9101, %v7255
        %v9103 = vpop.permute.xlu0 %9102
        %9104 = vset.pattern.permute.xlu0 0
        %9105 = vperm.xlu0 %9104, %v7304
        %v9106 = vpop.permute.xlu0 %9105
        %9107 = vset.pattern.permute.xlu0 0
        %9108 = vperm.xlu0 %9107, %v7353
        %v9109 = vpop.permute.xlu0 %9108
        %9110 = vset.pattern.permute.xlu0 0
        %9111 = vperm.xlu0 %9110, %v7402
        %v9112 = vpop.permute.xlu0 %9111
        %9113 = vset.pattern.permute.xlu0 0
        %9114 = vperm.xlu0 %9113, %v7451
        %v9115 = vpop.permute.xlu0 %9114
        %9116 = vset.pattern.permute.xlu0 0
        %9117 = vperm.xlu0 %9116, %v7500
        %v9118 = vpop.permute.xlu0 %9117
        %9119 = vset.pattern.permute.xlu0 0
        %9120 = vperm.xlu0 %9119, %v7549
        %v9121 = vpop.permute.xlu0 %9120
        %9122 = vset.pattern.permute.xlu0 0
        %9123 = vperm.xlu0 %9122, %v7598
        %v9124 = vpop.permute.xlu0 %9123
        %9125 = vset.pattern.permute.xlu0 0
        %9126 = vperm.xlu0 %9125, %v7647
        %v9127 = vpop.permute.xlu0 %9126
        %9128 = vset.pattern.permute.xlu0 0
        %9129 = vperm.xlu0 %9128, %v7696
        %v9130 = vpop.permute.xlu0 %9129
        %9131 = vset.pattern.permute.xlu0 0
        %9132 = vperm.xlu0 %9131, %v7745
        %v9133 = vpop.permute.xlu0 %9132
        %9134 = vset.pattern.permute.xlu0 0
        %9135 = vperm.xlu0 %9134, %v7794
        %v9136 = vpop.permute.xlu0 %9135
        %9137 = vset.pattern.permute.xlu0 0
        %9138 = vperm.xlu0 %9137, %v7843
        %v9139 = vpop.permute.xlu0 %9138
        %9140 = vset.pattern.permute.xlu0 0
        %9141 = vperm.xlu0 %9140, %v7892
        %v9142 = vpop.permute.xlu0 %9141
        %9143 = vset.pattern.permute.xlu0 0
        %9144 = vperm.xlu0 %9143, %v7941
        %v9145 = vpop.permute.xlu0 %9144
        %9146 = vset.pattern.permute.xlu0 0
        %9147 = vperm.xlu0 %9146, %v7990
        %v9148 = vpop.permute.xlu0 %9147
        %9149 = vset.pattern.permute.xlu0 0
        %9150 = vperm.xlu0 %9149, %v8039
        %v9151 = vpop.permute.xlu0 %9150
        %9152 = vset.pattern.permute.xlu0 0
        %9153 = vperm.xlu0 %9152, %v8088
        %v9154 = vpop.permute.xlu0 %9153
        %9155 = vset.pattern.permute.xlu0 0
        %9156 = vperm.xlu0 %9155, %v8137
        %v9157 = vpop.permute.xlu0 %9156
        %9158 = vset.pattern.permute.xlu0 0
        %9159 = vperm.xlu0 %9158, %v8186
        %v9160 = vpop.permute.xlu0 %9159
        %9161 = vset.pattern.permute.xlu0 0
        %9162 = vperm.xlu0 %9161, %v8235
        %v9163 = vpop.permute.xlu0 %9162
        %9164 = vset.pattern.permute.xlu0 0
        %9165 = vperm.xlu0 %9164, %v8284
        %v9166 = vpop.permute.xlu0 %9165
        %9167 = vset.pattern.permute.xlu0 0
        %9168 = vperm.xlu0 %9167, %v8333
        %v9169 = vpop.permute.xlu0 %9168
        %9170 = vset.pattern.permute.xlu0 0
        %9171 = vperm.xlu0 %9170, %v8382
        %v9172 = vpop.permute.xlu0 %9171
        %9173 = vset.pattern.permute.xlu0 0
        %9174 = vperm.xlu0 %9173, %v8431
        %v9175 = vpop.permute.xlu0 %9174
        %9176 = vset.pattern.permute.xlu0 0
        %9177 = vperm.xlu0 %9176, %v8480
        %v9178 = vpop.permute.xlu0 %9177
        %9179 = vset.pattern.permute.xlu0 0
        %9180 = vperm.xlu0 %9179, %v8529
        %v9181 = vpop.permute.xlu0 %9180
        %9182 = vset.pattern.permute.xlu0 0
        %9183 = vperm.xlu0 %9182, %v8578
        %v9184 = vpop.permute.xlu0 %9183
        %9185 = vset.pattern.permute.xlu0 0
        %9186 = vperm.xlu0 %9185, %v8627
        %v9187 = vpop.permute.xlu0 %9186
        %9188 = vset.pattern.permute.xlu0 0
        %9189 = vperm.xlu0 %9188, %v8676
        %v9190 = vpop.permute.xlu0 %9189
        %9191 = vset.pattern.permute.xlu0 0
        %9192 = vperm.xlu0 %9191, %v8725
        %v9193 = vpop.permute.xlu0 %9192
        %9194 = vset.pattern.permute.xlu0 0
        %9195 = vperm.xlu0 %9194, %v8774
        %v9196 = vpop.permute.xlu0 %9195
        %9197 = vset.pattern.permute.xlu0 0
        %9198 = vperm.xlu0 %9197, %v8823
        %v9199 = vpop.permute.xlu0 %9198
        %9200 = vset.pattern.permute.xlu0 0
        %9201 = vperm.xlu0 %9200, %v8872
        %v9202 = vpop.permute.xlu0 %9201
        %9203 = vset.pattern.permute.xlu0 0
        %9204 = vperm.xlu0 %9203, %v8921
        %v9205 = vpop.permute.xlu0 %9204
        %9206 = vset.pattern.permute.xlu0 0
        %9207 = vperm.xlu0 %9206, %v8970
        %v9208 = vpop.permute.xlu0 %9207
        %9209 = vset.pattern.permute.xlu0 0
        %9210 = vperm.xlu0 %9209, %v9019
        %v9211 = vpop.permute.xlu0 %9210
        %v9212 = vlaneseq
        %v9213 = vand.u32 %v9212, 127
        %v9214 = vlaneseq
        %v9215 = vshrl.u32 %v9214, 7
        %v9216 = vsub.s32 %v9213, %v9215
        %v9217 = vrot.slane %v9022, %v9216
        %v9218 = vadd.s32 %v9213, 4294967288
        %v9219 = vlaneseq
        %v9220 = vshrl.u32 %v9219, 7
        %v9221 = vsub.s32 %v9218, %v9220
        %v9222 = vrot.slane %v9025, %v9221
        %vm9223 = vcmask 130112
        %v9224 = vsel %vm9223, %v9222, %v9217
        %v9225 = vadd.s32 %v9213, 4294967280
        %v9226 = vlaneseq
        %v9227 = vshrl.u32 %v9226, 7
        %v9228 = vsub.s32 %v9225, %v9227
        %v9229 = vrot.slane %v9028, %v9228
        %vm9230 = vcmask 195712
        %v9231 = vsel %vm9230, %v9229, %v9224
        %v9232 = vadd.s32 %v9213, 4294967272
        %v9233 = vlaneseq
        %v9234 = vshrl.u32 %v9233, 7
        %v9235 = vsub.s32 %v9232, %v9234
        %v9236 = vrot.slane %v9031, %v9235
        %vm9237 = vcmask 261312
        %v9238 = vsel %vm9237, %v9236, %v9231
        %v9239 = vadd.s32 %v9213, 4294967264
        %v9240 = vlaneseq
        %v9241 = vshrl.u32 %v9240, 7
        %v9242 = vsub.s32 %v9239, %v9241
        %v9243 = vrot.slane %v9034, %v9242
        %vm9244 = vcmask 326912
        %v9245 = vsel %vm9244, %v9243, %v9238
        %v9246 = vadd.s32 %v9213, 4294967256
        %v9247 = vlaneseq
        %v9248 = vshrl.u32 %v9247, 7
        %v9249 = vsub.s32 %v9246, %v9248
        %v9250 = vrot.slane %v9037, %v9249
        %vm9251 = vcmask 392512
        %v9252 = vsel %vm9251, %v9250, %v9245
        %v9253 = vadd.s32 %v9213, 4294967248
        %v9254 = vlaneseq
        %v9255 = vshrl.u32 %v9254, 7
        %v9256 = vsub.s32 %v9253, %v9255
        %v9257 = vrot.slane %v9040, %v9256
        %vm9258 = vcmask 458112
        %v9259 = vsel %vm9258, %v9257, %v9252
        %v9260 = vadd.s32 %v9213, 4294967240
        %v9261 = vlaneseq
        %v9262 = vshrl.u32 %v9261, 7
        %v9263 = vsub.s32 %v9260, %v9262
        %v9264 = vrot.slane %v9043, %v9263
        %vm9265 = vcmask 523712
        %v9266 = vsel %vm9265, %v9264, %v9259
        %v9267 = vadd.s32 %v9213, 4294967232
        %v9268 = vlaneseq
        %v9269 = vshrl.u32 %v9268, 7
        %v9270 = vsub.s32 %v9267, %v9269
        %v9271 = vrot.slane %v9046, %v9270
        %vm9272 = vcmask 589312
        %v9273 = vsel %vm9272, %v9271, %v9266
        %v9274 = vadd.s32 %v9213, 4294967224
        %v9275 = vlaneseq
        %v9276 = vshrl.u32 %v9275, 7
        %v9277 = vsub.s32 %v9274, %v9276
        %v9278 = vrot.slane %v9049, %v9277
        %vm9279 = vcmask 654912
        %v9280 = vsel %vm9279, %v9278, %v9273
        %v9281 = vadd.s32 %v9213, 4294967216
        %v9282 = vlaneseq
        %v9283 = vshrl.u32 %v9282, 7
        %v9284 = vsub.s32 %v9281, %v9283
        %v9285 = vrot.slane %v9052, %v9284
        %vm9286 = vcmask 720512
        %v9287 = vsel %vm9286, %v9285, %v9280
        %v9288 = vadd.s32 %v9213, 4294967208
        %v9289 = vlaneseq
        %v9290 = vshrl.u32 %v9289, 7
        %v9291 = vsub.s32 %v9288, %v9290
        %v9292 = vrot.slane %v9055, %v9291
        %vm9293 = vcmask 786112
        %v9294 = vsel %vm9293, %v9292, %v9287
        %v9295 = vadd.s32 %v9213, 4294967200
        %v9296 = vlaneseq
        %v9297 = vshrl.u32 %v9296, 7
        %v9298 = vsub.s32 %v9295, %v9297
        %v9299 = vrot.slane %v9058, %v9298
        %vm9300 = vcmask 851712
        %v9301 = vsel %vm9300, %v9299, %v9294
        %v9302 = vadd.s32 %v9213, 4294967192
        %v9303 = vlaneseq
        %v9304 = vshrl.u32 %v9303, 7
        %v9305 = vsub.s32 %v9302, %v9304
        %v9306 = vrot.slane %v9061, %v9305
        %vm9307 = vcmask 917312
        %v9308 = vsel %vm9307, %v9306, %v9301
        %v9309 = vadd.s32 %v9213, 4294967184
        %v9310 = vlaneseq
        %v9311 = vshrl.u32 %v9310, 7
        %v9312 = vsub.s32 %v9309, %v9311
        %v9313 = vrot.slane %v9064, %v9312
        %vm9314 = vcmask 982912
        %v9315 = vsel %vm9314, %v9313, %v9308
        %v9316 = vadd.s32 %v9213, 4294967176
        %v9317 = vlaneseq
        %v9318 = vshrl.u32 %v9317, 7
        %v9319 = vsub.s32 %v9316, %v9318
        %v9320 = vrot.slane %v9067, %v9319
        %vm9321 = vcmask 1048512
        %v9322 = vsel %vm9321, %v9320, %v9315
        %v9323 = vlaneseq
        %v9324 = vshrl.u32 %v9323, 7
        %v9325 = vsub.s32 %v9213, %v9324
        %v9326 = vrot.slane %v9070, %v9325
        %v9327 = vlaneseq
        %v9328 = vshrl.u32 %v9327, 7
        %v9329 = vsub.s32 %v9218, %v9328
        %v9330 = vrot.slane %v9073, %v9329
        %v9331 = vsel %vm9223, %v9330, %v9326
        %v9332 = vlaneseq
        %v9333 = vshrl.u32 %v9332, 7
        %v9334 = vsub.s32 %v9225, %v9333
        %v9335 = vrot.slane %v9076, %v9334
        %v9336 = vsel %vm9230, %v9335, %v9331
        %v9337 = vlaneseq
        %v9338 = vshrl.u32 %v9337, 7
        %v9339 = vsub.s32 %v9232, %v9338
        %v9340 = vrot.slane %v9079, %v9339
        %v9341 = vsel %vm9237, %v9340, %v9336
        %v9342 = vlaneseq
        %v9343 = vshrl.u32 %v9342, 7
        %v9344 = vsub.s32 %v9239, %v9343
        %v9345 = vrot.slane %v9082, %v9344
        %v9346 = vsel %vm9244, %v9345, %v9341
        %v9347 = vlaneseq
        %v9348 = vshrl.u32 %v9347, 7
        %v9349 = vsub.s32 %v9246, %v9348
        %v9350 = vrot.slane %v9085, %v9349
        %v9351 = vsel %vm9251, %v9350, %v9346
        %v9352 = vlaneseq
        %v9353 = vshrl.u32 %v9352, 7
        %v9354 = vsub.s32 %v9253, %v9353
        %v9355 = vrot.slane %v9088, %v9354
        %v9356 = vsel %vm9258, %v9355, %v9351
        %v9357 = vlaneseq
        %v9358 = vshrl.u32 %v9357, 7
        %v9359 = vsub.s32 %v9260, %v9358
        %v9360 = vrot.slane %v9091, %v9359
        %v9361 = vsel %vm9265, %v9360, %v9356
        %v9362 = vlaneseq
        %v9363 = vshrl.u32 %v9362, 7
        %v9364 = vsub.s32 %v9267, %v9363
        %v9365 = vrot.slane %v9094, %v9364
        %v9366 = vsel %vm9272, %v9365, %v9361
        %v9367 = vlaneseq
        %v9368 = vshrl.u32 %v9367, 7
        %v9369 = vsub.s32 %v9274, %v9368
        %v9370 = vrot.slane %v9097, %v9369
        %v9371 = vsel %vm9279, %v9370, %v9366
        %v9372 = vlaneseq
        %v9373 = vshrl.u32 %v9372, 7
        %v9374 = vsub.s32 %v9281, %v9373
        %v9375 = vrot.slane %v9100, %v9374
        %v9376 = vsel %vm9286, %v9375, %v9371
        %v9377 = vlaneseq
        %v9378 = vshrl.u32 %v9377, 7
        %v9379 = vsub.s32 %v9288, %v9378
        %v9380 = vrot.slane %v9103, %v9379
        %v9381 = vsel %vm9293, %v9380, %v9376
        %v9382 = vlaneseq
        %v9383 = vshrl.u32 %v9382, 7
        %v9384 = vsub.s32 %v9295, %v9383
        %v9385 = vrot.slane %v9106, %v9384
        %v9386 = vsel %vm9300, %v9385, %v9381
        %v9387 = vlaneseq
        %v9388 = vshrl.u32 %v9387, 7
        %v9389 = vsub.s32 %v9302, %v9388
        %v9390 = vrot.slane %v9109, %v9389
        %v9391 = vsel %vm9307, %v9390, %v9386
        %v9392 = vlaneseq
        %v9393 = vshrl.u32 %v9392, 7
        %v9394 = vsub.s32 %v9309, %v9393
        %v9395 = vrot.slane %v9112, %v9394
        %v9396 = vsel %vm9314, %v9395, %v9391
        %v9397 = vlaneseq
        %v9398 = vshrl.u32 %v9397, 7
        %v9399 = vsub.s32 %v9316, %v9398
        %v9400 = vrot.slane %v9115, %v9399
        %v9401 = vsel %vm9321, %v9400, %v9396
        %v9402 = vlaneseq
        %v9403 = vshrl.u32 %v9402, 7
        %v9404 = vsub.s32 %v9213, %v9403
        %v9405 = vrot.slane %v9118, %v9404
        %v9406 = vlaneseq
        %v9407 = vshrl.u32 %v9406, 7
        %v9408 = vsub.s32 %v9218, %v9407
        %v9409 = vrot.slane %v9121, %v9408
        %v9410 = vsel %vm9223, %v9409, %v9405
        %v9411 = vlaneseq
        %v9412 = vshrl.u32 %v9411, 7
        %v9413 = vsub.s32 %v9225, %v9412
        %v9414 = vrot.slane %v9124, %v9413
        %v9415 = vsel %vm9230, %v9414, %v9410
        %v9416 = vlaneseq
        %v9417 = vshrl.u32 %v9416, 7
        %v9418 = vsub.s32 %v9232, %v9417
        %v9419 = vrot.slane %v9127, %v9418
        %v9420 = vsel %vm9237, %v9419, %v9415
        %v9421 = vlaneseq
        %v9422 = vshrl.u32 %v9421, 7
        %v9423 = vsub.s32 %v9239, %v9422
        %v9424 = vrot.slane %v9130, %v9423
        %v9425 = vsel %vm9244, %v9424, %v9420
        %v9426 = vlaneseq
        %v9427 = vshrl.u32 %v9426, 7
        %v9428 = vsub.s32 %v9246, %v9427
        %v9429 = vrot.slane %v9133, %v9428
        %v9430 = vsel %vm9251, %v9429, %v9425
        %v9431 = vlaneseq
        %v9432 = vshrl.u32 %v9431, 7
        %v9433 = vsub.s32 %v9253, %v9432
        %v9434 = vrot.slane %v9136, %v9433
        %v9435 = vsel %vm9258, %v9434, %v9430
        %v9436 = vlaneseq
        %v9437 = vshrl.u32 %v9436, 7
        %v9438 = vsub.s32 %v9260, %v9437
        %v9439 = vrot.slane %v9139, %v9438
        %v9440 = vsel %vm9265, %v9439, %v9435
        %v9441 = vlaneseq
        %v9442 = vshrl.u32 %v9441, 7
        %v9443 = vsub.s32 %v9267, %v9442
        %v9444 = vrot.slane %v9142, %v9443
        %v9445 = vsel %vm9272, %v9444, %v9440
        %v9446 = vlaneseq
        %v9447 = vshrl.u32 %v9446, 7
        %v9448 = vsub.s32 %v9274, %v9447
        %v9449 = vrot.slane %v9145, %v9448
        %v9450 = vsel %vm9279, %v9449, %v9445
        %v9451 = vlaneseq
        %v9452 = vshrl.u32 %v9451, 7
        %v9453 = vsub.s32 %v9281, %v9452
        %v9454 = vrot.slane %v9148, %v9453
        %v9455 = vsel %vm9286, %v9454, %v9450
        %v9456 = vlaneseq
        %v9457 = vshrl.u32 %v9456, 7
        %v9458 = vsub.s32 %v9288, %v9457
        %v9459 = vrot.slane %v9151, %v9458
        %v9460 = vsel %vm9293, %v9459, %v9455
        %v9461 = vlaneseq
        %v9462 = vshrl.u32 %v9461, 7
        %v9463 = vsub.s32 %v9295, %v9462
        %v9464 = vrot.slane %v9154, %v9463
        %v9465 = vsel %vm9300, %v9464, %v9460
        %v9466 = vlaneseq
        %v9467 = vshrl.u32 %v9466, 7
        %v9468 = vsub.s32 %v9302, %v9467
        %v9469 = vrot.slane %v9157, %v9468
        %v9470 = vsel %vm9307, %v9469, %v9465
        %v9471 = vlaneseq
        %v9472 = vshrl.u32 %v9471, 7
        %v9473 = vsub.s32 %v9309, %v9472
        %v9474 = vrot.slane %v9160, %v9473
        %v9475 = vsel %vm9314, %v9474, %v9470
        %v9476 = vlaneseq
        %v9477 = vshrl.u32 %v9476, 7
        %v9478 = vsub.s32 %v9316, %v9477
        %v9479 = vrot.slane %v9163, %v9478
        %v9480 = vsel %vm9321, %v9479, %v9475
        %v9481 = vlaneseq
        %v9482 = vshrl.u32 %v9481, 7
        %v9483 = vsub.s32 %v9213, %v9482
        %v9484 = vrot.slane %v9166, %v9483
        %v9485 = vlaneseq
        %v9486 = vshrl.u32 %v9485, 7
        %v9487 = vsub.s32 %v9218, %v9486
        %v9488 = vrot.slane %v9169, %v9487
        %v9489 = vsel %vm9223, %v9488, %v9484
        %v9490 = vlaneseq
        %v9491 = vshrl.u32 %v9490, 7
        %v9492 = vsub.s32 %v9225, %v9491
        %v9493 = vrot.slane %v9172, %v9492
        %v9494 = vsel %vm9230, %v9493, %v9489
        %v9495 = vlaneseq
        %v9496 = vshrl.u32 %v9495, 7
        %v9497 = vsub.s32 %v9232, %v9496
        %v9498 = vrot.slane %v9175, %v9497
        %v9499 = vsel %vm9237, %v9498, %v9494
        %v9500 = vlaneseq
        %v9501 = vshrl.u32 %v9500, 7
        %v9502 = vsub.s32 %v9239, %v9501
        %v9503 = vrot.slane %v9178, %v9502
        %v9504 = vsel %vm9244, %v9503, %v9499
        %v9505 = vlaneseq
        %v9506 = vshrl.u32 %v9505, 7
        %v9507 = vsub.s32 %v9246, %v9506
        %v9508 = vrot.slane %v9181, %v9507
        %v9509 = vsel %vm9251, %v9508, %v9504
        %v9510 = vlaneseq
        %v9511 = vshrl.u32 %v9510, 7
        %v9512 = vsub.s32 %v9253, %v9511
        %v9513 = vrot.slane %v9184, %v9512
        %v9514 = vsel %vm9258, %v9513, %v9509
        %v9515 = vlaneseq
        %v9516 = vshrl.u32 %v9515, 7
        %v9517 = vsub.s32 %v9260, %v9516
        %v9518 = vrot.slane %v9187, %v9517
        %v9519 = vsel %vm9265, %v9518, %v9514
        %v9520 = vlaneseq
        %v9521 = vshrl.u32 %v9520, 7
        %v9522 = vsub.s32 %v9267, %v9521
        %v9523 = vrot.slane %v9190, %v9522
        %v9524 = vsel %vm9272, %v9523, %v9519
        %v9525 = vlaneseq
        %v9526 = vshrl.u32 %v9525, 7
        %v9527 = vsub.s32 %v9274, %v9526
        %v9528 = vrot.slane %v9193, %v9527
        %v9529 = vsel %vm9279, %v9528, %v9524
        %v9530 = vlaneseq
        %v9531 = vshrl.u32 %v9530, 7
        %v9532 = vsub.s32 %v9281, %v9531
        %v9533 = vrot.slane %v9196, %v9532
        %v9534 = vsel %vm9286, %v9533, %v9529
        %v9535 = vlaneseq
        %v9536 = vshrl.u32 %v9535, 7
        %v9537 = vsub.s32 %v9288, %v9536
        %v9538 = vrot.slane %v9199, %v9537
        %v9539 = vsel %vm9293, %v9538, %v9534
        %v9540 = vlaneseq
        %v9541 = vshrl.u32 %v9540, 7
        %v9542 = vsub.s32 %v9295, %v9541
        %v9543 = vrot.slane %v9202, %v9542
        %v9544 = vsel %vm9300, %v9543, %v9539
        %v9545 = vlaneseq
        %v9546 = vshrl.u32 %v9545, 7
        %v9547 = vsub.s32 %v9302, %v9546
        %v9548 = vrot.slane %v9205, %v9547
        %v9549 = vsel %vm9307, %v9548, %v9544
        %v9550 = vlaneseq
        %v9551 = vshrl.u32 %v9550, 7
        %v9552 = vsub.s32 %v9309, %v9551
        %v9553 = vrot.slane %v9208, %v9552
        %v9554 = vsel %vm9314, %v9553, %v9549
        %v9555 = vlaneseq
        %v9556 = vshrl.u32 %v9555, 7
        %v9557 = vsub.s32 %v9316, %v9556
        %v9558 = vrot.slane %v9211, %v9557
        %v9559 = vsel %vm9321, %v9558, %v9554
        %v9560 = vcombine.low %v9322, %v9401
        %v9561 = vcombine.low %v9480, %v9559
        %v9563 = vunpack.c.l.s4 1966171168
        %v9564 = vunpack.c.0.s8 %v9563
        %v9565 = vlaneseq
        %v9566 = vshrl.u32 %v9565, 7
        %v9567 = vsub.s32 %v9564, %v9566
        %v9568 = vrot.slane %v9560, %v9567
        %v9570 = vunpack.c.l.s4 1966171168
        %v9571 = vunpack.c.0.s8 %v9570
        %v9572 = vlaneseq
        %v9573 = vshrl.u32 %v9572, 7
        %v9574 = vsub.s32 %v9571, %v9573
        %v9575 = vrot.slane %v9561, %v9574
        %v9576 = vcombine.low %v9568, %v9575
        %v9578 = vunpack.c.l.s4 1966171168
        %v9579 = vunpack.c.0.s8 %v9578
        %v9580 = vlaneseq
        %v9581 = vshrl.u32 %v9580, 7
        %v9582 = vsub.s32 %v9579, %v9581
        %v9583 = vrot.slane %v9576, %v9582
        %v9585 = vlaneseq
        %vm9586 = vcmp.ge.s32.totalorder %v9585, 0
        %vm9587 = vcmp.lt.s32.totalorder %v9585, 512
        %vm9588 = vmand %vm9586, %vm9587
        %9589 = vst.msk [vmem:[%s467] sm:$0xf] %vm9588, %v9583
        %s9590 = sand.u32 %s324, 1
        %s9591 = scalar_lea.sflag [#allocation4], %s9590
        %s9592 = sand.u32 %s324, 1
        %s9593 = smul.addr %s9592, 4
        %s9594 = scalar_lea.vmem [#allocation3], %s9593
        // Predicated region
        $region73: #{hybrid_ncf_forward.1} parent=71 // pred_check
          %p9595 = pneg %p334
        $region74: #{hybrid_ncf_forward.1} parent=71 // pred_check_branch
          %9597 = sbr.rel (%p9595) target = $region76
        $region75: #{hybrid_ncf_forward.1} parent=71 // pred_region
          %s9598 = smul.u32 4, %s28
          %s9600 = ssub.s32 64, 64
          %9601 = vsyncadd %s9591, %s9600
          %s9602 = smul.addr %s9598, 16
          %s9603 = scalar_lea.hbm %s13, %s9602
          %s9605 = sshll.u32 %s9594, 4
          %s9606 = int_to_ptr.vmem [resolvable:$true] %s9605
          %9608 = dma.vmem_to_hbm [thread:$0]  %s9606, 64, %s9603, %s9591
        $region76: #{hybrid_ncf_forward.1} parent=71 // pred_fallthru
          _
      $region72: #{hybrid_ncf_forward.1} parent=5 // pred_fallthru
        _
      %p9609 = scmp.le.s32.totalorder 2, %s23
      // Predicated region
      $region77: #{hybrid_ncf_forward.1} parent=5 // pred_check
        %p9610 = pneg %p9609
      $region78: #{hybrid_ncf_forward.1} parent=5 // pred_check_branch
        %9612 = sbr.rel (%p9610) target = $region80
      $region79: #{hybrid_ncf_forward.1} parent=5 // pred_region
        %s9613 = ssub.s32 %s23, 2
        // Predicated region
        $region81: #{hybrid_ncf_forward.1} parent=79 // pred_check
          %p9614 = pneg %p340
        $region82: #{hybrid_ncf_forward.1} parent=79 // pred_check_branch
          %9616 = sbr.rel (%p9614) target = $region84
        $region83: #{hybrid_ncf_forward.1} parent=79 // pred_region
          %s9617 = sand.u32 %s325, 1
          %s9618 = scalar_lea.sflag [#allocation4], %s9617
          %s9619 = sand.u32 %s325, 1
          %s9620 = smul.addr %s9619, 4
          %s9621 = scalar_lea.vmem [#allocation3], %s9620
          %9622 = dma.done %s9618, 64
        $region84: #{hybrid_ncf_forward.1} parent=79 // pred_fallthru
          _
      $region80: #{hybrid_ncf_forward.1} parent=5 // pred_fallthru
        _
    $region6: #{hybrid_ncf_forward.1} parent=1 // loop_footer
      %s27 = sadd.s32 1, %s23
    $region7: #{hybrid_ncf_forward.1} parent=1 // loop_footer_branch
      %22 = sbr.rel target = $region3
    $region8: #{hybrid_ncf_forward.1} parent=1 // loop_exit
      _
    %9623 = vsyncpa [#allocation4], 1
    %s9624 = scalar_lea.sflag [#allocation4], 1
    %9625 = vsyncpa %s9624, 1

</llo_original>
